<compile_context>
chip_gen: v7x
topology: tpu7x:2x2x1
jax: 0.10.0
libtpu: 0.0.40
codegen_flags: <defaults>
</compile_context>

<pallas_src>
import math

import numpy as np
import jax
import jax.numpy as jnp
from jax.experimental import pallas as pl
from jax.experimental.pallas import tpu as pltpu

# ----------------------------- configuration (small shapes) -----------------------------
INPUT_DIM = 12       # input_dim = 12 in the reference script
D_MODEL = 32
NHEAD = 4
HEAD_DIM = D_MODEL // NHEAD
NUM_ENC_LAYERS = 2
NUM_DEC_LAYERS = 2
DIM_FF = 64
DEC_SEQ_LEN = 4      # small stand-in for dec_seq_len=500
OUT_SEQ_LEN = 1
FC1_DIM = 128        # fc1 = nn.Linear(d_model, 128)
SEQ = 8
BATCH = 2
LN_EPS = 1e-5
PE_MAX_LEN = 64      # original max_len=5000; only the first `batch` rows are ever read
NEG_INF = -1e9

# --------------------- index registries shared by the packer and the kernel ----------------
ATTN_NAMES = tuple(
    [f'enc{l}.sa' for l in range(NUM_ENC_LAYERS)]
    + [name for l in range(NUM_DEC_LAYERS) for name in (f'dec{l}.sa', f'dec{l}.ca')]
)
ATTN_IDX = {n: i for i, n in enumerate(ATTN_NAMES)}
N_ATTN = len(ATTN_NAMES)

FF_NAMES = tuple([f'enc{l}' for l in range(NUM_ENC_LAYERS)]
                 + [f'dec{l}' for l in range(NUM_DEC_LAYERS)])
FF_IDX = {n: i for i, n in enumerate(FF_NAMES)}
N_FF = len(FF_NAMES)


def _make_vec32_names():
    names = ['enc_in_b', 'dec_in_b']
    names += [f'attn_out_b{i}' for i in range(N_ATTN)]
    for l in range(NUM_ENC_LAYERS):
        names += [f'enc{l}.norm1_g', f'enc{l}.norm1_b', f'enc{l}.norm2_g', f'enc{l}.norm2_b']
    for l in range(NUM_DEC_LAYERS):
        names += [f'dec{l}.norm1_g', f'dec{l}.norm1_b', f'dec{l}.norm2_g',
                  f'dec{l}.norm2_b', f'dec{l}.norm3_g', f'dec{l}.norm3_b']
    names += [f'ff2_b{i}' for i in range(N_FF)]
    names += ['enc_norm_g', 'enc_norm_b', 'dec_norm_g', 'dec_norm_b']
    return tuple(names)


VEC32_NAMES = _make_vec32_names()
VEC32_IDX = {n: i for i, n in enumerate(VEC32_NAMES)}


# ----------------------------------- fused Pallas kernel -----------------------------------
def _fused_kernel(x_enc_ref, x_dec_ref, pe_ref,
                  mask_ee_ref, mask_dd_ref, mask_de_ref,
                  in_proj_w_ref, q_w_ref, q_b_ref, kv_w_ref, kv_b_ref, attn_out_w_ref,
                  ff1_w_ref, ff1_b_ref, ff2_w_ref, vec32_ref,
                  fc1_w_ref, fc1_b_ref, fc2_w_ref, fc2_b_ref,
                  out_ref):
    f32 = jnp.float32

    def vrow(name):                                   # (1, D_MODEL) parameter row
        return vec32_ref[VEC32_IDX[name]]

    def matmul(a, b):
        return jnp.dot(a, b, preferred_element_type=f32)

    def layer_norm(y, gname, bname):
        mean = jnp.mean(y, axis=-1, keepdims=True)
        cen = y - mean
        var = jnp.mean(cen * cen, axis=-1, keepdims=True)
        return cen * jax.lax.rsqrt(var + LN_EPS) * vrow(gname) + vrow(bname)

    scale = 1.0 / math.sqrt(float(HEAD_DIM))          # PyTorch MHA: q * head_dim ** -0.5

    def mha(xq, xkv, mask, aname):
        """nn.MultiheadAttention (no mask/dropout) for ALL batch rows at once.

        xq:  (BATCH*lq, d)  batch-major rows.   xkv: (BATCH*lk, d).
        `mask` is an additive (BATCH*lq, BATCH*lk) block-diagonal mask that prevents
        attention across different batch elements.
        """
        ai = ATTN_IDX[aname]
        # Merged projections: one matmul for Q, one for K|V.
        q = (matmul(xq, q_w_ref[ai]) + q_b_ref[ai]) * scale          # (rows_q, d)
        kv = matmul(xkv, kv_w_ref[ai]) + kv_b_ref[ai]                 # (rows_k, 2d)
        ctx_heads = []
        for h in range(NHEAD):                                        # static lane slices
            qh = q[:, h * HEAD_DIM:(h + 1) * HEAD_DIM]                # (rows_q, dh)
            kh = kv[:, h * HEAD_DIM:(h + 1) * HEAD_DIM]               # (rows_k, dh)
            vh = kv[:, D_MODEL + h * HEAD_DIM:D_MODEL + (h + 1) * HEAD_DIM]
            s = jax.lax.dot_general(qh, kh, (((1,), (1,)), ((), ())),
                                    preferred_element_type=f32) + mask  # (rows_q, rows_k)
            m = jnp.max(s, axis=-1, keepdims=True)
            p = jnp.exp(s - m)
            p = p * pl.reciprocal(jnp.sum(p, axis=-1, keepdims=True), approx=True)
            ctx_heads.append(matmul(p, vh))                           # (rows_q, dh)
        ctx = jnp.concatenate(ctx_heads, axis=-1)                     # (rows_q, d)
        return matmul(ctx, attn_out_w_ref[ai]) + vrow(f'attn_out_b{ai}')

    def feed_forward(y, fname):
        fi = FF_IDX[fname]
        hdn = jnp.maximum(matmul(y, ff1_w_ref[fi]) + ff1_b_ref[fi], 0.0)
        return matmul(hdn, ff2_w_ref[fi]) + vrow(f'ff2_b{fi}')

    mask_ee = mask_ee_ref[...]        # encoder self-attn   (B*SEQ, B*SEQ)
    mask_dd = mask_dd_ref[...]        # decoder self-attn   (B*DEC, B*DEC)
    mask_de = mask_de_ref[...]        # decoder cross-attn  (B*DEC, B*SEQ)

    # ---- input embeddings (PE add fused into the encoder input projection epilogue) ----
    enc = matmul(x_enc_ref[...], in_proj_w_ref[0]) + vrow('enc_in_b') + pe_ref[...]
    dec = matmul(x_dec_ref[...], in_proj_w_ref[1]) + vrow('dec_in_b')

    # ---- encoder stack (post-norm) + final encoder LayerNorm ----
    mem = enc
    for l in range(NUM_ENC_LAYERS):
        a = mha(mem, mem, mask_ee, f'enc{l}.sa')
        mem = layer_norm(mem + a, f'enc{l}.norm1_g', f'enc{l}.norm1_b')
        ff = feed_forward(mem, f'enc{l}')
        mem = layer_norm(mem + ff, f'enc{l}.norm2_g', f'enc{l}.norm2_b')
    mem = layer_norm(mem, 'enc_norm_g', 'enc_norm_b')

    # ---- decoder stack (post-norm) + final decoder LayerNorm ----
    out = dec
    for l in range(NUM_DEC_LAYERS):
        a = mha(out, out, mask_dd, f'dec{l}.sa')
        out = layer_norm(out + a, f'dec{l}.norm1_g', f'dec{l}.norm1_b')
        a2 = mha(out, mem, mask_de, f'dec{l}.ca')
        out = layer_norm(out + a2, f'dec{l}.norm2_g', f'dec{l}.norm2_b')
        ff = feed_forward(out, f'dec{l}')
        out = layer_norm(out + ff, f'dec{l}.norm3_g', f'dec{l}.norm3_b')
    out = layer_norm(out, 'dec_norm_g', 'dec_norm_b')

    # ---- output head: ReLU(fc1) -> fc2 ----
    h = jnp.maximum(matmul(out, fc1_w_ref[...]) + fc1_b_ref[...], 0.0)
    out_ref[...] = matmul(h, fc2_w_ref[...]) + fc2_b_ref[...]


# ------------------------------------ parameter packing ------------------------------------
def _block_diag_mask(lq, lk):
    """Additive mask: 0 inside the same batch element's block, -1e9 across batches."""
    m = np.full((BATCH * lq, BATCH * lk), NEG_INF, np.float32)
    for b in range(BATCH):
        m[b * lq:(b + 1) * lq, b * lk:(b + 1) * lk] = 0.0
    return jnp.asarray(m)


def pack_params(params):
    """Pre-transpose and pack all weights into a few dense arrays (done once, on host)."""
    T = lambda w: jnp.transpose(w).astype(jnp.float32)

    attn_ps = [params['enc_layers'][l]['self_attn'] for l in range(NUM_ENC_LAYERS)]
    for l in range(NUM_DEC_LAYERS):
        attn_ps.append(params['dec_layers'][l]['self_attn'])
        attn_ps.append(params['dec_layers'][l]['cross_attn'])
    assert len(attn_ps) == N_ATTN

    # Merged projections (pre-transposed so activations left-multiply):
    #   q  = x @ q_w[a]  + q_b[a]    -> (rows, d)
    #   kv = x @ kv_w[a] + kv_b[a]   -> (rows, 2d);  kv[:, :d] = K, kv[:, d:] = V
    q_w = jnp.stack([T(p['in_w'][:D_MODEL]) for p in attn_ps])            # (6, 32, 32)
    kv_w = jnp.stack([T(p['in_w'][D_MODEL:]) for p in attn_ps])           # (6, 32, 64)
    q_b = jnp.stack([p['in_b'][:D_MODEL].reshape(1, D_MODEL)
                     for p in attn_ps]).astype(jnp.float32)               # (6, 1, 32)
    kv_b = jnp.stack([p['in_b'][D_MODEL:].reshape(1, 2 * D_MODEL)
                      for p in attn_ps]).astype(jnp.float32)              # (6, 1, 64)
    attn_out_w = jnp.stack([T(p['out_w']) for p in attn_ps])              # (6, 32, 32)

    ff_ps = ([params['enc_layers'][l] for l in range(NUM_ENC_LAYERS)]
             + [params['dec_layers'][l] for l in range(NUM_DEC_LAYERS)])
    ff1_w = jnp.stack([T(p['lin1_w']) for p in ff_ps])                    # (4, 32, 64)
    ff1_b = jnp.stack([p['lin1_b'].reshape(1, DIM_FF)
                       for p in ff_ps]).astype(jnp.float32)               # (4, 1, 64)
    ff2_w = jnp.stack([T(p['lin2_w']) for p in ff_ps])                    # (4, 64, 32)

    v = {'enc_in_b': params['enc_in_b'], 'dec_in_b': params['dec_in_b']}
    for i, p in enumerate(attn_ps):
        v[f'attn_out_b{i}'] = p['out_b']
    for l in range(NUM_ENC_LAYERS):
        lp = params['enc_layers'][l]
        for n in ('norm1_g', 'norm1_b', 'norm2_g', 'norm2_b'):
            v[f'enc{l}.{n}'] = lp[n]
    for l in range(NUM_DEC_LAYERS):
        lp = params['dec_layers'][l]
        for n in ('norm1_g', 'norm1_b', 'norm2_g', 'norm2_b', 'norm3_g', 'norm3_b'):
            v[f'dec{l}.{n}'] = lp[n]
    for i, p in enumerate(ff_ps):
        v[f'ff2_b{i}'] = p['lin2_b']
    for n in ('enc_norm_g', 'enc_norm_b', 'dec_norm_g', 'dec_norm_b'):
        v[n] = params[n]
    vec32 = jnp.stack([v[n].reshape(1, D_MODEL) for n in VEC32_NAMES]).astype(jnp.float32)

    # Reference PE quirk: pe[:batch] broadcast over the sequence axis.
    pe_rows = jnp.broadcast_to(params['pe'][:BATCH][:, None, :],
                               (BATCH, SEQ, D_MODEL)).reshape(BATCH * SEQ, D_MODEL)

    return dict(
        pe_rows=pe_rows.astype(jnp.float32),
        mask_ee=_block_diag_mask(SEQ, SEQ),
        mask_dd=_block_diag_mask(DEC_SEQ_LEN, DEC_SEQ_LEN),
        mask_de=_block_diag_mask(DEC_SEQ_LEN, SEQ),
        in_proj_w=jnp.stack([T(params['enc_in_w']), T(params['dec_in_w'])]),  # (2, 12, 32)
        q_w=q_w.astype(jnp.float32), q_b=q_b,
        kv_w=kv_w.astype(jnp.float32), kv_b=kv_b,
        attn_out_w=attn_out_w.astype(jnp.float32),
        ff1_w=ff1_w.astype(jnp.float32), ff1_b=ff1_b,
        ff2_w=ff2_w.astype(jnp.float32),
        vec32=vec32,                                  # (36, 1, 32)
        fc1_w=T(params['fc1_w']),
        fc1_b=params['fc1_b'].reshape(1, FC1_DIM).astype(jnp.float32),
        fc2_w=T(params['fc2_w']),
        fc2_b=params['fc2_b'].reshape(1, OUT_SEQ_LEN).astype(jnp.float32),
    )


# --------------------------------------- forward pass ---------------------------------------
def transformer_ts_forward(packed, x):
    """x: (SEQ, INPUT_DIM, BATCH) float32 -> (DEC_SEQ_LEN, BATCH, OUT_SEQ_LEN)."""
    xt = jnp.transpose(x, (2, 0, 1)).astype(jnp.float32)                 # (B, S, input_dim)
    x_enc = xt.reshape(BATCH * SEQ, INPUT_DIM)
    x_dec = xt[:, SEQ - DEC_SEQ_LEN:, :].reshape(BATCH * DEC_SEQ_LEN, INPUT_DIM)

    inputs = [
        x_enc, x_dec, packed['pe_rows'],
        packed['mask_ee'], packed['mask_dd'], packed['mask_de'],
        packed['in_proj_w'], packed['q_w'], packed['q_b'],
        packed['kv_w'], packed['kv_b'], packed['attn_out_w'],
        packed['ff1_w'], packed['ff1_b'], packed['ff2_w'], packed['vec32'],
        packed['fc1_w'], packed['fc1_b'], packed['fc2_w'], packed['fc2_b'],
    ]

    def full_spec(shape):
        nd = len(shape)
        return pl.BlockSpec(shape, lambda i, _nd=nd: (0,) * _nd)

    y2 = pl.pallas_call(
        _fused_kernel,
        grid=(1,),
        in_specs=[full_spec(a.shape) for a in inputs],
        out_specs=full_spec((BATCH * DEC_SEQ_LEN, OUT_SEQ_LEN)),
        out_shape=jax.ShapeDtypeStruct((BATCH * DEC_SEQ_LEN, OUT_SEQ_LEN), jnp.float32),
        compiler_params=pltpu.CompilerParams(dimension_semantics=("arbitrary",)),
    )(*inputs)

    # rows are (batch, dec_pos) batch-major -> (DEC_SEQ_LEN, BATCH, OUT_SEQ_LEN)
    return jnp.transpose(y2.reshape(BATCH, DEC_SEQ_LEN, OUT_SEQ_LEN), (1, 0, 2))


# -------------------------------- deterministic parameters --------------------------------
def make_positional_encoding(d_model, max_len):
    position = jnp.arange(max_len, dtype=jnp.float32)[:, None]
    div_term = jnp.exp(
        jnp.arange(0, d_model, 2, dtype=jnp.float32) * (-math.log(10000.0) / d_model)
    )
    pe = jnp.zeros((max_len, d_model), jnp.float32)
    pe = pe.at[:, 0::2].set(jnp.sin(position * div_term))
    pe = pe.at[:, 1::2].set(jnp.cos(position * div_term))
    return pe


def init_params(key):
    keys = iter(jax.random.split(key, 512))

    def w(shape, scale=0.05):
        return scale * jax.random.normal(next(keys), shape, dtype=jnp.float32)

    zeros = lambda shape: jnp.zeros(shape, jnp.float32)
    ones = lambda shape: jnp.ones(shape, jnp.float32)

    def attn_params():
        return dict(
            in_w=w((3 * D_MODEL, D_MODEL)), in_b=zeros((3 * D_MODEL,)),
            out_w=w((D_MODEL, D_MODEL)), out_b=zeros((D_MODEL,)),
        )

    def enc_layer_params():
        return dict(
            self_attn=attn_params(),
            lin1_w=w((DIM_FF, D_MODEL)), lin1_b=zeros((DIM_FF,)),
            lin2_w=w((D_MODEL, DIM_FF)), lin2_b=zeros((D_MODEL,)),
            norm1_g=ones((D_MODEL,)), norm1_b=zeros((D_MODEL,)),
            norm2_g=ones((D_MODEL,)), norm2_b=zeros((D_MODEL,)),
        )

    def dec_layer_params():
        p = enc_layer_params()
        p['cross_attn'] = attn_params()
        p['norm3_g'] = ones((D_MODEL,))
        p['norm3_b'] = zeros((D_MODEL,))
        return p

    return dict(
        pe=make_positional_encoding(D_MODEL, PE_MAX_LEN),
        enc_in_w=w((D_MODEL, INPUT_DIM)), enc_in_b=zeros((D_MODEL,)),
        dec_in_w=w((D_MODEL, INPUT_DIM)), dec_in_b=zeros((D_MODEL,)),
        enc_layers=[enc_layer_params() for _ in range(NUM_ENC_LAYERS)],
        dec_layers=[dec_layer_params() for _ in range(NUM_DEC_LAYERS)],
        enc_norm_g=ones((D_MODEL,)), enc_norm_b=zeros((D_MODEL,)),
        dec_norm_g=ones((D_MODEL,)), dec_norm_b=zeros((D_MODEL,)),
        fc1_w=w((FC1_DIM, D_MODEL)), fc1_b=zeros((FC1_DIM,)),
        fc2_w=w((OUT_SEQ_LEN, FC1_DIM)), fc2_b=zeros((OUT_SEQ_LEN,)),
        # out_fc is defined in __init__ but unused in forward(); omitted.
    )


# --------------------------------------- entry point ---------------------------------------
if __name__ == "__main__":
    root = jax.random.PRNGKey(0)
    pkey, xkey = jax.random.split(root)
    params = init_params(pkey)
    packed = pack_params(params)        # host-side, one-time packing/transposition

    # input layout: (seq_len, input_dim, batch) — see layout comment at top of file.
    x = jax.random.normal(xkey, (SEQ, INPUT_DIM, BATCH), dtype=jnp.float32)

    fwd = jax.jit(transformer_ts_forward)
    y = fwd(packed, x)
    jax.block_until_ready(y)

    assert y.shape == (DEC_SEQ_LEN, BATCH, OUT_SEQ_LEN), y.shape
    assert bool(jnp.all(jnp.isfinite(y)))
    print("KERNEL_OK")
</pallas_src>

<mosaic_0001>
module attributes {stable_mosaic.version = 11 : i64} {
  func.func @_fused_kernel(%arg0: i32, %arg1: memref<16x12xf32, #tpu.memory_space<vmem>>, %arg2: memref<8x12xf32, #tpu.memory_space<vmem>>, %arg3: memref<16x32xf32, #tpu.memory_space<vmem>>, %arg4: memref<16x16xf32, #tpu.memory_space<vmem>>, %arg5: memref<8x8xf32, #tpu.memory_space<vmem>>, %arg6: memref<8x16xf32, #tpu.memory_space<vmem>>, %arg7: memref<2x12x32xf32, #tpu.memory_space<vmem>>, %arg8: memref<6x32x32xf32, #tpu.memory_space<vmem>>, %arg9: memref<6x1x32xf32, #tpu.memory_space<vmem>>, %arg10: memref<6x32x64xf32, #tpu.memory_space<vmem>>, %arg11: memref<6x1x64xf32, #tpu.memory_space<vmem>>, %arg12: memref<6x32x32xf32, #tpu.memory_space<vmem>>, %arg13: memref<4x32x64xf32, #tpu.memory_space<vmem>>, %arg14: memref<4x1x64xf32, #tpu.memory_space<vmem>>, %arg15: memref<4x64x32xf32, #tpu.memory_space<vmem>>, %arg16: memref<36x1x32xf32, #tpu.memory_space<vmem>>, %arg17: memref<32x128xf32, #tpu.memory_space<vmem>>, %arg18: memref<1x128xf32, #tpu.memory_space<vmem>>, %arg19: memref<128x1xf32, #tpu.memory_space<vmem>>, %arg20: memref<1x1xf32, #tpu.memory_space<vmem>>, %arg21: memref<8x1xf32, #tpu.memory_space<vmem>>) attributes {dimension_semantics = [#tpu.dimension_semantics<arbitrary>], iteration_bounds = array<i64: 1>, scalar_prefetch = 0 : i64, scratch_operands = 0 : i64, tpu.core_type = #tpu.core_type<tc>, window_params = [{pipeline_mode = #tpu.pipeline_mode<synchronous>, transform_indices = @transform_0, window_bounds = array<i64: 16, 12>}, {pipeline_mode = #tpu.pipeline_mode<synchronous>, transform_indices = @transform_1, window_bounds = array<i64: 8, 12>}, {pipeline_mode = #tpu.pipeline_mode<synchronous>, transform_indices = @transform_2, window_bounds = array<i64: 16, 32>}, {pipeline_mode = #tpu.pipeline_mode<synchronous>, transform_indices = @transform_3, window_bounds = array<i64: 16, 16>}, {pipeline_mode = #tpu.pipeline_mode<synchronous>, transform_indices = @transform_4, window_bounds = array<i64: 8, 8>}, {pipeline_mode = #tpu.pipeline_mode<synchronous>, transform_indices = @transform_5, window_bounds = array<i64: 8, 16>}, {pipeline_mode = #tpu.pipeline_mode<synchronous>, transform_indices = @transform_6, window_bounds = array<i64: 2, 12, 32>}, {pipeline_mode = #tpu.pipeline_mode<synchronous>, transform_indices = @transform_7, window_bounds = array<i64: 6, 32, 32>}, {pipeline_mode = #tpu.pipeline_mode<synchronous>, transform_indices = @transform_8, window_bounds = array<i64: 6, 1, 32>}, {pipeline_mode = #tpu.pipeline_mode<synchronous>, transform_indices = @transform_9, window_bounds = array<i64: 6, 32, 64>}, {pipeline_mode = #tpu.pipeline_mode<synchronous>, transform_indices = @transform_10, window_bounds = array<i64: 6, 1, 64>}, {pipeline_mode = #tpu.pipeline_mode<synchronous>, transform_indices = @transform_11, window_bounds = array<i64: 6, 32, 32>}, {pipeline_mode = #tpu.pipeline_mode<synchronous>, transform_indices = @transform_12, window_bounds = array<i64: 4, 32, 64>}, {pipeline_mode = #tpu.pipeline_mode<synchronous>, transform_indices = @transform_13, window_bounds = array<i64: 4, 1, 64>}, {pipeline_mode = #tpu.pipeline_mode<synchronous>, transform_indices = @transform_14, window_bounds = array<i64: 4, 64, 32>}, {pipeline_mode = #tpu.pipeline_mode<synchronous>, transform_indices = @transform_15, window_bounds = array<i64: 36, 1, 32>}, {pipeline_mode = #tpu.pipeline_mode<synchronous>, transform_indices = @transform_16, window_bounds = array<i64: 32, 128>}, {pipeline_mode = #tpu.pipeline_mode<synchronous>, transform_indices = @transform_17, window_bounds = array<i64: 1, 128>}, {pipeline_mode = #tpu.pipeline_mode<synchronous>, transform_indices = @transform_18, window_bounds = array<i64: 128, 1>}, {pipeline_mode = #tpu.pipeline_mode<synchronous>, transform_indices = @transform_19, window_bounds = array<i64: 1, 1>}, {pipeline_mode = #tpu.pipeline_mode<synchronous>, transform_indices = @transform_20, window_bounds = array<i64: 8, 1>}]} {
    %c0 = arith.constant 0 : index
    %c0_0 = arith.constant 0 : index
    %0 = vector.load %arg4[%c0, %c0_0] : memref<16x16xf32, #tpu.memory_space<vmem>>, vector<16x16xf32>
    %c0_1 = arith.constant 0 : index
    %c0_2 = arith.constant 0 : index
    %1 = vector.load %arg5[%c0_1, %c0_2] : memref<8x8xf32, #tpu.memory_space<vmem>>, vector<8x8xf32>
    %c0_3 = arith.constant 0 : index
    %c0_4 = arith.constant 0 : index
    %2 = vector.load %arg6[%c0_3, %c0_4] : memref<8x16xf32, #tpu.memory_space<vmem>>, vector<8x16xf32>
    %c0_5 = arith.constant 0 : index
    %c0_6 = arith.constant 0 : index
    %3 = vector.load %arg1[%c0_5, %c0_6] : memref<16x12xf32, #tpu.memory_space<vmem>>, vector<16x12xf32>
    %c0_7 = arith.constant 0 : index
    %c0_8 = arith.constant 0 : index
    %c0_9 = arith.constant 0 : index
    %4 = vector.load %arg7[%c0_7, %c0_8, %c0_9] : memref<2x12x32xf32, #tpu.memory_space<vmem>>, vector<1x12x32xf32>
    %5 = vector.shape_cast %4 : vector<1x12x32xf32> to vector<12x32xf32>
    %cst = arith.constant dense<0.000000e+00> : vector<16x32xf32>
    %6 = tpu.matmul %3, %5, %cst {dimension_numbers = #tpu.dot_dimension_numbers<[1], [0], [0], [1], [0, 0, 1, 1], [], []>} : vector<16x12xf32>, vector<12x32xf32>, vector<16x32xf32> -> vector<16x32xf32>
    %c0_10 = arith.constant 0 : index
    %c0_11 = arith.constant 0 : index
    %c0_12 = arith.constant 0 : index
    %7 = vector.load %arg16[%c0_10, %c0_11, %c0_12] : memref<36x1x32xf32, #tpu.memory_space<vmem>>, vector<1x1x32xf32>
    %8 = vector.shape_cast %7 : vector<1x1x32xf32> to vector<1x32xf32>
    %9 = vector.broadcast %8 : vector<1x32xf32> to vector<16x32xf32>
    %10 = arith.addf %6, %9 : vector<16x32xf32>
    %c0_13 = arith.constant 0 : index
    %c0_14 = arith.constant 0 : index
    %11 = vector.load %arg3[%c0_13, %c0_14] : memref<16x32xf32, #tpu.memory_space<vmem>>, vector<16x32xf32>
    %12 = arith.addf %10, %11 : vector<16x32xf32>
    %c0_15 = arith.constant 0 : index
    %c0_16 = arith.constant 0 : index
    %13 = vector.load %arg2[%c0_15, %c0_16] : memref<8x12xf32, #tpu.memory_space<vmem>>, vector<8x12xf32>
    %c1 = arith.constant 1 : index
    %c0_17 = arith.constant 0 : index
    %c0_18 = arith.constant 0 : index
    %14 = vector.load %arg7[%c1, %c0_17, %c0_18] : memref<2x12x32xf32, #tpu.memory_space<vmem>>, vector<1x12x32xf32>
    %15 = vector.shape_cast %14 : vector<1x12x32xf32> to vector<12x32xf32>
    %cst_19 = arith.constant dense<0.000000e+00> : vector<8x32xf32>
    %16 = tpu.matmul %13, %15, %cst_19 {dimension_numbers = #tpu.dot_dimension_numbers<[1], [0], [0], [1], [0, 0, 1, 1], [], []>} : vector<8x12xf32>, vector<12x32xf32>, vector<8x32xf32> -> vector<8x32xf32>
    %c1_20 = arith.constant 1 : index
    %c0_21 = arith.constant 0 : index
    %c0_22 = arith.constant 0 : index
    %17 = vector.load %arg16[%c1_20, %c0_21, %c0_22] : memref<36x1x32xf32, #tpu.memory_space<vmem>>, vector<1x1x32xf32>
    %18 = vector.shape_cast %17 : vector<1x1x32xf32> to vector<1x32xf32>
    %19 = vector.broadcast %18 : vector<1x32xf32> to vector<8x32xf32>
    %20 = arith.addf %16, %19 : vector<8x32xf32>
    %c0_23 = arith.constant 0 : index
    %c0_24 = arith.constant 0 : index
    %c0_25 = arith.constant 0 : index
    %21 = vector.load %arg8[%c0_23, %c0_24, %c0_25] : memref<6x32x32xf32, #tpu.memory_space<vmem>>, vector<1x32x32xf32>
    %22 = vector.shape_cast %21 : vector<1x32x32xf32> to vector<32x32xf32>
    %cst_26 = arith.constant dense<0.000000e+00> : vector<16x32xf32>
    %23 = tpu.matmul %12, %22, %cst_26 {dimension_numbers = #tpu.dot_dimension_numbers<[1], [0], [0], [1], [0, 0, 1, 1], [], []>} : vector<16x32xf32>, vector<32x32xf32>, vector<16x32xf32> -> vector<16x32xf32>
    %c0_27 = arith.constant 0 : index
    %c0_28 = arith.constant 0 : index
    %c0_29 = arith.constant 0 : index
    %24 = vector.load %arg9[%c0_27, %c0_28, %c0_29] : memref<6x1x32xf32, #tpu.memory_space<vmem>>, vector<1x1x32xf32>
    %25 = vector.shape_cast %24 : vector<1x1x32xf32> to vector<1x32xf32>
    %26 = vector.broadcast %25 : vector<1x32xf32> to vector<16x32xf32>
    %27 = arith.addf %23, %26 : vector<16x32xf32>
    %cst_30 = arith.constant 0.353553385 : f32
    %28 = vector.broadcast %cst_30 : f32 to vector<16x32xf32>
    %29 = arith.mulf %27, %28 : vector<16x32xf32>
    %c0_31 = arith.constant 0 : index
    %c0_32 = arith.constant 0 : index
    %c0_33 = arith.constant 0 : index
    %30 = vector.load %arg10[%c0_31, %c0_32, %c0_33] : memref<6x32x64xf32, #tpu.memory_space<vmem>>, vector<1x32x64xf32>
    %31 = vector.shape_cast %30 : vector<1x32x64xf32> to vector<32x64xf32>
    %cst_34 = arith.constant dense<0.000000e+00> : vector<16x64xf32>
    %32 = tpu.matmul %12, %31, %cst_34 {dimension_numbers = #tpu.dot_dimension_numbers<[1], [0], [0], [1], [0, 0, 1, 1], [], []>} : vector<16x32xf32>, vector<32x64xf32>, vector<16x64xf32> -> vector<16x64xf32>
    %c0_35 = arith.constant 0 : index
    %c0_36 = arith.constant 0 : index
    %c0_37 = arith.constant 0 : index
    %33 = vector.load %arg11[%c0_35, %c0_36, %c0_37] : memref<6x1x64xf32, #tpu.memory_space<vmem>>, vector<1x1x64xf32>
    %34 = vector.shape_cast %33 : vector<1x1x64xf32> to vector<1x64xf32>
    %35 = vector.broadcast %34 : vector<1x64xf32> to vector<16x64xf32>
    %36 = arith.addf %32, %35 : vector<16x64xf32>
    %37 = vector.extract_strided_slice %29 {offsets = [0, 0], sizes = [16, 8], strides = [1, 1]} : vector<16x32xf32> to vector<16x8xf32>
    %38 = vector.extract_strided_slice %36 {offsets = [0, 0], sizes = [16, 8], strides = [1, 1]} : vector<16x64xf32> to vector<16x8xf32>
    %39 = vector.extract_strided_slice %36 {offsets = [0, 32], sizes = [16, 8], strides = [1, 1]} : vector<16x64xf32> to vector<16x8xf32>
    %cst_38 = arith.constant dense<0.000000e+00> : vector<16x16xf32>
    %40 = tpu.matmul %37, %38, %cst_38 {dimension_numbers = #tpu.dot_dimension_numbers<[1], [1], [0], [0], [0, 0, 1, 0], [], []>} : vector<16x8xf32>, vector<16x8xf32>, vector<16x16xf32> -> vector<16x16xf32>
    %41 = arith.addf %40, %0 : vector<16x16xf32>
    %cst_39 = arith.constant dense<0xFF800000> : vector<16xf32>
    %42 = vector.multi_reduction <maximumf>, %41, %cst_39 [1] : vector<16x16xf32> to vector<16xf32>
    %43 = vector.shape_cast %42 : vector<16xf32> to vector<16x1xf32>
    %44 = vector.broadcast %43 : vector<16x1xf32> to vector<16x16xf32>
    %45 = arith.subf %41, %44 : vector<16x16xf32>
    %46 = math.exp %45 : vector<16x16xf32>
    %cst_40 = arith.constant dense<0.000000e+00> : vector<16xf32>
    %47 = vector.multi_reduction <add>, %46, %cst_40 [1] : vector<16x16xf32> to vector<16xf32>
    %48 = vector.shape_cast %47 : vector<16xf32> to vector<16x1xf32>
    %49 = tpu.reciprocal %48 {approx = true} : vector<16x1xf32> -> vector<16x1xf32>
    %50 = vector.broadcast %49 : vector<16x1xf32> to vector<16x16xf32>
    %51 = arith.mulf %46, %50 : vector<16x16xf32>
    %cst_41 = arith.constant dense<0.000000e+00> : vector<16x8xf32>
    %52 = tpu.matmul %51, %39, %cst_41 {dimension_numbers = #tpu.dot_dimension_numbers<[1], [0], [0], [1], [0, 0, 1, 1], [], []>} : vector<16x16xf32>, vector<16x8xf32>, vector<16x8xf32> -> vector<16x8xf32>
    %53 = vector.extract_strided_slice %29 {offsets = [0, 8], sizes = [16, 8], strides = [1, 1]} : vector<16x32xf32> to vector<16x8xf32>
    %54 = vector.extract_strided_slice %36 {offsets = [0, 8], sizes = [16, 8], strides = [1, 1]} : vector<16x64xf32> to vector<16x8xf32>
    %55 = vector.extract_strided_slice %36 {offsets = [0, 40], sizes = [16, 8], strides = [1, 1]} : vector<16x64xf32> to vector<16x8xf32>
    %cst_42 = arith.constant dense<0.000000e+00> : vector<16x16xf32>
    %56 = tpu.matmul %53, %54, %cst_42 {dimension_numbers = #tpu.dot_dimension_numbers<[1], [1], [0], [0], [0, 0, 1, 0], [], []>} : vector<16x8xf32>, vector<16x8xf32>, vector<16x16xf32> -> vector<16x16xf32>
    %57 = arith.addf %56, %0 : vector<16x16xf32>
    %cst_43 = arith.constant dense<0xFF800000> : vector<16xf32>
    %58 = vector.multi_reduction <maximumf>, %57, %cst_43 [1] : vector<16x16xf32> to vector<16xf32>
    %59 = vector.shape_cast %58 : vector<16xf32> to vector<16x1xf32>
    %60 = vector.broadcast %59 : vector<16x1xf32> to vector<16x16xf32>
    %61 = arith.subf %57, %60 : vector<16x16xf32>
    %62 = math.exp %61 : vector<16x16xf32>
    %cst_44 = arith.constant dense<0.000000e+00> : vector<16xf32>
    %63 = vector.multi_reduction <add>, %62, %cst_44 [1] : vector<16x16xf32> to vector<16xf32>
    %64 = vector.shape_cast %63 : vector<16xf32> to vector<16x1xf32>
    %65 = tpu.reciprocal %64 {approx = true} : vector<16x1xf32> -> vector<16x1xf32>
    %66 = vector.broadcast %65 : vector<16x1xf32> to vector<16x16xf32>
    %67 = arith.mulf %62, %66 : vector<16x16xf32>
    %cst_45 = arith.constant dense<0.000000e+00> : vector<16x8xf32>
    %68 = tpu.matmul %67, %55, %cst_45 {dimension_numbers = #tpu.dot_dimension_numbers<[1], [0], [0], [1], [0, 0, 1, 1], [], []>} : vector<16x16xf32>, vector<16x8xf32>, vector<16x8xf32> -> vector<16x8xf32>
    %69 = vector.extract_strided_slice %29 {offsets = [0, 16], sizes = [16, 8], strides = [1, 1]} : vector<16x32xf32> to vector<16x8xf32>
    %70 = vector.extract_strided_slice %36 {offsets = [0, 16], sizes = [16, 8], strides = [1, 1]} : vector<16x64xf32> to vector<16x8xf32>
    %71 = vector.extract_strided_slice %36 {offsets = [0, 48], sizes = [16, 8], strides = [1, 1]} : vector<16x64xf32> to vector<16x8xf32>
    %cst_46 = arith.constant dense<0.000000e+00> : vector<16x16xf32>
    %72 = tpu.matmul %69, %70, %cst_46 {dimension_numbers = #tpu.dot_dimension_numbers<[1], [1], [0], [0], [0, 0, 1, 0], [], []>} : vector<16x8xf32>, vector<16x8xf32>, vector<16x16xf32> -> vector<16x16xf32>
    %73 = arith.addf %72, %0 : vector<16x16xf32>
    %cst_47 = arith.constant dense<0xFF800000> : vector<16xf32>
    %74 = vector.multi_reduction <maximumf>, %73, %cst_47 [1] : vector<16x16xf32> to vector<16xf32>
    %75 = vector.shape_cast %74 : vector<16xf32> to vector<16x1xf32>
    %76 = vector.broadcast %75 : vector<16x1xf32> to vector<16x16xf32>
    %77 = arith.subf %73, %76 : vector<16x16xf32>
    %78 = math.exp %77 : vector<16x16xf32>
    %cst_48 = arith.constant dense<0.000000e+00> : vector<16xf32>
    %79 = vector.multi_reduction <add>, %78, %cst_48 [1] : vector<16x16xf32> to vector<16xf32>
    %80 = vector.shape_cast %79 : vector<16xf32> to vector<16x1xf32>
    %81 = tpu.reciprocal %80 {approx = true} : vector<16x1xf32> -> vector<16x1xf32>
    %82 = vector.broadcast %81 : vector<16x1xf32> to vector<16x16xf32>
    %83 = arith.mulf %78, %82 : vector<16x16xf32>
    %cst_49 = arith.constant dense<0.000000e+00> : vector<16x8xf32>
    %84 = tpu.matmul %83, %71, %cst_49 {dimension_numbers = #tpu.dot_dimension_numbers<[1], [0], [0], [1], [0, 0, 1, 1], [], []>} : vector<16x16xf32>, vector<16x8xf32>, vector<16x8xf32> -> vector<16x8xf32>
    %85 = vector.extract_strided_slice %29 {offsets = [0, 24], sizes = [16, 8], strides = [1, 1]} : vector<16x32xf32> to vector<16x8xf32>
    %86 = vector.extract_strided_slice %36 {offsets = [0, 24], sizes = [16, 8], strides = [1, 1]} : vector<16x64xf32> to vector<16x8xf32>
    %87 = vector.extract_strided_slice %36 {offsets = [0, 56], sizes = [16, 8], strides = [1, 1]} : vector<16x64xf32> to vector<16x8xf32>
    %cst_50 = arith.constant dense<0.000000e+00> : vector<16x16xf32>
    %88 = tpu.matmul %85, %86, %cst_50 {dimension_numbers = #tpu.dot_dimension_numbers<[1], [1], [0], [0], [0, 0, 1, 0], [], []>} : vector<16x8xf32>, vector<16x8xf32>, vector<16x16xf32> -> vector<16x16xf32>
    %89 = arith.addf %88, %0 : vector<16x16xf32>
    %cst_51 = arith.constant dense<0xFF800000> : vector<16xf32>
    %90 = vector.multi_reduction <maximumf>, %89, %cst_51 [1] : vector<16x16xf32> to vector<16xf32>
    %91 = vector.shape_cast %90 : vector<16xf32> to vector<16x1xf32>
    %92 = vector.broadcast %91 : vector<16x1xf32> to vector<16x16xf32>
    %93 = arith.subf %89, %92 : vector<16x16xf32>
    %94 = math.exp %93 : vector<16x16xf32>
    %cst_52 = arith.constant dense<0.000000e+00> : vector<16xf32>
    %95 = vector.multi_reduction <add>, %94, %cst_52 [1] : vector<16x16xf32> to vector<16xf32>
    %96 = vector.shape_cast %95 : vector<16xf32> to vector<16x1xf32>
    %97 = tpu.reciprocal %96 {approx = true} : vector<16x1xf32> -> vector<16x1xf32>
    %98 = vector.broadcast %97 : vector<16x1xf32> to vector<16x16xf32>
    %99 = arith.mulf %94, %98 : vector<16x16xf32>
    %cst_53 = arith.constant dense<0.000000e+00> : vector<16x8xf32>
    %100 = tpu.matmul %99, %87, %cst_53 {dimension_numbers = #tpu.dot_dimension_numbers<[1], [0], [0], [1], [0, 0, 1, 1], [], []>} : vector<16x16xf32>, vector<16x8xf32>, vector<16x8xf32> -> vector<16x8xf32>
    %101 = tpu.concatenate %52, %68, %84, %100 in 1 : vector<16x8xf32>, vector<16x8xf32>, vector<16x8xf32>, vector<16x8xf32> -> vector<16x32xf32>
    %c0_54 = arith.constant 0 : index
    %c0_55 = arith.constant 0 : index
    %c0_56 = arith.constant 0 : index
    %102 = vector.load %arg12[%c0_54, %c0_55, %c0_56] : memref<6x32x32xf32, #tpu.memory_space<vmem>>, vector<1x32x32xf32>
    %103 = vector.shape_cast %102 : vector<1x32x32xf32> to vector<32x32xf32>
    %cst_57 = arith.constant dense<0.000000e+00> : vector<16x32xf32>
    %104 = tpu.matmul %101, %103, %cst_57 {dimension_numbers = #tpu.dot_dimension_numbers<[1], [0], [0], [1], [0, 0, 1, 1], [], []>} : vector<16x32xf32>, vector<32x32xf32>, vector<16x32xf32> -> vector<16x32xf32>
    %c2 = arith.constant 2 : index
    %c0_58 = arith.constant 0 : index
    %c0_59 = arith.constant 0 : index
    %105 = vector.load %arg16[%c2, %c0_58, %c0_59] : memref<36x1x32xf32, #tpu.memory_space<vmem>>, vector<1x1x32xf32>
    %106 = vector.shape_cast %105 : vector<1x1x32xf32> to vector<1x32xf32>
    %107 = vector.broadcast %106 : vector<1x32xf32> to vector<16x32xf32>
    %108 = arith.addf %104, %107 : vector<16x32xf32>
    %109 = arith.addf %12, %108 : vector<16x32xf32>
    %cst_60 = arith.constant dense<0.000000e+00> : vector<16xf32>
    %110 = vector.multi_reduction <add>, %109, %cst_60 [1] : vector<16x32xf32> to vector<16xf32>
    %111 = vector.shape_cast %110 : vector<16xf32> to vector<16x1xf32>
    %cst_61 = arith.constant 3.200000e+01 : f32
    %112 = vector.broadcast %cst_61 : f32 to vector<16x1xf32>
    %113 = arith.divf %111, %112 : vector<16x1xf32>
    %114 = vector.broadcast %113 : vector<16x1xf32> to vector<16x32xf32>
    %115 = arith.subf %109, %114 : vector<16x32xf32>
    %116 = arith.mulf %115, %115 : vector<16x32xf32>
    %cst_62 = arith.constant dense<0.000000e+00> : vector<16xf32>
    %117 = vector.multi_reduction <add>, %116, %cst_62 [1] : vector<16x32xf32> to vector<16xf32>
    %118 = vector.shape_cast %117 : vector<16xf32> to vector<16x1xf32>
    %cst_63 = arith.constant 3.200000e+01 : f32
    %119 = vector.broadcast %cst_63 : f32 to vector<16x1xf32>
    %120 = arith.divf %118, %119 : vector<16x1xf32>
    %cst_64 = arith.constant 9.99999974E-6 : f32
    %121 = vector.broadcast %cst_64 : f32 to vector<16x1xf32>
    %122 = arith.addf %120, %121 : vector<16x1xf32>
    %123 = math.rsqrt %122 : vector<16x1xf32>
    %124 = vector.broadcast %123 : vector<16x1xf32> to vector<16x32xf32>
    %125 = arith.mulf %115, %124 : vector<16x32xf32>
    %c8 = arith.constant 8 : index
    %c0_65 = arith.constant 0 : index
    %c0_66 = arith.constant 0 : index
    %126 = vector.load %arg16[%c8, %c0_65, %c0_66] : memref<36x1x32xf32, #tpu.memory_space<vmem>>, vector<1x1x32xf32>
    %127 = vector.shape_cast %126 : vector<1x1x32xf32> to vector<1x32xf32>
    %128 = vector.broadcast %127 : vector<1x32xf32> to vector<16x32xf32>
    %129 = arith.mulf %125, %128 : vector<16x32xf32>
    %c9 = arith.constant 9 : index
    %c0_67 = arith.constant 0 : index
    %c0_68 = arith.constant 0 : index
    %130 = vector.load %arg16[%c9, %c0_67, %c0_68] : memref<36x1x32xf32, #tpu.memory_space<vmem>>, vector<1x1x32xf32>
    %131 = vector.shape_cast %130 : vector<1x1x32xf32> to vector<1x32xf32>
    %132 = vector.broadcast %131 : vector<1x32xf32> to vector<16x32xf32>
    %133 = arith.addf %129, %132 : vector<16x32xf32>
    %c0_69 = arith.constant 0 : index
    %c0_70 = arith.constant 0 : index
    %c0_71 = arith.constant 0 : index
    %134 = vector.load %arg13[%c0_69, %c0_70, %c0_71] : memref<4x32x64xf32, #tpu.memory_space<vmem>>, vector<1x32x64xf32>
    %135 = vector.shape_cast %134 : vector<1x32x64xf32> to vector<32x64xf32>
    %cst_72 = arith.constant dense<0.000000e+00> : vector<16x64xf32>
    %136 = tpu.matmul %133, %135, %cst_72 {dimension_numbers = #tpu.dot_dimension_numbers<[1], [0], [0], [1], [0, 0, 1, 1], [], []>} : vector<16x32xf32>, vector<32x64xf32>, vector<16x64xf32> -> vector<16x64xf32>
    %c0_73 = arith.constant 0 : index
    %c0_74 = arith.constant 0 : index
    %c0_75 = arith.constant 0 : index
    %137 = vector.load %arg14[%c0_73, %c0_74, %c0_75] : memref<4x1x64xf32, #tpu.memory_space<vmem>>, vector<1x1x64xf32>
    %138 = vector.shape_cast %137 : vector<1x1x64xf32> to vector<1x64xf32>
    %139 = vector.broadcast %138 : vector<1x64xf32> to vector<16x64xf32>
    %140 = arith.addf %136, %139 : vector<16x64xf32>
    %cst_76 = arith.constant 0.000000e+00 : f32
    %141 = vector.broadcast %cst_76 : f32 to vector<16x64xf32>
    %142 = arith.maximumf %140, %141 : vector<16x64xf32>
    %c0_77 = arith.constant 0 : index
    %c0_78 = arith.constant 0 : index
    %c0_79 = arith.constant 0 : index
    %143 = vector.load %arg15[%c0_77, %c0_78, %c0_79] : memref<4x64x32xf32, #tpu.memory_space<vmem>>, vector<1x64x32xf32>
    %144 = vector.shape_cast %143 : vector<1x64x32xf32> to vector<64x32xf32>
    %cst_80 = arith.constant dense<0.000000e+00> : vector<16x32xf32>
    %145 = tpu.matmul %142, %144, %cst_80 {dimension_numbers = #tpu.dot_dimension_numbers<[1], [0], [0], [1], [0, 0, 1, 1], [], []>} : vector<16x64xf32>, vector<64x32xf32>, vector<16x32xf32> -> vector<16x32xf32>
    %c28 = arith.constant 28 : index
    %c0_81 = arith.constant 0 : index
    %c0_82 = arith.constant 0 : index
    %146 = vector.load %arg16[%c28, %c0_81, %c0_82] : memref<36x1x32xf32, #tpu.memory_space<vmem>>, vector<1x1x32xf32>
    %147 = vector.shape_cast %146 : vector<1x1x32xf32> to vector<1x32xf32>
    %148 = vector.broadcast %147 : vector<1x32xf32> to vector<16x32xf32>
    %149 = arith.addf %145, %148 : vector<16x32xf32>
    %150 = arith.addf %133, %149 : vector<16x32xf32>
    %cst_83 = arith.constant dense<0.000000e+00> : vector<16xf32>
    %151 = vector.multi_reduction <add>, %150, %cst_83 [1] : vector<16x32xf32> to vector<16xf32>
    %152 = vector.shape_cast %151 : vector<16xf32> to vector<16x1xf32>
    %cst_84 = arith.constant 3.200000e+01 : f32
    %153 = vector.broadcast %cst_84 : f32 to vector<16x1xf32>
    %154 = arith.divf %152, %153 : vector<16x1xf32>
    %155 = vector.broadcast %154 : vector<16x1xf32> to vector<16x32xf32>
    %156 = arith.subf %150, %155 : vector<16x32xf32>
    %157 = arith.mulf %156, %156 : vector<16x32xf32>
    %cst_85 = arith.constant dense<0.000000e+00> : vector<16xf32>
    %158 = vector.multi_reduction <add>, %157, %cst_85 [1] : vector<16x32xf32> to vector<16xf32>
    %159 = vector.shape_cast %158 : vector<16xf32> to vector<16x1xf32>
    %cst_86 = arith.constant 3.200000e+01 : f32
    %160 = vector.broadcast %cst_86 : f32 to vector<16x1xf32>
    %161 = arith.divf %159, %160 : vector<16x1xf32>
    %cst_87 = arith.constant 9.99999974E-6 : f32
    %162 = vector.broadcast %cst_87 : f32 to vector<16x1xf32>
    %163 = arith.addf %161, %162 : vector<16x1xf32>
    %164 = math.rsqrt %163 : vector<16x1xf32>
    %165 = vector.broadcast %164 : vector<16x1xf32> to vector<16x32xf32>
    %166 = arith.mulf %156, %165 : vector<16x32xf32>
    %c10 = arith.constant 10 : index
    %c0_88 = arith.constant 0 : index
    %c0_89 = arith.constant 0 : index
    %167 = vector.load %arg16[%c10, %c0_88, %c0_89] : memref<36x1x32xf32, #tpu.memory_space<vmem>>, vector<1x1x32xf32>
    %168 = vector.shape_cast %167 : vector<1x1x32xf32> to vector<1x32xf32>
    %169 = vector.broadcast %168 : vector<1x32xf32> to vector<16x32xf32>
    %170 = arith.mulf %166, %169 : vector<16x32xf32>
    %c11 = arith.constant 11 : index
    %c0_90 = arith.constant 0 : index
    %c0_91 = arith.constant 0 : index
    %171 = vector.load %arg16[%c11, %c0_90, %c0_91] : memref<36x1x32xf32, #tpu.memory_space<vmem>>, vector<1x1x32xf32>
    %172 = vector.shape_cast %171 : vector<1x1x32xf32> to vector<1x32xf32>
    %173 = vector.broadcast %172 : vector<1x32xf32> to vector<16x32xf32>
    %174 = arith.addf %170, %173 : vector<16x32xf32>
    %c1_92 = arith.constant 1 : index
    %c0_93 = arith.constant 0 : index
    %c0_94 = arith.constant 0 : index
    %175 = vector.load %arg8[%c1_92, %c0_93, %c0_94] : memref<6x32x32xf32, #tpu.memory_space<vmem>>, vector<1x32x32xf32>
    %176 = vector.shape_cast %175 : vector<1x32x32xf32> to vector<32x32xf32>
    %cst_95 = arith.constant dense<0.000000e+00> : vector<16x32xf32>
    %177 = tpu.matmul %174, %176, %cst_95 {dimension_numbers = #tpu.dot_dimension_numbers<[1], [0], [0], [1], [0, 0, 1, 1], [], []>} : vector<16x32xf32>, vector<32x32xf32>, vector<16x32xf32> -> vector<16x32xf32>
    %c1_96 = arith.constant 1 : index
    %c0_97 = arith.constant 0 : index
    %c0_98 = arith.constant 0 : index
    %178 = vector.load %arg9[%c1_96, %c0_97, %c0_98] : memref<6x1x32xf32, #tpu.memory_space<vmem>>, vector<1x1x32xf32>
    %179 = vector.shape_cast %178 : vector<1x1x32xf32> to vector<1x32xf32>
    %180 = vector.broadcast %179 : vector<1x32xf32> to vector<16x32xf32>
    %181 = arith.addf %177, %180 : vector<16x32xf32>
    %cst_99 = arith.constant 0.353553385 : f32
    %182 = vector.broadcast %cst_99 : f32 to vector<16x32xf32>
    %183 = arith.mulf %181, %182 : vector<16x32xf32>
    %c1_100 = arith.constant 1 : index
    %c0_101 = arith.constant 0 : index
    %c0_102 = arith.constant 0 : index
    %184 = vector.load %arg10[%c1_100, %c0_101, %c0_102] : memref<6x32x64xf32, #tpu.memory_space<vmem>>, vector<1x32x64xf32>
    %185 = vector.shape_cast %184 : vector<1x32x64xf32> to vector<32x64xf32>
    %cst_103 = arith.constant dense<0.000000e+00> : vector<16x64xf32>
    %186 = tpu.matmul %174, %185, %cst_103 {dimension_numbers = #tpu.dot_dimension_numbers<[1], [0], [0], [1], [0, 0, 1, 1], [], []>} : vector<16x32xf32>, vector<32x64xf32>, vector<16x64xf32> -> vector<16x64xf32>
    %c1_104 = arith.constant 1 : index
    %c0_105 = arith.constant 0 : index
    %c0_106 = arith.constant 0 : index
    %187 = vector.load %arg11[%c1_104, %c0_105, %c0_106] : memref<6x1x64xf32, #tpu.memory_space<vmem>>, vector<1x1x64xf32>
    %188 = vector.shape_cast %187 : vector<1x1x64xf32> to vector<1x64xf32>
    %189 = vector.broadcast %188 : vector<1x64xf32> to vector<16x64xf32>
    %190 = arith.addf %186, %189 : vector<16x64xf32>
    %191 = vector.extract_strided_slice %183 {offsets = [0, 0], sizes = [16, 8], strides = [1, 1]} : vector<16x32xf32> to vector<16x8xf32>
    %192 = vector.extract_strided_slice %190 {offsets = [0, 0], sizes = [16, 8], strides = [1, 1]} : vector<16x64xf32> to vector<16x8xf32>
    %193 = vector.extract_strided_slice %190 {offsets = [0, 32], sizes = [16, 8], strides = [1, 1]} : vector<16x64xf32> to vector<16x8xf32>
    %cst_107 = arith.constant dense<0.000000e+00> : vector<16x16xf32>
    %194 = tpu.matmul %191, %192, %cst_107 {dimension_numbers = #tpu.dot_dimension_numbers<[1], [1], [0], [0], [0, 0, 1, 0], [], []>} : vector<16x8xf32>, vector<16x8xf32>, vector<16x16xf32> -> vector<16x16xf32>
    %195 = arith.addf %194, %0 : vector<16x16xf32>
    %cst_108 = arith.constant dense<0xFF800000> : vector<16xf32>
    %196 = vector.multi_reduction <maximumf>, %195, %cst_108 [1] : vector<16x16xf32> to vector<16xf32>
    %197 = vector.shape_cast %196 : vector<16xf32> to vector<16x1xf32>
    %198 = vector.broadcast %197 : vector<16x1xf32> to vector<16x16xf32>
    %199 = arith.subf %195, %198 : vector<16x16xf32>
    %200 = math.exp %199 : vector<16x16xf32>
    %cst_109 = arith.constant dense<0.000000e+00> : vector<16xf32>
    %201 = vector.multi_reduction <add>, %200, %cst_109 [1] : vector<16x16xf32> to vector<16xf32>
    %202 = vector.shape_cast %201 : vector<16xf32> to vector<16x1xf32>
    %203 = tpu.reciprocal %202 {approx = true} : vector<16x1xf32> -> vector<16x1xf32>
    %204 = vector.broadcast %203 : vector<16x1xf32> to vector<16x16xf32>
    %205 = arith.mulf %200, %204 : vector<16x16xf32>
    %cst_110 = arith.constant dense<0.000000e+00> : vector<16x8xf32>
    %206 = tpu.matmul %205, %193, %cst_110 {dimension_numbers = #tpu.dot_dimension_numbers<[1], [0], [0], [1], [0, 0, 1, 1], [], []>} : vector<16x16xf32>, vector<16x8xf32>, vector<16x8xf32> -> vector<16x8xf32>
    %207 = vector.extract_strided_slice %183 {offsets = [0, 8], sizes = [16, 8], strides = [1, 1]} : vector<16x32xf32> to vector<16x8xf32>
    %208 = vector.extract_strided_slice %190 {offsets = [0, 8], sizes = [16, 8], strides = [1, 1]} : vector<16x64xf32> to vector<16x8xf32>
    %209 = vector.extract_strided_slice %190 {offsets = [0, 40], sizes = [16, 8], strides = [1, 1]} : vector<16x64xf32> to vector<16x8xf32>
    %cst_111 = arith.constant dense<0.000000e+00> : vector<16x16xf32>
    %210 = tpu.matmul %207, %208, %cst_111 {dimension_numbers = #tpu.dot_dimension_numbers<[1], [1], [0], [0], [0, 0, 1, 0], [], []>} : vector<16x8xf32>, vector<16x8xf32>, vector<16x16xf32> -> vector<16x16xf32>
    %211 = arith.addf %210, %0 : vector<16x16xf32>
    %cst_112 = arith.constant dense<0xFF800000> : vector<16xf32>
    %212 = vector.multi_reduction <maximumf>, %211, %cst_112 [1] : vector<16x16xf32> to vector<16xf32>
    %213 = vector.shape_cast %212 : vector<16xf32> to vector<16x1xf32>
    %214 = vector.broadcast %213 : vector<16x1xf32> to vector<16x16xf32>
    %215 = arith.subf %211, %214 : vector<16x16xf32>
    %216 = math.exp %215 : vector<16x16xf32>
    %cst_113 = arith.constant dense<0.000000e+00> : vector<16xf32>
    %217 = vector.multi_reduction <add>, %216, %cst_113 [1] : vector<16x16xf32> to vector<16xf32>
    %218 = vector.shape_cast %217 : vector<16xf32> to vector<16x1xf32>
    %219 = tpu.reciprocal %218 {approx = true} : vector<16x1xf32> -> vector<16x1xf32>
    %220 = vector.broadcast %219 : vector<16x1xf32> to vector<16x16xf32>
    %221 = arith.mulf %216, %220 : vector<16x16xf32>
    %cst_114 = arith.constant dense<0.000000e+00> : vector<16x8xf32>
    %222 = tpu.matmul %221, %209, %cst_114 {dimension_numbers = #tpu.dot_dimension_numbers<[1], [0], [0], [1], [0, 0, 1, 1], [], []>} : vector<16x16xf32>, vector<16x8xf32>, vector<16x8xf32> -> vector<16x8xf32>
    %223 = vector.extract_strided_slice %183 {offsets = [0, 16], sizes = [16, 8], strides = [1, 1]} : vector<16x32xf32> to vector<16x8xf32>
    %224 = vector.extract_strided_slice %190 {offsets = [0, 16], sizes = [16, 8], strides = [1, 1]} : vector<16x64xf32> to vector<16x8xf32>
    %225 = vector.extract_strided_slice %190 {offsets = [0, 48], sizes = [16, 8], strides = [1, 1]} : vector<16x64xf32> to vector<16x8xf32>
    %cst_115 = arith.constant dense<0.000000e+00> : vector<16x16xf32>
    %226 = tpu.matmul %223, %224, %cst_115 {dimension_numbers = #tpu.dot_dimension_numbers<[1], [1], [0], [0], [0, 0, 1, 0], [], []>} : vector<16x8xf32>, vector<16x8xf32>, vector<16x16xf32> -> vector<16x16xf32>
    %227 = arith.addf %226, %0 : vector<16x16xf32>
    %cst_116 = arith.constant dense<0xFF800000> : vector<16xf32>
    %228 = vector.multi_reduction <maximumf>, %227, %cst_116 [1] : vector<16x16xf32> to vector<16xf32>
    %229 = vector.shape_cast %228 : vector<16xf32> to vector<16x1xf32>
    %230 = vector.broadcast %229 : vector<16x1xf32> to vector<16x16xf32>
    %231 = arith.subf %227, %230 : vector<16x16xf32>
    %232 = math.exp %231 : vector<16x16xf32>
    %cst_117 = arith.constant dense<0.000000e+00> : vector<16xf32>
    %233 = vector.multi_reduction <add>, %232, %cst_117 [1] : vector<16x16xf32> to vector<16xf32>
    %234 = vector.shape_cast %233 : vector<16xf32> to vector<16x1xf32>
    %235 = tpu.reciprocal %234 {approx = true} : vector<16x1xf32> -> vector<16x1xf32>
    %236 = vector.broadcast %235 : vector<16x1xf32> to vector<16x16xf32>
    %237 = arith.mulf %232, %236 : vector<16x16xf32>
    %cst_118 = arith.constant dense<0.000000e+00> : vector<16x8xf32>
    %238 = tpu.matmul %237, %225, %cst_118 {dimension_numbers = #tpu.dot_dimension_numbers<[1], [0], [0], [1], [0, 0, 1, 1], [], []>} : vector<16x16xf32>, vector<16x8xf32>, vector<16x8xf32> -> vector<16x8xf32>
    %239 = vector.extract_strided_slice %183 {offsets = [0, 24], sizes = [16, 8], strides = [1, 1]} : vector<16x32xf32> to vector<16x8xf32>
    %240 = vector.extract_strided_slice %190 {offsets = [0, 24], sizes = [16, 8], strides = [1, 1]} : vector<16x64xf32> to vector<16x8xf32>
    %241 = vector.extract_strided_slice %190 {offsets = [0, 56], sizes = [16, 8], strides = [1, 1]} : vector<16x64xf32> to vector<16x8xf32>
    %cst_119 = arith.constant dense<0.000000e+00> : vector<16x16xf32>
    %242 = tpu.matmul %239, %240, %cst_119 {dimension_numbers = #tpu.dot_dimension_numbers<[1], [1], [0], [0], [0, 0, 1, 0], [], []>} : vector<16x8xf32>, vector<16x8xf32>, vector<16x16xf32> -> vector<16x16xf32>
    %243 = arith.addf %242, %0 : vector<16x16xf32>
    %cst_120 = arith.constant dense<0xFF800000> : vector<16xf32>
    %244 = vector.multi_reduction <maximumf>, %243, %cst_120 [1] : vector<16x16xf32> to vector<16xf32>
    %245 = vector.shape_cast %244 : vector<16xf32> to vector<16x1xf32>
    %246 = vector.broadcast %245 : vector<16x1xf32> to vector<16x16xf32>
    %247 = arith.subf %243, %246 : vector<16x16xf32>
    %248 = math.exp %247 : vector<16x16xf32>
    %cst_121 = arith.constant dense<0.000000e+00> : vector<16xf32>
    %249 = vector.multi_reduction <add>, %248, %cst_121 [1] : vector<16x16xf32> to vector<16xf32>
    %250 = vector.shape_cast %249 : vector<16xf32> to vector<16x1xf32>
    %251 = tpu.reciprocal %250 {approx = true} : vector<16x1xf32> -> vector<16x1xf32>
    %252 = vector.broadcast %251 : vector<16x1xf32> to vector<16x16xf32>
    %253 = arith.mulf %248, %252 : vector<16x16xf32>
    %cst_122 = arith.constant dense<0.000000e+00> : vector<16x8xf32>
    %254 = tpu.matmul %253, %241, %cst_122 {dimension_numbers = #tpu.dot_dimension_numbers<[1], [0], [0], [1], [0, 0, 1, 1], [], []>} : vector<16x16xf32>, vector<16x8xf32>, vector<16x8xf32> -> vector<16x8xf32>
    %255 = tpu.concatenate %206, %222, %238, %254 in 1 : vector<16x8xf32>, vector<16x8xf32>, vector<16x8xf32>, vector<16x8xf32> -> vector<16x32xf32>
    %c1_123 = arith.constant 1 : index
    %c0_124 = arith.constant 0 : index
    %c0_125 = arith.constant 0 : index
    %256 = vector.load %arg12[%c1_123, %c0_124, %c0_125] : memref<6x32x32xf32, #tpu.memory_space<vmem>>, vector<1x32x32xf32>
    %257 = vector.shape_cast %256 : vector<1x32x32xf32> to vector<32x32xf32>
    %cst_126 = arith.constant dense<0.000000e+00> : vector<16x32xf32>
    %258 = tpu.matmul %255, %257, %cst_126 {dimension_numbers = #tpu.dot_dimension_numbers<[1], [0], [0], [1], [0, 0, 1, 1], [], []>} : vector<16x32xf32>, vector<32x32xf32>, vector<16x32xf32> -> vector<16x32xf32>
    %c3 = arith.constant 3 : index
    %c0_127 = arith.constant 0 : index
    %c0_128 = arith.constant 0 : index
    %259 = vector.load %arg16[%c3, %c0_127, %c0_128] : memref<36x1x32xf32, #tpu.memory_space<vmem>>, vector<1x1x32xf32>
    %260 = vector.shape_cast %259 : vector<1x1x32xf32> to vector<1x32xf32>
    %261 = vector.broadcast %260 : vector<1x32xf32> to vector<16x32xf32>
    %262 = arith.addf %258, %261 : vector<16x32xf32>
    %263 = arith.addf %174, %262 : vector<16x32xf32>
    %cst_129 = arith.constant dense<0.000000e+00> : vector<16xf32>
    %264 = vector.multi_reduction <add>, %263, %cst_129 [1] : vector<16x32xf32> to vector<16xf32>
    %265 = vector.shape_cast %264 : vector<16xf32> to vector<16x1xf32>
    %cst_130 = arith.constant 3.200000e+01 : f32
    %266 = vector.broadcast %cst_130 : f32 to vector<16x1xf32>
    %267 = arith.divf %265, %266 : vector<16x1xf32>
    %268 = vector.broadcast %267 : vector<16x1xf32> to vector<16x32xf32>
    %269 = arith.subf %263, %268 : vector<16x32xf32>
    %270 = arith.mulf %269, %269 : vector<16x32xf32>
    %cst_131 = arith.constant dense<0.000000e+00> : vector<16xf32>
    %271 = vector.multi_reduction <add>, %270, %cst_131 [1] : vector<16x32xf32> to vector<16xf32>
    %272 = vector.shape_cast %271 : vector<16xf32> to vector<16x1xf32>
    %cst_132 = arith.constant 3.200000e+01 : f32
    %273 = vector.broadcast %cst_132 : f32 to vector<16x1xf32>
    %274 = arith.divf %272, %273 : vector<16x1xf32>
    %cst_133 = arith.constant 9.99999974E-6 : f32
    %275 = vector.broadcast %cst_133 : f32 to vector<16x1xf32>
    %276 = arith.addf %274, %275 : vector<16x1xf32>
    %277 = math.rsqrt %276 : vector<16x1xf32>
    %278 = vector.broadcast %277 : vector<16x1xf32> to vector<16x32xf32>
    %279 = arith.mulf %269, %278 : vector<16x32xf32>
    %c12 = arith.constant 12 : index
    %c0_134 = arith.constant 0 : index
    %c0_135 = arith.constant 0 : index
    %280 = vector.load %arg16[%c12, %c0_134, %c0_135] : memref<36x1x32xf32, #tpu.memory_space<vmem>>, vector<1x1x32xf32>
    %281 = vector.shape_cast %280 : vector<1x1x32xf32> to vector<1x32xf32>
    %282 = vector.broadcast %281 : vector<1x32xf32> to vector<16x32xf32>
    %283 = arith.mulf %279, %282 : vector<16x32xf32>
    %c13 = arith.constant 13 : index
    %c0_136 = arith.constant 0 : index
    %c0_137 = arith.constant 0 : index
    %284 = vector.load %arg16[%c13, %c0_136, %c0_137] : memref<36x1x32xf32, #tpu.memory_space<vmem>>, vector<1x1x32xf32>
    %285 = vector.shape_cast %284 : vector<1x1x32xf32> to vector<1x32xf32>
    %286 = vector.broadcast %285 : vector<1x32xf32> to vector<16x32xf32>
    %287 = arith.addf %283, %286 : vector<16x32xf32>
    %c1_138 = arith.constant 1 : index
    %c0_139 = arith.constant 0 : index
    %c0_140 = arith.constant 0 : index
    %288 = vector.load %arg13[%c1_138, %c0_139, %c0_140] : memref<4x32x64xf32, #tpu.memory_space<vmem>>, vector<1x32x64xf32>
    %289 = vector.shape_cast %288 : vector<1x32x64xf32> to vector<32x64xf32>
    %cst_141 = arith.constant dense<0.000000e+00> : vector<16x64xf32>
    %290 = tpu.matmul %287, %289, %cst_141 {dimension_numbers = #tpu.dot_dimension_numbers<[1], [0], [0], [1], [0, 0, 1, 1], [], []>} : vector<16x32xf32>, vector<32x64xf32>, vector<16x64xf32> -> vector<16x64xf32>
    %c1_142 = arith.constant 1 : index
    %c0_143 = arith.constant 0 : index
    %c0_144 = arith.constant 0 : index
    %291 = vector.load %arg14[%c1_142, %c0_143, %c0_144] : memref<4x1x64xf32, #tpu.memory_space<vmem>>, vector<1x1x64xf32>
    %292 = vector.shape_cast %291 : vector<1x1x64xf32> to vector<1x64xf32>
    %293 = vector.broadcast %292 : vector<1x64xf32> to vector<16x64xf32>
    %294 = arith.addf %290, %293 : vector<16x64xf32>
    %cst_145 = arith.constant 0.000000e+00 : f32
    %295 = vector.broadcast %cst_145 : f32 to vector<16x64xf32>
    %296 = arith.maximumf %294, %295 : vector<16x64xf32>
    %c1_146 = arith.constant 1 : index
    %c0_147 = arith.constant 0 : index
    %c0_148 = arith.constant 0 : index
    %297 = vector.load %arg15[%c1_146, %c0_147, %c0_148] : memref<4x64x32xf32, #tpu.memory_space<vmem>>, vector<1x64x32xf32>
    %298 = vector.shape_cast %297 : vector<1x64x32xf32> to vector<64x32xf32>
    %cst_149 = arith.constant dense<0.000000e+00> : vector<16x32xf32>
    %299 = tpu.matmul %296, %298, %cst_149 {dimension_numbers = #tpu.dot_dimension_numbers<[1], [0], [0], [1], [0, 0, 1, 1], [], []>} : vector<16x64xf32>, vector<64x32xf32>, vector<16x32xf32> -> vector<16x32xf32>
    %c29 = arith.constant 29 : index
    %c0_150 = arith.constant 0 : index
    %c0_151 = arith.constant 0 : index
    %300 = vector.load %arg16[%c29, %c0_150, %c0_151] : memref<36x1x32xf32, #tpu.memory_space<vmem>>, vector<1x1x32xf32>
    %301 = vector.shape_cast %300 : vector<1x1x32xf32> to vector<1x32xf32>
    %302 = vector.broadcast %301 : vector<1x32xf32> to vector<16x32xf32>
    %303 = arith.addf %299, %302 : vector<16x32xf32>
    %304 = arith.addf %287, %303 : vector<16x32xf32>
    %cst_152 = arith.constant dense<0.000000e+00> : vector<16xf32>
    %305 = vector.multi_reduction <add>, %304, %cst_152 [1] : vector<16x32xf32> to vector<16xf32>
    %306 = vector.shape_cast %305 : vector<16xf32> to vector<16x1xf32>
    %cst_153 = arith.constant 3.200000e+01 : f32
    %307 = vector.broadcast %cst_153 : f32 to vector<16x1xf32>
    %308 = arith.divf %306, %307 : vector<16x1xf32>
    %309 = vector.broadcast %308 : vector<16x1xf32> to vector<16x32xf32>
    %310 = arith.subf %304, %309 : vector<16x32xf32>
    %311 = arith.mulf %310, %310 : vector<16x32xf32>
    %cst_154 = arith.constant dense<0.000000e+00> : vector<16xf32>
    %312 = vector.multi_reduction <add>, %311, %cst_154 [1] : vector<16x32xf32> to vector<16xf32>
    %313 = vector.shape_cast %312 : vector<16xf32> to vector<16x1xf32>
    %cst_155 = arith.constant 3.200000e+01 : f32
    %314 = vector.broadcast %cst_155 : f32 to vector<16x1xf32>
    %315 = arith.divf %313, %314 : vector<16x1xf32>
    %cst_156 = arith.constant 9.99999974E-6 : f32
    %316 = vector.broadcast %cst_156 : f32 to vector<16x1xf32>
    %317 = arith.addf %315, %316 : vector<16x1xf32>
    %318 = math.rsqrt %317 : vector<16x1xf32>
    %319 = vector.broadcast %318 : vector<16x1xf32> to vector<16x32xf32>
    %320 = arith.mulf %310, %319 : vector<16x32xf32>
    %c14 = arith.constant 14 : index
    %c0_157 = arith.constant 0 : index
    %c0_158 = arith.constant 0 : index
    %321 = vector.load %arg16[%c14, %c0_157, %c0_158] : memref<36x1x32xf32, #tpu.memory_space<vmem>>, vector<1x1x32xf32>
    %322 = vector.shape_cast %321 : vector<1x1x32xf32> to vector<1x32xf32>
    %323 = vector.broadcast %322 : vector<1x32xf32> to vector<16x32xf32>
    %324 = arith.mulf %320, %323 : vector<16x32xf32>
    %c15 = arith.constant 15 : index
    %c0_159 = arith.constant 0 : index
    %c0_160 = arith.constant 0 : index
    %325 = vector.load %arg16[%c15, %c0_159, %c0_160] : memref<36x1x32xf32, #tpu.memory_space<vmem>>, vector<1x1x32xf32>
    %326 = vector.shape_cast %325 : vector<1x1x32xf32> to vector<1x32xf32>
    %327 = vector.broadcast %326 : vector<1x32xf32> to vector<16x32xf32>
    %328 = arith.addf %324, %327 : vector<16x32xf32>
    %cst_161 = arith.constant dense<0.000000e+00> : vector<16xf32>
    %329 = vector.multi_reduction <add>, %328, %cst_161 [1] : vector<16x32xf32> to vector<16xf32>
    %330 = vector.shape_cast %329 : vector<16xf32> to vector<16x1xf32>
    %cst_162 = arith.constant 3.200000e+01 : f32
    %331 = vector.broadcast %cst_162 : f32 to vector<16x1xf32>
    %332 = arith.divf %330, %331 : vector<16x1xf32>
    %333 = vector.broadcast %332 : vector<16x1xf32> to vector<16x32xf32>
    %334 = arith.subf %328, %333 : vector<16x32xf32>
    %335 = arith.mulf %334, %334 : vector<16x32xf32>
    %cst_163 = arith.constant dense<0.000000e+00> : vector<16xf32>
    %336 = vector.multi_reduction <add>, %335, %cst_163 [1] : vector<16x32xf32> to vector<16xf32>
    %337 = vector.shape_cast %336 : vector<16xf32> to vector<16x1xf32>
    %cst_164 = arith.constant 3.200000e+01 : f32
    %338 = vector.broadcast %cst_164 : f32 to vector<16x1xf32>
    %339 = arith.divf %337, %338 : vector<16x1xf32>
    %cst_165 = arith.constant 9.99999974E-6 : f32
    %340 = vector.broadcast %cst_165 : f32 to vector<16x1xf32>
    %341 = arith.addf %339, %340 : vector<16x1xf32>
    %342 = math.rsqrt %341 : vector<16x1xf32>
    %343 = vector.broadcast %342 : vector<16x1xf32> to vector<16x32xf32>
    %344 = arith.mulf %334, %343 : vector<16x32xf32>
    %c32 = arith.constant 32 : index
    %c0_166 = arith.constant 0 : index
    %c0_167 = arith.constant 0 : index
    %345 = vector.load %arg16[%c32, %c0_166, %c0_167] : memref<36x1x32xf32, #tpu.memory_space<vmem>>, vector<1x1x32xf32>
    %346 = vector.shape_cast %345 : vector<1x1x32xf32> to vector<1x32xf32>
    %347 = vector.broadcast %346 : vector<1x32xf32> to vector<16x32xf32>
    %348 = arith.mulf %344, %347 : vector<16x32xf32>
    %c33 = arith.constant 33 : index
    %c0_168 = arith.constant 0 : index
    %c0_169 = arith.constant 0 : index
    %349 = vector.load %arg16[%c33, %c0_168, %c0_169] : memref<36x1x32xf32, #tpu.memory_space<vmem>>, vector<1x1x32xf32>
    %350 = vector.shape_cast %349 : vector<1x1x32xf32> to vector<1x32xf32>
    %351 = vector.broadcast %350 : vector<1x32xf32> to vector<16x32xf32>
    %352 = arith.addf %348, %351 : vector<16x32xf32>
    %c2_170 = arith.constant 2 : index
    %c0_171 = arith.constant 0 : index
    %c0_172 = arith.constant 0 : index
    %353 = vector.load %arg8[%c2_170, %c0_171, %c0_172] : memref<6x32x32xf32, #tpu.memory_space<vmem>>, vector<1x32x32xf32>
    %354 = vector.shape_cast %353 : vector<1x32x32xf32> to vector<32x32xf32>
    %cst_173 = arith.constant dense<0.000000e+00> : vector<8x32xf32>
    %355 = tpu.matmul %20, %354, %cst_173 {dimension_numbers = #tpu.dot_dimension_numbers<[1], [0], [0], [1], [0, 0, 1, 1], [], []>} : vector<8x32xf32>, vector<32x32xf32>, vector<8x32xf32> -> vector<8x32xf32>
    %c2_174 = arith.constant 2 : index
    %c0_175 = arith.constant 0 : index
    %c0_176 = arith.constant 0 : index
    %356 = vector.load %arg9[%c2_174, %c0_175, %c0_176] : memref<6x1x32xf32, #tpu.memory_space<vmem>>, vector<1x1x32xf32>
    %357 = vector.shape_cast %356 : vector<1x1x32xf32> to vector<1x32xf32>
    %358 = vector.broadcast %357 : vector<1x32xf32> to vector<8x32xf32>
    %359 = arith.addf %355, %358 : vector<8x32xf32>
    %cst_177 = arith.constant 0.353553385 : f32
    %360 = vector.broadcast %cst_177 : f32 to vector<8x32xf32>
    %361 = arith.mulf %359, %360 : vector<8x32xf32>
    %c2_178 = arith.constant 2 : index
    %c0_179 = arith.constant 0 : index
    %c0_180 = arith.constant 0 : index
    %362 = vector.load %arg10[%c2_178, %c0_179, %c0_180] : memref<6x32x64xf32, #tpu.memory_space<vmem>>, vector<1x32x64xf32>
    %363 = vector.shape_cast %362 : vector<1x32x64xf32> to vector<32x64xf32>
    %cst_181 = arith.constant dense<0.000000e+00> : vector<8x64xf32>
    %364 = tpu.matmul %20, %363, %cst_181 {dimension_numbers = #tpu.dot_dimension_numbers<[1], [0], [0], [1], [0, 0, 1, 1], [], []>} : vector<8x32xf32>, vector<32x64xf32>, vector<8x64xf32> -> vector<8x64xf32>
    %c2_182 = arith.constant 2 : index
    %c0_183 = arith.constant 0 : index
    %c0_184 = arith.constant 0 : index
    %365 = vector.load %arg11[%c2_182, %c0_183, %c0_184] : memref<6x1x64xf32, #tpu.memory_space<vmem>>, vector<1x1x64xf32>
    %366 = vector.shape_cast %365 : vector<1x1x64xf32> to vector<1x64xf32>
    %367 = vector.broadcast %366 : vector<1x64xf32> to vector<8x64xf32>
    %368 = arith.addf %364, %367 : vector<8x64xf32>
    %369 = vector.extract_strided_slice %361 {offsets = [0, 0], sizes = [8, 8], strides = [1, 1]} : vector<8x32xf32> to vector<8x8xf32>
    %370 = vector.extract_strided_slice %368 {offsets = [0, 0], sizes = [8, 8], strides = [1, 1]} : vector<8x64xf32> to vector<8x8xf32>
    %371 = vector.extract_strided_slice %368 {offsets = [0, 32], sizes = [8, 8], strides = [1, 1]} : vector<8x64xf32> to vector<8x8xf32>
    %cst_185 = arith.constant dense<0.000000e+00> : vector<8x8xf32>
    %372 = tpu.matmul %369, %370, %cst_185 {dimension_numbers = #tpu.dot_dimension_numbers<[1], [1], [0], [0], [0, 0, 1, 0], [], []>} : vector<8x8xf32>, vector<8x8xf32>, vector<8x8xf32> -> vector<8x8xf32>
    %373 = arith.addf %372, %1 : vector<8x8xf32>
    %cst_186 = arith.constant dense<0xFF800000> : vector<8xf32>
    %374 = vector.multi_reduction <maximumf>, %373, %cst_186 [1] : vector<8x8xf32> to vector<8xf32>
    %375 = vector.shape_cast %374 : vector<8xf32> to vector<8x1xf32>
    %376 = vector.broadcast %375 : vector<8x1xf32> to vector<8x8xf32>
    %377 = arith.subf %373, %376 : vector<8x8xf32>
    %378 = math.exp %377 : vector<8x8xf32>
    %cst_187 = arith.constant dense<0.000000e+00> : vector<8xf32>
    %379 = vector.multi_reduction <add>, %378, %cst_187 [1] : vector<8x8xf32> to vector<8xf32>
    %380 = vector.shape_cast %379 : vector<8xf32> to vector<8x1xf32>
    %381 = tpu.reciprocal %380 {approx = true} : vector<8x1xf32> -> vector<8x1xf32>
    %382 = vector.broadcast %381 : vector<8x1xf32> to vector<8x8xf32>
    %383 = arith.mulf %378, %382 : vector<8x8xf32>
    %cst_188 = arith.constant dense<0.000000e+00> : vector<8x8xf32>
    %384 = tpu.matmul %383, %371, %cst_188 {dimension_numbers = #tpu.dot_dimension_numbers<[1], [0], [0], [1], [0, 0, 1, 1], [], []>} : vector<8x8xf32>, vector<8x8xf32>, vector<8x8xf32> -> vector<8x8xf32>
    %385 = vector.extract_strided_slice %361 {offsets = [0, 8], sizes = [8, 8], strides = [1, 1]} : vector<8x32xf32> to vector<8x8xf32>
    %386 = vector.extract_strided_slice %368 {offsets = [0, 8], sizes = [8, 8], strides = [1, 1]} : vector<8x64xf32> to vector<8x8xf32>
    %387 = vector.extract_strided_slice %368 {offsets = [0, 40], sizes = [8, 8], strides = [1, 1]} : vector<8x64xf32> to vector<8x8xf32>
    %cst_189 = arith.constant dense<0.000000e+00> : vector<8x8xf32>
    %388 = tpu.matmul %385, %386, %cst_189 {dimension_numbers = #tpu.dot_dimension_numbers<[1], [1], [0], [0], [0, 0, 1, 0], [], []>} : vector<8x8xf32>, vector<8x8xf32>, vector<8x8xf32> -> vector<8x8xf32>
    %389 = arith.addf %388, %1 : vector<8x8xf32>
    %cst_190 = arith.constant dense<0xFF800000> : vector<8xf32>
    %390 = vector.multi_reduction <maximumf>, %389, %cst_190 [1] : vector<8x8xf32> to vector<8xf32>
    %391 = vector.shape_cast %390 : vector<8xf32> to vector<8x1xf32>
    %392 = vector.broadcast %391 : vector<8x1xf32> to vector<8x8xf32>
    %393 = arith.subf %389, %392 : vector<8x8xf32>
    %394 = math.exp %393 : vector<8x8xf32>
    %cst_191 = arith.constant dense<0.000000e+00> : vector<8xf32>
    %395 = vector.multi_reduction <add>, %394, %cst_191 [1] : vector<8x8xf32> to vector<8xf32>
    %396 = vector.shape_cast %395 : vector<8xf32> to vector<8x1xf32>
    %397 = tpu.reciprocal %396 {approx = true} : vector<8x1xf32> -> vector<8x1xf32>
    %398 = vector.broadcast %397 : vector<8x1xf32> to vector<8x8xf32>
    %399 = arith.mulf %394, %398 : vector<8x8xf32>
    %cst_192 = arith.constant dense<0.000000e+00> : vector<8x8xf32>
    %400 = tpu.matmul %399, %387, %cst_192 {dimension_numbers = #tpu.dot_dimension_numbers<[1], [0], [0], [1], [0, 0, 1, 1], [], []>} : vector<8x8xf32>, vector<8x8xf32>, vector<8x8xf32> -> vector<8x8xf32>
    %401 = vector.extract_strided_slice %361 {offsets = [0, 16], sizes = [8, 8], strides = [1, 1]} : vector<8x32xf32> to vector<8x8xf32>
    %402 = vector.extract_strided_slice %368 {offsets = [0, 16], sizes = [8, 8], strides = [1, 1]} : vector<8x64xf32> to vector<8x8xf32>
    %403 = vector.extract_strided_slice %368 {offsets = [0, 48], sizes = [8, 8], strides = [1, 1]} : vector<8x64xf32> to vector<8x8xf32>
    %cst_193 = arith.constant dense<0.000000e+00> : vector<8x8xf32>
    %404 = tpu.matmul %401, %402, %cst_193 {dimension_numbers = #tpu.dot_dimension_numbers<[1], [1], [0], [0], [0, 0, 1, 0], [], []>} : vector<8x8xf32>, vector<8x8xf32>, vector<8x8xf32> -> vector<8x8xf32>
    %405 = arith.addf %404, %1 : vector<8x8xf32>
    %cst_194 = arith.constant dense<0xFF800000> : vector<8xf32>
    %406 = vector.multi_reduction <maximumf>, %405, %cst_194 [1] : vector<8x8xf32> to vector<8xf32>
    %407 = vector.shape_cast %406 : vector<8xf32> to vector<8x1xf32>
    %408 = vector.broadcast %407 : vector<8x1xf32> to vector<8x8xf32>
    %409 = arith.subf %405, %408 : vector<8x8xf32>
    %410 = math.exp %409 : vector<8x8xf32>
    %cst_195 = arith.constant dense<0.000000e+00> : vector<8xf32>
    %411 = vector.multi_reduction <add>, %410, %cst_195 [1] : vector<8x8xf32> to vector<8xf32>
    %412 = vector.shape_cast %411 : vector<8xf32> to vector<8x1xf32>
    %413 = tpu.reciprocal %412 {approx = true} : vector<8x1xf32> -> vector<8x1xf32>
    %414 = vector.broadcast %413 : vector<8x1xf32> to vector<8x8xf32>
    %415 = arith.mulf %410, %414 : vector<8x8xf32>
    %cst_196 = arith.constant dense<0.000000e+00> : vector<8x8xf32>
    %416 = tpu.matmul %415, %403, %cst_196 {dimension_numbers = #tpu.dot_dimension_numbers<[1], [0], [0], [1], [0, 0, 1, 1], [], []>} : vector<8x8xf32>, vector<8x8xf32>, vector<8x8xf32> -> vector<8x8xf32>
    %417 = vector.extract_strided_slice %361 {offsets = [0, 24], sizes = [8, 8], strides = [1, 1]} : vector<8x32xf32> to vector<8x8xf32>
    %418 = vector.extract_strided_slice %368 {offsets = [0, 24], sizes = [8, 8], strides = [1, 1]} : vector<8x64xf32> to vector<8x8xf32>
    %419 = vector.extract_strided_slice %368 {offsets = [0, 56], sizes = [8, 8], strides = [1, 1]} : vector<8x64xf32> to vector<8x8xf32>
    %cst_197 = arith.constant dense<0.000000e+00> : vector<8x8xf32>
    %420 = tpu.matmul %417, %418, %cst_197 {dimension_numbers = #tpu.dot_dimension_numbers<[1], [1], [0], [0], [0, 0, 1, 0], [], []>} : vector<8x8xf32>, vector<8x8xf32>, vector<8x8xf32> -> vector<8x8xf32>
    %421 = arith.addf %420, %1 : vector<8x8xf32>
    %cst_198 = arith.constant dense<0xFF800000> : vector<8xf32>
    %422 = vector.multi_reduction <maximumf>, %421, %cst_198 [1] : vector<8x8xf32> to vector<8xf32>
    %423 = vector.shape_cast %422 : vector<8xf32> to vector<8x1xf32>
    %424 = vector.broadcast %423 : vector<8x1xf32> to vector<8x8xf32>
    %425 = arith.subf %421, %424 : vector<8x8xf32>
    %426 = math.exp %425 : vector<8x8xf32>
    %cst_199 = arith.constant dense<0.000000e+00> : vector<8xf32>
    %427 = vector.multi_reduction <add>, %426, %cst_199 [1] : vector<8x8xf32> to vector<8xf32>
    %428 = vector.shape_cast %427 : vector<8xf32> to vector<8x1xf32>
    %429 = tpu.reciprocal %428 {approx = true} : vector<8x1xf32> -> vector<8x1xf32>
    %430 = vector.broadcast %429 : vector<8x1xf32> to vector<8x8xf32>
    %431 = arith.mulf %426, %430 : vector<8x8xf32>
    %cst_200 = arith.constant dense<0.000000e+00> : vector<8x8xf32>
    %432 = tpu.matmul %431, %419, %cst_200 {dimension_numbers = #tpu.dot_dimension_numbers<[1], [0], [0], [1], [0, 0, 1, 1], [], []>} : vector<8x8xf32>, vector<8x8xf32>, vector<8x8xf32> -> vector<8x8xf32>
    %433 = tpu.concatenate %384, %400, %416, %432 in 1 : vector<8x8xf32>, vector<8x8xf32>, vector<8x8xf32>, vector<8x8xf32> -> vector<8x32xf32>
    %c2_201 = arith.constant 2 : index
    %c0_202 = arith.constant 0 : index
    %c0_203 = arith.constant 0 : index
    %434 = vector.load %arg12[%c2_201, %c0_202, %c0_203] : memref<6x32x32xf32, #tpu.memory_space<vmem>>, vector<1x32x32xf32>
    %435 = vector.shape_cast %434 : vector<1x32x32xf32> to vector<32x32xf32>
    %cst_204 = arith.constant dense<0.000000e+00> : vector<8x32xf32>
    %436 = tpu.matmul %433, %435, %cst_204 {dimension_numbers = #tpu.dot_dimension_numbers<[1], [0], [0], [1], [0, 0, 1, 1], [], []>} : vector<8x32xf32>, vector<32x32xf32>, vector<8x32xf32> -> vector<8x32xf32>
    %c4 = arith.constant 4 : index
    %c0_205 = arith.constant 0 : index
    %c0_206 = arith.constant 0 : index
    %437 = vector.load %arg16[%c4, %c0_205, %c0_206] : memref<36x1x32xf32, #tpu.memory_space<vmem>>, vector<1x1x32xf32>
    %438 = vector.shape_cast %437 : vector<1x1x32xf32> to vector<1x32xf32>
    %439 = vector.broadcast %438 : vector<1x32xf32> to vector<8x32xf32>
    %440 = arith.addf %436, %439 : vector<8x32xf32>
    %441 = arith.addf %20, %440 : vector<8x32xf32>
    %cst_207 = arith.constant dense<0.000000e+00> : vector<8xf32>
    %442 = vector.multi_reduction <add>, %441, %cst_207 [1] : vector<8x32xf32> to vector<8xf32>
    %443 = vector.shape_cast %442 : vector<8xf32> to vector<8x1xf32>
    %cst_208 = arith.constant 3.200000e+01 : f32
    %444 = vector.broadcast %cst_208 : f32 to vector<8x1xf32>
    %445 = arith.divf %443, %444 : vector<8x1xf32>
    %446 = vector.broadcast %445 : vector<8x1xf32> to vector<8x32xf32>
    %447 = arith.subf %441, %446 : vector<8x32xf32>
    %448 = arith.mulf %447, %447 : vector<8x32xf32>
    %cst_209 = arith.constant dense<0.000000e+00> : vector<8xf32>
    %449 = vector.multi_reduction <add>, %448, %cst_209 [1] : vector<8x32xf32> to vector<8xf32>
    %450 = vector.shape_cast %449 : vector<8xf32> to vector<8x1xf32>
    %cst_210 = arith.constant 3.200000e+01 : f32
    %451 = vector.broadcast %cst_210 : f32 to vector<8x1xf32>
    %452 = arith.divf %450, %451 : vector<8x1xf32>
    %cst_211 = arith.constant 9.99999974E-6 : f32
    %453 = vector.broadcast %cst_211 : f32 to vector<8x1xf32>
    %454 = arith.addf %452, %453 : vector<8x1xf32>
    %455 = math.rsqrt %454 : vector<8x1xf32>
    %456 = vector.broadcast %455 : vector<8x1xf32> to vector<8x32xf32>
    %457 = arith.mulf %447, %456 : vector<8x32xf32>
    %c16 = arith.constant 16 : index
    %c0_212 = arith.constant 0 : index
    %c0_213 = arith.constant 0 : index
    %458 = vector.load %arg16[%c16, %c0_212, %c0_213] : memref<36x1x32xf32, #tpu.memory_space<vmem>>, vector<1x1x32xf32>
    %459 = vector.shape_cast %458 : vector<1x1x32xf32> to vector<1x32xf32>
    %460 = vector.broadcast %459 : vector<1x32xf32> to vector<8x32xf32>
    %461 = arith.mulf %457, %460 : vector<8x32xf32>
    %c17 = arith.constant 17 : index
    %c0_214 = arith.constant 0 : index
    %c0_215 = arith.constant 0 : index
    %462 = vector.load %arg16[%c17, %c0_214, %c0_215] : memref<36x1x32xf32, #tpu.memory_space<vmem>>, vector<1x1x32xf32>
    %463 = vector.shape_cast %462 : vector<1x1x32xf32> to vector<1x32xf32>
    %464 = vector.broadcast %463 : vector<1x32xf32> to vector<8x32xf32>
    %465 = arith.addf %461, %464 : vector<8x32xf32>
    %c3_216 = arith.constant 3 : index
    %c0_217 = arith.constant 0 : index
    %c0_218 = arith.constant 0 : index
    %466 = vector.load %arg8[%c3_216, %c0_217, %c0_218] : memref<6x32x32xf32, #tpu.memory_space<vmem>>, vector<1x32x32xf32>
    %467 = vector.shape_cast %466 : vector<1x32x32xf32> to vector<32x32xf32>
    %cst_219 = arith.constant dense<0.000000e+00> : vector<8x32xf32>
    %468 = tpu.matmul %465, %467, %cst_219 {dimension_numbers = #tpu.dot_dimension_numbers<[1], [0], [0], [1], [0, 0, 1, 1], [], []>} : vector<8x32xf32>, vector<32x32xf32>, vector<8x32xf32> -> vector<8x32xf32>
    %c3_220 = arith.constant 3 : index
    %c0_221 = arith.constant 0 : index
    %c0_222 = arith.constant 0 : index
    %469 = vector.load %arg9[%c3_220, %c0_221, %c0_222] : memref<6x1x32xf32, #tpu.memory_space<vmem>>, vector<1x1x32xf32>
    %470 = vector.shape_cast %469 : vector<1x1x32xf32> to vector<1x32xf32>
    %471 = vector.broadcast %470 : vector<1x32xf32> to vector<8x32xf32>
    %472 = arith.addf %468, %471 : vector<8x32xf32>
    %cst_223 = arith.constant 0.353553385 : f32
    %473 = vector.broadcast %cst_223 : f32 to vector<8x32xf32>
    %474 = arith.mulf %472, %473 : vector<8x32xf32>
    %c3_224 = arith.constant 3 : index
    %c0_225 = arith.constant 0 : index
    %c0_226 = arith.constant 0 : index
    %475 = vector.load %arg10[%c3_224, %c0_225, %c0_226] : memref<6x32x64xf32, #tpu.memory_space<vmem>>, vector<1x32x64xf32>
    %476 = vector.shape_cast %475 : vector<1x32x64xf32> to vector<32x64xf32>
    %cst_227 = arith.constant dense<0.000000e+00> : vector<16x64xf32>
    %477 = tpu.matmul %352, %476, %cst_227 {dimension_numbers = #tpu.dot_dimension_numbers<[1], [0], [0], [1], [0, 0, 1, 1], [], []>} : vector<16x32xf32>, vector<32x64xf32>, vector<16x64xf32> -> vector<16x64xf32>
    %c3_228 = arith.constant 3 : index
    %c0_229 = arith.constant 0 : index
    %c0_230 = arith.constant 0 : index
    %478 = vector.load %arg11[%c3_228, %c0_229, %c0_230] : memref<6x1x64xf32, #tpu.memory_space<vmem>>, vector<1x1x64xf32>
    %479 = vector.shape_cast %478 : vector<1x1x64xf32> to vector<1x64xf32>
    %480 = vector.broadcast %479 : vector<1x64xf32> to vector<16x64xf32>
    %481 = arith.addf %477, %480 : vector<16x64xf32>
    %482 = vector.extract_strided_slice %474 {offsets = [0, 0], sizes = [8, 8], strides = [1, 1]} : vector<8x32xf32> to vector<8x8xf32>
    %483 = vector.extract_strided_slice %481 {offsets = [0, 0], sizes = [16, 8], strides = [1, 1]} : vector<16x64xf32> to vector<16x8xf32>
    %484 = vector.extract_strided_slice %481 {offsets = [0, 32], sizes = [16, 8], strides = [1, 1]} : vector<16x64xf32> to vector<16x8xf32>
    %cst_231 = arith.constant dense<0.000000e+00> : vector<8x16xf32>
    %485 = tpu.matmul %482, %483, %cst_231 {dimension_numbers = #tpu.dot_dimension_numbers<[1], [1], [0], [0], [0, 0, 1, 0], [], []>} : vector<8x8xf32>, vector<16x8xf32>, vector<8x16xf32> -> vector<8x16xf32>
    %486 = arith.addf %485, %2 : vector<8x16xf32>
    %cst_232 = arith.constant dense<0xFF800000> : vector<8xf32>
    %487 = vector.multi_reduction <maximumf>, %486, %cst_232 [1] : vector<8x16xf32> to vector<8xf32>
    %488 = vector.shape_cast %487 : vector<8xf32> to vector<8x1xf32>
    %489 = vector.broadcast %488 : vector<8x1xf32> to vector<8x16xf32>
    %490 = arith.subf %486, %489 : vector<8x16xf32>
    %491 = math.exp %490 : vector<8x16xf32>
    %cst_233 = arith.constant dense<0.000000e+00> : vector<8xf32>
    %492 = vector.multi_reduction <add>, %491, %cst_233 [1] : vector<8x16xf32> to vector<8xf32>
    %493 = vector.shape_cast %492 : vector<8xf32> to vector<8x1xf32>
    %494 = tpu.reciprocal %493 {approx = true} : vector<8x1xf32> -> vector<8x1xf32>
    %495 = vector.broadcast %494 : vector<8x1xf32> to vector<8x16xf32>
    %496 = arith.mulf %491, %495 : vector<8x16xf32>
    %cst_234 = arith.constant dense<0.000000e+00> : vector<8x8xf32>
    %497 = tpu.matmul %496, %484, %cst_234 {dimension_numbers = #tpu.dot_dimension_numbers<[1], [0], [0], [1], [0, 0, 1, 1], [], []>} : vector<8x16xf32>, vector<16x8xf32>, vector<8x8xf32> -> vector<8x8xf32>
    %498 = vector.extract_strided_slice %474 {offsets = [0, 8], sizes = [8, 8], strides = [1, 1]} : vector<8x32xf32> to vector<8x8xf32>
    %499 = vector.extract_strided_slice %481 {offsets = [0, 8], sizes = [16, 8], strides = [1, 1]} : vector<16x64xf32> to vector<16x8xf32>
    %500 = vector.extract_strided_slice %481 {offsets = [0, 40], sizes = [16, 8], strides = [1, 1]} : vector<16x64xf32> to vector<16x8xf32>
    %cst_235 = arith.constant dense<0.000000e+00> : vector<8x16xf32>
    %501 = tpu.matmul %498, %499, %cst_235 {dimension_numbers = #tpu.dot_dimension_numbers<[1], [1], [0], [0], [0, 0, 1, 0], [], []>} : vector<8x8xf32>, vector<16x8xf32>, vector<8x16xf32> -> vector<8x16xf32>
    %502 = arith.addf %501, %2 : vector<8x16xf32>
    %cst_236 = arith.constant dense<0xFF800000> : vector<8xf32>
    %503 = vector.multi_reduction <maximumf>, %502, %cst_236 [1] : vector<8x16xf32> to vector<8xf32>
    %504 = vector.shape_cast %503 : vector<8xf32> to vector<8x1xf32>
    %505 = vector.broadcast %504 : vector<8x1xf32> to vector<8x16xf32>
    %506 = arith.subf %502, %505 : vector<8x16xf32>
    %507 = math.exp %506 : vector<8x16xf32>
    %cst_237 = arith.constant dense<0.000000e+00> : vector<8xf32>
    %508 = vector.multi_reduction <add>, %507, %cst_237 [1] : vector<8x16xf32> to vector<8xf32>
    %509 = vector.shape_cast %508 : vector<8xf32> to vector<8x1xf32>
    %510 = tpu.reciprocal %509 {approx = true} : vector<8x1xf32> -> vector<8x1xf32>
    %511 = vector.broadcast %510 : vector<8x1xf32> to vector<8x16xf32>
    %512 = arith.mulf %507, %511 : vector<8x16xf32>
    %cst_238 = arith.constant dense<0.000000e+00> : vector<8x8xf32>
    %513 = tpu.matmul %512, %500, %cst_238 {dimension_numbers = #tpu.dot_dimension_numbers<[1], [0], [0], [1], [0, 0, 1, 1], [], []>} : vector<8x16xf32>, vector<16x8xf32>, vector<8x8xf32> -> vector<8x8xf32>
    %514 = vector.extract_strided_slice %474 {offsets = [0, 16], sizes = [8, 8], strides = [1, 1]} : vector<8x32xf32> to vector<8x8xf32>
    %515 = vector.extract_strided_slice %481 {offsets = [0, 16], sizes = [16, 8], strides = [1, 1]} : vector<16x64xf32> to vector<16x8xf32>
    %516 = vector.extract_strided_slice %481 {offsets = [0, 48], sizes = [16, 8], strides = [1, 1]} : vector<16x64xf32> to vector<16x8xf32>
    %cst_239 = arith.constant dense<0.000000e+00> : vector<8x16xf32>
    %517 = tpu.matmul %514, %515, %cst_239 {dimension_numbers = #tpu.dot_dimension_numbers<[1], [1], [0], [0], [0, 0, 1, 0], [], []>} : vector<8x8xf32>, vector<16x8xf32>, vector<8x16xf32> -> vector<8x16xf32>
    %518 = arith.addf %517, %2 : vector<8x16xf32>
    %cst_240 = arith.constant dense<0xFF800000> : vector<8xf32>
    %519 = vector.multi_reduction <maximumf>, %518, %cst_240 [1] : vector<8x16xf32> to vector<8xf32>
    %520 = vector.shape_cast %519 : vector<8xf32> to vector<8x1xf32>
    %521 = vector.broadcast %520 : vector<8x1xf32> to vector<8x16xf32>
    %522 = arith.subf %518, %521 : vector<8x16xf32>
    %523 = math.exp %522 : vector<8x16xf32>
    %cst_241 = arith.constant dense<0.000000e+00> : vector<8xf32>
    %524 = vector.multi_reduction <add>, %523, %cst_241 [1] : vector<8x16xf32> to vector<8xf32>
    %525 = vector.shape_cast %524 : vector<8xf32> to vector<8x1xf32>
    %526 = tpu.reciprocal %525 {approx = true} : vector<8x1xf32> -> vector<8x1xf32>
    %527 = vector.broadcast %526 : vector<8x1xf32> to vector<8x16xf32>
    %528 = arith.mulf %523, %527 : vector<8x16xf32>
    %cst_242 = arith.constant dense<0.000000e+00> : vector<8x8xf32>
    %529 = tpu.matmul %528, %516, %cst_242 {dimension_numbers = #tpu.dot_dimension_numbers<[1], [0], [0], [1], [0, 0, 1, 1], [], []>} : vector<8x16xf32>, vector<16x8xf32>, vector<8x8xf32> -> vector<8x8xf32>
    %530 = vector.extract_strided_slice %474 {offsets = [0, 24], sizes = [8, 8], strides = [1, 1]} : vector<8x32xf32> to vector<8x8xf32>
    %531 = vector.extract_strided_slice %481 {offsets = [0, 24], sizes = [16, 8], strides = [1, 1]} : vector<16x64xf32> to vector<16x8xf32>
    %532 = vector.extract_strided_slice %481 {offsets = [0, 56], sizes = [16, 8], strides = [1, 1]} : vector<16x64xf32> to vector<16x8xf32>
    %cst_243 = arith.constant dense<0.000000e+00> : vector<8x16xf32>
    %533 = tpu.matmul %530, %531, %cst_243 {dimension_numbers = #tpu.dot_dimension_numbers<[1], [1], [0], [0], [0, 0, 1, 0], [], []>} : vector<8x8xf32>, vector<16x8xf32>, vector<8x16xf32> -> vector<8x16xf32>
    %534 = arith.addf %533, %2 : vector<8x16xf32>
    %cst_244 = arith.constant dense<0xFF800000> : vector<8xf32>
    %535 = vector.multi_reduction <maximumf>, %534, %cst_244 [1] : vector<8x16xf32> to vector<8xf32>
    %536 = vector.shape_cast %535 : vector<8xf32> to vector<8x1xf32>
    %537 = vector.broadcast %536 : vector<8x1xf32> to vector<8x16xf32>
    %538 = arith.subf %534, %537 : vector<8x16xf32>
    %539 = math.exp %538 : vector<8x16xf32>
    %cst_245 = arith.constant dense<0.000000e+00> : vector<8xf32>
    %540 = vector.multi_reduction <add>, %539, %cst_245 [1] : vector<8x16xf32> to vector<8xf32>
    %541 = vector.shape_cast %540 : vector<8xf32> to vector<8x1xf32>
    %542 = tpu.reciprocal %541 {approx = true} : vector<8x1xf32> -> vector<8x1xf32>
    %543 = vector.broadcast %542 : vector<8x1xf32> to vector<8x16xf32>
    %544 = arith.mulf %539, %543 : vector<8x16xf32>
    %cst_246 = arith.constant dense<0.000000e+00> : vector<8x8xf32>
    %545 = tpu.matmul %544, %532, %cst_246 {dimension_numbers = #tpu.dot_dimension_numbers<[1], [0], [0], [1], [0, 0, 1, 1], [], []>} : vector<8x16xf32>, vector<16x8xf32>, vector<8x8xf32> -> vector<8x8xf32>
    %546 = tpu.concatenate %497, %513, %529, %545 in 1 : vector<8x8xf32>, vector<8x8xf32>, vector<8x8xf32>, vector<8x8xf32> -> vector<8x32xf32>
    %c3_247 = arith.constant 3 : index
    %c0_248 = arith.constant 0 : index
    %c0_249 = arith.constant 0 : index
    %547 = vector.load %arg12[%c3_247, %c0_248, %c0_249] : memref<6x32x32xf32, #tpu.memory_space<vmem>>, vector<1x32x32xf32>
    %548 = vector.shape_cast %547 : vector<1x32x32xf32> to vector<32x32xf32>
    %cst_250 = arith.constant dense<0.000000e+00> : vector<8x32xf32>
    %549 = tpu.matmul %546, %548, %cst_250 {dimension_numbers = #tpu.dot_dimension_numbers<[1], [0], [0], [1], [0, 0, 1, 1], [], []>} : vector<8x32xf32>, vector<32x32xf32>, vector<8x32xf32> -> vector<8x32xf32>
    %c5 = arith.constant 5 : index
    %c0_251 = arith.constant 0 : index
    %c0_252 = arith.constant 0 : index
    %550 = vector.load %arg16[%c5, %c0_251, %c0_252] : memref<36x1x32xf32, #tpu.memory_space<vmem>>, vector<1x1x32xf32>
    %551 = vector.shape_cast %550 : vector<1x1x32xf32> to vector<1x32xf32>
    %552 = vector.broadcast %551 : vector<1x32xf32> to vector<8x32xf32>
    %553 = arith.addf %549, %552 : vector<8x32xf32>
    %554 = arith.addf %465, %553 : vector<8x32xf32>
    %cst_253 = arith.constant dense<0.000000e+00> : vector<8xf32>
    %555 = vector.multi_reduction <add>, %554, %cst_253 [1] : vector<8x32xf32> to vector<8xf32>
    %556 = vector.shape_cast %555 : vector<8xf32> to vector<8x1xf32>
    %cst_254 = arith.constant 3.200000e+01 : f32
    %557 = vector.broadcast %cst_254 : f32 to vector<8x1xf32>
    %558 = arith.divf %556, %557 : vector<8x1xf32>
    %559 = vector.broadcast %558 : vector<8x1xf32> to vector<8x32xf32>
    %560 = arith.subf %554, %559 : vector<8x32xf32>
    %561 = arith.mulf %560, %560 : vector<8x32xf32>
    %cst_255 = arith.constant dense<0.000000e+00> : vector<8xf32>
    %562 = vector.multi_reduction <add>, %561, %cst_255 [1] : vector<8x32xf32> to vector<8xf32>
    %563 = vector.shape_cast %562 : vector<8xf32> to vector<8x1xf32>
    %cst_256 = arith.constant 3.200000e+01 : f32
    %564 = vector.broadcast %cst_256 : f32 to vector<8x1xf32>
    %565 = arith.divf %563, %564 : vector<8x1xf32>
    %cst_257 = arith.constant 9.99999974E-6 : f32
    %566 = vector.broadcast %cst_257 : f32 to vector<8x1xf32>
    %567 = arith.addf %565, %566 : vector<8x1xf32>
    %568 = math.rsqrt %567 : vector<8x1xf32>
    %569 = vector.broadcast %568 : vector<8x1xf32> to vector<8x32xf32>
    %570 = arith.mulf %560, %569 : vector<8x32xf32>
    %c18 = arith.constant 18 : index
    %c0_258 = arith.constant 0 : index
    %c0_259 = arith.constant 0 : index
    %571 = vector.load %arg16[%c18, %c0_258, %c0_259] : memref<36x1x32xf32, #tpu.memory_space<vmem>>, vector<1x1x32xf32>
    %572 = vector.shape_cast %571 : vector<1x1x32xf32> to vector<1x32xf32>
    %573 = vector.broadcast %572 : vector<1x32xf32> to vector<8x32xf32>
    %574 = arith.mulf %570, %573 : vector<8x32xf32>
    %c19 = arith.constant 19 : index
    %c0_260 = arith.constant 0 : index
    %c0_261 = arith.constant 0 : index
    %575 = vector.load %arg16[%c19, %c0_260, %c0_261] : memref<36x1x32xf32, #tpu.memory_space<vmem>>, vector<1x1x32xf32>
    %576 = vector.shape_cast %575 : vector<1x1x32xf32> to vector<1x32xf32>
    %577 = vector.broadcast %576 : vector<1x32xf32> to vector<8x32xf32>
    %578 = arith.addf %574, %577 : vector<8x32xf32>
    %c2_262 = arith.constant 2 : index
    %c0_263 = arith.constant 0 : index
    %c0_264 = arith.constant 0 : index
    %579 = vector.load %arg13[%c2_262, %c0_263, %c0_264] : memref<4x32x64xf32, #tpu.memory_space<vmem>>, vector<1x32x64xf32>
    %580 = vector.shape_cast %579 : vector<1x32x64xf32> to vector<32x64xf32>
    %cst_265 = arith.constant dense<0.000000e+00> : vector<8x64xf32>
    %581 = tpu.matmul %578, %580, %cst_265 {dimension_numbers = #tpu.dot_dimension_numbers<[1], [0], [0], [1], [0, 0, 1, 1], [], []>} : vector<8x32xf32>, vector<32x64xf32>, vector<8x64xf32> -> vector<8x64xf32>
    %c2_266 = arith.constant 2 : index
    %c0_267 = arith.constant 0 : index
    %c0_268 = arith.constant 0 : index
    %582 = vector.load %arg14[%c2_266, %c0_267, %c0_268] : memref<4x1x64xf32, #tpu.memory_space<vmem>>, vector<1x1x64xf32>
    %583 = vector.shape_cast %582 : vector<1x1x64xf32> to vector<1x64xf32>
    %584 = vector.broadcast %583 : vector<1x64xf32> to vector<8x64xf32>
    %585 = arith.addf %581, %584 : vector<8x64xf32>
    %cst_269 = arith.constant 0.000000e+00 : f32
    %586 = vector.broadcast %cst_269 : f32 to vector<8x64xf32>
    %587 = arith.maximumf %585, %586 : vector<8x64xf32>
    %c2_270 = arith.constant 2 : index
    %c0_271 = arith.constant 0 : index
    %c0_272 = arith.constant 0 : index
    %588 = vector.load %arg15[%c2_270, %c0_271, %c0_272] : memref<4x64x32xf32, #tpu.memory_space<vmem>>, vector<1x64x32xf32>
    %589 = vector.shape_cast %588 : vector<1x64x32xf32> to vector<64x32xf32>
    %cst_273 = arith.constant dense<0.000000e+00> : vector<8x32xf32>
    %590 = tpu.matmul %587, %589, %cst_273 {dimension_numbers = #tpu.dot_dimension_numbers<[1], [0], [0], [1], [0, 0, 1, 1], [], []>} : vector<8x64xf32>, vector<64x32xf32>, vector<8x32xf32> -> vector<8x32xf32>
    %c30 = arith.constant 30 : index
    %c0_274 = arith.constant 0 : index
    %c0_275 = arith.constant 0 : index
    %591 = vector.load %arg16[%c30, %c0_274, %c0_275] : memref<36x1x32xf32, #tpu.memory_space<vmem>>, vector<1x1x32xf32>
    %592 = vector.shape_cast %591 : vector<1x1x32xf32> to vector<1x32xf32>
    %593 = vector.broadcast %592 : vector<1x32xf32> to vector<8x32xf32>
    %594 = arith.addf %590, %593 : vector<8x32xf32>
    %595 = arith.addf %578, %594 : vector<8x32xf32>
    %cst_276 = arith.constant dense<0.000000e+00> : vector<8xf32>
    %596 = vector.multi_reduction <add>, %595, %cst_276 [1] : vector<8x32xf32> to vector<8xf32>
    %597 = vector.shape_cast %596 : vector<8xf32> to vector<8x1xf32>
    %cst_277 = arith.constant 3.200000e+01 : f32
    %598 = vector.broadcast %cst_277 : f32 to vector<8x1xf32>
    %599 = arith.divf %597, %598 : vector<8x1xf32>
    %600 = vector.broadcast %599 : vector<8x1xf32> to vector<8x32xf32>
    %601 = arith.subf %595, %600 : vector<8x32xf32>
    %602 = arith.mulf %601, %601 : vector<8x32xf32>
    %cst_278 = arith.constant dense<0.000000e+00> : vector<8xf32>
    %603 = vector.multi_reduction <add>, %602, %cst_278 [1] : vector<8x32xf32> to vector<8xf32>
    %604 = vector.shape_cast %603 : vector<8xf32> to vector<8x1xf32>
    %cst_279 = arith.constant 3.200000e+01 : f32
    %605 = vector.broadcast %cst_279 : f32 to vector<8x1xf32>
    %606 = arith.divf %604, %605 : vector<8x1xf32>
    %cst_280 = arith.constant 9.99999974E-6 : f32
    %607 = vector.broadcast %cst_280 : f32 to vector<8x1xf32>
    %608 = arith.addf %606, %607 : vector<8x1xf32>
    %609 = math.rsqrt %608 : vector<8x1xf32>
    %610 = vector.broadcast %609 : vector<8x1xf32> to vector<8x32xf32>
    %611 = arith.mulf %601, %610 : vector<8x32xf32>
    %c20 = arith.constant 20 : index
    %c0_281 = arith.constant 0 : index
    %c0_282 = arith.constant 0 : index
    %612 = vector.load %arg16[%c20, %c0_281, %c0_282] : memref<36x1x32xf32, #tpu.memory_space<vmem>>, vector<1x1x32xf32>
    %613 = vector.shape_cast %612 : vector<1x1x32xf32> to vector<1x32xf32>
    %614 = vector.broadcast %613 : vector<1x32xf32> to vector<8x32xf32>
    %615 = arith.mulf %611, %614 : vector<8x32xf32>
    %c21 = arith.constant 21 : index
    %c0_283 = arith.constant 0 : index
    %c0_284 = arith.constant 0 : index
    %616 = vector.load %arg16[%c21, %c0_283, %c0_284] : memref<36x1x32xf32, #tpu.memory_space<vmem>>, vector<1x1x32xf32>
    %617 = vector.shape_cast %616 : vector<1x1x32xf32> to vector<1x32xf32>
    %618 = vector.broadcast %617 : vector<1x32xf32> to vector<8x32xf32>
    %619 = arith.addf %615, %618 : vector<8x32xf32>
    %c4_285 = arith.constant 4 : index
    %c0_286 = arith.constant 0 : index
    %c0_287 = arith.constant 0 : index
    %620 = vector.load %arg8[%c4_285, %c0_286, %c0_287] : memref<6x32x32xf32, #tpu.memory_space<vmem>>, vector<1x32x32xf32>
    %621 = vector.shape_cast %620 : vector<1x32x32xf32> to vector<32x32xf32>
    %cst_288 = arith.constant dense<0.000000e+00> : vector<8x32xf32>
    %622 = tpu.matmul %619, %621, %cst_288 {dimension_numbers = #tpu.dot_dimension_numbers<[1], [0], [0], [1], [0, 0, 1, 1], [], []>} : vector<8x32xf32>, vector<32x32xf32>, vector<8x32xf32> -> vector<8x32xf32>
    %c4_289 = arith.constant 4 : index
    %c0_290 = arith.constant 0 : index
    %c0_291 = arith.constant 0 : index
    %623 = vector.load %arg9[%c4_289, %c0_290, %c0_291] : memref<6x1x32xf32, #tpu.memory_space<vmem>>, vector<1x1x32xf32>
    %624 = vector.shape_cast %623 : vector<1x1x32xf32> to vector<1x32xf32>
    %625 = vector.broadcast %624 : vector<1x32xf32> to vector<8x32xf32>
    %626 = arith.addf %622, %625 : vector<8x32xf32>
    %cst_292 = arith.constant 0.353553385 : f32
    %627 = vector.broadcast %cst_292 : f32 to vector<8x32xf32>
    %628 = arith.mulf %626, %627 : vector<8x32xf32>
    %c4_293 = arith.constant 4 : index
    %c0_294 = arith.constant 0 : index
    %c0_295 = arith.constant 0 : index
    %629 = vector.load %arg10[%c4_293, %c0_294, %c0_295] : memref<6x32x64xf32, #tpu.memory_space<vmem>>, vector<1x32x64xf32>
    %630 = vector.shape_cast %629 : vector<1x32x64xf32> to vector<32x64xf32>
    %cst_296 = arith.constant dense<0.000000e+00> : vector<8x64xf32>
    %631 = tpu.matmul %619, %630, %cst_296 {dimension_numbers = #tpu.dot_dimension_numbers<[1], [0], [0], [1], [0, 0, 1, 1], [], []>} : vector<8x32xf32>, vector<32x64xf32>, vector<8x64xf32> -> vector<8x64xf32>
    %c4_297 = arith.constant 4 : index
    %c0_298 = arith.constant 0 : index
    %c0_299 = arith.constant 0 : index
    %632 = vector.load %arg11[%c4_297, %c0_298, %c0_299] : memref<6x1x64xf32, #tpu.memory_space<vmem>>, vector<1x1x64xf32>
    %633 = vector.shape_cast %632 : vector<1x1x64xf32> to vector<1x64xf32>
    %634 = vector.broadcast %633 : vector<1x64xf32> to vector<8x64xf32>
    %635 = arith.addf %631, %634 : vector<8x64xf32>
    %636 = vector.extract_strided_slice %628 {offsets = [0, 0], sizes = [8, 8], strides = [1, 1]} : vector<8x32xf32> to vector<8x8xf32>
    %637 = vector.extract_strided_slice %635 {offsets = [0, 0], sizes = [8, 8], strides = [1, 1]} : vector<8x64xf32> to vector<8x8xf32>
    %638 = vector.extract_strided_slice %635 {offsets = [0, 32], sizes = [8, 8], strides = [1, 1]} : vector<8x64xf32> to vector<8x8xf32>
    %cst_300 = arith.constant dense<0.000000e+00> : vector<8x8xf32>
    %639 = tpu.matmul %636, %637, %cst_300 {dimension_numbers = #tpu.dot_dimension_numbers<[1], [1], [0], [0], [0, 0, 1, 0], [], []>} : vector<8x8xf32>, vector<8x8xf32>, vector<8x8xf32> -> vector<8x8xf32>
    %640 = arith.addf %639, %1 : vector<8x8xf32>
    %cst_301 = arith.constant dense<0xFF800000> : vector<8xf32>
    %641 = vector.multi_reduction <maximumf>, %640, %cst_301 [1] : vector<8x8xf32> to vector<8xf32>
    %642 = vector.shape_cast %641 : vector<8xf32> to vector<8x1xf32>
    %643 = vector.broadcast %642 : vector<8x1xf32> to vector<8x8xf32>
    %644 = arith.subf %640, %643 : vector<8x8xf32>
    %645 = math.exp %644 : vector<8x8xf32>
    %cst_302 = arith.constant dense<0.000000e+00> : vector<8xf32>
    %646 = vector.multi_reduction <add>, %645, %cst_302 [1] : vector<8x8xf32> to vector<8xf32>
    %647 = vector.shape_cast %646 : vector<8xf32> to vector<8x1xf32>
    %648 = tpu.reciprocal %647 {approx = true} : vector<8x1xf32> -> vector<8x1xf32>
    %649 = vector.broadcast %648 : vector<8x1xf32> to vector<8x8xf32>
    %650 = arith.mulf %645, %649 : vector<8x8xf32>
    %cst_303 = arith.constant dense<0.000000e+00> : vector<8x8xf32>
    %651 = tpu.matmul %650, %638, %cst_303 {dimension_numbers = #tpu.dot_dimension_numbers<[1], [0], [0], [1], [0, 0, 1, 1], [], []>} : vector<8x8xf32>, vector<8x8xf32>, vector<8x8xf32> -> vector<8x8xf32>
    %652 = vector.extract_strided_slice %628 {offsets = [0, 8], sizes = [8, 8], strides = [1, 1]} : vector<8x32xf32> to vector<8x8xf32>
    %653 = vector.extract_strided_slice %635 {offsets = [0, 8], sizes = [8, 8], strides = [1, 1]} : vector<8x64xf32> to vector<8x8xf32>
    %654 = vector.extract_strided_slice %635 {offsets = [0, 40], sizes = [8, 8], strides = [1, 1]} : vector<8x64xf32> to vector<8x8xf32>
    %cst_304 = arith.constant dense<0.000000e+00> : vector<8x8xf32>
    %655 = tpu.matmul %652, %653, %cst_304 {dimension_numbers = #tpu.dot_dimension_numbers<[1], [1], [0], [0], [0, 0, 1, 0], [], []>} : vector<8x8xf32>, vector<8x8xf32>, vector<8x8xf32> -> vector<8x8xf32>
    %656 = arith.addf %655, %1 : vector<8x8xf32>
    %cst_305 = arith.constant dense<0xFF800000> : vector<8xf32>
    %657 = vector.multi_reduction <maximumf>, %656, %cst_305 [1] : vector<8x8xf32> to vector<8xf32>
    %658 = vector.shape_cast %657 : vector<8xf32> to vector<8x1xf32>
    %659 = vector.broadcast %658 : vector<8x1xf32> to vector<8x8xf32>
    %660 = arith.subf %656, %659 : vector<8x8xf32>
    %661 = math.exp %660 : vector<8x8xf32>
    %cst_306 = arith.constant dense<0.000000e+00> : vector<8xf32>
    %662 = vector.multi_reduction <add>, %661, %cst_306 [1] : vector<8x8xf32> to vector<8xf32>
    %663 = vector.shape_cast %662 : vector<8xf32> to vector<8x1xf32>
    %664 = tpu.reciprocal %663 {approx = true} : vector<8x1xf32> -> vector<8x1xf32>
    %665 = vector.broadcast %664 : vector<8x1xf32> to vector<8x8xf32>
    %666 = arith.mulf %661, %665 : vector<8x8xf32>
    %cst_307 = arith.constant dense<0.000000e+00> : vector<8x8xf32>
    %667 = tpu.matmul %666, %654, %cst_307 {dimension_numbers = #tpu.dot_dimension_numbers<[1], [0], [0], [1], [0, 0, 1, 1], [], []>} : vector<8x8xf32>, vector<8x8xf32>, vector<8x8xf32> -> vector<8x8xf32>
    %668 = vector.extract_strided_slice %628 {offsets = [0, 16], sizes = [8, 8], strides = [1, 1]} : vector<8x32xf32> to vector<8x8xf32>
    %669 = vector.extract_strided_slice %635 {offsets = [0, 16], sizes = [8, 8], strides = [1, 1]} : vector<8x64xf32> to vector<8x8xf32>
    %670 = vector.extract_strided_slice %635 {offsets = [0, 48], sizes = [8, 8], strides = [1, 1]} : vector<8x64xf32> to vector<8x8xf32>
    %cst_308 = arith.constant dense<0.000000e+00> : vector<8x8xf32>
    %671 = tpu.matmul %668, %669, %cst_308 {dimension_numbers = #tpu.dot_dimension_numbers<[1], [1], [0], [0], [0, 0, 1, 0], [], []>} : vector<8x8xf32>, vector<8x8xf32>, vector<8x8xf32> -> vector<8x8xf32>
    %672 = arith.addf %671, %1 : vector<8x8xf32>
    %cst_309 = arith.constant dense<0xFF800000> : vector<8xf32>
    %673 = vector.multi_reduction <maximumf>, %672, %cst_309 [1] : vector<8x8xf32> to vector<8xf32>
    %674 = vector.shape_cast %673 : vector<8xf32> to vector<8x1xf32>
    %675 = vector.broadcast %674 : vector<8x1xf32> to vector<8x8xf32>
    %676 = arith.subf %672, %675 : vector<8x8xf32>
    %677 = math.exp %676 : vector<8x8xf32>
    %cst_310 = arith.constant dense<0.000000e+00> : vector<8xf32>
    %678 = vector.multi_reduction <add>, %677, %cst_310 [1] : vector<8x8xf32> to vector<8xf32>
    %679 = vector.shape_cast %678 : vector<8xf32> to vector<8x1xf32>
    %680 = tpu.reciprocal %679 {approx = true} : vector<8x1xf32> -> vector<8x1xf32>
    %681 = vector.broadcast %680 : vector<8x1xf32> to vector<8x8xf32>
    %682 = arith.mulf %677, %681 : vector<8x8xf32>
    %cst_311 = arith.constant dense<0.000000e+00> : vector<8x8xf32>
    %683 = tpu.matmul %682, %670, %cst_311 {dimension_numbers = #tpu.dot_dimension_numbers<[1], [0], [0], [1], [0, 0, 1, 1], [], []>} : vector<8x8xf32>, vector<8x8xf32>, vector<8x8xf32> -> vector<8x8xf32>
    %684 = vector.extract_strided_slice %628 {offsets = [0, 24], sizes = [8, 8], strides = [1, 1]} : vector<8x32xf32> to vector<8x8xf32>
    %685 = vector.extract_strided_slice %635 {offsets = [0, 24], sizes = [8, 8], strides = [1, 1]} : vector<8x64xf32> to vector<8x8xf32>
    %686 = vector.extract_strided_slice %635 {offsets = [0, 56], sizes = [8, 8], strides = [1, 1]} : vector<8x64xf32> to vector<8x8xf32>
    %cst_312 = arith.constant dense<0.000000e+00> : vector<8x8xf32>
    %687 = tpu.matmul %684, %685, %cst_312 {dimension_numbers = #tpu.dot_dimension_numbers<[1], [1], [0], [0], [0, 0, 1, 0], [], []>} : vector<8x8xf32>, vector<8x8xf32>, vector<8x8xf32> -> vector<8x8xf32>
    %688 = arith.addf %687, %1 : vector<8x8xf32>
    %cst_313 = arith.constant dense<0xFF800000> : vector<8xf32>
    %689 = vector.multi_reduction <maximumf>, %688, %cst_313 [1] : vector<8x8xf32> to vector<8xf32>
    %690 = vector.shape_cast %689 : vector<8xf32> to vector<8x1xf32>
    %691 = vector.broadcast %690 : vector<8x1xf32> to vector<8x8xf32>
    %692 = arith.subf %688, %691 : vector<8x8xf32>
    %693 = math.exp %692 : vector<8x8xf32>
    %cst_314 = arith.constant dense<0.000000e+00> : vector<8xf32>
    %694 = vector.multi_reduction <add>, %693, %cst_314 [1] : vector<8x8xf32> to vector<8xf32>
    %695 = vector.shape_cast %694 : vector<8xf32> to vector<8x1xf32>
    %696 = tpu.reciprocal %695 {approx = true} : vector<8x1xf32> -> vector<8x1xf32>
    %697 = vector.broadcast %696 : vector<8x1xf32> to vector<8x8xf32>
    %698 = arith.mulf %693, %697 : vector<8x8xf32>
    %cst_315 = arith.constant dense<0.000000e+00> : vector<8x8xf32>
    %699 = tpu.matmul %698, %686, %cst_315 {dimension_numbers = #tpu.dot_dimension_numbers<[1], [0], [0], [1], [0, 0, 1, 1], [], []>} : vector<8x8xf32>, vector<8x8xf32>, vector<8x8xf32> -> vector<8x8xf32>
    %700 = tpu.concatenate %651, %667, %683, %699 in 1 : vector<8x8xf32>, vector<8x8xf32>, vector<8x8xf32>, vector<8x8xf32> -> vector<8x32xf32>
    %c4_316 = arith.constant 4 : index
    %c0_317 = arith.constant 0 : index
    %c0_318 = arith.constant 0 : index
    %701 = vector.load %arg12[%c4_316, %c0_317, %c0_318] : memref<6x32x32xf32, #tpu.memory_space<vmem>>, vector<1x32x32xf32>
    %702 = vector.shape_cast %701 : vector<1x32x32xf32> to vector<32x32xf32>
    %cst_319 = arith.constant dense<0.000000e+00> : vector<8x32xf32>
    %703 = tpu.matmul %700, %702, %cst_319 {dimension_numbers = #tpu.dot_dimension_numbers<[1], [0], [0], [1], [0, 0, 1, 1], [], []>} : vector<8x32xf32>, vector<32x32xf32>, vector<8x32xf32> -> vector<8x32xf32>
    %c6 = arith.constant 6 : index
    %c0_320 = arith.constant 0 : index
    %c0_321 = arith.constant 0 : index
    %704 = vector.load %arg16[%c6, %c0_320, %c0_321] : memref<36x1x32xf32, #tpu.memory_space<vmem>>, vector<1x1x32xf32>
    %705 = vector.shape_cast %704 : vector<1x1x32xf32> to vector<1x32xf32>
    %706 = vector.broadcast %705 : vector<1x32xf32> to vector<8x32xf32>
    %707 = arith.addf %703, %706 : vector<8x32xf32>
    %708 = arith.addf %619, %707 : vector<8x32xf32>
    %cst_322 = arith.constant dense<0.000000e+00> : vector<8xf32>
    %709 = vector.multi_reduction <add>, %708, %cst_322 [1] : vector<8x32xf32> to vector<8xf32>
    %710 = vector.shape_cast %709 : vector<8xf32> to vector<8x1xf32>
    %cst_323 = arith.constant 3.200000e+01 : f32
    %711 = vector.broadcast %cst_323 : f32 to vector<8x1xf32>
    %712 = arith.divf %710, %711 : vector<8x1xf32>
    %713 = vector.broadcast %712 : vector<8x1xf32> to vector<8x32xf32>
    %714 = arith.subf %708, %713 : vector<8x32xf32>
    %715 = arith.mulf %714, %714 : vector<8x32xf32>
    %cst_324 = arith.constant dense<0.000000e+00> : vector<8xf32>
    %716 = vector.multi_reduction <add>, %715, %cst_324 [1] : vector<8x32xf32> to vector<8xf32>
    %717 = vector.shape_cast %716 : vector<8xf32> to vector<8x1xf32>
    %cst_325 = arith.constant 3.200000e+01 : f32
    %718 = vector.broadcast %cst_325 : f32 to vector<8x1xf32>
    %719 = arith.divf %717, %718 : vector<8x1xf32>
    %cst_326 = arith.constant 9.99999974E-6 : f32
    %720 = vector.broadcast %cst_326 : f32 to vector<8x1xf32>
    %721 = arith.addf %719, %720 : vector<8x1xf32>
    %722 = math.rsqrt %721 : vector<8x1xf32>
    %723 = vector.broadcast %722 : vector<8x1xf32> to vector<8x32xf32>
    %724 = arith.mulf %714, %723 : vector<8x32xf32>
    %c22 = arith.constant 22 : index
    %c0_327 = arith.constant 0 : index
    %c0_328 = arith.constant 0 : index
    %725 = vector.load %arg16[%c22, %c0_327, %c0_328] : memref<36x1x32xf32, #tpu.memory_space<vmem>>, vector<1x1x32xf32>
    %726 = vector.shape_cast %725 : vector<1x1x32xf32> to vector<1x32xf32>
    %727 = vector.broadcast %726 : vector<1x32xf32> to vector<8x32xf32>
    %728 = arith.mulf %724, %727 : vector<8x32xf32>
    %c23 = arith.constant 23 : index
    %c0_329 = arith.constant 0 : index
    %c0_330 = arith.constant 0 : index
    %729 = vector.load %arg16[%c23, %c0_329, %c0_330] : memref<36x1x32xf32, #tpu.memory_space<vmem>>, vector<1x1x32xf32>
    %730 = vector.shape_cast %729 : vector<1x1x32xf32> to vector<1x32xf32>
    %731 = vector.broadcast %730 : vector<1x32xf32> to vector<8x32xf32>
    %732 = arith.addf %728, %731 : vector<8x32xf32>
    %c5_331 = arith.constant 5 : index
    %c0_332 = arith.constant 0 : index
    %c0_333 = arith.constant 0 : index
    %733 = vector.load %arg8[%c5_331, %c0_332, %c0_333] : memref<6x32x32xf32, #tpu.memory_space<vmem>>, vector<1x32x32xf32>
    %734 = vector.shape_cast %733 : vector<1x32x32xf32> to vector<32x32xf32>
    %cst_334 = arith.constant dense<0.000000e+00> : vector<8x32xf32>
    %735 = tpu.matmul %732, %734, %cst_334 {dimension_numbers = #tpu.dot_dimension_numbers<[1], [0], [0], [1], [0, 0, 1, 1], [], []>} : vector<8x32xf32>, vector<32x32xf32>, vector<8x32xf32> -> vector<8x32xf32>
    %c5_335 = arith.constant 5 : index
    %c0_336 = arith.constant 0 : index
    %c0_337 = arith.constant 0 : index
    %736 = vector.load %arg9[%c5_335, %c0_336, %c0_337] : memref<6x1x32xf32, #tpu.memory_space<vmem>>, vector<1x1x32xf32>
    %737 = vector.shape_cast %736 : vector<1x1x32xf32> to vector<1x32xf32>
    %738 = vector.broadcast %737 : vector<1x32xf32> to vector<8x32xf32>
    %739 = arith.addf %735, %738 : vector<8x32xf32>
    %cst_338 = arith.constant 0.353553385 : f32
    %740 = vector.broadcast %cst_338 : f32 to vector<8x32xf32>
    %741 = arith.mulf %739, %740 : vector<8x32xf32>
    %c5_339 = arith.constant 5 : index
    %c0_340 = arith.constant 0 : index
    %c0_341 = arith.constant 0 : index
    %742 = vector.load %arg10[%c5_339, %c0_340, %c0_341] : memref<6x32x64xf32, #tpu.memory_space<vmem>>, vector<1x32x64xf32>
    %743 = vector.shape_cast %742 : vector<1x32x64xf32> to vector<32x64xf32>
    %cst_342 = arith.constant dense<0.000000e+00> : vector<16x64xf32>
    %744 = tpu.matmul %352, %743, %cst_342 {dimension_numbers = #tpu.dot_dimension_numbers<[1], [0], [0], [1], [0, 0, 1, 1], [], []>} : vector<16x32xf32>, vector<32x64xf32>, vector<16x64xf32> -> vector<16x64xf32>
    %c5_343 = arith.constant 5 : index
    %c0_344 = arith.constant 0 : index
    %c0_345 = arith.constant 0 : index
    %745 = vector.load %arg11[%c5_343, %c0_344, %c0_345] : memref<6x1x64xf32, #tpu.memory_space<vmem>>, vector<1x1x64xf32>
    %746 = vector.shape_cast %745 : vector<1x1x64xf32> to vector<1x64xf32>
    %747 = vector.broadcast %746 : vector<1x64xf32> to vector<16x64xf32>
    %748 = arith.addf %744, %747 : vector<16x64xf32>
    %749 = vector.extract_strided_slice %741 {offsets = [0, 0], sizes = [8, 8], strides = [1, 1]} : vector<8x32xf32> to vector<8x8xf32>
    %750 = vector.extract_strided_slice %748 {offsets = [0, 0], sizes = [16, 8], strides = [1, 1]} : vector<16x64xf32> to vector<16x8xf32>
    %751 = vector.extract_strided_slice %748 {offsets = [0, 32], sizes = [16, 8], strides = [1, 1]} : vector<16x64xf32> to vector<16x8xf32>
    %cst_346 = arith.constant dense<0.000000e+00> : vector<8x16xf32>
    %752 = tpu.matmul %749, %750, %cst_346 {dimension_numbers = #tpu.dot_dimension_numbers<[1], [1], [0], [0], [0, 0, 1, 0], [], []>} : vector<8x8xf32>, vector<16x8xf32>, vector<8x16xf32> -> vector<8x16xf32>
    %753 = arith.addf %752, %2 : vector<8x16xf32>
    %cst_347 = arith.constant dense<0xFF800000> : vector<8xf32>
    %754 = vector.multi_reduction <maximumf>, %753, %cst_347 [1] : vector<8x16xf32> to vector<8xf32>
    %755 = vector.shape_cast %754 : vector<8xf32> to vector<8x1xf32>
    %756 = vector.broadcast %755 : vector<8x1xf32> to vector<8x16xf32>
    %757 = arith.subf %753, %756 : vector<8x16xf32>
    %758 = math.exp %757 : vector<8x16xf32>
    %cst_348 = arith.constant dense<0.000000e+00> : vector<8xf32>
    %759 = vector.multi_reduction <add>, %758, %cst_348 [1] : vector<8x16xf32> to vector<8xf32>
    %760 = vector.shape_cast %759 : vector<8xf32> to vector<8x1xf32>
    %761 = tpu.reciprocal %760 {approx = true} : vector<8x1xf32> -> vector<8x1xf32>
    %762 = vector.broadcast %761 : vector<8x1xf32> to vector<8x16xf32>
    %763 = arith.mulf %758, %762 : vector<8x16xf32>
    %cst_349 = arith.constant dense<0.000000e+00> : vector<8x8xf32>
    %764 = tpu.matmul %763, %751, %cst_349 {dimension_numbers = #tpu.dot_dimension_numbers<[1], [0], [0], [1], [0, 0, 1, 1], [], []>} : vector<8x16xf32>, vector<16x8xf32>, vector<8x8xf32> -> vector<8x8xf32>
    %765 = vector.extract_strided_slice %741 {offsets = [0, 8], sizes = [8, 8], strides = [1, 1]} : vector<8x32xf32> to vector<8x8xf32>
    %766 = vector.extract_strided_slice %748 {offsets = [0, 8], sizes = [16, 8], strides = [1, 1]} : vector<16x64xf32> to vector<16x8xf32>
    %767 = vector.extract_strided_slice %748 {offsets = [0, 40], sizes = [16, 8], strides = [1, 1]} : vector<16x64xf32> to vector<16x8xf32>
    %cst_350 = arith.constant dense<0.000000e+00> : vector<8x16xf32>
    %768 = tpu.matmul %765, %766, %cst_350 {dimension_numbers = #tpu.dot_dimension_numbers<[1], [1], [0], [0], [0, 0, 1, 0], [], []>} : vector<8x8xf32>, vector<16x8xf32>, vector<8x16xf32> -> vector<8x16xf32>
    %769 = arith.addf %768, %2 : vector<8x16xf32>
    %cst_351 = arith.constant dense<0xFF800000> : vector<8xf32>
    %770 = vector.multi_reduction <maximumf>, %769, %cst_351 [1] : vector<8x16xf32> to vector<8xf32>
    %771 = vector.shape_cast %770 : vector<8xf32> to vector<8x1xf32>
    %772 = vector.broadcast %771 : vector<8x1xf32> to vector<8x16xf32>
    %773 = arith.subf %769, %772 : vector<8x16xf32>
    %774 = math.exp %773 : vector<8x16xf32>
    %cst_352 = arith.constant dense<0.000000e+00> : vector<8xf32>
    %775 = vector.multi_reduction <add>, %774, %cst_352 [1] : vector<8x16xf32> to vector<8xf32>
    %776 = vector.shape_cast %775 : vector<8xf32> to vector<8x1xf32>
    %777 = tpu.reciprocal %776 {approx = true} : vector<8x1xf32> -> vector<8x1xf32>
    %778 = vector.broadcast %777 : vector<8x1xf32> to vector<8x16xf32>
    %779 = arith.mulf %774, %778 : vector<8x16xf32>
    %cst_353 = arith.constant dense<0.000000e+00> : vector<8x8xf32>
    %780 = tpu.matmul %779, %767, %cst_353 {dimension_numbers = #tpu.dot_dimension_numbers<[1], [0], [0], [1], [0, 0, 1, 1], [], []>} : vector<8x16xf32>, vector<16x8xf32>, vector<8x8xf32> -> vector<8x8xf32>
    %781 = vector.extract_strided_slice %741 {offsets = [0, 16], sizes = [8, 8], strides = [1, 1]} : vector<8x32xf32> to vector<8x8xf32>
    %782 = vector.extract_strided_slice %748 {offsets = [0, 16], sizes = [16, 8], strides = [1, 1]} : vector<16x64xf32> to vector<16x8xf32>
    %783 = vector.extract_strided_slice %748 {offsets = [0, 48], sizes = [16, 8], strides = [1, 1]} : vector<16x64xf32> to vector<16x8xf32>
    %cst_354 = arith.constant dense<0.000000e+00> : vector<8x16xf32>
    %784 = tpu.matmul %781, %782, %cst_354 {dimension_numbers = #tpu.dot_dimension_numbers<[1], [1], [0], [0], [0, 0, 1, 0], [], []>} : vector<8x8xf32>, vector<16x8xf32>, vector<8x16xf32> -> vector<8x16xf32>
    %785 = arith.addf %784, %2 : vector<8x16xf32>
    %cst_355 = arith.constant dense<0xFF800000> : vector<8xf32>
    %786 = vector.multi_reduction <maximumf>, %785, %cst_355 [1] : vector<8x16xf32> to vector<8xf32>
    %787 = vector.shape_cast %786 : vector<8xf32> to vector<8x1xf32>
    %788 = vector.broadcast %787 : vector<8x1xf32> to vector<8x16xf32>
    %789 = arith.subf %785, %788 : vector<8x16xf32>
    %790 = math.exp %789 : vector<8x16xf32>
    %cst_356 = arith.constant dense<0.000000e+00> : vector<8xf32>
    %791 = vector.multi_reduction <add>, %790, %cst_356 [1] : vector<8x16xf32> to vector<8xf32>
    %792 = vector.shape_cast %791 : vector<8xf32> to vector<8x1xf32>
    %793 = tpu.reciprocal %792 {approx = true} : vector<8x1xf32> -> vector<8x1xf32>
    %794 = vector.broadcast %793 : vector<8x1xf32> to vector<8x16xf32>
    %795 = arith.mulf %790, %794 : vector<8x16xf32>
    %cst_357 = arith.constant dense<0.000000e+00> : vector<8x8xf32>
    %796 = tpu.matmul %795, %783, %cst_357 {dimension_numbers = #tpu.dot_dimension_numbers<[1], [0], [0], [1], [0, 0, 1, 1], [], []>} : vector<8x16xf32>, vector<16x8xf32>, vector<8x8xf32> -> vector<8x8xf32>
    %797 = vector.extract_strided_slice %741 {offsets = [0, 24], sizes = [8, 8], strides = [1, 1]} : vector<8x32xf32> to vector<8x8xf32>
    %798 = vector.extract_strided_slice %748 {offsets = [0, 24], sizes = [16, 8], strides = [1, 1]} : vector<16x64xf32> to vector<16x8xf32>
    %799 = vector.extract_strided_slice %748 {offsets = [0, 56], sizes = [16, 8], strides = [1, 1]} : vector<16x64xf32> to vector<16x8xf32>
    %cst_358 = arith.constant dense<0.000000e+00> : vector<8x16xf32>
    %800 = tpu.matmul %797, %798, %cst_358 {dimension_numbers = #tpu.dot_dimension_numbers<[1], [1], [0], [0], [0, 0, 1, 0], [], []>} : vector<8x8xf32>, vector<16x8xf32>, vector<8x16xf32> -> vector<8x16xf32>
    %801 = arith.addf %800, %2 : vector<8x16xf32>
    %cst_359 = arith.constant dense<0xFF800000> : vector<8xf32>
    %802 = vector.multi_reduction <maximumf>, %801, %cst_359 [1] : vector<8x16xf32> to vector<8xf32>
    %803 = vector.shape_cast %802 : vector<8xf32> to vector<8x1xf32>
    %804 = vector.broadcast %803 : vector<8x1xf32> to vector<8x16xf32>
    %805 = arith.subf %801, %804 : vector<8x16xf32>
    %806 = math.exp %805 : vector<8x16xf32>
    %cst_360 = arith.constant dense<0.000000e+00> : vector<8xf32>
    %807 = vector.multi_reduction <add>, %806, %cst_360 [1] : vector<8x16xf32> to vector<8xf32>
    %808 = vector.shape_cast %807 : vector<8xf32> to vector<8x1xf32>
    %809 = tpu.reciprocal %808 {approx = true} : vector<8x1xf32> -> vector<8x1xf32>
    %810 = vector.broadcast %809 : vector<8x1xf32> to vector<8x16xf32>
    %811 = arith.mulf %806, %810 : vector<8x16xf32>
    %cst_361 = arith.constant dense<0.000000e+00> : vector<8x8xf32>
    %812 = tpu.matmul %811, %799, %cst_361 {dimension_numbers = #tpu.dot_dimension_numbers<[1], [0], [0], [1], [0, 0, 1, 1], [], []>} : vector<8x16xf32>, vector<16x8xf32>, vector<8x8xf32> -> vector<8x8xf32>
    %813 = tpu.concatenate %764, %780, %796, %812 in 1 : vector<8x8xf32>, vector<8x8xf32>, vector<8x8xf32>, vector<8x8xf32> -> vector<8x32xf32>
    %c5_362 = arith.constant 5 : index
    %c0_363 = arith.constant 0 : index
    %c0_364 = arith.constant 0 : index
    %814 = vector.load %arg12[%c5_362, %c0_363, %c0_364] : memref<6x32x32xf32, #tpu.memory_space<vmem>>, vector<1x32x32xf32>
    %815 = vector.shape_cast %814 : vector<1x32x32xf32> to vector<32x32xf32>
    %cst_365 = arith.constant dense<0.000000e+00> : vector<8x32xf32>
    %816 = tpu.matmul %813, %815, %cst_365 {dimension_numbers = #tpu.dot_dimension_numbers<[1], [0], [0], [1], [0, 0, 1, 1], [], []>} : vector<8x32xf32>, vector<32x32xf32>, vector<8x32xf32> -> vector<8x32xf32>
    %c7 = arith.constant 7 : index
    %c0_366 = arith.constant 0 : index
    %c0_367 = arith.constant 0 : index
    %817 = vector.load %arg16[%c7, %c0_366, %c0_367] : memref<36x1x32xf32, #tpu.memory_space<vmem>>, vector<1x1x32xf32>
    %818 = vector.shape_cast %817 : vector<1x1x32xf32> to vector<1x32xf32>
    %819 = vector.broadcast %818 : vector<1x32xf32> to vector<8x32xf32>
    %820 = arith.addf %816, %819 : vector<8x32xf32>
    %821 = arith.addf %732, %820 : vector<8x32xf32>
    %cst_368 = arith.constant dense<0.000000e+00> : vector<8xf32>
    %822 = vector.multi_reduction <add>, %821, %cst_368 [1] : vector<8x32xf32> to vector<8xf32>
    %823 = vector.shape_cast %822 : vector<8xf32> to vector<8x1xf32>
    %cst_369 = arith.constant 3.200000e+01 : f32
    %824 = vector.broadcast %cst_369 : f32 to vector<8x1xf32>
    %825 = arith.divf %823, %824 : vector<8x1xf32>
    %826 = vector.broadcast %825 : vector<8x1xf32> to vector<8x32xf32>
    %827 = arith.subf %821, %826 : vector<8x32xf32>
    %828 = arith.mulf %827, %827 : vector<8x32xf32>
    %cst_370 = arith.constant dense<0.000000e+00> : vector<8xf32>
    %829 = vector.multi_reduction <add>, %828, %cst_370 [1] : vector<8x32xf32> to vector<8xf32>
    %830 = vector.shape_cast %829 : vector<8xf32> to vector<8x1xf32>
    %cst_371 = arith.constant 3.200000e+01 : f32
    %831 = vector.broadcast %cst_371 : f32 to vector<8x1xf32>
    %832 = arith.divf %830, %831 : vector<8x1xf32>
    %cst_372 = arith.constant 9.99999974E-6 : f32
    %833 = vector.broadcast %cst_372 : f32 to vector<8x1xf32>
    %834 = arith.addf %832, %833 : vector<8x1xf32>
    %835 = math.rsqrt %834 : vector<8x1xf32>
    %836 = vector.broadcast %835 : vector<8x1xf32> to vector<8x32xf32>
    %837 = arith.mulf %827, %836 : vector<8x32xf32>
    %c24 = arith.constant 24 : index
    %c0_373 = arith.constant 0 : index
    %c0_374 = arith.constant 0 : index
    %838 = vector.load %arg16[%c24, %c0_373, %c0_374] : memref<36x1x32xf32, #tpu.memory_space<vmem>>, vector<1x1x32xf32>
    %839 = vector.shape_cast %838 : vector<1x1x32xf32> to vector<1x32xf32>
    %840 = vector.broadcast %839 : vector<1x32xf32> to vector<8x32xf32>
    %841 = arith.mulf %837, %840 : vector<8x32xf32>
    %c25 = arith.constant 25 : index
    %c0_375 = arith.constant 0 : index
    %c0_376 = arith.constant 0 : index
    %842 = vector.load %arg16[%c25, %c0_375, %c0_376] : memref<36x1x32xf32, #tpu.memory_space<vmem>>, vector<1x1x32xf32>
    %843 = vector.shape_cast %842 : vector<1x1x32xf32> to vector<1x32xf32>
    %844 = vector.broadcast %843 : vector<1x32xf32> to vector<8x32xf32>
    %845 = arith.addf %841, %844 : vector<8x32xf32>
    %c3_377 = arith.constant 3 : index
    %c0_378 = arith.constant 0 : index
    %c0_379 = arith.constant 0 : index
    %846 = vector.load %arg13[%c3_377, %c0_378, %c0_379] : memref<4x32x64xf32, #tpu.memory_space<vmem>>, vector<1x32x64xf32>
    %847 = vector.shape_cast %846 : vector<1x32x64xf32> to vector<32x64xf32>
    %cst_380 = arith.constant dense<0.000000e+00> : vector<8x64xf32>
    %848 = tpu.matmul %845, %847, %cst_380 {dimension_numbers = #tpu.dot_dimension_numbers<[1], [0], [0], [1], [0, 0, 1, 1], [], []>} : vector<8x32xf32>, vector<32x64xf32>, vector<8x64xf32> -> vector<8x64xf32>
    %c3_381 = arith.constant 3 : index
    %c0_382 = arith.constant 0 : index
    %c0_383 = arith.constant 0 : index
    %849 = vector.load %arg14[%c3_381, %c0_382, %c0_383] : memref<4x1x64xf32, #tpu.memory_space<vmem>>, vector<1x1x64xf32>
    %850 = vector.shape_cast %849 : vector<1x1x64xf32> to vector<1x64xf32>
    %851 = vector.broadcast %850 : vector<1x64xf32> to vector<8x64xf32>
    %852 = arith.addf %848, %851 : vector<8x64xf32>
    %cst_384 = arith.constant 0.000000e+00 : f32
    %853 = vector.broadcast %cst_384 : f32 to vector<8x64xf32>
    %854 = arith.maximumf %852, %853 : vector<8x64xf32>
    %c3_385 = arith.constant 3 : index
    %c0_386 = arith.constant 0 : index
    %c0_387 = arith.constant 0 : index
    %855 = vector.load %arg15[%c3_385, %c0_386, %c0_387] : memref<4x64x32xf32, #tpu.memory_space<vmem>>, vector<1x64x32xf32>
    %856 = vector.shape_cast %855 : vector<1x64x32xf32> to vector<64x32xf32>
    %cst_388 = arith.constant dense<0.000000e+00> : vector<8x32xf32>
    %857 = tpu.matmul %854, %856, %cst_388 {dimension_numbers = #tpu.dot_dimension_numbers<[1], [0], [0], [1], [0, 0, 1, 1], [], []>} : vector<8x64xf32>, vector<64x32xf32>, vector<8x32xf32> -> vector<8x32xf32>
    %c31 = arith.constant 31 : index
    %c0_389 = arith.constant 0 : index
    %c0_390 = arith.constant 0 : index
    %858 = vector.load %arg16[%c31, %c0_389, %c0_390] : memref<36x1x32xf32, #tpu.memory_space<vmem>>, vector<1x1x32xf32>
    %859 = vector.shape_cast %858 : vector<1x1x32xf32> to vector<1x32xf32>
    %860 = vector.broadcast %859 : vector<1x32xf32> to vector<8x32xf32>
    %861 = arith.addf %857, %860 : vector<8x32xf32>
    %862 = arith.addf %845, %861 : vector<8x32xf32>
    %cst_391 = arith.constant dense<0.000000e+00> : vector<8xf32>
    %863 = vector.multi_reduction <add>, %862, %cst_391 [1] : vector<8x32xf32> to vector<8xf32>
    %864 = vector.shape_cast %863 : vector<8xf32> to vector<8x1xf32>
    %cst_392 = arith.constant 3.200000e+01 : f32
    %865 = vector.broadcast %cst_392 : f32 to vector<8x1xf32>
    %866 = arith.divf %864, %865 : vector<8x1xf32>
    %867 = vector.broadcast %866 : vector<8x1xf32> to vector<8x32xf32>
    %868 = arith.subf %862, %867 : vector<8x32xf32>
    %869 = arith.mulf %868, %868 : vector<8x32xf32>
    %cst_393 = arith.constant dense<0.000000e+00> : vector<8xf32>
    %870 = vector.multi_reduction <add>, %869, %cst_393 [1] : vector<8x32xf32> to vector<8xf32>
    %871 = vector.shape_cast %870 : vector<8xf32> to vector<8x1xf32>
    %cst_394 = arith.constant 3.200000e+01 : f32
    %872 = vector.broadcast %cst_394 : f32 to vector<8x1xf32>
    %873 = arith.divf %871, %872 : vector<8x1xf32>
    %cst_395 = arith.constant 9.99999974E-6 : f32
    %874 = vector.broadcast %cst_395 : f32 to vector<8x1xf32>
    %875 = arith.addf %873, %874 : vector<8x1xf32>
    %876 = math.rsqrt %875 : vector<8x1xf32>
    %877 = vector.broadcast %876 : vector<8x1xf32> to vector<8x32xf32>
    %878 = arith.mulf %868, %877 : vector<8x32xf32>
    %c26 = arith.constant 26 : index
    %c0_396 = arith.constant 0 : index
    %c0_397 = arith.constant 0 : index
    %879 = vector.load %arg16[%c26, %c0_396, %c0_397] : memref<36x1x32xf32, #tpu.memory_space<vmem>>, vector<1x1x32xf32>
    %880 = vector.shape_cast %879 : vector<1x1x32xf32> to vector<1x32xf32>
    %881 = vector.broadcast %880 : vector<1x32xf32> to vector<8x32xf32>
    %882 = arith.mulf %878, %881 : vector<8x32xf32>
    %c27 = arith.constant 27 : index
    %c0_398 = arith.constant 0 : index
    %c0_399 = arith.constant 0 : index
    %883 = vector.load %arg16[%c27, %c0_398, %c0_399] : memref<36x1x32xf32, #tpu.memory_space<vmem>>, vector<1x1x32xf32>
    %884 = vector.shape_cast %883 : vector<1x1x32xf32> to vector<1x32xf32>
    %885 = vector.broadcast %884 : vector<1x32xf32> to vector<8x32xf32>
    %886 = arith.addf %882, %885 : vector<8x32xf32>
    %cst_400 = arith.constant dense<0.000000e+00> : vector<8xf32>
    %887 = vector.multi_reduction <add>, %886, %cst_400 [1] : vector<8x32xf32> to vector<8xf32>
    %888 = vector.shape_cast %887 : vector<8xf32> to vector<8x1xf32>
    %cst_401 = arith.constant 3.200000e+01 : f32
    %889 = vector.broadcast %cst_401 : f32 to vector<8x1xf32>
    %890 = arith.divf %888, %889 : vector<8x1xf32>
    %891 = vector.broadcast %890 : vector<8x1xf32> to vector<8x32xf32>
    %892 = arith.subf %886, %891 : vector<8x32xf32>
    %893 = arith.mulf %892, %892 : vector<8x32xf32>
    %cst_402 = arith.constant dense<0.000000e+00> : vector<8xf32>
    %894 = vector.multi_reduction <add>, %893, %cst_402 [1] : vector<8x32xf32> to vector<8xf32>
    %895 = vector.shape_cast %894 : vector<8xf32> to vector<8x1xf32>
    %cst_403 = arith.constant 3.200000e+01 : f32
    %896 = vector.broadcast %cst_403 : f32 to vector<8x1xf32>
    %897 = arith.divf %895, %896 : vector<8x1xf32>
    %cst_404 = arith.constant 9.99999974E-6 : f32
    %898 = vector.broadcast %cst_404 : f32 to vector<8x1xf32>
    %899 = arith.addf %897, %898 : vector<8x1xf32>
    %900 = math.rsqrt %899 : vector<8x1xf32>
    %901 = vector.broadcast %900 : vector<8x1xf32> to vector<8x32xf32>
    %902 = arith.mulf %892, %901 : vector<8x32xf32>
    %c34 = arith.constant 34 : index
    %c0_405 = arith.constant 0 : index
    %c0_406 = arith.constant 0 : index
    %903 = vector.load %arg16[%c34, %c0_405, %c0_406] : memref<36x1x32xf32, #tpu.memory_space<vmem>>, vector<1x1x32xf32>
    %904 = vector.shape_cast %903 : vector<1x1x32xf32> to vector<1x32xf32>
    %905 = vector.broadcast %904 : vector<1x32xf32> to vector<8x32xf32>
    %906 = arith.mulf %902, %905 : vector<8x32xf32>
    %c35 = arith.constant 35 : index
    %c0_407 = arith.constant 0 : index
    %c0_408 = arith.constant 0 : index
    %907 = vector.load %arg16[%c35, %c0_407, %c0_408] : memref<36x1x32xf32, #tpu.memory_space<vmem>>, vector<1x1x32xf32>
    %908 = vector.shape_cast %907 : vector<1x1x32xf32> to vector<1x32xf32>
    %909 = vector.broadcast %908 : vector<1x32xf32> to vector<8x32xf32>
    %910 = arith.addf %906, %909 : vector<8x32xf32>
    %c0_409 = arith.constant 0 : index
    %c0_410 = arith.constant 0 : index
    %911 = vector.load %arg17[%c0_409, %c0_410] : memref<32x128xf32, #tpu.memory_space<vmem>>, vector<32x128xf32>
    %cst_411 = arith.constant dense<0.000000e+00> : vector<8x128xf32>
    %912 = tpu.matmul %910, %911, %cst_411 {dimension_numbers = #tpu.dot_dimension_numbers<[1], [0], [0], [1], [0, 0, 1, 1], [], []>} : vector<8x32xf32>, vector<32x128xf32>, vector<8x128xf32> -> vector<8x128xf32>
    %c0_412 = arith.constant 0 : index
    %c0_413 = arith.constant 0 : index
    %913 = vector.load %arg18[%c0_412, %c0_413] : memref<1x128xf32, #tpu.memory_space<vmem>>, vector<1x128xf32>
    %914 = vector.broadcast %913 : vector<1x128xf32> to vector<8x128xf32>
    %915 = arith.addf %912, %914 : vector<8x128xf32>
    %cst_414 = arith.constant 0.000000e+00 : f32
    %916 = vector.broadcast %cst_414 : f32 to vector<8x128xf32>
    %917 = arith.maximumf %915, %916 : vector<8x128xf32>
    %c0_415 = arith.constant 0 : index
    %c0_416 = arith.constant 0 : index
    %918 = vector.load %arg19[%c0_415, %c0_416] : memref<128x1xf32, #tpu.memory_space<vmem>>, vector<128x1xf32>
    %cst_417 = arith.constant dense<0.000000e+00> : vector<8x1xf32>
    %919 = tpu.matmul %917, %918, %cst_417 {dimension_numbers = #tpu.dot_dimension_numbers<[1], [0], [0], [1], [0, 0, 1, 1], [], []>} : vector<8x128xf32>, vector<128x1xf32>, vector<8x1xf32> -> vector<8x1xf32>
    %c0_418 = arith.constant 0 : index
    %c0_419 = arith.constant 0 : index
    %920 = vector.load %arg20[%c0_418, %c0_419] : memref<1x1xf32, #tpu.memory_space<vmem>>, vector<1x1xf32>
    %921 = vector.broadcast %920 : vector<1x1xf32> to vector<8x1xf32>
    %922 = arith.addf %919, %921 : vector<8x1xf32>
    %c0_420 = arith.constant 0 : index
    %c0_421 = arith.constant 0 : index
    %923 = vector.load %arg21[%c0_420, %c0_421] : memref<8x1xf32, #tpu.memory_space<vmem>>, vector<8x1xf32>
    tpu.vector_store %arg21[%c0_420, %c0_421], %922 {strides = array<i32>} : memref<8x1xf32, #tpu.memory_space<vmem>>, vector<8x1xf32>,
    return
  }
  func.func @transform_0(%arg0: i32) -> (i32, i32) {
    %c0_i32 = arith.constant 0 : i32
    %c0_i32_0 = arith.constant 0 : i32
    %c0_i32_1 = arith.constant 0 : i32
    return %c0_i32, %c0_i32_0 : i32, i32
  }
  func.func @transform_1(%arg0: i32) -> (i32, i32) {
    %c0_i32 = arith.constant 0 : i32
    %c0_i32_0 = arith.constant 0 : i32
    %c0_i32_1 = arith.constant 0 : i32
    return %c0_i32, %c0_i32_0 : i32, i32
  }
  func.func @transform_2(%arg0: i32) -> (i32, i32) {
    %c0_i32 = arith.constant 0 : i32
    %c0_i32_0 = arith.constant 0 : i32
    %c0_i32_1 = arith.constant 0 : i32
    return %c0_i32, %c0_i32_0 : i32, i32
  }
  func.func @transform_3(%arg0: i32) -> (i32, i32) {
    %c0_i32 = arith.constant 0 : i32
    %c0_i32_0 = arith.constant 0 : i32
    %c0_i32_1 = arith.constant 0 : i32
    return %c0_i32, %c0_i32_0 : i32, i32
  }
  func.func @transform_4(%arg0: i32) -> (i32, i32) {
    %c0_i32 = arith.constant 0 : i32
    %c0_i32_0 = arith.constant 0 : i32
    %c0_i32_1 = arith.constant 0 : i32
    return %c0_i32, %c0_i32_0 : i32, i32
  }
  func.func @transform_5(%arg0: i32) -> (i32, i32) {
    %c0_i32 = arith.constant 0 : i32
    %c0_i32_0 = arith.constant 0 : i32
    %c0_i32_1 = arith.constant 0 : i32
    return %c0_i32, %c0_i32_0 : i32, i32
  }
  func.func @transform_6(%arg0: i32) -> (i32, i32, i32) {
    %c0_i32 = arith.constant 0 : i32
    %c0_i32_0 = arith.constant 0 : i32
    %c0_i32_1 = arith.constant 0 : i32
    %c0_i32_2 = arith.constant 0 : i32
    return %c0_i32, %c0_i32_0, %c0_i32_1 : i32, i32, i32
  }
  func.func @transform_7(%arg0: i32) -> (i32, i32, i32) {
    %c0_i32 = arith.constant 0 : i32
    %c0_i32_0 = arith.constant 0 : i32
    %c0_i32_1 = arith.constant 0 : i32
    %c0_i32_2 = arith.constant 0 : i32
    return %c0_i32, %c0_i32_0, %c0_i32_1 : i32, i32, i32
  }
  func.func @transform_8(%arg0: i32) -> (i32, i32, i32) {
    %c0_i32 = arith.constant 0 : i32
    %c0_i32_0 = arith.constant 0 : i32
    %c0_i32_1 = arith.constant 0 : i32
    %c0_i32_2 = arith.constant 0 : i32
    return %c0_i32, %c0_i32_0, %c0_i32_1 : i32, i32, i32
  }
  func.func @transform_9(%arg0: i32) -> (i32, i32, i32) {
    %c0_i32 = arith.constant 0 : i32
    %c0_i32_0 = arith.constant 0 : i32
    %c0_i32_1 = arith.constant 0 : i32
    %c0_i32_2 = arith.constant 0 : i32
    return %c0_i32, %c0_i32_0, %c0_i32_1 : i32, i32, i32
  }
  func.func @transform_10(%arg0: i32) -> (i32, i32, i32) {
    %c0_i32 = arith.constant 0 : i32
    %c0_i32_0 = arith.constant 0 : i32
    %c0_i32_1 = arith.constant 0 : i32
    %c0_i32_2 = arith.constant 0 : i32
    return %c0_i32, %c0_i32_0, %c0_i32_1 : i32, i32, i32
  }
  func.func @transform_11(%arg0: i32) -> (i32, i32, i32) {
    %c0_i32 = arith.constant 0 : i32
    %c0_i32_0 = arith.constant 0 : i32
    %c0_i32_1 = arith.constant 0 : i32
    %c0_i32_2 = arith.constant 0 : i32
    return %c0_i32, %c0_i32_0, %c0_i32_1 : i32, i32, i32
  }
  func.func @transform_12(%arg0: i32) -> (i32, i32, i32) {
    %c0_i32 = arith.constant 0 : i32
    %c0_i32_0 = arith.constant 0 : i32
    %c0_i32_1 = arith.constant 0 : i32
    %c0_i32_2 = arith.constant 0 : i32
    return %c0_i32, %c0_i32_0, %c0_i32_1 : i32, i32, i32
  }
  func.func @transform_13(%arg0: i32) -> (i32, i32, i32) {
    %c0_i32 = arith.constant 0 : i32
    %c0_i32_0 = arith.constant 0 : i32
    %c0_i32_1 = arith.constant 0 : i32
    %c0_i32_2 = arith.constant 0 : i32
    return %c0_i32, %c0_i32_0, %c0_i32_1 : i32, i32, i32
  }
  func.func @transform_14(%arg0: i32) -> (i32, i32, i32) {
    %c0_i32 = arith.constant 0 : i32
    %c0_i32_0 = arith.constant 0 : i32
    %c0_i32_1 = arith.constant 0 : i32
    %c0_i32_2 = arith.constant 0 : i32
    return %c0_i32, %c0_i32_0, %c0_i32_1 : i32, i32, i32
  }
  func.func @transform_15(%arg0: i32) -> (i32, i32, i32) {
    %c0_i32 = arith.constant 0 : i32
    %c0_i32_0 = arith.constant 0 : i32
    %c0_i32_1 = arith.constant 0 : i32
    %c0_i32_2 = arith.constant 0 : i32
    return %c0_i32, %c0_i32_0, %c0_i32_1 : i32, i32, i32
  }
  func.func @transform_16(%arg0: i32) -> (i32, i32) {
    %c0_i32 = arith.constant 0 : i32
    %c0_i32_0 = arith.constant 0 : i32
    %c0_i32_1 = arith.constant 0 : i32
    return %c0_i32, %c0_i32_0 : i32, i32
  }
  func.func @transform_17(%arg0: i32) -> (i32, i32) {
    %c0_i32 = arith.constant 0 : i32
    %c0_i32_0 = arith.constant 0 : i32
    %c0_i32_1 = arith.constant 0 : i32
    return %c0_i32, %c0_i32_0 : i32, i32
  }
  func.func @transform_18(%arg0: i32) -> (i32, i32) {
    %c0_i32 = arith.constant 0 : i32
    %c0_i32_0 = arith.constant 0 : i32
    %c0_i32_1 = arith.constant 0 : i32
    return %c0_i32, %c0_i32_0 : i32, i32
  }
  func.func @transform_19(%arg0: i32) -> (i32, i32) {
    %c0_i32 = arith.constant 0 : i32
    %c0_i32_0 = arith.constant 0 : i32
    %c0_i32_1 = arith.constant 0 : i32
    return %c0_i32, %c0_i32_0 : i32, i32
  }
  func.func @transform_20(%arg0: i32) -> (i32, i32) {
    %c0_i32 = arith.constant 0 : i32
    %c0_i32_0 = arith.constant 0 : i32
    %c0_i32_1 = arith.constant 0 : i32
    return %c0_i32, %c0_i32_0 : i32, i32
  }
}

</mosaic_0001>

<llo_original>
// kernel: transformer_ts_forward.1
$region0: #{transformer_ts_forward.1}
  #allocation0 [shape = 'u32[]', space=smem, size = 0x4, offset = 0x4, fixed_abs, tag = 'smem constant byte address 0x4 - core index']
  #allocation1 [shape = 'u32[144,128]{1,0:T(1,128)}', space=vmem, size = 0x12000, scoped, tag = 'internal scratch']
  #allocation2 [shape = 'f32[1,1]{1,0:T(1,128)S(1)}', space=vmem, size = 0x200, scoped, tag = 'scoped memory for transformer_ts_forward.1']
  %s0 = inlined_call_operand.vmem [shape: f32[16,12], index: 0, kind: input, shape index: {}]
  %s1 = inlined_call_operand.vmem [shape: f32[8,12], index: 1, kind: input, shape index: {}]
  %s2 = inlined_call_operand.hbm [shape: f32[16,32], index: 2, kind: input, shape index: {}]
  %s3 = inlined_call_operand.hbm [shape: f32[16,16], index: 3, kind: input, shape index: {}]
  %s4 = inlined_call_operand.hbm [shape: f32[8,8], index: 4, kind: input, shape index: {}]
  %s5 = inlined_call_operand.hbm [shape: f32[8,16], index: 5, kind: input, shape index: {}]
  %s6 = inlined_call_operand.vmem [shape: f32[2,12,32], index: 6, kind: input, shape index: {}]
  %s7 = inlined_call_operand.vmem [shape: f32[6,32,32], index: 7, kind: input, shape index: {}]
  %s8 = inlined_call_operand.vmem [shape: f32[6,1,32], index: 8, kind: input, shape index: {}]
  %s9 = inlined_call_operand.vmem [shape: f32[6,32,64], index: 9, kind: input, shape index: {}]
  %s10 = inlined_call_operand.hbm [shape: f32[6,1,64], index: 10, kind: input, shape index: {}]
  %s11 = inlined_call_operand.vmem [shape: f32[6,32,32], index: 11, kind: input, shape index: {}]
  %s12 = inlined_call_operand.hbm [shape: f32[4,32,64], index: 12, kind: input, shape index: {}]
  %s13 = inlined_call_operand.hbm [shape: f32[4,1,64], index: 13, kind: input, shape index: {}]
  %s14 = inlined_call_operand.vmem [shape: f32[4,64,32], index: 14, kind: input, shape index: {}]
  %s15 = inlined_call_operand.vmem [shape: f32[36,1,32], index: 15, kind: input, shape index: {}]
  %s16 = inlined_call_operand.hbm [shape: f32[32,128], index: 16, kind: input, shape index: {}]
  %s17 = inlined_call_operand.hbm [shape: f32[1,128], index: 17, kind: input, shape index: {}]
  %s18 = inlined_call_operand.vmem [shape: f32[128,1], index: 18, kind: input, shape index: {}]
  %s19 = inlined_call_operand.<no memory space> [shape: f32[1,1], index: 19, kind: input, shape index: {}]
  %s20 = inlined_call_operand.vmem [shape: f32[8,1], index: 20, kind: output, shape index: {}]
  %s21 = sld [smem:[#allocation0]]
  $region126: #{transformer_ts_forward.1} parent=0
    _
  %s23 = ssub.s32 1, %s21
  %s24 = scalar_select 0, %s23, %s21
  %v25 = vstv %s19
  %26 = vst [vmem:[#allocation2] sm:$0x1] %v25
  $region1: #{transformer_ts_forward.1} parent=0
    #allocation3 [shape = 'u8[8192]{0}', space=vmem, size = 0x2000, scoped, tag = 'input window, operand 2, single buffered']
    #allocation4 [shape = 's32[1]{0}', space=sflag, size = 0x4, scoped, tag = 'scoped memory for transformer_ts_forward.1']
    #allocation5 [shape = 'u8[8192]{0}', space=vmem, size = 0x2000, scoped, tag = 'input window, operand 3, single buffered']
    #allocation6 [shape = 's32[1]{0}', space=sflag, size = 0x4, scoped, tag = 'scoped memory for transformer_ts_forward.1']
    #allocation7 [shape = 'u8[4096]{0}', space=vmem, size = 0x1000, scoped, tag = 'input window, operand 4, single buffered']
    #allocation8 [shape = 'u8[4096]{0}', space=vmem, size = 0x1000, scoped, tag = 'input window, operand 5, single buffered']
    #allocation9 [shape = 's32[1]{0}', space=sflag, size = 0x4, scoped, tag = 'scoped memory for transformer_ts_forward.1']
    #allocation10 [shape = 'u8[3072]{0}', space=vmem, size = 0xc00, scoped, tag = 'input window, operand 10, single buffered']
    #allocation11 [shape = 'u8[65536]{0}', space=vmem, size = 0x10000, scoped, tag = 'input window, operand 12, single buffered']
    #allocation12 [shape = 's32[1]{0}', space=sflag, size = 0x4, scoped, tag = 'scoped memory for transformer_ts_forward.1']
    #allocation13 [shape = 'u8[2048]{0}', space=vmem, size = 0x800, scoped, tag = 'input window, operand 13, single buffered']
    #allocation14 [shape = 'u8[16384]{0}', space=vmem, size = 0x4000, scoped, tag = 'input window, operand 16, single buffered']
    #allocation15 [shape = 's32[1]{0}', space=sflag, size = 0x4, scoped, tag = 'scoped memory for transformer_ts_forward.1']
    #allocation16 [shape = 'u8[512]{0}', space=vmem, size = 0x400, scoped, tag = 'input window, operand 17, single buffered']
    %27 = vsyncpa [#allocation4], 0
    %28 = vsyncpa [#allocation6], 0
    %29 = vsyncpa [#allocation9], 0
    %30 = vsyncpa [#allocation12], 0
    %31 = vsyncpa [#allocation15], 0
    // Predicated region
    $region2: #{transformer_ts_forward.1} parent=1 // pred_check
      _
    $region3: #{transformer_ts_forward.1} parent=1 // pred_check_branch
      %33 = sbr.rel (0) target = $region5
    $region4: #{transformer_ts_forward.1} parent=1 // pred_region
      _
    $region5: #{transformer_ts_forward.1} parent=1 // pred_fallthru
      _
    // Predicated region
    $region6: #{transformer_ts_forward.1} parent=1 // pred_check
      _
    $region7: #{transformer_ts_forward.1} parent=1 // pred_check_branch
      %35 = sbr.rel (0) target = $region9
    $region8: #{transformer_ts_forward.1} parent=1 // pred_region
      _
    $region9: #{transformer_ts_forward.1} parent=1 // pred_fallthru
      _
    // Predicated region
    $region10: #{transformer_ts_forward.1} parent=1 // pred_check
      _
    $region11: #{transformer_ts_forward.1} parent=1 // pred_check_branch
      %37 = sbr.rel (0) target = $region13
    $region12: #{transformer_ts_forward.1} parent=1 // pred_region
      %s39 = ssub.s32 256, 256
      %40 = vsyncadd [#allocation4], %s39
      %s41 = sshll.u32 [#allocation3], 4
      %s42 = int_to_ptr.vmem [resolvable:$true] %s41
      %47 = dma.hbm_to_vmem [thread:$0]  %s2, 256, %s42, [#allocation4], 128, 128, 8
    $region13: #{transformer_ts_forward.1} parent=1 // pred_fallthru
      _
    // Predicated region
    $region14: #{transformer_ts_forward.1} parent=1 // pred_check
      _
    $region15: #{transformer_ts_forward.1} parent=1 // pred_check_branch
      %49 = sbr.rel (0) target = $region17
    $region16: #{transformer_ts_forward.1} parent=1 // pred_region
      %s51 = ssub.s32 256, 256
      %52 = vsyncadd [#allocation6], %s51
      %s53 = sshll.u32 [#allocation5], 4
      %s54 = int_to_ptr.vmem [resolvable:$true] %s53
      %59 = dma.hbm_to_vmem [thread:$0]  %s3, 256, %s54, [#allocation6], 128, 128, 8
    $region17: #{transformer_ts_forward.1} parent=1 // pred_fallthru
      _
    // Predicated region
    $region18: #{transformer_ts_forward.1} parent=1 // pred_check
      _
    $region19: #{transformer_ts_forward.1} parent=1 // pred_check_branch
      %61 = sbr.rel (0) target = $region21
    $region20: #{transformer_ts_forward.1} parent=1 // pred_region
      %s63 = ssub.s32 128, 128
      %64 = vsyncadd [#allocation6], %s63
      %s66 = sshll.u32 [#allocation7], 4
      %s67 = int_to_ptr.vmem [resolvable:$true] %s66
      %69 = dma.hbm_to_vmem [thread:$0]  %s4, 128, %s67, [#allocation6]
    $region21: #{transformer_ts_forward.1} parent=1 // pred_fallthru
      _
    // Predicated region
    $region22: #{transformer_ts_forward.1} parent=1 // pred_check
      _
    $region23: #{transformer_ts_forward.1} parent=1 // pred_check_branch
      %71 = sbr.rel (0) target = $region25
    $region24: #{transformer_ts_forward.1} parent=1 // pred_region
      %s73 = ssub.s32 128, 128
      %74 = vsyncadd [#allocation9], %s73
      %s76 = sshll.u32 [#allocation8], 4
      %s77 = int_to_ptr.vmem [resolvable:$true] %s76
      %79 = dma.hbm_to_vmem [thread:$0]  %s5, 128, %s77, [#allocation9]
    $region25: #{transformer_ts_forward.1} parent=1 // pred_fallthru
      _
    // Predicated region
    $region26: #{transformer_ts_forward.1} parent=1 // pred_check
      _
    $region27: #{transformer_ts_forward.1} parent=1 // pred_check_branch
      %81 = sbr.rel (0) target = $region29
    $region28: #{transformer_ts_forward.1} parent=1 // pred_region
      _
    $region29: #{transformer_ts_forward.1} parent=1 // pred_fallthru
      _
    // Predicated region
    $region30: #{transformer_ts_forward.1} parent=1 // pred_check
      _
    $region31: #{transformer_ts_forward.1} parent=1 // pred_check_branch
      %83 = sbr.rel (0) target = $region33
    $region32: #{transformer_ts_forward.1} parent=1 // pred_region
      _
    $region33: #{transformer_ts_forward.1} parent=1 // pred_fallthru
      _
    // Predicated region
    $region34: #{transformer_ts_forward.1} parent=1 // pred_check
      _
    $region35: #{transformer_ts_forward.1} parent=1 // pred_check_branch
      %85 = sbr.rel (0) target = $region37
    $region36: #{transformer_ts_forward.1} parent=1 // pred_region
      _
    $region37: #{transformer_ts_forward.1} parent=1 // pred_fallthru
      _
    // Predicated region
    $region38: #{transformer_ts_forward.1} parent=1 // pred_check
      _
    $region39: #{transformer_ts_forward.1} parent=1 // pred_check_branch
      %87 = sbr.rel (0) target = $region41
    $region40: #{transformer_ts_forward.1} parent=1 // pred_region
      _
    $region41: #{transformer_ts_forward.1} parent=1 // pred_fallthru
      _
    // Predicated region
    $region42: #{transformer_ts_forward.1} parent=1 // pred_check
      _
    $region43: #{transformer_ts_forward.1} parent=1 // pred_check_branch
      %89 = sbr.rel (0) target = $region45
    $region44: #{transformer_ts_forward.1} parent=1 // pred_region
      %s91 = ssub.s32 96, 96
      %92 = vsyncadd [#allocation9], %s91
      %s93 = sshll.u32 [#allocation10], 4
      %s94 = int_to_ptr.vmem [resolvable:$true] %s93
      %99 = dma.hbm_to_vmem [thread:$0]  %s10, 96, %s94, [#allocation9], 16, 16, 1
    $region45: #{transformer_ts_forward.1} parent=1 // pred_fallthru
      _
    // Predicated region
    $region46: #{transformer_ts_forward.1} parent=1 // pred_check
      _
    $region47: #{transformer_ts_forward.1} parent=1 // pred_check_branch
      %101 = sbr.rel (0) target = $region49
    $region48: #{transformer_ts_forward.1} parent=1 // pred_region
      _
    $region49: #{transformer_ts_forward.1} parent=1 // pred_fallthru
      _
    // Predicated region
    $region50: #{transformer_ts_forward.1} parent=1 // pred_check
      _
    $region51: #{transformer_ts_forward.1} parent=1 // pred_check_branch
      %103 = sbr.rel (0) target = $region53
    $region52: #{transformer_ts_forward.1} parent=1 // pred_region
      %s105 = ssub.s32 2048, 2048
      %106 = vsyncadd [#allocation12], %s105
      %s107 = sshll.u32 [#allocation11], 4
      %s108 = int_to_ptr.vmem [resolvable:$true] %s107
      %113 = dma.hbm_to_vmem [thread:$0]  %s12, 2048, %s108, [#allocation12], 128, 128, 8
    $region53: #{transformer_ts_forward.1} parent=1 // pred_fallthru
      _
    // Predicated region
    $region54: #{transformer_ts_forward.1} parent=1 // pred_check
      _
    $region55: #{transformer_ts_forward.1} parent=1 // pred_check_branch
      %115 = sbr.rel (0) target = $region57
    $region56: #{transformer_ts_forward.1} parent=1 // pred_region
      %s117 = ssub.s32 64, 64
      %118 = vsyncadd [#allocation12], %s117
      %s119 = sshll.u32 [#allocation13], 4
      %s120 = int_to_ptr.vmem [resolvable:$true] %s119
      %125 = dma.hbm_to_vmem [thread:$0]  %s13, 64, %s120, [#allocation12], 16, 16, 1
    $region57: #{transformer_ts_forward.1} parent=1 // pred_fallthru
      _
    // Predicated region
    $region58: #{transformer_ts_forward.1} parent=1 // pred_check
      _
    $region59: #{transformer_ts_forward.1} parent=1 // pred_check_branch
      %127 = sbr.rel (0) target = $region61
    $region60: #{transformer_ts_forward.1} parent=1 // pred_region
      _
    $region61: #{transformer_ts_forward.1} parent=1 // pred_fallthru
      _
    // Predicated region
    $region62: #{transformer_ts_forward.1} parent=1 // pred_check
      _
    $region63: #{transformer_ts_forward.1} parent=1 // pred_check_branch
      %129 = sbr.rel (0) target = $region65
    $region64: #{transformer_ts_forward.1} parent=1 // pred_region
      _
    $region65: #{transformer_ts_forward.1} parent=1 // pred_fallthru
      _
    // Predicated region
    $region66: #{transformer_ts_forward.1} parent=1 // pred_check
      _
    $region67: #{transformer_ts_forward.1} parent=1 // pred_check_branch
      %131 = sbr.rel (0) target = $region69
    $region68: #{transformer_ts_forward.1} parent=1 // pred_region
      %s133 = ssub.s32 512, 512
      %134 = vsyncadd [#allocation15], %s133
      %s135 = sshll.u32 [#allocation14], 4
      %s136 = int_to_ptr.vmem [resolvable:$true] %s135
      %141 = dma.hbm_to_vmem [thread:$0]  %s16, 512, %s136, [#allocation15], 128, 128, 8
    $region69: #{transformer_ts_forward.1} parent=1 // pred_fallthru
      _
    // Predicated region
    $region70: #{transformer_ts_forward.1} parent=1 // pred_check
      _
    $region71: #{transformer_ts_forward.1} parent=1 // pred_check_branch
      %143 = sbr.rel (0) target = $region73
    $region72: #{transformer_ts_forward.1} parent=1 // pred_region
      %s145 = ssub.s32 16, 16
      %146 = vsyncadd [#allocation15], %s145
      %s148 = sshll.u32 [#allocation16], 4
      %s149 = int_to_ptr.vmem [resolvable:$true] %s148
      %151 = dma.hbm_to_vmem [thread:$0]  %s17, 16, %s149, [#allocation15]
    $region73: #{transformer_ts_forward.1} parent=1 // pred_fallthru
      _
    // Predicated region
    $region74: #{transformer_ts_forward.1} parent=1 // pred_check
      _
    $region75: #{transformer_ts_forward.1} parent=1 // pred_check_branch
      %153 = sbr.rel (0) target = $region77
    $region76: #{transformer_ts_forward.1} parent=1 // pred_region
      _
    $region77: #{transformer_ts_forward.1} parent=1 // pred_fallthru
      _
    // Predicated region
    $region78: #{transformer_ts_forward.1} parent=1 // pred_check
      _
    $region79: #{transformer_ts_forward.1} parent=1 // pred_check_branch
      %155 = sbr.rel (0) target = $region81
    $region80: #{transformer_ts_forward.1} parent=1 // pred_region
      _
    $region81: #{transformer_ts_forward.1} parent=1 // pred_fallthru
      _
    // Predicated region
    $region82: #{transformer_ts_forward.1} parent=1 // pred_check
      _
    $region83: #{transformer_ts_forward.1} parent=1 // pred_check_branch
      %157 = sbr.rel (0) target = $region85
    $region84: #{transformer_ts_forward.1} parent=1 // pred_region
      %158 = dma.done [#allocation4], 256
    $region85: #{transformer_ts_forward.1} parent=1 // pred_fallthru
      _
    // Predicated region
    $region86: #{transformer_ts_forward.1} parent=1 // pred_check
      _
    $region87: #{transformer_ts_forward.1} parent=1 // pred_check_branch
      %160 = sbr.rel (0) target = $region89
    $region88: #{transformer_ts_forward.1} parent=1 // pred_region
      %161 = dma.done [#allocation6], 256
    $region89: #{transformer_ts_forward.1} parent=1 // pred_fallthru
      _
    // Predicated region
    $region90: #{transformer_ts_forward.1} parent=1 // pred_check
      _
    $region91: #{transformer_ts_forward.1} parent=1 // pred_check_branch
      %163 = sbr.rel (0) target = $region93
    $region92: #{transformer_ts_forward.1} parent=1 // pred_region
      %164 = dma.done [#allocation6], 128
    $region93: #{transformer_ts_forward.1} parent=1 // pred_fallthru
      _
    // Predicated region
    $region94: #{transformer_ts_forward.1} parent=1 // pred_check
      _
    $region95: #{transformer_ts_forward.1} parent=1 // pred_check_branch
      %166 = sbr.rel (0) target = $region97
    $region96: #{transformer_ts_forward.1} parent=1 // pred_region
      %167 = dma.done [#allocation9], 128
    $region97: #{transformer_ts_forward.1} parent=1 // pred_fallthru
      _
    // Predicated region
    $region98: #{transformer_ts_forward.1} parent=1 // pred_check
      _
    $region99: #{transformer_ts_forward.1} parent=1 // pred_check_branch
      %169 = sbr.rel (0) target = $region101
    $region100: #{transformer_ts_forward.1} parent=1 // pred_region
      %170 = dma.done [#allocation9], 96
    $region101: #{transformer_ts_forward.1} parent=1 // pred_fallthru
      _
    // Predicated region
    $region102: #{transformer_ts_forward.1} parent=1 // pred_check
      _
    $region103: #{transformer_ts_forward.1} parent=1 // pred_check_branch
      %172 = sbr.rel (0) target = $region105
    $region104: #{transformer_ts_forward.1} parent=1 // pred_region
      %173 = dma.done [#allocation12], 2048
    $region105: #{transformer_ts_forward.1} parent=1 // pred_fallthru
      _
    // Predicated region
    $region106: #{transformer_ts_forward.1} parent=1 // pred_check
      _
    $region107: #{transformer_ts_forward.1} parent=1 // pred_check_branch
      %175 = sbr.rel (0) target = $region109
    $region108: #{transformer_ts_forward.1} parent=1 // pred_region
      %176 = dma.done [#allocation12], 64
    $region109: #{transformer_ts_forward.1} parent=1 // pred_fallthru
      _
    // Predicated region
    $region110: #{transformer_ts_forward.1} parent=1 // pred_check
      _
    $region111: #{transformer_ts_forward.1} parent=1 // pred_check_branch
      %178 = sbr.rel (0) target = $region113
    $region112: #{transformer_ts_forward.1} parent=1 // pred_region
      %179 = dma.done [#allocation15], 512
    $region113: #{transformer_ts_forward.1} parent=1 // pred_fallthru
      _
    // Predicated region
    $region114: #{transformer_ts_forward.1} parent=1 // pred_check
      _
    $region115: #{transformer_ts_forward.1} parent=1 // pred_check_branch
      %181 = sbr.rel (0) target = $region117
    $region116: #{transformer_ts_forward.1} parent=1 // pred_region
      %182 = dma.done [#allocation15], 16
    $region117: #{transformer_ts_forward.1} parent=1 // pred_fallthru
      _
    %v183 = vld [vmem:[#allocation5] sm:$0xff]
    %v184 = vld [vmem:[#allocation5 + $0x8] sm:$0xff]
    %v185 = vld [vmem:[#allocation7] sm:$0xff]
    %v186 = vld [vmem:[#allocation8] sm:$0xff]
    %v187 = vld [vmem:[%s0] sm:$0xff]
    %v188 = vld [vmem:[%s0 + $0x8] sm:$0xff]
    %v189 = vld [vmem:[%s6] sm:$0xff]
    %v190 = vld [vmem:[%s6 + $0x8] sm:$0xf]
    %v191 = vld [vmem:[%s15] sm:$0x1]
    %v193 = vlaneseq
    %v194 = vshrl.u32 %v193, 7
    %v195 = vsub.s32 0, %v194
    %v196 = vrot.slane %v191, %v195
    %vm198 = vcmask 97280
    %v200 = vsel %vm198, %v187, 0
    %v203 = vsel %vm198, %v188, 0
    %vm205 = vcmask 1043456
    %v207 = vsel %vm205, %v190, 0
    %209 = vmatprep.subr.mxu0 0.0
    %210 = vmatpush1.msra.mxu0 %v189
    %211 = vmatprep.subr.mxu0 0.0
    %212 = vmatpush1.msra.mxu0 %v207
    %213 = vmatprep.subr.mxu0 0.0
    %214 = vmatpush1.msra.mxu0 0.0
    %215 = vmatprep.subr.mxu0 0.0
    %216 = vmatpush1.msra.mxu0 0.0
    %217 = vmatprep.subr.mxu0 0.0
    %218 = vmatpush1.msra.mxu0 0.0
    %219 = vmatprep.subr.mxu0 0.0
    %220 = vmatpush1.msra.mxu0 0.0
    %221 = vmatprep.subr.mxu0 0.0
    %222 = vmatpush1.msra.mxu0 0.0
    %223 = vmatprep.subr.mxu0 0.0
    %224 = vmatpush1.msra.mxu0 0.0
    %225 = vmatprep.subr.mxu0 0.0
    %226 = vmatpush1.msra.mxu0 0.0
    %227 = vmatprep.subr.mxu0 0.0
    %228 = vmatpush1.msra.mxu0 0.0
    %229 = vmatprep.subr.mxu0 0.0
    %230 = vmatpush1.msra.mxu0 0.0
    %231 = vmatprep.subr.mxu0 0.0
    %232 = vmatpush1.msra.mxu0 0.0
    %233 = vmatprep.subr.mxu0 0.0
    %234 = vmatpush1.msra.mxu0 0.0
    %235 = vmatprep.subr.mxu0 0.0
    %236 = vmatpush1.msra.mxu0 0.0
    %237 = vmatprep.subr.mxu0 0.0
    %238 = vmatpush1.msra.mxu0 0.0
    %239 = vmatprep.subr.mxu0 0.0
    %240 = vmatpush1.msra.mxu0 0.0
    %241 = vmatprep.subr.mxu0 0.0
    %242 = vmatpush1.msra.mxu0 0.0
    %243 = vmatprep.subr.mxu0 0.0
    %244 = vmatpush1.msra.mxu0 0.0
    %245 = vmatprep.subr.mxu0 0.0
    %246 = vmatpush1.msra.mxu0 0.0
    %247 = vmatprep.subr.mxu0 0.0
    %248 = vmatpush1.msra.mxu0 0.0
    %249 = vmatprep.subr.mxu0 0.0
    %250 = vmatpush1.msra.mxu0 0.0
    %251 = vmatprep.subr.mxu0 0.0
    %252 = vmatpush1.msra.mxu0 0.0
    %253 = vmatprep.subr.mxu0 0.0
    %254 = vmatpush1.msra.mxu0 0.0
    %255 = vmatprep.subr.mxu0 0.0
    %256 = vmatpush1.msra.mxu0 0.0
    %257 = vmatprep.subr.mxu0 0.0
    %258 = vmatpush1.msra.mxu0 0.0
    %259 = vmatprep.subr.mxu0 0.0
    %260 = vmatpush1.msra.mxu0 0.0
    %261 = vmatprep.subr.mxu0 0.0
    %262 = vmatpush1.msra.mxu0 0.0
    %263 = vmatprep.subr.mxu0 0.0
    %264 = vmatpush1.msra.mxu0 0.0
    %265 = vmatprep.subr.mxu0 0.0
    %266 = vmatpush1.msra.mxu0 0.0
    %267 = vmatprep.subr.mxu0 0.0
    %268 = vmatpush1.msra.mxu0 0.0
    %269 = vmatprep.subr.mxu0 0.0
    %270 = vmatpush1.msra.mxu0 0.0
    %271 = vmatprep.subr.mxu0 0.0
    %272 = vmatpush1.msra.mxu0 0.0
    %273 = vmatprep.mubr.f32.mxu0 0.0
    %274 = vmatmul.mubr.f32.gmra.mrb[0].mxu0 %v200
    %v275 = vpop.f32.mrb[0].mxu0
    %v276 = vadd.f32 %v196, %v275
    %v277 = vpop.f32.mrb[0].mxu0
    %278 = vmatprep.mubr.f32.mxu0 0.0
    %279 = vmatmul.mubr.f32.gmra.mrb[0].mxu0 %v203
    %v280 = vpop.f32.mrb[0].mxu0
    %v281 = vadd.f32 %v196, %v280
    %v282 = vpop.f32.mrb[0].mxu0
    %283 = vdwg.mxu0
    %v284 = vld [vmem:[#allocation3] sm:$0xff]
    %v285 = vld [vmem:[#allocation3 + $0x8] sm:$0xff]
    %v286 = vadd.f32 %v276, %v284
    %v287 = vadd.f32 %v281, %v285
    %v288 = vld [vmem:[%s1] sm:$0xff]
    %s289 = scalar_lea.vmem %s6, 16
    %v290 = vld [vmem:[%s289] sm:$0xff]
    %v291 = vld [vmem:[%s289 + $0x8] sm:$0xf]
    %s292 = scalar_lea.vmem %s15, 1
    %v293 = vld [vmem:[%s292] sm:$0x1]
    %v295 = vlaneseq
    %v296 = vshrl.u32 %v295, 7
    %v297 = vsub.s32 0, %v296
    %v298 = vrot.slane %v293, %v297
    %v301 = vsel %vm198, %v288, 0
    %v304 = vsel %vm205, %v291, 0
    %306 = vmatprep.subr.mxu0 0.0
    %307 = vmatpush1.msra.mxu0 %v290
    %308 = vmatprep.subr.mxu0 0.0
    %309 = vmatpush1.msra.mxu0 %v304
    %310 = vmatprep.subr.mxu0 0.0
    %311 = vmatpush1.msra.mxu0 0.0
    %312 = vmatprep.subr.mxu0 0.0
    %313 = vmatpush1.msra.mxu0 0.0
    %314 = vmatprep.subr.mxu0 0.0
    %315 = vmatpush1.msra.mxu0 0.0
    %316 = vmatprep.subr.mxu0 0.0
    %317 = vmatpush1.msra.mxu0 0.0
    %318 = vmatprep.subr.mxu0 0.0
    %319 = vmatpush1.msra.mxu0 0.0
    %320 = vmatprep.subr.mxu0 0.0
    %321 = vmatpush1.msra.mxu0 0.0
    %322 = vmatprep.subr.mxu0 0.0
    %323 = vmatpush1.msra.mxu0 0.0
    %324 = vmatprep.subr.mxu0 0.0
    %325 = vmatpush1.msra.mxu0 0.0
    %326 = vmatprep.subr.mxu0 0.0
    %327 = vmatpush1.msra.mxu0 0.0
    %328 = vmatprep.subr.mxu0 0.0
    %329 = vmatpush1.msra.mxu0 0.0
    %330 = vmatprep.subr.mxu0 0.0
    %331 = vmatpush1.msra.mxu0 0.0
    %332 = vmatprep.subr.mxu0 0.0
    %333 = vmatpush1.msra.mxu0 0.0
    %334 = vmatprep.subr.mxu0 0.0
    %335 = vmatpush1.msra.mxu0 0.0
    %336 = vmatprep.subr.mxu0 0.0
    %337 = vmatpush1.msra.mxu0 0.0
    %338 = vmatprep.subr.mxu0 0.0
    %339 = vmatpush1.msra.mxu0 0.0
    %340 = vmatprep.subr.mxu0 0.0
    %341 = vmatpush1.msra.mxu0 0.0
    %342 = vmatprep.subr.mxu0 0.0
    %343 = vmatpush1.msra.mxu0 0.0
    %344 = vmatprep.subr.mxu0 0.0
    %345 = vmatpush1.msra.mxu0 0.0
    %346 = vmatprep.subr.mxu0 0.0
    %347 = vmatpush1.msra.mxu0 0.0
    %348 = vmatprep.subr.mxu0 0.0
    %349 = vmatpush1.msra.mxu0 0.0
    %350 = vmatprep.subr.mxu0 0.0
    %351 = vmatpush1.msra.mxu0 0.0
    %352 = vmatprep.subr.mxu0 0.0
    %353 = vmatpush1.msra.mxu0 0.0
    %354 = vmatprep.subr.mxu0 0.0
    %355 = vmatpush1.msra.mxu0 0.0
    %356 = vmatprep.subr.mxu0 0.0
    %357 = vmatpush1.msra.mxu0 0.0
    %358 = vmatprep.subr.mxu0 0.0
    %359 = vmatpush1.msra.mxu0 0.0
    %360 = vmatprep.subr.mxu0 0.0
    %361 = vmatpush1.msra.mxu0 0.0
    %362 = vmatprep.subr.mxu0 0.0
    %363 = vmatpush1.msra.mxu0 0.0
    %364 = vmatprep.subr.mxu0 0.0
    %365 = vmatpush1.msra.mxu0 0.0
    %366 = vmatprep.subr.mxu0 0.0
    %367 = vmatpush1.msra.mxu0 0.0
    %368 = vmatprep.subr.mxu0 0.0
    %369 = vmatpush1.msra.mxu0 0.0
    %370 = vmatprep.mubr.f32.mxu0 0.0
    %371 = vmatmul.mubr.f32.gmra.mrb[0].mxu0 %v301
    %v372 = vpop.f32.mrb[0].mxu0
    %v373 = vadd.f32 %v298, %v372
    %v374 = vpop.f32.mrb[0].mxu0
    %375 = vdwg.mxu0
    %v376 = vld [vmem:[%s7] sm:$0xff]
    %v377 = vld [vmem:[%s7 + $0x8] sm:$0xff]
    %v378 = vld [vmem:[%s7 + $0x10] sm:$0xff]
    %v379 = vld [vmem:[%s7 + $0x18] sm:$0xff]
    %v380 = vld [vmem:[%s8] sm:$0x1]
    %v382 = vlaneseq
    %v383 = vshrl.u32 %v382, 7
    %v384 = vsub.s32 0, %v383
    %v385 = vrot.slane %v380, %v384
    %vm387 = vcmask 261120
    %v389 = vsel %vm387, %v286, 0
    %v392 = vsel %vm387, %v287, 0
    %394 = vmatprep.subr.mxu0 0.0
    %395 = vmatpush1.msra.mxu0 %v376
    %396 = vmatprep.subr.mxu0 0.0
    %397 = vmatpush1.msra.mxu0 %v377
    %398 = vmatprep.subr.mxu0 0.0
    %399 = vmatpush1.msra.mxu0 %v378
    %400 = vmatprep.subr.mxu0 0.0
    %401 = vmatpush1.msra.mxu0 %v379
    %402 = vmatprep.subr.mxu0 0.0
    %403 = vmatpush1.msra.mxu0 0.0
    %404 = vmatprep.subr.mxu0 0.0
    %405 = vmatpush1.msra.mxu0 0.0
    %406 = vmatprep.subr.mxu0 0.0
    %407 = vmatpush1.msra.mxu0 0.0
    %408 = vmatprep.subr.mxu0 0.0
    %409 = vmatpush1.msra.mxu0 0.0
    %410 = vmatprep.subr.mxu0 0.0
    %411 = vmatpush1.msra.mxu0 0.0
    %412 = vmatprep.subr.mxu0 0.0
    %413 = vmatpush1.msra.mxu0 0.0
    %414 = vmatprep.subr.mxu0 0.0
    %415 = vmatpush1.msra.mxu0 0.0
    %416 = vmatprep.subr.mxu0 0.0
    %417 = vmatpush1.msra.mxu0 0.0
    %418 = vmatprep.subr.mxu0 0.0
    %419 = vmatpush1.msra.mxu0 0.0
    %420 = vmatprep.subr.mxu0 0.0
    %421 = vmatpush1.msra.mxu0 0.0
    %422 = vmatprep.subr.mxu0 0.0
    %423 = vmatpush1.msra.mxu0 0.0
    %424 = vmatprep.subr.mxu0 0.0
    %425 = vmatpush1.msra.mxu0 0.0
    %426 = vmatprep.subr.mxu0 0.0
    %427 = vmatpush1.msra.mxu0 0.0
    %428 = vmatprep.subr.mxu0 0.0
    %429 = vmatpush1.msra.mxu0 0.0
    %430 = vmatprep.subr.mxu0 0.0
    %431 = vmatpush1.msra.mxu0 0.0
    %432 = vmatprep.subr.mxu0 0.0
    %433 = vmatpush1.msra.mxu0 0.0
    %434 = vmatprep.subr.mxu0 0.0
    %435 = vmatpush1.msra.mxu0 0.0
    %436 = vmatprep.subr.mxu0 0.0
    %437 = vmatpush1.msra.mxu0 0.0
    %438 = vmatprep.subr.mxu0 0.0
    %439 = vmatpush1.msra.mxu0 0.0
    %440 = vmatprep.subr.mxu0 0.0
    %441 = vmatpush1.msra.mxu0 0.0
    %442 = vmatprep.subr.mxu0 0.0
    %443 = vmatpush1.msra.mxu0 0.0
    %444 = vmatprep.subr.mxu0 0.0
    %445 = vmatpush1.msra.mxu0 0.0
    %446 = vmatprep.subr.mxu0 0.0
    %447 = vmatpush1.msra.mxu0 0.0
    %448 = vmatprep.subr.mxu0 0.0
    %449 = vmatpush1.msra.mxu0 0.0
    %450 = vmatprep.subr.mxu0 0.0
    %451 = vmatpush1.msra.mxu0 0.0
    %452 = vmatprep.subr.mxu0 0.0
    %453 = vmatpush1.msra.mxu0 0.0
    %454 = vmatprep.subr.mxu0 0.0
    %455 = vmatpush1.msra.mxu0 0.0
    %456 = vmatprep.subr.mxu0 0.0
    %457 = vmatpush1.msra.mxu0 0.0
    %458 = vmatprep.mubr.f32.mxu0 0.0
    %459 = vmatmul.mubr.f32.gmra.mrb[0].mxu0 %v389
    %v460 = vpop.f32.mrb[0].mxu0
    %v461 = vadd.f32 %v385, %v460
    %v462 = vpop.f32.mrb[0].mxu0
    %463 = vmatprep.mubr.f32.mxu0 0.0
    %464 = vmatmul.mubr.f32.gmra.mrb[0].mxu0 %v392
    %v465 = vpop.f32.mrb[0].mxu0
    %v466 = vadd.f32 %v385, %v465
    %v467 = vpop.f32.mrb[0].mxu0
    %468 = vdwg.mxu0
    %v469 = vmul.f32 %v461, 0.35355338
    %v470 = vmul.f32 %v466, 0.35355338
    %v471 = vld [vmem:[%s9] sm:$0xff]
    %v472 = vld [vmem:[%s9 + $0x8] sm:$0xff]
    %v473 = vld [vmem:[%s9 + $0x10] sm:$0xff]
    %v474 = vld [vmem:[%s9 + $0x18] sm:$0xff]
    %v475 = vld [vmem:[#allocation10] sm:$0x1]
    %v477 = vlaneseq
    %v478 = vshrl.u32 %v477, 7
    %v479 = vsub.s32 0, %v478
    %v480 = vrot.slane %v475, %v479
    %482 = vmatprep.subr.mxu0 0.0
    %483 = vmatpush1.msra.mxu0 %v471
    %484 = vmatprep.subr.mxu0 0.0
    %485 = vmatpush1.msra.mxu0 %v472
    %486 = vmatprep.subr.mxu0 0.0
    %487 = vmatpush1.msra.mxu0 %v473
    %488 = vmatprep.subr.mxu0 0.0
    %489 = vmatpush1.msra.mxu0 %v474
    %490 = vmatprep.subr.mxu0 0.0
    %491 = vmatpush1.msra.mxu0 0.0
    %492 = vmatprep.subr.mxu0 0.0
    %493 = vmatpush1.msra.mxu0 0.0
    %494 = vmatprep.subr.mxu0 0.0
    %495 = vmatpush1.msra.mxu0 0.0
    %496 = vmatprep.subr.mxu0 0.0
    %497 = vmatpush1.msra.mxu0 0.0
    %498 = vmatprep.subr.mxu0 0.0
    %499 = vmatpush1.msra.mxu0 0.0
    %500 = vmatprep.subr.mxu0 0.0
    %501 = vmatpush1.msra.mxu0 0.0
    %502 = vmatprep.subr.mxu0 0.0
    %503 = vmatpush1.msra.mxu0 0.0
    %504 = vmatprep.subr.mxu0 0.0
    %505 = vmatpush1.msra.mxu0 0.0
    %506 = vmatprep.subr.mxu0 0.0
    %507 = vmatpush1.msra.mxu0 0.0
    %508 = vmatprep.subr.mxu0 0.0
    %509 = vmatpush1.msra.mxu0 0.0
    %510 = vmatprep.subr.mxu0 0.0
    %511 = vmatpush1.msra.mxu0 0.0
    %512 = vmatprep.subr.mxu0 0.0
    %513 = vmatpush1.msra.mxu0 0.0
    %514 = vmatprep.subr.mxu0 0.0
    %515 = vmatpush1.msra.mxu0 0.0
    %516 = vmatprep.subr.mxu0 0.0
    %517 = vmatpush1.msra.mxu0 0.0
    %518 = vmatprep.subr.mxu0 0.0
    %519 = vmatpush1.msra.mxu0 0.0
    %520 = vmatprep.subr.mxu0 0.0
    %521 = vmatpush1.msra.mxu0 0.0
    %522 = vmatprep.subr.mxu0 0.0
    %523 = vmatpush1.msra.mxu0 0.0
    %524 = vmatprep.subr.mxu0 0.0
    %525 = vmatpush1.msra.mxu0 0.0
    %526 = vmatprep.subr.mxu0 0.0
    %527 = vmatpush1.msra.mxu0 0.0
    %528 = vmatprep.subr.mxu0 0.0
    %529 = vmatpush1.msra.mxu0 0.0
    %530 = vmatprep.subr.mxu0 0.0
    %531 = vmatpush1.msra.mxu0 0.0
    %532 = vmatprep.subr.mxu0 0.0
    %533 = vmatpush1.msra.mxu0 0.0
    %534 = vmatprep.subr.mxu0 0.0
    %535 = vmatpush1.msra.mxu0 0.0
    %536 = vmatprep.subr.mxu0 0.0
    %537 = vmatpush1.msra.mxu0 0.0
    %538 = vmatprep.subr.mxu0 0.0
    %539 = vmatpush1.msra.mxu0 0.0
    %540 = vmatprep.subr.mxu0 0.0
    %541 = vmatpush1.msra.mxu0 0.0
    %542 = vmatprep.subr.mxu0 0.0
    %543 = vmatpush1.msra.mxu0 0.0
    %544 = vmatprep.subr.mxu0 0.0
    %545 = vmatpush1.msra.mxu0 0.0
    %546 = vmatprep.mubr.f32.mxu0 0.0
    %547 = vmatmul.mubr.f32.gmra.mrb[0].mxu0 %v389
    %v548 = vpop.f32.mrb[0].mxu0
    %v549 = vadd.f32 %v480, %v548
    %v550 = vpop.f32.mrb[0].mxu0
    %551 = vmatprep.mubr.f32.mxu0 0.0
    %552 = vmatmul.mubr.f32.gmra.mrb[0].mxu0 %v392
    %v553 = vpop.f32.mrb[0].mxu0
    %v554 = vadd.f32 %v480, %v553
    %v555 = vpop.f32.mrb[0].mxu0
    %556 = vdwg.mxu0
    %vm557 = vcmask 64512
    %v559 = vsel %vm557, %v469, 0
    %v562 = vsel %vm557, %v470, 0
    %v565 = vsel %vm557, %v549, 0
    %v568 = vsel %vm557, %v554, 0
    %570 = vmatprep.subr.mxu0 0.0
    %571 = vmatpush1.xpose.msra.mxu0 %v565
    %572 = vmatprep.subr.mxu0 0.0
    %573 = vmatpush1.xpose.msra.mxu0 %v568
    %574 = vmatprep.subr.mxu0 0.0
    %575 = vmatpush1.xpose.msra.mxu0 0.0
    %576 = vmatprep.subr.mxu0 0.0
    %577 = vmatpush1.xpose.msra.mxu0 0.0
    %578 = vmatprep.subr.mxu0 0.0
    %579 = vmatpush1.xpose.msra.mxu0 0.0
    %580 = vmatprep.subr.mxu0 0.0
    %581 = vmatpush1.xpose.msra.mxu0 0.0
    %582 = vmatprep.subr.mxu0 0.0
    %583 = vmatpush1.xpose.msra.mxu0 0.0
    %584 = vmatprep.subr.mxu0 0.0
    %585 = vmatpush1.xpose.msra.mxu0 0.0
    %586 = vmatprep.subr.mxu0 0.0
    %587 = vmatpush1.xpose.msra.mxu0 0.0
    %588 = vmatprep.subr.mxu0 0.0
    %589 = vmatpush1.xpose.msra.mxu0 0.0
    %590 = vmatprep.subr.mxu0 0.0
    %591 = vmatpush1.xpose.msra.mxu0 0.0
    %592 = vmatprep.subr.mxu0 0.0
    %593 = vmatpush1.xpose.msra.mxu0 0.0
    %594 = vmatprep.subr.mxu0 0.0
    %595 = vmatpush1.xpose.msra.mxu0 0.0
    %596 = vmatprep.subr.mxu0 0.0
    %597 = vmatpush1.xpose.msra.mxu0 0.0
    %598 = vmatprep.subr.mxu0 0.0
    %599 = vmatpush1.xpose.msra.mxu0 0.0
    %600 = vmatprep.subr.mxu0 0.0
    %601 = vmatpush1.xpose.msra.mxu0 0.0
    %602 = vmatprep.subr.mxu0 0.0
    %603 = vmatpush1.xpose.msra.mxu0 0.0
    %604 = vmatprep.subr.mxu0 0.0
    %605 = vmatpush1.xpose.msra.mxu0 0.0
    %606 = vmatprep.subr.mxu0 0.0
    %607 = vmatpush1.xpose.msra.mxu0 0.0
    %608 = vmatprep.subr.mxu0 0.0
    %609 = vmatpush1.xpose.msra.mxu0 0.0
    %610 = vmatprep.subr.mxu0 0.0
    %611 = vmatpush1.xpose.msra.mxu0 0.0
    %612 = vmatprep.subr.mxu0 0.0
    %613 = vmatpush1.xpose.msra.mxu0 0.0
    %614 = vmatprep.subr.mxu0 0.0
    %615 = vmatpush1.xpose.msra.mxu0 0.0
    %616 = vmatprep.subr.mxu0 0.0
    %617 = vmatpush1.xpose.msra.mxu0 0.0
    %618 = vmatprep.subr.mxu0 0.0
    %619 = vmatpush1.xpose.msra.mxu0 0.0
    %620 = vmatprep.subr.mxu0 0.0
    %621 = vmatpush1.xpose.msra.mxu0 0.0
    %622 = vmatprep.subr.mxu0 0.0
    %623 = vmatpush1.xpose.msra.mxu0 0.0
    %624 = vmatprep.subr.mxu0 0.0
    %625 = vmatpush1.xpose.msra.mxu0 0.0
    %626 = vmatprep.subr.mxu0 0.0
    %627 = vmatpush1.xpose.msra.mxu0 0.0
    %628 = vmatprep.subr.mxu0 0.0
    %629 = vmatpush1.xpose.msra.mxu0 0.0
    %630 = vmatprep.subr.mxu0 0.0
    %631 = vmatpush1.xpose.msra.mxu0 0.0
    %632 = vmatprep.subr.mxu0 0.0
    %633 = vmatpush1.xpose.msra.mxu0 0.0
    %634 = vmatprep.mubr.f32.mxu0 0.0
    %635 = vmatmul.mubr.f32.gmra.mrb[0].mxu0 %v559
    %v636 = vpop.f32.mrb[0].mxu0
    %v637 = vadd.f32 %v183, %v636
    %v638 = vpop.f32.mrb[0].mxu0
    %639 = vmatprep.mubr.f32.mxu0 0.0
    %640 = vmatmul.mubr.f32.gmra.mrb[0].mxu0 %v562
    %v641 = vpop.f32.mrb[0].mxu0
    %v642 = vadd.f32 %v184, %v641
    %v643 = vpop.f32.mrb[0].mxu0
    %644 = vdwg.mxu0
    %vm645 = vcmask 130048
    %v646 = vsel %vm645, %v637, -inf
    %647 = vmax.xlane.f32.xlu0 %v646
    %v648 = vpop.xlane.xlu0 %647
    %v649 = vsel %vm645, %v642, -inf
    %650 = vmax.xlane.f32.xlu0 %v649
    %v651 = vpop.xlane.xlu0 %650
    %v652 = vsub.f32 %v637, %v648
    %v653 = vsub.f32 %v642, %v651
    %v654 = vmul.f32 %v652, 1.442695
    %v655 = vpow.pop %v654
    %v656 = vmul.f32 %v653, 1.442695
    %v657 = vpow.pop %v656
    %v658 = vsel %vm645, %v655, 0.0
    %659 = vadd.xlane.f32.xlu0 %v658
    %v660 = vpop.xlane.xlu0 %659
    %v661 = vsel %vm645, %v657, 0.0
    %662 = vadd.xlane.f32.xlu0 %v661
    %v663 = vpop.xlane.xlu0 %662
    %v664 = vrcp.pop %v660
    %v665 = vrcp.pop %v663
    %v666 = vmul.f32 %v655, %v664
    %v667 = vmul.f32 %v657, %v665
    %668 = vrot.lane.b32.xlu0 %v549, 96
    %v669 = vpop.permute.xlu0 %668
    %670 = vrot.lane.b32.xlu0 %v554, 96
    %v671 = vpop.permute.xlu0 %670
    %v675 = vsel %vm645, %v666, 0
    %v678 = vsel %vm645, %v667, 0
    %680 = vmatprep.subr.mxu0 0.0
    %681 = vmatpush1.msra.mxu0 %v669
    %682 = vmatprep.subr.mxu0 0.0
    %683 = vmatpush1.msra.mxu0 %v671
    %684 = vmatprep.subr.mxu0 0.0
    %685 = vmatpush1.msra.mxu0 0.0
    %686 = vmatprep.subr.mxu0 0.0
    %687 = vmatpush1.msra.mxu0 0.0
    %688 = vmatprep.subr.mxu0 0.0
    %689 = vmatpush1.msra.mxu0 0.0
    %690 = vmatprep.subr.mxu0 0.0
    %691 = vmatpush1.msra.mxu0 0.0
    %692 = vmatprep.subr.mxu0 0.0
    %693 = vmatpush1.msra.mxu0 0.0
    %694 = vmatprep.subr.mxu0 0.0
    %695 = vmatpush1.msra.mxu0 0.0
    %696 = vmatprep.subr.mxu0 0.0
    %697 = vmatpush1.msra.mxu0 0.0
    %698 = vmatprep.subr.mxu0 0.0
    %699 = vmatpush1.msra.mxu0 0.0
    %700 = vmatprep.subr.mxu0 0.0
    %701 = vmatpush1.msra.mxu0 0.0
    %702 = vmatprep.subr.mxu0 0.0
    %703 = vmatpush1.msra.mxu0 0.0
    %704 = vmatprep.subr.mxu0 0.0
    %705 = vmatpush1.msra.mxu0 0.0
    %706 = vmatprep.subr.mxu0 0.0
    %707 = vmatpush1.msra.mxu0 0.0
    %708 = vmatprep.subr.mxu0 0.0
    %709 = vmatpush1.msra.mxu0 0.0
    %710 = vmatprep.subr.mxu0 0.0
    %711 = vmatpush1.msra.mxu0 0.0
    %712 = vmatprep.subr.mxu0 0.0
    %713 = vmatpush1.msra.mxu0 0.0
    %714 = vmatprep.subr.mxu0 0.0
    %715 = vmatpush1.msra.mxu0 0.0
    %716 = vmatprep.subr.mxu0 0.0
    %717 = vmatpush1.msra.mxu0 0.0
    %718 = vmatprep.subr.mxu0 0.0
    %719 = vmatpush1.msra.mxu0 0.0
    %720 = vmatprep.subr.mxu0 0.0
    %721 = vmatpush1.msra.mxu0 0.0
    %722 = vmatprep.subr.mxu0 0.0
    %723 = vmatpush1.msra.mxu0 0.0
    %724 = vmatprep.subr.mxu0 0.0
    %725 = vmatpush1.msra.mxu0 0.0
    %726 = vmatprep.subr.mxu0 0.0
    %727 = vmatpush1.msra.mxu0 0.0
    %728 = vmatprep.subr.mxu0 0.0
    %729 = vmatpush1.msra.mxu0 0.0
    %730 = vmatprep.subr.mxu0 0.0
    %731 = vmatpush1.msra.mxu0 0.0
    %732 = vmatprep.subr.mxu0 0.0
    %733 = vmatpush1.msra.mxu0 0.0
    %734 = vmatprep.subr.mxu0 0.0
    %735 = vmatpush1.msra.mxu0 0.0
    %736 = vmatprep.subr.mxu0 0.0
    %737 = vmatpush1.msra.mxu0 0.0
    %738 = vmatprep.subr.mxu0 0.0
    %739 = vmatpush1.msra.mxu0 0.0
    %740 = vmatprep.subr.mxu0 0.0
    %741 = vmatpush1.msra.mxu0 0.0
    %742 = vmatprep.subr.mxu0 0.0
    %743 = vmatpush1.msra.mxu0 0.0
    %744 = vmatprep.mubr.f32.mxu0 0.0
    %745 = vmatmul.mubr.f32.gmra.mrb[0].mxu0 %v675
    %v746 = vpop.f32.mrb[0].mxu0
    %v747 = vadd.f32 0.0, %v746
    %v748 = vpop.f32.mrb[0].mxu0
    %749 = vmatprep.mubr.f32.mxu0 0.0
    %750 = vmatmul.mubr.f32.gmra.mrb[0].mxu0 %v678
    %v751 = vpop.f32.mrb[0].mxu0
    %v752 = vadd.f32 0.0, %v751
    %v753 = vpop.f32.mrb[0].mxu0
    %754 = vdwg.mxu0
    %755 = vrot.lane.b32.xlu0 %v469, 120
    %v756 = vpop.permute.xlu0 %755
    %757 = vrot.lane.b32.xlu0 %v470, 120
    %v758 = vpop.permute.xlu0 %757
    %759 = vrot.lane.b32.xlu0 %v549, 120
    %v760 = vpop.permute.xlu0 %759
    %761 = vrot.lane.b32.xlu0 %v554, 120
    %v762 = vpop.permute.xlu0 %761
    %v763 = vsel %vm557, %v756, 0
    %v765 = vsel %vm557, %v758, 0
    %v767 = vsel %vm557, %v760, 0
    %v769 = vsel %vm557, %v762, 0
    %771 = vmatprep.subr.mxu0 0.0
    %772 = vmatpush1.xpose.msra.mxu0 %v767
    %773 = vmatprep.subr.mxu0 0.0
    %774 = vmatpush1.xpose.msra.mxu0 %v769
    %775 = vmatprep.subr.mxu0 0.0
    %776 = vmatpush1.xpose.msra.mxu0 0.0
    %777 = vmatprep.subr.mxu0 0.0
    %778 = vmatpush1.xpose.msra.mxu0 0.0
    %779 = vmatprep.subr.mxu0 0.0
    %780 = vmatpush1.xpose.msra.mxu0 0.0
    %781 = vmatprep.subr.mxu0 0.0
    %782 = vmatpush1.xpose.msra.mxu0 0.0
    %783 = vmatprep.subr.mxu0 0.0
    %784 = vmatpush1.xpose.msra.mxu0 0.0
    %785 = vmatprep.subr.mxu0 0.0
    %786 = vmatpush1.xpose.msra.mxu0 0.0
    %787 = vmatprep.subr.mxu0 0.0
    %788 = vmatpush1.xpose.msra.mxu0 0.0
    %789 = vmatprep.subr.mxu0 0.0
    %790 = vmatpush1.xpose.msra.mxu0 0.0
    %791 = vmatprep.subr.mxu0 0.0
    %792 = vmatpush1.xpose.msra.mxu0 0.0
    %793 = vmatprep.subr.mxu0 0.0
    %794 = vmatpush1.xpose.msra.mxu0 0.0
    %795 = vmatprep.subr.mxu0 0.0
    %796 = vmatpush1.xpose.msra.mxu0 0.0
    %797 = vmatprep.subr.mxu0 0.0
    %798 = vmatpush1.xpose.msra.mxu0 0.0
    %799 = vmatprep.subr.mxu0 0.0
    %800 = vmatpush1.xpose.msra.mxu0 0.0
    %801 = vmatprep.subr.mxu0 0.0
    %802 = vmatpush1.xpose.msra.mxu0 0.0
    %803 = vmatprep.subr.mxu0 0.0
    %804 = vmatpush1.xpose.msra.mxu0 0.0
    %805 = vmatprep.subr.mxu0 0.0
    %806 = vmatpush1.xpose.msra.mxu0 0.0
    %807 = vmatprep.subr.mxu0 0.0
    %808 = vmatpush1.xpose.msra.mxu0 0.0
    %809 = vmatprep.subr.mxu0 0.0
    %810 = vmatpush1.xpose.msra.mxu0 0.0
    %811 = vmatprep.subr.mxu0 0.0
    %812 = vmatpush1.xpose.msra.mxu0 0.0
    %813 = vmatprep.subr.mxu0 0.0
    %814 = vmatpush1.xpose.msra.mxu0 0.0
    %815 = vmatprep.subr.mxu0 0.0
    %816 = vmatpush1.xpose.msra.mxu0 0.0
    %817 = vmatprep.subr.mxu0 0.0
    %818 = vmatpush1.xpose.msra.mxu0 0.0
    %819 = vmatprep.subr.mxu0 0.0
    %820 = vmatpush1.xpose.msra.mxu0 0.0
    %821 = vmatprep.subr.mxu0 0.0
    %822 = vmatpush1.xpose.msra.mxu0 0.0
    %823 = vmatprep.subr.mxu0 0.0
    %824 = vmatpush1.xpose.msra.mxu0 0.0
    %825 = vmatprep.subr.mxu0 0.0
    %826 = vmatpush1.xpose.msra.mxu0 0.0
    %827 = vmatprep.subr.mxu0 0.0
    %828 = vmatpush1.xpose.msra.mxu0 0.0
    %829 = vmatprep.subr.mxu0 0.0
    %830 = vmatpush1.xpose.msra.mxu0 0.0
    %831 = vmatprep.subr.mxu0 0.0
    %832 = vmatpush1.xpose.msra.mxu0 0.0
    %833 = vmatprep.subr.mxu0 0.0
    %834 = vmatpush1.xpose.msra.mxu0 0.0
    %835 = vmatprep.mubr.f32.mxu0 0.0
    %836 = vmatmul.mubr.f32.gmra.mrb[0].mxu0 %v763
    %v837 = vpop.f32.mrb[0].mxu0
    %v838 = vadd.f32 %v183, %v837
    %v839 = vpop.f32.mrb[0].mxu0
    %840 = vmatprep.mubr.f32.mxu0 0.0
    %841 = vmatmul.mubr.f32.gmra.mrb[0].mxu0 %v765
    %v842 = vpop.f32.mrb[0].mxu0
    %v843 = vadd.f32 %v184, %v842
    %v844 = vpop.f32.mrb[0].mxu0
    %845 = vdwg.mxu0
    %v846 = vsel %vm645, %v838, -inf
    %847 = vmax.xlane.f32.xlu0 %v846
    %v848 = vpop.xlane.xlu0 %847
    %v849 = vsel %vm645, %v843, -inf
    %850 = vmax.xlane.f32.xlu0 %v849
    %v851 = vpop.xlane.xlu0 %850
    %v852 = vsub.f32 %v838, %v848
    %v853 = vsub.f32 %v843, %v851
    %v854 = vmul.f32 %v852, 1.442695
    %v855 = vpow.pop %v854
    %v856 = vmul.f32 %v853, 1.442695
    %v857 = vpow.pop %v856
    %v858 = vsel %vm645, %v855, 0.0
    %859 = vadd.xlane.f32.xlu0 %v858
    %v860 = vpop.xlane.xlu0 %859
    %v861 = vsel %vm645, %v857, 0.0
    %862 = vadd.xlane.f32.xlu0 %v861
    %v863 = vpop.xlane.xlu0 %862
    %v864 = vrcp.pop %v860
    %v865 = vrcp.pop %v863
    %v866 = vmul.f32 %v855, %v864
    %v867 = vmul.f32 %v857, %v865
    %868 = vrot.lane.b32.xlu0 %v549, 88
    %v869 = vpop.permute.xlu0 %868
    %870 = vrot.lane.b32.xlu0 %v554, 88
    %v871 = vpop.permute.xlu0 %870
    %v875 = vsel %vm645, %v866, 0
    %v878 = vsel %vm645, %v867, 0
    %880 = vmatprep.subr.mxu0 0.0
    %881 = vmatpush1.msra.mxu0 %v869
    %882 = vmatprep.subr.mxu0 0.0
    %883 = vmatpush1.msra.mxu0 %v871
    %884 = vmatprep.subr.mxu0 0.0
    %885 = vmatpush1.msra.mxu0 0.0
    %886 = vmatprep.subr.mxu0 0.0
    %887 = vmatpush1.msra.mxu0 0.0
    %888 = vmatprep.subr.mxu0 0.0
    %889 = vmatpush1.msra.mxu0 0.0
    %890 = vmatprep.subr.mxu0 0.0
    %891 = vmatpush1.msra.mxu0 0.0
    %892 = vmatprep.subr.mxu0 0.0
    %893 = vmatpush1.msra.mxu0 0.0
    %894 = vmatprep.subr.mxu0 0.0
    %895 = vmatpush1.msra.mxu0 0.0
    %896 = vmatprep.subr.mxu0 0.0
    %897 = vmatpush1.msra.mxu0 0.0
    %898 = vmatprep.subr.mxu0 0.0
    %899 = vmatpush1.msra.mxu0 0.0
    %900 = vmatprep.subr.mxu0 0.0
    %901 = vmatpush1.msra.mxu0 0.0
    %902 = vmatprep.subr.mxu0 0.0
    %903 = vmatpush1.msra.mxu0 0.0
    %904 = vmatprep.subr.mxu0 0.0
    %905 = vmatpush1.msra.mxu0 0.0
    %906 = vmatprep.subr.mxu0 0.0
    %907 = vmatpush1.msra.mxu0 0.0
    %908 = vmatprep.subr.mxu0 0.0
    %909 = vmatpush1.msra.mxu0 0.0
    %910 = vmatprep.subr.mxu0 0.0
    %911 = vmatpush1.msra.mxu0 0.0
    %912 = vmatprep.subr.mxu0 0.0
    %913 = vmatpush1.msra.mxu0 0.0
    %914 = vmatprep.subr.mxu0 0.0
    %915 = vmatpush1.msra.mxu0 0.0
    %916 = vmatprep.subr.mxu0 0.0
    %917 = vmatpush1.msra.mxu0 0.0
    %918 = vmatprep.subr.mxu0 0.0
    %919 = vmatpush1.msra.mxu0 0.0
    %920 = vmatprep.subr.mxu0 0.0
    %921 = vmatpush1.msra.mxu0 0.0
    %922 = vmatprep.subr.mxu0 0.0
    %923 = vmatpush1.msra.mxu0 0.0
    %924 = vmatprep.subr.mxu0 0.0
    %925 = vmatpush1.msra.mxu0 0.0
    %926 = vmatprep.subr.mxu0 0.0
    %927 = vmatpush1.msra.mxu0 0.0
    %928 = vmatprep.subr.mxu0 0.0
    %929 = vmatpush1.msra.mxu0 0.0
    %930 = vmatprep.subr.mxu0 0.0
    %931 = vmatpush1.msra.mxu0 0.0
    %932 = vmatprep.subr.mxu0 0.0
    %933 = vmatpush1.msra.mxu0 0.0
    %934 = vmatprep.subr.mxu0 0.0
    %935 = vmatpush1.msra.mxu0 0.0
    %936 = vmatprep.subr.mxu0 0.0
    %937 = vmatpush1.msra.mxu0 0.0
    %938 = vmatprep.subr.mxu0 0.0
    %939 = vmatpush1.msra.mxu0 0.0
    %940 = vmatprep.subr.mxu0 0.0
    %941 = vmatpush1.msra.mxu0 0.0
    %942 = vmatprep.subr.mxu0 0.0
    %943 = vmatpush1.msra.mxu0 0.0
    %944 = vmatprep.mubr.f32.mxu0 0.0
    %945 = vmatmul.mubr.f32.gmra.mrb[0].mxu0 %v875
    %v946 = vpop.f32.mrb[0].mxu0
    %v947 = vadd.f32 0.0, %v946
    %v948 = vpop.f32.mrb[0].mxu0
    %949 = vmatprep.mubr.f32.mxu0 0.0
    %950 = vmatmul.mubr.f32.gmra.mrb[0].mxu0 %v878
    %v951 = vpop.f32.mrb[0].mxu0
    %v952 = vadd.f32 0.0, %v951
    %v953 = vpop.f32.mrb[0].mxu0
    %954 = vdwg.mxu0
    %955 = vrot.lane.b32.xlu0 %v469, 112
    %v956 = vpop.permute.xlu0 %955
    %957 = vrot.lane.b32.xlu0 %v470, 112
    %v958 = vpop.permute.xlu0 %957
    %959 = vrot.lane.b32.xlu0 %v549, 112
    %v960 = vpop.permute.xlu0 %959
    %961 = vrot.lane.b32.xlu0 %v554, 112
    %v962 = vpop.permute.xlu0 %961
    %v963 = vsel %vm557, %v956, 0
    %v965 = vsel %vm557, %v958, 0
    %v967 = vsel %vm557, %v960, 0
    %v969 = vsel %vm557, %v962, 0
    %971 = vmatprep.subr.mxu0 0.0
    %972 = vmatpush1.xpose.msra.mxu0 %v967
    %973 = vmatprep.subr.mxu0 0.0
    %974 = vmatpush1.xpose.msra.mxu0 %v969
    %975 = vmatprep.subr.mxu0 0.0
    %976 = vmatpush1.xpose.msra.mxu0 0.0
    %977 = vmatprep.subr.mxu0 0.0
    %978 = vmatpush1.xpose.msra.mxu0 0.0
    %979 = vmatprep.subr.mxu0 0.0
    %980 = vmatpush1.xpose.msra.mxu0 0.0
    %981 = vmatprep.subr.mxu0 0.0
    %982 = vmatpush1.xpose.msra.mxu0 0.0
    %983 = vmatprep.subr.mxu0 0.0
    %984 = vmatpush1.xpose.msra.mxu0 0.0
    %985 = vmatprep.subr.mxu0 0.0
    %986 = vmatpush1.xpose.msra.mxu0 0.0
    %987 = vmatprep.subr.mxu0 0.0
    %988 = vmatpush1.xpose.msra.mxu0 0.0
    %989 = vmatprep.subr.mxu0 0.0
    %990 = vmatpush1.xpose.msra.mxu0 0.0
    %991 = vmatprep.subr.mxu0 0.0
    %992 = vmatpush1.xpose.msra.mxu0 0.0
    %993 = vmatprep.subr.mxu0 0.0
    %994 = vmatpush1.xpose.msra.mxu0 0.0
    %995 = vmatprep.subr.mxu0 0.0
    %996 = vmatpush1.xpose.msra.mxu0 0.0
    %997 = vmatprep.subr.mxu0 0.0
    %998 = vmatpush1.xpose.msra.mxu0 0.0
    %999 = vmatprep.subr.mxu0 0.0
    %1000 = vmatpush1.xpose.msra.mxu0 0.0
    %1001 = vmatprep.subr.mxu0 0.0
    %1002 = vmatpush1.xpose.msra.mxu0 0.0
    %1003 = vmatprep.subr.mxu0 0.0
    %1004 = vmatpush1.xpose.msra.mxu0 0.0
    %1005 = vmatprep.subr.mxu0 0.0
    %1006 = vmatpush1.xpose.msra.mxu0 0.0
    %1007 = vmatprep.subr.mxu0 0.0
    %1008 = vmatpush1.xpose.msra.mxu0 0.0
    %1009 = vmatprep.subr.mxu0 0.0
    %1010 = vmatpush1.xpose.msra.mxu0 0.0
    %1011 = vmatprep.subr.mxu0 0.0
    %1012 = vmatpush1.xpose.msra.mxu0 0.0
    %1013 = vmatprep.subr.mxu0 0.0
    %1014 = vmatpush1.xpose.msra.mxu0 0.0
    %1015 = vmatprep.subr.mxu0 0.0
    %1016 = vmatpush1.xpose.msra.mxu0 0.0
    %1017 = vmatprep.subr.mxu0 0.0
    %1018 = vmatpush1.xpose.msra.mxu0 0.0
    %1019 = vmatprep.subr.mxu0 0.0
    %1020 = vmatpush1.xpose.msra.mxu0 0.0
    %1021 = vmatprep.subr.mxu0 0.0
    %1022 = vmatpush1.xpose.msra.mxu0 0.0
    %1023 = vmatprep.subr.mxu0 0.0
    %1024 = vmatpush1.xpose.msra.mxu0 0.0
    %1025 = vmatprep.subr.mxu0 0.0
    %1026 = vmatpush1.xpose.msra.mxu0 0.0
    %1027 = vmatprep.subr.mxu0 0.0
    %1028 = vmatpush1.xpose.msra.mxu0 0.0
    %1029 = vmatprep.subr.mxu0 0.0
    %1030 = vmatpush1.xpose.msra.mxu0 0.0
    %1031 = vmatprep.subr.mxu0 0.0
    %1032 = vmatpush1.xpose.msra.mxu0 0.0
    %1033 = vmatprep.subr.mxu0 0.0
    %1034 = vmatpush1.xpose.msra.mxu0 0.0
    %1035 = vmatprep.mubr.f32.mxu0 0.0
    %1036 = vmatmul.mubr.f32.gmra.mrb[0].mxu0 %v963
    %v1037 = vpop.f32.mrb[0].mxu0
    %v1038 = vadd.f32 %v183, %v1037
    %v1039 = vpop.f32.mrb[0].mxu0
    %1040 = vmatprep.mubr.f32.mxu0 0.0
    %1041 = vmatmul.mubr.f32.gmra.mrb[0].mxu0 %v965
    %v1042 = vpop.f32.mrb[0].mxu0
    %v1043 = vadd.f32 %v184, %v1042
    %v1044 = vpop.f32.mrb[0].mxu0
    %1045 = vdwg.mxu0
    %v1046 = vsel %vm645, %v1038, -inf
    %1047 = vmax.xlane.f32.xlu0 %v1046
    %v1048 = vpop.xlane.xlu0 %1047
    %v1049 = vsel %vm645, %v1043, -inf
    %1050 = vmax.xlane.f32.xlu0 %v1049
    %v1051 = vpop.xlane.xlu0 %1050
    %v1052 = vsub.f32 %v1038, %v1048
    %v1053 = vsub.f32 %v1043, %v1051
    %v1054 = vmul.f32 %v1052, 1.442695
    %v1055 = vpow.pop %v1054
    %v1056 = vmul.f32 %v1053, 1.442695
    %v1057 = vpow.pop %v1056
    %v1058 = vsel %vm645, %v1055, 0.0
    %1059 = vadd.xlane.f32.xlu0 %v1058
    %v1060 = vpop.xlane.xlu0 %1059
    %v1061 = vsel %vm645, %v1057, 0.0
    %1062 = vadd.xlane.f32.xlu0 %v1061
    %v1063 = vpop.xlane.xlu0 %1062
    %v1064 = vrcp.pop %v1060
    %v1065 = vrcp.pop %v1063
    %v1066 = vmul.f32 %v1055, %v1064
    %v1067 = vmul.f32 %v1057, %v1065
    %1068 = vrot.lane.b32.xlu0 %v549, 80
    %v1069 = vpop.permute.xlu0 %1068
    %1070 = vrot.lane.b32.xlu0 %v554, 80
    %v1071 = vpop.permute.xlu0 %1070
    %v1075 = vsel %vm645, %v1066, 0
    %v1078 = vsel %vm645, %v1067, 0
    %1080 = vmatprep.subr.mxu0 0.0
    %1081 = vmatpush1.msra.mxu0 %v1069
    %1082 = vmatprep.subr.mxu0 0.0
    %1083 = vmatpush1.msra.mxu0 %v1071
    %1084 = vmatprep.subr.mxu0 0.0
    %1085 = vmatpush1.msra.mxu0 0.0
    %1086 = vmatprep.subr.mxu0 0.0
    %1087 = vmatpush1.msra.mxu0 0.0
    %1088 = vmatprep.subr.mxu0 0.0
    %1089 = vmatpush1.msra.mxu0 0.0
    %1090 = vmatprep.subr.mxu0 0.0
    %1091 = vmatpush1.msra.mxu0 0.0
    %1092 = vmatprep.subr.mxu0 0.0
    %1093 = vmatpush1.msra.mxu0 0.0
    %1094 = vmatprep.subr.mxu0 0.0
    %1095 = vmatpush1.msra.mxu0 0.0
    %1096 = vmatprep.subr.mxu0 0.0
    %1097 = vmatpush1.msra.mxu0 0.0
    %1098 = vmatprep.subr.mxu0 0.0
    %1099 = vmatpush1.msra.mxu0 0.0
    %1100 = vmatprep.subr.mxu0 0.0
    %1101 = vmatpush1.msra.mxu0 0.0
    %1102 = vmatprep.subr.mxu0 0.0
    %1103 = vmatpush1.msra.mxu0 0.0
    %1104 = vmatprep.subr.mxu0 0.0
    %1105 = vmatpush1.msra.mxu0 0.0
    %1106 = vmatprep.subr.mxu0 0.0
    %1107 = vmatpush1.msra.mxu0 0.0
    %1108 = vmatprep.subr.mxu0 0.0
    %1109 = vmatpush1.msra.mxu0 0.0
    %1110 = vmatprep.subr.mxu0 0.0
    %1111 = vmatpush1.msra.mxu0 0.0
    %1112 = vmatprep.subr.mxu0 0.0
    %1113 = vmatpush1.msra.mxu0 0.0
    %1114 = vmatprep.subr.mxu0 0.0
    %1115 = vmatpush1.msra.mxu0 0.0
    %1116 = vmatprep.subr.mxu0 0.0
    %1117 = vmatpush1.msra.mxu0 0.0
    %1118 = vmatprep.subr.mxu0 0.0
    %1119 = vmatpush1.msra.mxu0 0.0
    %1120 = vmatprep.subr.mxu0 0.0
    %1121 = vmatpush1.msra.mxu0 0.0
    %1122 = vmatprep.subr.mxu0 0.0
    %1123 = vmatpush1.msra.mxu0 0.0
    %1124 = vmatprep.subr.mxu0 0.0
    %1125 = vmatpush1.msra.mxu0 0.0
    %1126 = vmatprep.subr.mxu0 0.0
    %1127 = vmatpush1.msra.mxu0 0.0
    %1128 = vmatprep.subr.mxu0 0.0
    %1129 = vmatpush1.msra.mxu0 0.0
    %1130 = vmatprep.subr.mxu0 0.0
    %1131 = vmatpush1.msra.mxu0 0.0
    %1132 = vmatprep.subr.mxu0 0.0
    %1133 = vmatpush1.msra.mxu0 0.0
    %1134 = vmatprep.subr.mxu0 0.0
    %1135 = vmatpush1.msra.mxu0 0.0
    %1136 = vmatprep.subr.mxu0 0.0
    %1137 = vmatpush1.msra.mxu0 0.0
    %1138 = vmatprep.subr.mxu0 0.0
    %1139 = vmatpush1.msra.mxu0 0.0
    %1140 = vmatprep.subr.mxu0 0.0
    %1141 = vmatpush1.msra.mxu0 0.0
    %1142 = vmatprep.subr.mxu0 0.0
    %1143 = vmatpush1.msra.mxu0 0.0
    %1144 = vmatprep.mubr.f32.mxu0 0.0
    %1145 = vmatmul.mubr.f32.gmra.mrb[0].mxu0 %v1075
    %v1146 = vpop.f32.mrb[0].mxu0
    %v1147 = vadd.f32 0.0, %v1146
    %v1148 = vpop.f32.mrb[0].mxu0
    %1149 = vmatprep.mubr.f32.mxu0 0.0
    %1150 = vmatmul.mubr.f32.gmra.mrb[0].mxu0 %v1078
    %v1151 = vpop.f32.mrb[0].mxu0
    %v1152 = vadd.f32 0.0, %v1151
    %v1153 = vpop.f32.mrb[0].mxu0
    %1154 = vdwg.mxu0
    %1155 = vrot.lane.b32.xlu0 %v469, 104
    %v1156 = vpop.permute.xlu0 %1155
    %1157 = vrot.lane.b32.xlu0 %v470, 104
    %v1158 = vpop.permute.xlu0 %1157
    %1159 = vrot.lane.b32.xlu0 %v549, 104
    %v1160 = vpop.permute.xlu0 %1159
    %1161 = vrot.lane.b32.xlu0 %v554, 104
    %v1162 = vpop.permute.xlu0 %1161
    %v1163 = vsel %vm557, %v1156, 0
    %v1165 = vsel %vm557, %v1158, 0
    %v1167 = vsel %vm557, %v1160, 0
    %v1169 = vsel %vm557, %v1162, 0
    %1171 = vmatprep.subr.mxu0 0.0
    %1172 = vmatpush1.xpose.msra.mxu0 %v1167
    %1173 = vmatprep.subr.mxu0 0.0
    %1174 = vmatpush1.xpose.msra.mxu0 %v1169
    %1175 = vmatprep.subr.mxu0 0.0
    %1176 = vmatpush1.xpose.msra.mxu0 0.0
    %1177 = vmatprep.subr.mxu0 0.0
    %1178 = vmatpush1.xpose.msra.mxu0 0.0
    %1179 = vmatprep.subr.mxu0 0.0
    %1180 = vmatpush1.xpose.msra.mxu0 0.0
    %1181 = vmatprep.subr.mxu0 0.0
    %1182 = vmatpush1.xpose.msra.mxu0 0.0
    %1183 = vmatprep.subr.mxu0 0.0
    %1184 = vmatpush1.xpose.msra.mxu0 0.0
    %1185 = vmatprep.subr.mxu0 0.0
    %1186 = vmatpush1.xpose.msra.mxu0 0.0
    %1187 = vmatprep.subr.mxu0 0.0
    %1188 = vmatpush1.xpose.msra.mxu0 0.0
    %1189 = vmatprep.subr.mxu0 0.0
    %1190 = vmatpush1.xpose.msra.mxu0 0.0
    %1191 = vmatprep.subr.mxu0 0.0
    %1192 = vmatpush1.xpose.msra.mxu0 0.0
    %1193 = vmatprep.subr.mxu0 0.0
    %1194 = vmatpush1.xpose.msra.mxu0 0.0
    %1195 = vmatprep.subr.mxu0 0.0
    %1196 = vmatpush1.xpose.msra.mxu0 0.0
    %1197 = vmatprep.subr.mxu0 0.0
    %1198 = vmatpush1.xpose.msra.mxu0 0.0
    %1199 = vmatprep.subr.mxu0 0.0
    %1200 = vmatpush1.xpose.msra.mxu0 0.0
    %1201 = vmatprep.subr.mxu0 0.0
    %1202 = vmatpush1.xpose.msra.mxu0 0.0
    %1203 = vmatprep.subr.mxu0 0.0
    %1204 = vmatpush1.xpose.msra.mxu0 0.0
    %1205 = vmatprep.subr.mxu0 0.0
    %1206 = vmatpush1.xpose.msra.mxu0 0.0
    %1207 = vmatprep.subr.mxu0 0.0
    %1208 = vmatpush1.xpose.msra.mxu0 0.0
    %1209 = vmatprep.subr.mxu0 0.0
    %1210 = vmatpush1.xpose.msra.mxu0 0.0
    %1211 = vmatprep.subr.mxu0 0.0
    %1212 = vmatpush1.xpose.msra.mxu0 0.0
    %1213 = vmatprep.subr.mxu0 0.0
    %1214 = vmatpush1.xpose.msra.mxu0 0.0
    %1215 = vmatprep.subr.mxu0 0.0
    %1216 = vmatpush1.xpose.msra.mxu0 0.0
    %1217 = vmatprep.subr.mxu0 0.0
    %1218 = vmatpush1.xpose.msra.mxu0 0.0
    %1219 = vmatprep.subr.mxu0 0.0
    %1220 = vmatpush1.xpose.msra.mxu0 0.0
    %1221 = vmatprep.subr.mxu0 0.0
    %1222 = vmatpush1.xpose.msra.mxu0 0.0
    %1223 = vmatprep.subr.mxu0 0.0
    %1224 = vmatpush1.xpose.msra.mxu0 0.0
    %1225 = vmatprep.subr.mxu0 0.0
    %1226 = vmatpush1.xpose.msra.mxu0 0.0
    %1227 = vmatprep.subr.mxu0 0.0
    %1228 = vmatpush1.xpose.msra.mxu0 0.0
    %1229 = vmatprep.subr.mxu0 0.0
    %1230 = vmatpush1.xpose.msra.mxu0 0.0
    %1231 = vmatprep.subr.mxu0 0.0
    %1232 = vmatpush1.xpose.msra.mxu0 0.0
    %1233 = vmatprep.subr.mxu0 0.0
    %1234 = vmatpush1.xpose.msra.mxu0 0.0
    %1235 = vmatprep.mubr.f32.mxu0 0.0
    %1236 = vmatmul.mubr.f32.gmra.mrb[0].mxu0 %v1163
    %v1237 = vpop.f32.mrb[0].mxu0
    %v1238 = vadd.f32 %v183, %v1237
    %v1239 = vpop.f32.mrb[0].mxu0
    %1240 = vmatprep.mubr.f32.mxu0 0.0
    %1241 = vmatmul.mubr.f32.gmra.mrb[0].mxu0 %v1165
    %v1242 = vpop.f32.mrb[0].mxu0
    %v1243 = vadd.f32 %v184, %v1242
    %v1244 = vpop.f32.mrb[0].mxu0
    %1245 = vdwg.mxu0
    %v1246 = vsel %vm645, %v1238, -inf
    %1247 = vmax.xlane.f32.xlu0 %v1246
    %v1248 = vpop.xlane.xlu0 %1247
    %v1249 = vsel %vm645, %v1243, -inf
    %1250 = vmax.xlane.f32.xlu0 %v1249
    %v1251 = vpop.xlane.xlu0 %1250
    %v1252 = vsub.f32 %v1238, %v1248
    %v1253 = vsub.f32 %v1243, %v1251
    %v1254 = vmul.f32 %v1252, 1.442695
    %v1255 = vpow.pop %v1254
    %v1256 = vmul.f32 %v1253, 1.442695
    %v1257 = vpow.pop %v1256
    %v1258 = vsel %vm645, %v1255, 0.0
    %1259 = vadd.xlane.f32.xlu0 %v1258
    %v1260 = vpop.xlane.xlu0 %1259
    %v1261 = vsel %vm645, %v1257, 0.0
    %1262 = vadd.xlane.f32.xlu0 %v1261
    %v1263 = vpop.xlane.xlu0 %1262
    %v1264 = vrcp.pop %v1260
    %v1265 = vrcp.pop %v1263
    %v1266 = vmul.f32 %v1255, %v1264
    %v1267 = vmul.f32 %v1257, %v1265
    %1268 = vrot.lane.b32.xlu0 %v549, 72
    %v1269 = vpop.permute.xlu0 %1268
    %1270 = vrot.lane.b32.xlu0 %v554, 72
    %v1271 = vpop.permute.xlu0 %1270
    %v1275 = vsel %vm645, %v1266, 0
    %v1278 = vsel %vm645, %v1267, 0
    %1280 = vmatprep.subr.mxu0 0.0
    %1281 = vmatpush1.msra.mxu0 %v1269
    %1282 = vmatprep.subr.mxu0 0.0
    %1283 = vmatpush1.msra.mxu0 %v1271
    %1284 = vmatprep.subr.mxu0 0.0
    %1285 = vmatpush1.msra.mxu0 0.0
    %1286 = vmatprep.subr.mxu0 0.0
    %1287 = vmatpush1.msra.mxu0 0.0
    %1288 = vmatprep.subr.mxu0 0.0
    %1289 = vmatpush1.msra.mxu0 0.0
    %1290 = vmatprep.subr.mxu0 0.0
    %1291 = vmatpush1.msra.mxu0 0.0
    %1292 = vmatprep.subr.mxu0 0.0
    %1293 = vmatpush1.msra.mxu0 0.0
    %1294 = vmatprep.subr.mxu0 0.0
    %1295 = vmatpush1.msra.mxu0 0.0
    %1296 = vmatprep.subr.mxu0 0.0
    %1297 = vmatpush1.msra.mxu0 0.0
    %1298 = vmatprep.subr.mxu0 0.0
    %1299 = vmatpush1.msra.mxu0 0.0
    %1300 = vmatprep.subr.mxu0 0.0
    %1301 = vmatpush1.msra.mxu0 0.0
    %1302 = vmatprep.subr.mxu0 0.0
    %1303 = vmatpush1.msra.mxu0 0.0
    %1304 = vmatprep.subr.mxu0 0.0
    %1305 = vmatpush1.msra.mxu0 0.0
    %1306 = vmatprep.subr.mxu0 0.0
    %1307 = vmatpush1.msra.mxu0 0.0
    %1308 = vmatprep.subr.mxu0 0.0
    %1309 = vmatpush1.msra.mxu0 0.0
    %1310 = vmatprep.subr.mxu0 0.0
    %1311 = vmatpush1.msra.mxu0 0.0
    %1312 = vmatprep.subr.mxu0 0.0
    %1313 = vmatpush1.msra.mxu0 0.0
    %1314 = vmatprep.subr.mxu0 0.0
    %1315 = vmatpush1.msra.mxu0 0.0
    %1316 = vmatprep.subr.mxu0 0.0
    %1317 = vmatpush1.msra.mxu0 0.0
    %1318 = vmatprep.subr.mxu0 0.0
    %1319 = vmatpush1.msra.mxu0 0.0
    %1320 = vmatprep.subr.mxu0 0.0
    %1321 = vmatpush1.msra.mxu0 0.0
    %1322 = vmatprep.subr.mxu0 0.0
    %1323 = vmatpush1.msra.mxu0 0.0
    %1324 = vmatprep.subr.mxu0 0.0
    %1325 = vmatpush1.msra.mxu0 0.0
    %1326 = vmatprep.subr.mxu0 0.0
    %1327 = vmatpush1.msra.mxu0 0.0
    %1328 = vmatprep.subr.mxu0 0.0
    %1329 = vmatpush1.msra.mxu0 0.0
    %1330 = vmatprep.subr.mxu0 0.0
    %1331 = vmatpush1.msra.mxu0 0.0
    %1332 = vmatprep.subr.mxu0 0.0
    %1333 = vmatpush1.msra.mxu0 0.0
    %1334 = vmatprep.subr.mxu0 0.0
    %1335 = vmatpush1.msra.mxu0 0.0
    %1336 = vmatprep.subr.mxu0 0.0
    %1337 = vmatpush1.msra.mxu0 0.0
    %1338 = vmatprep.subr.mxu0 0.0
    %1339 = vmatpush1.msra.mxu0 0.0
    %1340 = vmatprep.subr.mxu0 0.0
    %1341 = vmatpush1.msra.mxu0 0.0
    %1342 = vmatprep.subr.mxu0 0.0
    %1343 = vmatpush1.msra.mxu0 0.0
    %1344 = vmatprep.mubr.f32.mxu0 0.0
    %1345 = vmatmul.mubr.f32.gmra.mrb[0].mxu0 %v1275
    %v1346 = vpop.f32.mrb[0].mxu0
    %v1347 = vadd.f32 0.0, %v1346
    %v1348 = vpop.f32.mrb[0].mxu0
    %1349 = vmatprep.mubr.f32.mxu0 0.0
    %1350 = vmatmul.mubr.f32.gmra.mrb[0].mxu0 %v1278
    %v1351 = vpop.f32.mrb[0].mxu0
    %v1352 = vadd.f32 0.0, %v1351
    %v1353 = vpop.f32.mrb[0].mxu0
    %1354 = vdwg.mxu0
    %1357 = vrot.lane.b32.xlu0 %v947, 8
    %v1358 = vpop.permute.xlu0 %1357
    %1359 = vrot.lane.b32.xlu0 %v952, 8
    %v1360 = vpop.permute.xlu0 %1359
    %1365 = vrot.lane.b32.xlu0 %v1147, 16
    %v1366 = vpop.permute.xlu0 %1365
    %1367 = vrot.lane.b32.xlu0 %v1152, 16
    %v1368 = vpop.permute.xlu0 %1367
    %1373 = vrot.lane.b32.xlu0 %v1347, 24
    %v1374 = vpop.permute.xlu0 %1373
    %1375 = vrot.lane.b32.xlu0 %v1352, 24
    %v1376 = vpop.permute.xlu0 %1375
    %v1379 = vsel %vm557, %v747, %v1358
    %v1380 = vsel %vm557, %v752, %v1360
    %v1381 = vsel %vm645, %v1379, %v1366
    %v1382 = vsel %vm645, %v1380, %v1368
    %vm1383 = vcmask 195584
    %v1384 = vsel %vm1383, %v1381, %v1374
    %v1385 = vsel %vm1383, %v1382, %v1376
    %v1386 = vld [vmem:[%s11] sm:$0xff]
    %v1387 = vld [vmem:[%s11 + $0x8] sm:$0xff]
    %v1388 = vld [vmem:[%s11 + $0x10] sm:$0xff]
    %v1389 = vld [vmem:[%s11 + $0x18] sm:$0xff]
    %s1390 = scalar_lea.vmem %s15, 2
    %v1391 = vld [vmem:[%s1390] sm:$0x1]
    %v1393 = vlaneseq
    %v1394 = vshrl.u32 %v1393, 7
    %v1395 = vsub.s32 0, %v1394
    %v1396 = vrot.slane %v1391, %v1395
    %v1399 = vsel %vm387, %v1384, 0
    %v1402 = vsel %vm387, %v1385, 0
    %1404 = vmatprep.subr.mxu0 0.0
    %1405 = vmatpush1.msra.mxu0 %v1386
    %1406 = vmatprep.subr.mxu0 0.0
    %1407 = vmatpush1.msra.mxu0 %v1387
    %1408 = vmatprep.subr.mxu0 0.0
    %1409 = vmatpush1.msra.mxu0 %v1388
    %1410 = vmatprep.subr.mxu0 0.0
    %1411 = vmatpush1.msra.mxu0 %v1389
    %1412 = vmatprep.subr.mxu0 0.0
    %1413 = vmatpush1.msra.mxu0 0.0
    %1414 = vmatprep.subr.mxu0 0.0
    %1415 = vmatpush1.msra.mxu0 0.0
    %1416 = vmatprep.subr.mxu0 0.0
    %1417 = vmatpush1.msra.mxu0 0.0
    %1418 = vmatprep.subr.mxu0 0.0
    %1419 = vmatpush1.msra.mxu0 0.0
    %1420 = vmatprep.subr.mxu0 0.0
    %1421 = vmatpush1.msra.mxu0 0.0
    %1422 = vmatprep.subr.mxu0 0.0
    %1423 = vmatpush1.msra.mxu0 0.0
    %1424 = vmatprep.subr.mxu0 0.0
    %1425 = vmatpush1.msra.mxu0 0.0
    %1426 = vmatprep.subr.mxu0 0.0
    %1427 = vmatpush1.msra.mxu0 0.0
    %1428 = vmatprep.subr.mxu0 0.0
    %1429 = vmatpush1.msra.mxu0 0.0
    %1430 = vmatprep.subr.mxu0 0.0
    %1431 = vmatpush1.msra.mxu0 0.0
    %1432 = vmatprep.subr.mxu0 0.0
    %1433 = vmatpush1.msra.mxu0 0.0
    %1434 = vmatprep.subr.mxu0 0.0
    %1435 = vmatpush1.msra.mxu0 0.0
    %1436 = vmatprep.subr.mxu0 0.0
    %1437 = vmatpush1.msra.mxu0 0.0
    %1438 = vmatprep.subr.mxu0 0.0
    %1439 = vmatpush1.msra.mxu0 0.0
    %1440 = vmatprep.subr.mxu0 0.0
    %1441 = vmatpush1.msra.mxu0 0.0
    %1442 = vmatprep.subr.mxu0 0.0
    %1443 = vmatpush1.msra.mxu0 0.0
    %1444 = vmatprep.subr.mxu0 0.0
    %1445 = vmatpush1.msra.mxu0 0.0
    %1446 = vmatprep.subr.mxu0 0.0
    %1447 = vmatpush1.msra.mxu0 0.0
    %1448 = vmatprep.subr.mxu0 0.0
    %1449 = vmatpush1.msra.mxu0 0.0
    %1450 = vmatprep.subr.mxu0 0.0
    %1451 = vmatpush1.msra.mxu0 0.0
    %1452 = vmatprep.subr.mxu0 0.0
    %1453 = vmatpush1.msra.mxu0 0.0
    %1454 = vmatprep.subr.mxu0 0.0
    %1455 = vmatpush1.msra.mxu0 0.0
    %1456 = vmatprep.subr.mxu0 0.0
    %1457 = vmatpush1.msra.mxu0 0.0
    %1458 = vmatprep.subr.mxu0 0.0
    %1459 = vmatpush1.msra.mxu0 0.0
    %1460 = vmatprep.subr.mxu0 0.0
    %1461 = vmatpush1.msra.mxu0 0.0
    %1462 = vmatprep.subr.mxu0 0.0
    %1463 = vmatpush1.msra.mxu0 0.0
    %1464 = vmatprep.subr.mxu0 0.0
    %1465 = vmatpush1.msra.mxu0 0.0
    %1466 = vmatprep.subr.mxu0 0.0
    %1467 = vmatpush1.msra.mxu0 0.0
    %1468 = vmatprep.mubr.f32.mxu0 0.0
    %1469 = vmatmul.mubr.f32.gmra.mrb[0].mxu0 %v1399
    %v1470 = vpop.f32.mrb[0].mxu0
    %v1471 = vadd.f32 %v1396, %v1470
    %v1472 = vpop.f32.mrb[0].mxu0
    %1473 = vmatprep.mubr.f32.mxu0 0.0
    %1474 = vmatmul.mubr.f32.gmra.mrb[0].mxu0 %v1402
    %v1475 = vpop.f32.mrb[0].mxu0
    %v1476 = vadd.f32 %v1396, %v1475
    %v1477 = vpop.f32.mrb[0].mxu0
    %1478 = vdwg.mxu0
    %v1479 = vadd.f32 %v286, %v1471
    %v1480 = vadd.f32 %v287, %v1476
    %v1481 = vsel %vm387, %v1479, 0.0
    %1482 = vadd.xlane.f32.xlu0 %v1481
    %v1483 = vpop.xlane.xlu0 %1482
    %v1484 = vsel %vm387, %v1480, 0.0
    %1485 = vadd.xlane.f32.xlu0 %v1484
    %v1486 = vpop.xlane.xlu0 %1485
    %v1487 = vrcp.pop 32.0
    %v1488 = vmul.f32 %v1483, %v1487
    %v1489 = vmul.f32 %v1486, %v1487
    %v1490 = vsub.f32 %v1479, %v1488
    %v1491 = vsub.f32 %v1480, %v1489
    %v1492 = vmul.f32 %v1490, %v1490
    %v1493 = vmul.f32 %v1491, %v1491
    %v1494 = vsel %vm387, %v1492, 0.0
    %1495 = vadd.xlane.f32.xlu0 %v1494
    %v1496 = vpop.xlane.xlu0 %1495
    %v1497 = vsel %vm387, %v1493, 0.0
    %1498 = vadd.xlane.f32.xlu0 %v1497
    %v1499 = vpop.xlane.xlu0 %1498
    %v1500 = vmul.f32 %v1496, %v1487
    %v1501 = vmul.f32 %v1499, %v1487
    %v1502 = vadd.f32 %v1500, 1e-05
    %v1503 = vadd.f32 %v1501, 1e-05
    %v1504 = vrsqrt.pop %v1502
    %v1505 = vrsqrt.pop %v1503
    %v1506 = vmul.f32 %v1490, %v1504
    %v1507 = vmul.f32 %v1491, %v1505
    %s1508 = scalar_lea.vmem %s15, 8
    %v1509 = vld [vmem:[%s1508] sm:$0x1]
    %v1511 = vlaneseq
    %v1512 = vshrl.u32 %v1511, 7
    %v1513 = vsub.s32 0, %v1512
    %v1514 = vrot.slane %v1509, %v1513
    %v1516 = vmul.f32 %v1506, %v1514
    %v1517 = vmul.f32 %v1507, %v1514
    %s1518 = scalar_lea.vmem %s15, 9
    %v1519 = vld [vmem:[%s1518] sm:$0x1]
    %v1521 = vlaneseq
    %v1522 = vshrl.u32 %v1521, 7
    %v1523 = vsub.s32 0, %v1522
    %v1524 = vrot.slane %v1519, %v1523
    %v1526 = vadd.f32 %v1516, %v1524
    %v1527 = vadd.f32 %v1517, %v1524
    %v1528 = vld [vmem:[#allocation11] sm:$0xff]
    %v1529 = vld [vmem:[#allocation11 + $0x8] sm:$0xff]
    %v1530 = vld [vmem:[#allocation11 + $0x10] sm:$0xff]
    %v1531 = vld [vmem:[#allocation11 + $0x18] sm:$0xff]
    %v1532 = vld [vmem:[#allocation13] sm:$0x1]
    %v1534 = vlaneseq
    %v1535 = vshrl.u32 %v1534, 7
    %v1536 = vsub.s32 0, %v1535
    %v1537 = vrot.slane %v1532, %v1536
    %v1540 = vsel %vm387, %v1526, 0
    %v1543 = vsel %vm387, %v1527, 0
    %1545 = vmatprep.subr.mxu0 0.0
    %1546 = vmatpush1.msra.mxu0 %v1528
    %1547 = vmatprep.subr.mxu0 0.0
    %1548 = vmatpush1.msra.mxu0 %v1529
    %1549 = vmatprep.subr.mxu0 0.0
    %1550 = vmatpush1.msra.mxu0 %v1530
    %1551 = vmatprep.subr.mxu0 0.0
    %1552 = vmatpush1.msra.mxu0 %v1531
    %1553 = vmatprep.subr.mxu0 0.0
    %1554 = vmatpush1.msra.mxu0 0.0
    %1555 = vmatprep.subr.mxu0 0.0
    %1556 = vmatpush1.msra.mxu0 0.0
    %1557 = vmatprep.subr.mxu0 0.0
    %1558 = vmatpush1.msra.mxu0 0.0
    %1559 = vmatprep.subr.mxu0 0.0
    %1560 = vmatpush1.msra.mxu0 0.0
    %1561 = vmatprep.subr.mxu0 0.0
    %1562 = vmatpush1.msra.mxu0 0.0
    %1563 = vmatprep.subr.mxu0 0.0
    %1564 = vmatpush1.msra.mxu0 0.0
    %1565 = vmatprep.subr.mxu0 0.0
    %1566 = vmatpush1.msra.mxu0 0.0
    %1567 = vmatprep.subr.mxu0 0.0
    %1568 = vmatpush1.msra.mxu0 0.0
    %1569 = vmatprep.subr.mxu0 0.0
    %1570 = vmatpush1.msra.mxu0 0.0
    %1571 = vmatprep.subr.mxu0 0.0
    %1572 = vmatpush1.msra.mxu0 0.0
    %1573 = vmatprep.subr.mxu0 0.0
    %1574 = vmatpush1.msra.mxu0 0.0
    %1575 = vmatprep.subr.mxu0 0.0
    %1576 = vmatpush1.msra.mxu0 0.0
    %1577 = vmatprep.subr.mxu0 0.0
    %1578 = vmatpush1.msra.mxu0 0.0
    %1579 = vmatprep.subr.mxu0 0.0
    %1580 = vmatpush1.msra.mxu0 0.0
    %1581 = vmatprep.subr.mxu0 0.0
    %1582 = vmatpush1.msra.mxu0 0.0
    %1583 = vmatprep.subr.mxu0 0.0
    %1584 = vmatpush1.msra.mxu0 0.0
    %1585 = vmatprep.subr.mxu0 0.0
    %1586 = vmatpush1.msra.mxu0 0.0
    %1587 = vmatprep.subr.mxu0 0.0
    %1588 = vmatpush1.msra.mxu0 0.0
    %1589 = vmatprep.subr.mxu0 0.0
    %1590 = vmatpush1.msra.mxu0 0.0
    %1591 = vmatprep.subr.mxu0 0.0
    %1592 = vmatpush1.msra.mxu0 0.0
    %1593 = vmatprep.subr.mxu0 0.0
    %1594 = vmatpush1.msra.mxu0 0.0
    %1595 = vmatprep.subr.mxu0 0.0
    %1596 = vmatpush1.msra.mxu0 0.0
    %1597 = vmatprep.subr.mxu0 0.0
    %1598 = vmatpush1.msra.mxu0 0.0
    %1599 = vmatprep.subr.mxu0 0.0
    %1600 = vmatpush1.msra.mxu0 0.0
    %1601 = vmatprep.subr.mxu0 0.0
    %1602 = vmatpush1.msra.mxu0 0.0
    %1603 = vmatprep.subr.mxu0 0.0
    %1604 = vmatpush1.msra.mxu0 0.0
    %1605 = vmatprep.subr.mxu0 0.0
    %1606 = vmatpush1.msra.mxu0 0.0
    %1607 = vmatprep.subr.mxu0 0.0
    %1608 = vmatpush1.msra.mxu0 0.0
    %1609 = vmatprep.mubr.f32.mxu0 0.0
    %1610 = vmatmul.mubr.f32.gmra.mrb[0].mxu0 %v1540
    %v1611 = vpop.f32.mrb[0].mxu0
    %v1612 = vadd.f32 %v1537, %v1611
    %v1613 = vpop.f32.mrb[0].mxu0
    %1614 = vmatprep.mubr.f32.mxu0 0.0
    %1615 = vmatmul.mubr.f32.gmra.mrb[0].mxu0 %v1543
    %v1616 = vpop.f32.mrb[0].mxu0
    %v1617 = vadd.f32 %v1537, %v1616
    %v1618 = vpop.f32.mrb[0].mxu0
    %1619 = vdwg.mxu0
    %v1620 = vmax.f32 %v1612, 0.0
    %v1621 = vmax.f32 %v1617, 0.0
    %v1622 = vld [vmem:[%s14] sm:$0xff]
    %v1623 = vld [vmem:[%s14 + $0x8] sm:$0xff]
    %v1624 = vld [vmem:[%s14 + $0x10] sm:$0xff]
    %v1625 = vld [vmem:[%s14 + $0x18] sm:$0xff]
    %v1626 = vld [vmem:[%s14 + $0x20] sm:$0xff]
    %v1627 = vld [vmem:[%s14 + $0x28] sm:$0xff]
    %v1628 = vld [vmem:[%s14 + $0x30] sm:$0xff]
    %v1629 = vld [vmem:[%s14 + $0x38] sm:$0xff]
    %s1630 = scalar_lea.vmem %s15, 28
    %v1631 = vld [vmem:[%s1630] sm:$0x1]
    %v1633 = vlaneseq
    %v1634 = vshrl.u32 %v1633, 7
    %v1635 = vsub.s32 0, %v1634
    %v1636 = vrot.slane %v1631, %v1635
    %vm1638 = vcmask 523264
    %v1640 = vsel %vm1638, %v1620, 0
    %v1643 = vsel %vm1638, %v1621, 0
    %1645 = vmatprep.subr.mxu0 0.0
    %1646 = vmatpush1.msra.mxu0 %v1622
    %1647 = vmatprep.subr.mxu0 0.0
    %1648 = vmatpush1.msra.mxu0 %v1623
    %1649 = vmatprep.subr.mxu0 0.0
    %1650 = vmatpush1.msra.mxu0 %v1624
    %1651 = vmatprep.subr.mxu0 0.0
    %1652 = vmatpush1.msra.mxu0 %v1625
    %1653 = vmatprep.subr.mxu0 0.0
    %1654 = vmatpush1.msra.mxu0 %v1626
    %1655 = vmatprep.subr.mxu0 0.0
    %1656 = vmatpush1.msra.mxu0 %v1627
    %1657 = vmatprep.subr.mxu0 0.0
    %1658 = vmatpush1.msra.mxu0 %v1628
    %1659 = vmatprep.subr.mxu0 0.0
    %1660 = vmatpush1.msra.mxu0 %v1629
    %1661 = vmatprep.subr.mxu0 0.0
    %1662 = vmatpush1.msra.mxu0 0.0
    %1663 = vmatprep.subr.mxu0 0.0
    %1664 = vmatpush1.msra.mxu0 0.0
    %1665 = vmatprep.subr.mxu0 0.0
    %1666 = vmatpush1.msra.mxu0 0.0
    %1667 = vmatprep.subr.mxu0 0.0
    %1668 = vmatpush1.msra.mxu0 0.0
    %1669 = vmatprep.subr.mxu0 0.0
    %1670 = vmatpush1.msra.mxu0 0.0
    %1671 = vmatprep.subr.mxu0 0.0
    %1672 = vmatpush1.msra.mxu0 0.0
    %1673 = vmatprep.subr.mxu0 0.0
    %1674 = vmatpush1.msra.mxu0 0.0
    %1675 = vmatprep.subr.mxu0 0.0
    %1676 = vmatpush1.msra.mxu0 0.0
    %1677 = vmatprep.subr.mxu0 0.0
    %1678 = vmatpush1.msra.mxu0 0.0
    %1679 = vmatprep.subr.mxu0 0.0
    %1680 = vmatpush1.msra.mxu0 0.0
    %1681 = vmatprep.subr.mxu0 0.0
    %1682 = vmatpush1.msra.mxu0 0.0
    %1683 = vmatprep.subr.mxu0 0.0
    %1684 = vmatpush1.msra.mxu0 0.0
    %1685 = vmatprep.subr.mxu0 0.0
    %1686 = vmatpush1.msra.mxu0 0.0
    %1687 = vmatprep.subr.mxu0 0.0
    %1688 = vmatpush1.msra.mxu0 0.0
    %1689 = vmatprep.subr.mxu0 0.0
    %1690 = vmatpush1.msra.mxu0 0.0
    %1691 = vmatprep.subr.mxu0 0.0
    %1692 = vmatpush1.msra.mxu0 0.0
    %1693 = vmatprep.subr.mxu0 0.0
    %1694 = vmatpush1.msra.mxu0 0.0
    %1695 = vmatprep.subr.mxu0 0.0
    %1696 = vmatpush1.msra.mxu0 0.0
    %1697 = vmatprep.subr.mxu0 0.0
    %1698 = vmatpush1.msra.mxu0 0.0
    %1699 = vmatprep.subr.mxu0 0.0
    %1700 = vmatpush1.msra.mxu0 0.0
    %1701 = vmatprep.subr.mxu0 0.0
    %1702 = vmatpush1.msra.mxu0 0.0
    %1703 = vmatprep.subr.mxu0 0.0
    %1704 = vmatpush1.msra.mxu0 0.0
    %1705 = vmatprep.subr.mxu0 0.0
    %1706 = vmatpush1.msra.mxu0 0.0
    %1707 = vmatprep.subr.mxu0 0.0
    %1708 = vmatpush1.msra.mxu0 0.0
    %1709 = vmatprep.mubr.f32.mxu0 0.0
    %1710 = vmatmul.mubr.f32.gmra.mrb[0].mxu0 %v1640
    %v1711 = vpop.f32.mrb[0].mxu0
    %v1712 = vadd.f32 %v1636, %v1711
    %v1713 = vpop.f32.mrb[0].mxu0
    %1714 = vmatprep.mubr.f32.mxu0 0.0
    %1715 = vmatmul.mubr.f32.gmra.mrb[0].mxu0 %v1643
    %v1716 = vpop.f32.mrb[0].mxu0
    %v1717 = vadd.f32 %v1636, %v1716
    %v1718 = vpop.f32.mrb[0].mxu0
    %1719 = vdwg.mxu0
    %v1720 = vadd.f32 %v1526, %v1712
    %v1721 = vadd.f32 %v1527, %v1717
    %v1722 = vsel %vm387, %v1720, 0.0
    %1723 = vadd.xlane.f32.xlu0 %v1722
    %v1724 = vpop.xlane.xlu0 %1723
    %v1725 = vsel %vm387, %v1721, 0.0
    %1726 = vadd.xlane.f32.xlu0 %v1725
    %v1727 = vpop.xlane.xlu0 %1726
    %v1728 = vmul.f32 %v1724, %v1487
    %v1729 = vmul.f32 %v1727, %v1487
    %v1730 = vsub.f32 %v1720, %v1728
    %v1731 = vsub.f32 %v1721, %v1729
    %v1732 = vmul.f32 %v1730, %v1730
    %v1733 = vmul.f32 %v1731, %v1731
    %v1734 = vsel %vm387, %v1732, 0.0
    %1735 = vadd.xlane.f32.xlu0 %v1734
    %v1736 = vpop.xlane.xlu0 %1735
    %v1737 = vsel %vm387, %v1733, 0.0
    %1738 = vadd.xlane.f32.xlu0 %v1737
    %v1739 = vpop.xlane.xlu0 %1738
    %v1740 = vmul.f32 %v1736, %v1487
    %v1741 = vmul.f32 %v1739, %v1487
    %v1742 = vadd.f32 %v1740, 1e-05
    %v1743 = vadd.f32 %v1741, 1e-05
    %v1744 = vrsqrt.pop %v1742
    %v1745 = vrsqrt.pop %v1743
    %v1746 = vmul.f32 %v1730, %v1744
    %v1747 = vmul.f32 %v1731, %v1745
    %s1748 = scalar_lea.vmem %s15, 10
    %v1749 = vld [vmem:[%s1748] sm:$0x1]
    %v1751 = vlaneseq
    %v1752 = vshrl.u32 %v1751, 7
    %v1753 = vsub.s32 0, %v1752
    %v1754 = vrot.slane %v1749, %v1753
    %v1756 = vmul.f32 %v1746, %v1754
    %v1757 = vmul.f32 %v1747, %v1754
    %s1758 = scalar_lea.vmem %s15, 11
    %v1759 = vld [vmem:[%s1758] sm:$0x1]
    %v1761 = vlaneseq
    %v1762 = vshrl.u32 %v1761, 7
    %v1763 = vsub.s32 0, %v1762
    %v1764 = vrot.slane %v1759, %v1763
    %v1766 = vadd.f32 %v1756, %v1764
    %v1767 = vadd.f32 %v1757, %v1764
    %s1768 = scalar_lea.vmem %s7, 32
    %v1769 = vld [vmem:[%s1768] sm:$0xff]
    %v1770 = vld [vmem:[%s1768 + $0x8] sm:$0xff]
    %v1771 = vld [vmem:[%s1768 + $0x10] sm:$0xff]
    %v1772 = vld [vmem:[%s1768 + $0x18] sm:$0xff]
    %s1773 = scalar_lea.vmem %s8, 1
    %v1774 = vld [vmem:[%s1773] sm:$0x1]
    %v1776 = vlaneseq
    %v1777 = vshrl.u32 %v1776, 7
    %v1778 = vsub.s32 0, %v1777
    %v1779 = vrot.slane %v1774, %v1778
    %v1782 = vsel %vm387, %v1766, 0
    %v1785 = vsel %vm387, %v1767, 0
    %1787 = vmatprep.subr.mxu0 0.0
    %1788 = vmatpush1.msra.mxu0 %v1769
    %1789 = vmatprep.subr.mxu0 0.0
    %1790 = vmatpush1.msra.mxu0 %v1770
    %1791 = vmatprep.subr.mxu0 0.0
    %1792 = vmatpush1.msra.mxu0 %v1771
    %1793 = vmatprep.subr.mxu0 0.0
    %1794 = vmatpush1.msra.mxu0 %v1772
    %1795 = vmatprep.subr.mxu0 0.0
    %1796 = vmatpush1.msra.mxu0 0.0
    %1797 = vmatprep.subr.mxu0 0.0
    %1798 = vmatpush1.msra.mxu0 0.0
    %1799 = vmatprep.subr.mxu0 0.0
    %1800 = vmatpush1.msra.mxu0 0.0
    %1801 = vmatprep.subr.mxu0 0.0
    %1802 = vmatpush1.msra.mxu0 0.0
    %1803 = vmatprep.subr.mxu0 0.0
    %1804 = vmatpush1.msra.mxu0 0.0
    %1805 = vmatprep.subr.mxu0 0.0
    %1806 = vmatpush1.msra.mxu0 0.0
    %1807 = vmatprep.subr.mxu0 0.0
    %1808 = vmatpush1.msra.mxu0 0.0
    %1809 = vmatprep.subr.mxu0 0.0
    %1810 = vmatpush1.msra.mxu0 0.0
    %1811 = vmatprep.subr.mxu0 0.0
    %1812 = vmatpush1.msra.mxu0 0.0
    %1813 = vmatprep.subr.mxu0 0.0
    %1814 = vmatpush1.msra.mxu0 0.0
    %1815 = vmatprep.subr.mxu0 0.0
    %1816 = vmatpush1.msra.mxu0 0.0
    %1817 = vmatprep.subr.mxu0 0.0
    %1818 = vmatpush1.msra.mxu0 0.0
    %1819 = vmatprep.subr.mxu0 0.0
    %1820 = vmatpush1.msra.mxu0 0.0
    %1821 = vmatprep.subr.mxu0 0.0
    %1822 = vmatpush1.msra.mxu0 0.0
    %1823 = vmatprep.subr.mxu0 0.0
    %1824 = vmatpush1.msra.mxu0 0.0
    %1825 = vmatprep.subr.mxu0 0.0
    %1826 = vmatpush1.msra.mxu0 0.0
    %1827 = vmatprep.subr.mxu0 0.0
    %1828 = vmatpush1.msra.mxu0 0.0
    %1829 = vmatprep.subr.mxu0 0.0
    %1830 = vmatpush1.msra.mxu0 0.0
    %1831 = vmatprep.subr.mxu0 0.0
    %1832 = vmatpush1.msra.mxu0 0.0
    %1833 = vmatprep.subr.mxu0 0.0
    %1834 = vmatpush1.msra.mxu0 0.0
    %1835 = vmatprep.subr.mxu0 0.0
    %1836 = vmatpush1.msra.mxu0 0.0
    %1837 = vmatprep.subr.mxu0 0.0
    %1838 = vmatpush1.msra.mxu0 0.0
    %1839 = vmatprep.subr.mxu0 0.0
    %1840 = vmatpush1.msra.mxu0 0.0
    %1841 = vmatprep.subr.mxu0 0.0
    %1842 = vmatpush1.msra.mxu0 0.0
    %1843 = vmatprep.subr.mxu0 0.0
    %1844 = vmatpush1.msra.mxu0 0.0
    %1845 = vmatprep.subr.mxu0 0.0
    %1846 = vmatpush1.msra.mxu0 0.0
    %1847 = vmatprep.subr.mxu0 0.0
    %1848 = vmatpush1.msra.mxu0 0.0
    %1849 = vmatprep.subr.mxu0 0.0
    %1850 = vmatpush1.msra.mxu0 0.0
    %1851 = vmatprep.mubr.f32.mxu0 0.0
    %1852 = vmatmul.mubr.f32.gmra.mrb[0].mxu0 %v1782
    %v1853 = vpop.f32.mrb[0].mxu0
    %v1854 = vadd.f32 %v1779, %v1853
    %v1855 = vpop.f32.mrb[0].mxu0
    %1856 = vmatprep.mubr.f32.mxu0 0.0
    %1857 = vmatmul.mubr.f32.gmra.mrb[0].mxu0 %v1785
    %v1858 = vpop.f32.mrb[0].mxu0
    %v1859 = vadd.f32 %v1779, %v1858
    %v1860 = vpop.f32.mrb[0].mxu0
    %1861 = vdwg.mxu0
    %v1862 = vmul.f32 %v1854, 0.35355338
    %v1863 = vmul.f32 %v1859, 0.35355338
    %s1864 = scalar_lea.vmem %s9, 32
    %v1865 = vld [vmem:[%s1864] sm:$0xff]
    %v1866 = vld [vmem:[%s1864 + $0x8] sm:$0xff]
    %v1867 = vld [vmem:[%s1864 + $0x10] sm:$0xff]
    %v1868 = vld [vmem:[%s1864 + $0x18] sm:$0xff]
    %s1869 = scalar_lea.vmem [#allocation10], 1
    %v1870 = vld [vmem:[%s1869] sm:$0x1]
    %v1872 = vlaneseq
    %v1873 = vshrl.u32 %v1872, 7
    %v1874 = vsub.s32 0, %v1873
    %v1875 = vrot.slane %v1870, %v1874
    %1877 = vmatprep.subr.mxu0 0.0
    %1878 = vmatpush1.msra.mxu0 %v1865
    %1879 = vmatprep.subr.mxu0 0.0
    %1880 = vmatpush1.msra.mxu0 %v1866
    %1881 = vmatprep.subr.mxu0 0.0
    %1882 = vmatpush1.msra.mxu0 %v1867
    %1883 = vmatprep.subr.mxu0 0.0
    %1884 = vmatpush1.msra.mxu0 %v1868
    %1885 = vmatprep.subr.mxu0 0.0
    %1886 = vmatpush1.msra.mxu0 0.0
    %1887 = vmatprep.subr.mxu0 0.0
    %1888 = vmatpush1.msra.mxu0 0.0
    %1889 = vmatprep.subr.mxu0 0.0
    %1890 = vmatpush1.msra.mxu0 0.0
    %1891 = vmatprep.subr.mxu0 0.0
    %1892 = vmatpush1.msra.mxu0 0.0
    %1893 = vmatprep.subr.mxu0 0.0
    %1894 = vmatpush1.msra.mxu0 0.0
    %1895 = vmatprep.subr.mxu0 0.0
    %1896 = vmatpush1.msra.mxu0 0.0
    %1897 = vmatprep.subr.mxu0 0.0
    %1898 = vmatpush1.msra.mxu0 0.0
    %1899 = vmatprep.subr.mxu0 0.0
    %1900 = vmatpush1.msra.mxu0 0.0
    %1901 = vmatprep.subr.mxu0 0.0
    %1902 = vmatpush1.msra.mxu0 0.0
    %1903 = vmatprep.subr.mxu0 0.0
    %1904 = vmatpush1.msra.mxu0 0.0
    %1905 = vmatprep.subr.mxu0 0.0
    %1906 = vmatpush1.msra.mxu0 0.0
    %1907 = vmatprep.subr.mxu0 0.0
    %1908 = vmatpush1.msra.mxu0 0.0
    %1909 = vmatprep.subr.mxu0 0.0
    %1910 = vmatpush1.msra.mxu0 0.0
    %1911 = vmatprep.subr.mxu0 0.0
    %1912 = vmatpush1.msra.mxu0 0.0
    %1913 = vmatprep.subr.mxu0 0.0
    %1914 = vmatpush1.msra.mxu0 0.0
    %1915 = vmatprep.subr.mxu0 0.0
    %1916 = vmatpush1.msra.mxu0 0.0
    %1917 = vmatprep.subr.mxu0 0.0
    %1918 = vmatpush1.msra.mxu0 0.0
    %1919 = vmatprep.subr.mxu0 0.0
    %1920 = vmatpush1.msra.mxu0 0.0
    %1921 = vmatprep.subr.mxu0 0.0
    %1922 = vmatpush1.msra.mxu0 0.0
    %1923 = vmatprep.subr.mxu0 0.0
    %1924 = vmatpush1.msra.mxu0 0.0
    %1925 = vmatprep.subr.mxu0 0.0
    %1926 = vmatpush1.msra.mxu0 0.0
    %1927 = vmatprep.subr.mxu0 0.0
    %1928 = vmatpush1.msra.mxu0 0.0
    %1929 = vmatprep.subr.mxu0 0.0
    %1930 = vmatpush1.msra.mxu0 0.0
    %1931 = vmatprep.subr.mxu0 0.0
    %1932 = vmatpush1.msra.mxu0 0.0
    %1933 = vmatprep.subr.mxu0 0.0
    %1934 = vmatpush1.msra.mxu0 0.0
    %1935 = vmatprep.subr.mxu0 0.0
    %1936 = vmatpush1.msra.mxu0 0.0
    %1937 = vmatprep.subr.mxu0 0.0
    %1938 = vmatpush1.msra.mxu0 0.0
    %1939 = vmatprep.subr.mxu0 0.0
    %1940 = vmatpush1.msra.mxu0 0.0
    %1941 = vmatprep.mubr.f32.mxu0 0.0
    %1942 = vmatmul.mubr.f32.gmra.mrb[0].mxu0 %v1782
    %v1943 = vpop.f32.mrb[0].mxu0
    %v1944 = vadd.f32 %v1875, %v1943
    %v1945 = vpop.f32.mrb[0].mxu0
    %1946 = vmatprep.mubr.f32.mxu0 0.0
    %1947 = vmatmul.mubr.f32.gmra.mrb[0].mxu0 %v1785
    %v1948 = vpop.f32.mrb[0].mxu0
    %v1949 = vadd.f32 %v1875, %v1948
    %v1950 = vpop.f32.mrb[0].mxu0
    %1951 = vdwg.mxu0
    %v1953 = vsel %vm557, %v1862, 0
    %v1956 = vsel %vm557, %v1863, 0
    %v1959 = vsel %vm557, %v1944, 0
    %v1962 = vsel %vm557, %v1949, 0
    %1964 = vmatprep.subr.mxu0 0.0
    %1965 = vmatpush1.xpose.msra.mxu0 %v1959
    %1966 = vmatprep.subr.mxu0 0.0
    %1967 = vmatpush1.xpose.msra.mxu0 %v1962
    %1968 = vmatprep.subr.mxu0 0.0
    %1969 = vmatpush1.xpose.msra.mxu0 0.0
    %1970 = vmatprep.subr.mxu0 0.0
    %1971 = vmatpush1.xpose.msra.mxu0 0.0
    %1972 = vmatprep.subr.mxu0 0.0
    %1973 = vmatpush1.xpose.msra.mxu0 0.0
    %1974 = vmatprep.subr.mxu0 0.0
    %1975 = vmatpush1.xpose.msra.mxu0 0.0
    %1976 = vmatprep.subr.mxu0 0.0
    %1977 = vmatpush1.xpose.msra.mxu0 0.0
    %1978 = vmatprep.subr.mxu0 0.0
    %1979 = vmatpush1.xpose.msra.mxu0 0.0
    %1980 = vmatprep.subr.mxu0 0.0
    %1981 = vmatpush1.xpose.msra.mxu0 0.0
    %1982 = vmatprep.subr.mxu0 0.0
    %1983 = vmatpush1.xpose.msra.mxu0 0.0
    %1984 = vmatprep.subr.mxu0 0.0
    %1985 = vmatpush1.xpose.msra.mxu0 0.0
    %1986 = vmatprep.subr.mxu0 0.0
    %1987 = vmatpush1.xpose.msra.mxu0 0.0
    %1988 = vmatprep.subr.mxu0 0.0
    %1989 = vmatpush1.xpose.msra.mxu0 0.0
    %1990 = vmatprep.subr.mxu0 0.0
    %1991 = vmatpush1.xpose.msra.mxu0 0.0
    %1992 = vmatprep.subr.mxu0 0.0
    %1993 = vmatpush1.xpose.msra.mxu0 0.0
    %1994 = vmatprep.subr.mxu0 0.0
    %1995 = vmatpush1.xpose.msra.mxu0 0.0
    %1996 = vmatprep.subr.mxu0 0.0
    %1997 = vmatpush1.xpose.msra.mxu0 0.0
    %1998 = vmatprep.subr.mxu0 0.0
    %1999 = vmatpush1.xpose.msra.mxu0 0.0
    %2000 = vmatprep.subr.mxu0 0.0
    %2001 = vmatpush1.xpose.msra.mxu0 0.0
    %2002 = vmatprep.subr.mxu0 0.0
    %2003 = vmatpush1.xpose.msra.mxu0 0.0
    %2004 = vmatprep.subr.mxu0 0.0
    %2005 = vmatpush1.xpose.msra.mxu0 0.0
    %2006 = vmatprep.subr.mxu0 0.0
    %2007 = vmatpush1.xpose.msra.mxu0 0.0
    %2008 = vmatprep.subr.mxu0 0.0
    %2009 = vmatpush1.xpose.msra.mxu0 0.0
    %2010 = vmatprep.subr.mxu0 0.0
    %2011 = vmatpush1.xpose.msra.mxu0 0.0
    %2012 = vmatprep.subr.mxu0 0.0
    %2013 = vmatpush1.xpose.msra.mxu0 0.0
    %2014 = vmatprep.subr.mxu0 0.0
    %2015 = vmatpush1.xpose.msra.mxu0 0.0
    %2016 = vmatprep.subr.mxu0 0.0
    %2017 = vmatpush1.xpose.msra.mxu0 0.0
    %2018 = vmatprep.subr.mxu0 0.0
    %2019 = vmatpush1.xpose.msra.mxu0 0.0
    %2020 = vmatprep.subr.mxu0 0.0
    %2021 = vmatpush1.xpose.msra.mxu0 0.0
    %2022 = vmatprep.subr.mxu0 0.0
    %2023 = vmatpush1.xpose.msra.mxu0 0.0
    %2024 = vmatprep.subr.mxu0 0.0
    %2025 = vmatpush1.xpose.msra.mxu0 0.0
    %2026 = vmatprep.subr.mxu0 0.0
    %2027 = vmatpush1.xpose.msra.mxu0 0.0
    %2028 = vmatprep.mubr.f32.mxu0 0.0
    %2029 = vmatmul.mubr.f32.gmra.mrb[0].mxu0 %v1953
    %v2030 = vpop.f32.mrb[0].mxu0
    %v2031 = vadd.f32 %v183, %v2030
    %v2032 = vpop.f32.mrb[0].mxu0
    %2033 = vmatprep.mubr.f32.mxu0 0.0
    %2034 = vmatmul.mubr.f32.gmra.mrb[0].mxu0 %v1956
    %v2035 = vpop.f32.mrb[0].mxu0
    %v2036 = vadd.f32 %v184, %v2035
    %v2037 = vpop.f32.mrb[0].mxu0
    %2038 = vdwg.mxu0
    %v2039 = vsel %vm645, %v2031, -inf
    %2040 = vmax.xlane.f32.xlu0 %v2039
    %v2041 = vpop.xlane.xlu0 %2040
    %v2042 = vsel %vm645, %v2036, -inf
    %2043 = vmax.xlane.f32.xlu0 %v2042
    %v2044 = vpop.xlane.xlu0 %2043
    %v2045 = vsub.f32 %v2031, %v2041
    %v2046 = vsub.f32 %v2036, %v2044
    %v2047 = vmul.f32 %v2045, 1.442695
    %v2048 = vpow.pop %v2047
    %v2049 = vmul.f32 %v2046, 1.442695
    %v2050 = vpow.pop %v2049
    %v2051 = vsel %vm645, %v2048, 0.0
    %2052 = vadd.xlane.f32.xlu0 %v2051
    %v2053 = vpop.xlane.xlu0 %2052
    %v2054 = vsel %vm645, %v2050, 0.0
    %2055 = vadd.xlane.f32.xlu0 %v2054
    %v2056 = vpop.xlane.xlu0 %2055
    %v2057 = vrcp.pop %v2053
    %v2058 = vrcp.pop %v2056
    %v2059 = vmul.f32 %v2048, %v2057
    %v2060 = vmul.f32 %v2050, %v2058
    %2061 = vrot.lane.b32.xlu0 %v1944, 96
    %v2062 = vpop.permute.xlu0 %2061
    %2063 = vrot.lane.b32.xlu0 %v1949, 96
    %v2064 = vpop.permute.xlu0 %2063
    %v2068 = vsel %vm645, %v2059, 0
    %v2071 = vsel %vm645, %v2060, 0
    %2073 = vmatprep.subr.mxu0 0.0
    %2074 = vmatpush1.msra.mxu0 %v2062
    %2075 = vmatprep.subr.mxu0 0.0
    %2076 = vmatpush1.msra.mxu0 %v2064
    %2077 = vmatprep.subr.mxu0 0.0
    %2078 = vmatpush1.msra.mxu0 0.0
    %2079 = vmatprep.subr.mxu0 0.0
    %2080 = vmatpush1.msra.mxu0 0.0
    %2081 = vmatprep.subr.mxu0 0.0
    %2082 = vmatpush1.msra.mxu0 0.0
    %2083 = vmatprep.subr.mxu0 0.0
    %2084 = vmatpush1.msra.mxu0 0.0
    %2085 = vmatprep.subr.mxu0 0.0
    %2086 = vmatpush1.msra.mxu0 0.0
    %2087 = vmatprep.subr.mxu0 0.0
    %2088 = vmatpush1.msra.mxu0 0.0
    %2089 = vmatprep.subr.mxu0 0.0
    %2090 = vmatpush1.msra.mxu0 0.0
    %2091 = vmatprep.subr.mxu0 0.0
    %2092 = vmatpush1.msra.mxu0 0.0
    %2093 = vmatprep.subr.mxu0 0.0
    %2094 = vmatpush1.msra.mxu0 0.0
    %2095 = vmatprep.subr.mxu0 0.0
    %2096 = vmatpush1.msra.mxu0 0.0
    %2097 = vmatprep.subr.mxu0 0.0
    %2098 = vmatpush1.msra.mxu0 0.0
    %2099 = vmatprep.subr.mxu0 0.0
    %2100 = vmatpush1.msra.mxu0 0.0
    %2101 = vmatprep.subr.mxu0 0.0
    %2102 = vmatpush1.msra.mxu0 0.0
    %2103 = vmatprep.subr.mxu0 0.0
    %2104 = vmatpush1.msra.mxu0 0.0
    %2105 = vmatprep.subr.mxu0 0.0
    %2106 = vmatpush1.msra.mxu0 0.0
    %2107 = vmatprep.subr.mxu0 0.0
    %2108 = vmatpush1.msra.mxu0 0.0
    %2109 = vmatprep.subr.mxu0 0.0
    %2110 = vmatpush1.msra.mxu0 0.0
    %2111 = vmatprep.subr.mxu0 0.0
    %2112 = vmatpush1.msra.mxu0 0.0
    %2113 = vmatprep.subr.mxu0 0.0
    %2114 = vmatpush1.msra.mxu0 0.0
    %2115 = vmatprep.subr.mxu0 0.0
    %2116 = vmatpush1.msra.mxu0 0.0
    %2117 = vmatprep.subr.mxu0 0.0
    %2118 = vmatpush1.msra.mxu0 0.0
    %2119 = vmatprep.subr.mxu0 0.0
    %2120 = vmatpush1.msra.mxu0 0.0
    %2121 = vmatprep.subr.mxu0 0.0
    %2122 = vmatpush1.msra.mxu0 0.0
    %2123 = vmatprep.subr.mxu0 0.0
    %2124 = vmatpush1.msra.mxu0 0.0
    %2125 = vmatprep.subr.mxu0 0.0
    %2126 = vmatpush1.msra.mxu0 0.0
    %2127 = vmatprep.subr.mxu0 0.0
    %2128 = vmatpush1.msra.mxu0 0.0
    %2129 = vmatprep.subr.mxu0 0.0
    %2130 = vmatpush1.msra.mxu0 0.0
    %2131 = vmatprep.subr.mxu0 0.0
    %2132 = vmatpush1.msra.mxu0 0.0
    %2133 = vmatprep.subr.mxu0 0.0
    %2134 = vmatpush1.msra.mxu0 0.0
    %2135 = vmatprep.subr.mxu0 0.0
    %2136 = vmatpush1.msra.mxu0 0.0
    %2137 = vmatprep.mubr.f32.mxu0 0.0
    %2138 = vmatmul.mubr.f32.gmra.mrb[0].mxu0 %v2068
    %v2139 = vpop.f32.mrb[0].mxu0
    %v2140 = vadd.f32 0.0, %v2139
    %v2141 = vpop.f32.mrb[0].mxu0
    %2142 = vmatprep.mubr.f32.mxu0 0.0
    %2143 = vmatmul.mubr.f32.gmra.mrb[0].mxu0 %v2071
    %v2144 = vpop.f32.mrb[0].mxu0
    %v2145 = vadd.f32 0.0, %v2144
    %v2146 = vpop.f32.mrb[0].mxu0
    %2147 = vdwg.mxu0
    %2148 = vrot.lane.b32.xlu0 %v1862, 120
    %v2149 = vpop.permute.xlu0 %2148
    %2150 = vrot.lane.b32.xlu0 %v1863, 120
    %v2151 = vpop.permute.xlu0 %2150
    %2152 = vrot.lane.b32.xlu0 %v1944, 120
    %v2153 = vpop.permute.xlu0 %2152
    %2154 = vrot.lane.b32.xlu0 %v1949, 120
    %v2155 = vpop.permute.xlu0 %2154
    %v2156 = vsel %vm557, %v2149, 0
    %v2158 = vsel %vm557, %v2151, 0
    %v2160 = vsel %vm557, %v2153, 0
    %v2162 = vsel %vm557, %v2155, 0
    %2164 = vmatprep.subr.mxu0 0.0
    %2165 = vmatpush1.xpose.msra.mxu0 %v2160
    %2166 = vmatprep.subr.mxu0 0.0
    %2167 = vmatpush1.xpose.msra.mxu0 %v2162
    %2168 = vmatprep.subr.mxu0 0.0
    %2169 = vmatpush1.xpose.msra.mxu0 0.0
    %2170 = vmatprep.subr.mxu0 0.0
    %2171 = vmatpush1.xpose.msra.mxu0 0.0
    %2172 = vmatprep.subr.mxu0 0.0
    %2173 = vmatpush1.xpose.msra.mxu0 0.0
    %2174 = vmatprep.subr.mxu0 0.0
    %2175 = vmatpush1.xpose.msra.mxu0 0.0
    %2176 = vmatprep.subr.mxu0 0.0
    %2177 = vmatpush1.xpose.msra.mxu0 0.0
    %2178 = vmatprep.subr.mxu0 0.0
    %2179 = vmatpush1.xpose.msra.mxu0 0.0
    %2180 = vmatprep.subr.mxu0 0.0
    %2181 = vmatpush1.xpose.msra.mxu0 0.0
    %2182 = vmatprep.subr.mxu0 0.0
    %2183 = vmatpush1.xpose.msra.mxu0 0.0
    %2184 = vmatprep.subr.mxu0 0.0
    %2185 = vmatpush1.xpose.msra.mxu0 0.0
    %2186 = vmatprep.subr.mxu0 0.0
    %2187 = vmatpush1.xpose.msra.mxu0 0.0
    %2188 = vmatprep.subr.mxu0 0.0
    %2189 = vmatpush1.xpose.msra.mxu0 0.0
    %2190 = vmatprep.subr.mxu0 0.0
    %2191 = vmatpush1.xpose.msra.mxu0 0.0
    %2192 = vmatprep.subr.mxu0 0.0
    %2193 = vmatpush1.xpose.msra.mxu0 0.0
    %2194 = vmatprep.subr.mxu0 0.0
    %2195 = vmatpush1.xpose.msra.mxu0 0.0
    %2196 = vmatprep.subr.mxu0 0.0
    %2197 = vmatpush1.xpose.msra.mxu0 0.0
    %2198 = vmatprep.subr.mxu0 0.0
    %2199 = vmatpush1.xpose.msra.mxu0 0.0
    %2200 = vmatprep.subr.mxu0 0.0
    %2201 = vmatpush1.xpose.msra.mxu0 0.0
    %2202 = vmatprep.subr.mxu0 0.0
    %2203 = vmatpush1.xpose.msra.mxu0 0.0
    %2204 = vmatprep.subr.mxu0 0.0
    %2205 = vmatpush1.xpose.msra.mxu0 0.0
    %2206 = vmatprep.subr.mxu0 0.0
    %2207 = vmatpush1.xpose.msra.mxu0 0.0
    %2208 = vmatprep.subr.mxu0 0.0
    %2209 = vmatpush1.xpose.msra.mxu0 0.0
    %2210 = vmatprep.subr.mxu0 0.0
    %2211 = vmatpush1.xpose.msra.mxu0 0.0
    %2212 = vmatprep.subr.mxu0 0.0
    %2213 = vmatpush1.xpose.msra.mxu0 0.0
    %2214 = vmatprep.subr.mxu0 0.0
    %2215 = vmatpush1.xpose.msra.mxu0 0.0
    %2216 = vmatprep.subr.mxu0 0.0
    %2217 = vmatpush1.xpose.msra.mxu0 0.0
    %2218 = vmatprep.subr.mxu0 0.0
    %2219 = vmatpush1.xpose.msra.mxu0 0.0
    %2220 = vmatprep.subr.mxu0 0.0
    %2221 = vmatpush1.xpose.msra.mxu0 0.0
    %2222 = vmatprep.subr.mxu0 0.0
    %2223 = vmatpush1.xpose.msra.mxu0 0.0
    %2224 = vmatprep.subr.mxu0 0.0
    %2225 = vmatpush1.xpose.msra.mxu0 0.0
    %2226 = vmatprep.subr.mxu0 0.0
    %2227 = vmatpush1.xpose.msra.mxu0 0.0
    %2228 = vmatprep.mubr.f32.mxu0 0.0
    %2229 = vmatmul.mubr.f32.gmra.mrb[0].mxu0 %v2156
    %v2230 = vpop.f32.mrb[0].mxu0
    %v2231 = vadd.f32 %v183, %v2230
    %v2232 = vpop.f32.mrb[0].mxu0
    %2233 = vmatprep.mubr.f32.mxu0 0.0
    %2234 = vmatmul.mubr.f32.gmra.mrb[0].mxu0 %v2158
    %v2235 = vpop.f32.mrb[0].mxu0
    %v2236 = vadd.f32 %v184, %v2235
    %v2237 = vpop.f32.mrb[0].mxu0
    %2238 = vdwg.mxu0
    %v2239 = vsel %vm645, %v2231, -inf
    %2240 = vmax.xlane.f32.xlu0 %v2239
    %v2241 = vpop.xlane.xlu0 %2240
    %v2242 = vsel %vm645, %v2236, -inf
    %2243 = vmax.xlane.f32.xlu0 %v2242
    %v2244 = vpop.xlane.xlu0 %2243
    %v2245 = vsub.f32 %v2231, %v2241
    %v2246 = vsub.f32 %v2236, %v2244
    %v2247 = vmul.f32 %v2245, 1.442695
    %v2248 = vpow.pop %v2247
    %v2249 = vmul.f32 %v2246, 1.442695
    %v2250 = vpow.pop %v2249
    %v2251 = vsel %vm645, %v2248, 0.0
    %2252 = vadd.xlane.f32.xlu0 %v2251
    %v2253 = vpop.xlane.xlu0 %2252
    %v2254 = vsel %vm645, %v2250, 0.0
    %2255 = vadd.xlane.f32.xlu0 %v2254
    %v2256 = vpop.xlane.xlu0 %2255
    %v2257 = vrcp.pop %v2253
    %v2258 = vrcp.pop %v2256
    %v2259 = vmul.f32 %v2248, %v2257
    %v2260 = vmul.f32 %v2250, %v2258
    %2261 = vrot.lane.b32.xlu0 %v1944, 88
    %v2262 = vpop.permute.xlu0 %2261
    %2263 = vrot.lane.b32.xlu0 %v1949, 88
    %v2264 = vpop.permute.xlu0 %2263
    %v2268 = vsel %vm645, %v2259, 0
    %v2271 = vsel %vm645, %v2260, 0
    %2273 = vmatprep.subr.mxu0 0.0
    %2274 = vmatpush1.msra.mxu0 %v2262
    %2275 = vmatprep.subr.mxu0 0.0
    %2276 = vmatpush1.msra.mxu0 %v2264
    %2277 = vmatprep.subr.mxu0 0.0
    %2278 = vmatpush1.msra.mxu0 0.0
    %2279 = vmatprep.subr.mxu0 0.0
    %2280 = vmatpush1.msra.mxu0 0.0
    %2281 = vmatprep.subr.mxu0 0.0
    %2282 = vmatpush1.msra.mxu0 0.0
    %2283 = vmatprep.subr.mxu0 0.0
    %2284 = vmatpush1.msra.mxu0 0.0
    %2285 = vmatprep.subr.mxu0 0.0
    %2286 = vmatpush1.msra.mxu0 0.0
    %2287 = vmatprep.subr.mxu0 0.0
    %2288 = vmatpush1.msra.mxu0 0.0
    %2289 = vmatprep.subr.mxu0 0.0
    %2290 = vmatpush1.msra.mxu0 0.0
    %2291 = vmatprep.subr.mxu0 0.0
    %2292 = vmatpush1.msra.mxu0 0.0
    %2293 = vmatprep.subr.mxu0 0.0
    %2294 = vmatpush1.msra.mxu0 0.0
    %2295 = vmatprep.subr.mxu0 0.0
    %2296 = vmatpush1.msra.mxu0 0.0
    %2297 = vmatprep.subr.mxu0 0.0
    %2298 = vmatpush1.msra.mxu0 0.0
    %2299 = vmatprep.subr.mxu0 0.0
    %2300 = vmatpush1.msra.mxu0 0.0
    %2301 = vmatprep.subr.mxu0 0.0
    %2302 = vmatpush1.msra.mxu0 0.0
    %2303 = vmatprep.subr.mxu0 0.0
    %2304 = vmatpush1.msra.mxu0 0.0
    %2305 = vmatprep.subr.mxu0 0.0
    %2306 = vmatpush1.msra.mxu0 0.0
    %2307 = vmatprep.subr.mxu0 0.0
    %2308 = vmatpush1.msra.mxu0 0.0
    %2309 = vmatprep.subr.mxu0 0.0
    %2310 = vmatpush1.msra.mxu0 0.0
    %2311 = vmatprep.subr.mxu0 0.0
    %2312 = vmatpush1.msra.mxu0 0.0
    %2313 = vmatprep.subr.mxu0 0.0
    %2314 = vmatpush1.msra.mxu0 0.0
    %2315 = vmatprep.subr.mxu0 0.0
    %2316 = vmatpush1.msra.mxu0 0.0
    %2317 = vmatprep.subr.mxu0 0.0
    %2318 = vmatpush1.msra.mxu0 0.0
    %2319 = vmatprep.subr.mxu0 0.0
    %2320 = vmatpush1.msra.mxu0 0.0
    %2321 = vmatprep.subr.mxu0 0.0
    %2322 = vmatpush1.msra.mxu0 0.0
    %2323 = vmatprep.subr.mxu0 0.0
    %2324 = vmatpush1.msra.mxu0 0.0
    %2325 = vmatprep.subr.mxu0 0.0
    %2326 = vmatpush1.msra.mxu0 0.0
    %2327 = vmatprep.subr.mxu0 0.0
    %2328 = vmatpush1.msra.mxu0 0.0
    %2329 = vmatprep.subr.mxu0 0.0
    %2330 = vmatpush1.msra.mxu0 0.0
    %2331 = vmatprep.subr.mxu0 0.0
    %2332 = vmatpush1.msra.mxu0 0.0
    %2333 = vmatprep.subr.mxu0 0.0
    %2334 = vmatpush1.msra.mxu0 0.0
    %2335 = vmatprep.subr.mxu0 0.0
    %2336 = vmatpush1.msra.mxu0 0.0
    %2337 = vmatprep.mubr.f32.mxu0 0.0
    %2338 = vmatmul.mubr.f32.gmra.mrb[0].mxu0 %v2268
    %v2339 = vpop.f32.mrb[0].mxu0
    %v2340 = vadd.f32 0.0, %v2339
    %v2341 = vpop.f32.mrb[0].mxu0
    %2342 = vmatprep.mubr.f32.mxu0 0.0
    %2343 = vmatmul.mubr.f32.gmra.mrb[0].mxu0 %v2271
    %v2344 = vpop.f32.mrb[0].mxu0
    %v2345 = vadd.f32 0.0, %v2344
    %v2346 = vpop.f32.mrb[0].mxu0
    %2347 = vdwg.mxu0
    %2348 = vrot.lane.b32.xlu0 %v1862, 112
    %v2349 = vpop.permute.xlu0 %2348
    %2350 = vrot.lane.b32.xlu0 %v1863, 112
    %v2351 = vpop.permute.xlu0 %2350
    %2352 = vrot.lane.b32.xlu0 %v1944, 112
    %v2353 = vpop.permute.xlu0 %2352
    %2354 = vrot.lane.b32.xlu0 %v1949, 112
    %v2355 = vpop.permute.xlu0 %2354
    %v2356 = vsel %vm557, %v2349, 0
    %v2358 = vsel %vm557, %v2351, 0
    %v2360 = vsel %vm557, %v2353, 0
    %v2362 = vsel %vm557, %v2355, 0
    %2364 = vmatprep.subr.mxu0 0.0
    %2365 = vmatpush1.xpose.msra.mxu0 %v2360
    %2366 = vmatprep.subr.mxu0 0.0
    %2367 = vmatpush1.xpose.msra.mxu0 %v2362
    %2368 = vmatprep.subr.mxu0 0.0
    %2369 = vmatpush1.xpose.msra.mxu0 0.0
    %2370 = vmatprep.subr.mxu0 0.0
    %2371 = vmatpush1.xpose.msra.mxu0 0.0
    %2372 = vmatprep.subr.mxu0 0.0
    %2373 = vmatpush1.xpose.msra.mxu0 0.0
    %2374 = vmatprep.subr.mxu0 0.0
    %2375 = vmatpush1.xpose.msra.mxu0 0.0
    %2376 = vmatprep.subr.mxu0 0.0
    %2377 = vmatpush1.xpose.msra.mxu0 0.0
    %2378 = vmatprep.subr.mxu0 0.0
    %2379 = vmatpush1.xpose.msra.mxu0 0.0
    %2380 = vmatprep.subr.mxu0 0.0
    %2381 = vmatpush1.xpose.msra.mxu0 0.0
    %2382 = vmatprep.subr.mxu0 0.0
    %2383 = vmatpush1.xpose.msra.mxu0 0.0
    %2384 = vmatprep.subr.mxu0 0.0
    %2385 = vmatpush1.xpose.msra.mxu0 0.0
    %2386 = vmatprep.subr.mxu0 0.0
    %2387 = vmatpush1.xpose.msra.mxu0 0.0
    %2388 = vmatprep.subr.mxu0 0.0
    %2389 = vmatpush1.xpose.msra.mxu0 0.0
    %2390 = vmatprep.subr.mxu0 0.0
    %2391 = vmatpush1.xpose.msra.mxu0 0.0
    %2392 = vmatprep.subr.mxu0 0.0
    %2393 = vmatpush1.xpose.msra.mxu0 0.0
    %2394 = vmatprep.subr.mxu0 0.0
    %2395 = vmatpush1.xpose.msra.mxu0 0.0
    %2396 = vmatprep.subr.mxu0 0.0
    %2397 = vmatpush1.xpose.msra.mxu0 0.0
    %2398 = vmatprep.subr.mxu0 0.0
    %2399 = vmatpush1.xpose.msra.mxu0 0.0
    %2400 = vmatprep.subr.mxu0 0.0
    %2401 = vmatpush1.xpose.msra.mxu0 0.0
    %2402 = vmatprep.subr.mxu0 0.0
    %2403 = vmatpush1.xpose.msra.mxu0 0.0
    %2404 = vmatprep.subr.mxu0 0.0
    %2405 = vmatpush1.xpose.msra.mxu0 0.0
    %2406 = vmatprep.subr.mxu0 0.0
    %2407 = vmatpush1.xpose.msra.mxu0 0.0
    %2408 = vmatprep.subr.mxu0 0.0
    %2409 = vmatpush1.xpose.msra.mxu0 0.0
    %2410 = vmatprep.subr.mxu0 0.0
    %2411 = vmatpush1.xpose.msra.mxu0 0.0
    %2412 = vmatprep.subr.mxu0 0.0
    %2413 = vmatpush1.xpose.msra.mxu0 0.0
    %2414 = vmatprep.subr.mxu0 0.0
    %2415 = vmatpush1.xpose.msra.mxu0 0.0
    %2416 = vmatprep.subr.mxu0 0.0
    %2417 = vmatpush1.xpose.msra.mxu0 0.0
    %2418 = vmatprep.subr.mxu0 0.0
    %2419 = vmatpush1.xpose.msra.mxu0 0.0
    %2420 = vmatprep.subr.mxu0 0.0
    %2421 = vmatpush1.xpose.msra.mxu0 0.0
    %2422 = vmatprep.subr.mxu0 0.0
    %2423 = vmatpush1.xpose.msra.mxu0 0.0
    %2424 = vmatprep.subr.mxu0 0.0
    %2425 = vmatpush1.xpose.msra.mxu0 0.0
    %2426 = vmatprep.subr.mxu0 0.0
    %2427 = vmatpush1.xpose.msra.mxu0 0.0
    %2428 = vmatprep.mubr.f32.mxu0 0.0
    %2429 = vmatmul.mubr.f32.gmra.mrb[0].mxu0 %v2356
    %v2430 = vpop.f32.mrb[0].mxu0
    %v2431 = vadd.f32 %v183, %v2430
    %v2432 = vpop.f32.mrb[0].mxu0
    %2433 = vmatprep.mubr.f32.mxu0 0.0
    %2434 = vmatmul.mubr.f32.gmra.mrb[0].mxu0 %v2358
    %v2435 = vpop.f32.mrb[0].mxu0
    %v2436 = vadd.f32 %v184, %v2435
    %v2437 = vpop.f32.mrb[0].mxu0
    %2438 = vdwg.mxu0
    %v2439 = vsel %vm645, %v2431, -inf
    %2440 = vmax.xlane.f32.xlu0 %v2439
    %v2441 = vpop.xlane.xlu0 %2440
    %v2442 = vsel %vm645, %v2436, -inf
    %2443 = vmax.xlane.f32.xlu0 %v2442
    %v2444 = vpop.xlane.xlu0 %2443
    %v2445 = vsub.f32 %v2431, %v2441
    %v2446 = vsub.f32 %v2436, %v2444
    %v2447 = vmul.f32 %v2445, 1.442695
    %v2448 = vpow.pop %v2447
    %v2449 = vmul.f32 %v2446, 1.442695
    %v2450 = vpow.pop %v2449
    %v2451 = vsel %vm645, %v2448, 0.0
    %2452 = vadd.xlane.f32.xlu0 %v2451
    %v2453 = vpop.xlane.xlu0 %2452
    %v2454 = vsel %vm645, %v2450, 0.0
    %2455 = vadd.xlane.f32.xlu0 %v2454
    %v2456 = vpop.xlane.xlu0 %2455
    %v2457 = vrcp.pop %v2453
    %v2458 = vrcp.pop %v2456
    %v2459 = vmul.f32 %v2448, %v2457
    %v2460 = vmul.f32 %v2450, %v2458
    %2461 = vrot.lane.b32.xlu0 %v1944, 80
    %v2462 = vpop.permute.xlu0 %2461
    %2463 = vrot.lane.b32.xlu0 %v1949, 80
    %v2464 = vpop.permute.xlu0 %2463
    %v2468 = vsel %vm645, %v2459, 0
    %v2471 = vsel %vm645, %v2460, 0
    %2473 = vmatprep.subr.mxu0 0.0
    %2474 = vmatpush1.msra.mxu0 %v2462
    %2475 = vmatprep.subr.mxu0 0.0
    %2476 = vmatpush1.msra.mxu0 %v2464
    %2477 = vmatprep.subr.mxu0 0.0
    %2478 = vmatpush1.msra.mxu0 0.0
    %2479 = vmatprep.subr.mxu0 0.0
    %2480 = vmatpush1.msra.mxu0 0.0
    %2481 = vmatprep.subr.mxu0 0.0
    %2482 = vmatpush1.msra.mxu0 0.0
    %2483 = vmatprep.subr.mxu0 0.0
    %2484 = vmatpush1.msra.mxu0 0.0
    %2485 = vmatprep.subr.mxu0 0.0
    %2486 = vmatpush1.msra.mxu0 0.0
    %2487 = vmatprep.subr.mxu0 0.0
    %2488 = vmatpush1.msra.mxu0 0.0
    %2489 = vmatprep.subr.mxu0 0.0
    %2490 = vmatpush1.msra.mxu0 0.0
    %2491 = vmatprep.subr.mxu0 0.0
    %2492 = vmatpush1.msra.mxu0 0.0
    %2493 = vmatprep.subr.mxu0 0.0
    %2494 = vmatpush1.msra.mxu0 0.0
    %2495 = vmatprep.subr.mxu0 0.0
    %2496 = vmatpush1.msra.mxu0 0.0
    %2497 = vmatprep.subr.mxu0 0.0
    %2498 = vmatpush1.msra.mxu0 0.0
    %2499 = vmatprep.subr.mxu0 0.0
    %2500 = vmatpush1.msra.mxu0 0.0
    %2501 = vmatprep.subr.mxu0 0.0
    %2502 = vmatpush1.msra.mxu0 0.0
    %2503 = vmatprep.subr.mxu0 0.0
    %2504 = vmatpush1.msra.mxu0 0.0
    %2505 = vmatprep.subr.mxu0 0.0
    %2506 = vmatpush1.msra.mxu0 0.0
    %2507 = vmatprep.subr.mxu0 0.0
    %2508 = vmatpush1.msra.mxu0 0.0
    %2509 = vmatprep.subr.mxu0 0.0
    %2510 = vmatpush1.msra.mxu0 0.0
    %2511 = vmatprep.subr.mxu0 0.0
    %2512 = vmatpush1.msra.mxu0 0.0
    %2513 = vmatprep.subr.mxu0 0.0
    %2514 = vmatpush1.msra.mxu0 0.0
    %2515 = vmatprep.subr.mxu0 0.0
    %2516 = vmatpush1.msra.mxu0 0.0
    %2517 = vmatprep.subr.mxu0 0.0
    %2518 = vmatpush1.msra.mxu0 0.0
    %2519 = vmatprep.subr.mxu0 0.0
    %2520 = vmatpush1.msra.mxu0 0.0
    %2521 = vmatprep.subr.mxu0 0.0
    %2522 = vmatpush1.msra.mxu0 0.0
    %2523 = vmatprep.subr.mxu0 0.0
    %2524 = vmatpush1.msra.mxu0 0.0
    %2525 = vmatprep.subr.mxu0 0.0
    %2526 = vmatpush1.msra.mxu0 0.0
    %2527 = vmatprep.subr.mxu0 0.0
    %2528 = vmatpush1.msra.mxu0 0.0
    %2529 = vmatprep.subr.mxu0 0.0
    %2530 = vmatpush1.msra.mxu0 0.0
    %2531 = vmatprep.subr.mxu0 0.0
    %2532 = vmatpush1.msra.mxu0 0.0
    %2533 = vmatprep.subr.mxu0 0.0
    %2534 = vmatpush1.msra.mxu0 0.0
    %2535 = vmatprep.subr.mxu0 0.0
    %2536 = vmatpush1.msra.mxu0 0.0
    %2537 = vmatprep.mubr.f32.mxu0 0.0
    %2538 = vmatmul.mubr.f32.gmra.mrb[0].mxu0 %v2468
    %v2539 = vpop.f32.mrb[0].mxu0
    %v2540 = vadd.f32 0.0, %v2539
    %v2541 = vpop.f32.mrb[0].mxu0
    %2542 = vmatprep.mubr.f32.mxu0 0.0
    %2543 = vmatmul.mubr.f32.gmra.mrb[0].mxu0 %v2471
    %v2544 = vpop.f32.mrb[0].mxu0
    %v2545 = vadd.f32 0.0, %v2544
    %v2546 = vpop.f32.mrb[0].mxu0
    %2547 = vdwg.mxu0
    %2548 = vrot.lane.b32.xlu0 %v1862, 104
    %v2549 = vpop.permute.xlu0 %2548
    %2550 = vrot.lane.b32.xlu0 %v1863, 104
    %v2551 = vpop.permute.xlu0 %2550
    %2552 = vrot.lane.b32.xlu0 %v1944, 104
    %v2553 = vpop.permute.xlu0 %2552
    %2554 = vrot.lane.b32.xlu0 %v1949, 104
    %v2555 = vpop.permute.xlu0 %2554
    %v2556 = vsel %vm557, %v2549, 0
    %v2558 = vsel %vm557, %v2551, 0
    %v2560 = vsel %vm557, %v2553, 0
    %v2562 = vsel %vm557, %v2555, 0
    %2564 = vmatprep.subr.mxu0 0.0
    %2565 = vmatpush1.xpose.msra.mxu0 %v2560
    %2566 = vmatprep.subr.mxu0 0.0
    %2567 = vmatpush1.xpose.msra.mxu0 %v2562
    %2568 = vmatprep.subr.mxu0 0.0
    %2569 = vmatpush1.xpose.msra.mxu0 0.0
    %2570 = vmatprep.subr.mxu0 0.0
    %2571 = vmatpush1.xpose.msra.mxu0 0.0
    %2572 = vmatprep.subr.mxu0 0.0
    %2573 = vmatpush1.xpose.msra.mxu0 0.0
    %2574 = vmatprep.subr.mxu0 0.0
    %2575 = vmatpush1.xpose.msra.mxu0 0.0
    %2576 = vmatprep.subr.mxu0 0.0
    %2577 = vmatpush1.xpose.msra.mxu0 0.0
    %2578 = vmatprep.subr.mxu0 0.0
    %2579 = vmatpush1.xpose.msra.mxu0 0.0
    %2580 = vmatprep.subr.mxu0 0.0
    %2581 = vmatpush1.xpose.msra.mxu0 0.0
    %2582 = vmatprep.subr.mxu0 0.0
    %2583 = vmatpush1.xpose.msra.mxu0 0.0
    %2584 = vmatprep.subr.mxu0 0.0
    %2585 = vmatpush1.xpose.msra.mxu0 0.0
    %2586 = vmatprep.subr.mxu0 0.0
    %2587 = vmatpush1.xpose.msra.mxu0 0.0
    %2588 = vmatprep.subr.mxu0 0.0
    %2589 = vmatpush1.xpose.msra.mxu0 0.0
    %2590 = vmatprep.subr.mxu0 0.0
    %2591 = vmatpush1.xpose.msra.mxu0 0.0
    %2592 = vmatprep.subr.mxu0 0.0
    %2593 = vmatpush1.xpose.msra.mxu0 0.0
    %2594 = vmatprep.subr.mxu0 0.0
    %2595 = vmatpush1.xpose.msra.mxu0 0.0
    %2596 = vmatprep.subr.mxu0 0.0
    %2597 = vmatpush1.xpose.msra.mxu0 0.0
    %2598 = vmatprep.subr.mxu0 0.0
    %2599 = vmatpush1.xpose.msra.mxu0 0.0
    %2600 = vmatprep.subr.mxu0 0.0
    %2601 = vmatpush1.xpose.msra.mxu0 0.0
    %2602 = vmatprep.subr.mxu0 0.0
    %2603 = vmatpush1.xpose.msra.mxu0 0.0
    %2604 = vmatprep.subr.mxu0 0.0
    %2605 = vmatpush1.xpose.msra.mxu0 0.0
    %2606 = vmatprep.subr.mxu0 0.0
    %2607 = vmatpush1.xpose.msra.mxu0 0.0
    %2608 = vmatprep.subr.mxu0 0.0
    %2609 = vmatpush1.xpose.msra.mxu0 0.0
    %2610 = vmatprep.subr.mxu0 0.0
    %2611 = vmatpush1.xpose.msra.mxu0 0.0
    %2612 = vmatprep.subr.mxu0 0.0
    %2613 = vmatpush1.xpose.msra.mxu0 0.0
    %2614 = vmatprep.subr.mxu0 0.0
    %2615 = vmatpush1.xpose.msra.mxu0 0.0
    %2616 = vmatprep.subr.mxu0 0.0
    %2617 = vmatpush1.xpose.msra.mxu0 0.0
    %2618 = vmatprep.subr.mxu0 0.0
    %2619 = vmatpush1.xpose.msra.mxu0 0.0
    %2620 = vmatprep.subr.mxu0 0.0
    %2621 = vmatpush1.xpose.msra.mxu0 0.0
    %2622 = vmatprep.subr.mxu0 0.0
    %2623 = vmatpush1.xpose.msra.mxu0 0.0
    %2624 = vmatprep.subr.mxu0 0.0
    %2625 = vmatpush1.xpose.msra.mxu0 0.0
    %2626 = vmatprep.subr.mxu0 0.0
    %2627 = vmatpush1.xpose.msra.mxu0 0.0
    %2628 = vmatprep.mubr.f32.mxu0 0.0
    %2629 = vmatmul.mubr.f32.gmra.mrb[0].mxu0 %v2556
    %v2630 = vpop.f32.mrb[0].mxu0
    %v2631 = vadd.f32 %v183, %v2630
    %v2632 = vpop.f32.mrb[0].mxu0
    %2633 = vmatprep.mubr.f32.mxu0 0.0
    %2634 = vmatmul.mubr.f32.gmra.mrb[0].mxu0 %v2558
    %v2635 = vpop.f32.mrb[0].mxu0
    %v2636 = vadd.f32 %v184, %v2635
    %v2637 = vpop.f32.mrb[0].mxu0
    %2638 = vdwg.mxu0
    %v2639 = vsel %vm645, %v2631, -inf
    %2640 = vmax.xlane.f32.xlu0 %v2639
    %v2641 = vpop.xlane.xlu0 %2640
    %v2642 = vsel %vm645, %v2636, -inf
    %2643 = vmax.xlane.f32.xlu0 %v2642
    %v2644 = vpop.xlane.xlu0 %2643
    %v2645 = vsub.f32 %v2631, %v2641
    %v2646 = vsub.f32 %v2636, %v2644
    %v2647 = vmul.f32 %v2645, 1.442695
    %v2648 = vpow.pop %v2647
    %v2649 = vmul.f32 %v2646, 1.442695
    %v2650 = vpow.pop %v2649
    %v2651 = vsel %vm645, %v2648, 0.0
    %2652 = vadd.xlane.f32.xlu0 %v2651
    %v2653 = vpop.xlane.xlu0 %2652
    %v2654 = vsel %vm645, %v2650, 0.0
    %2655 = vadd.xlane.f32.xlu0 %v2654
    %v2656 = vpop.xlane.xlu0 %2655
    %v2657 = vrcp.pop %v2653
    %v2658 = vrcp.pop %v2656
    %v2659 = vmul.f32 %v2648, %v2657
    %v2660 = vmul.f32 %v2650, %v2658
    %2661 = vrot.lane.b32.xlu0 %v1944, 72
    %v2662 = vpop.permute.xlu0 %2661
    %2663 = vrot.lane.b32.xlu0 %v1949, 72
    %v2664 = vpop.permute.xlu0 %2663
    %v2668 = vsel %vm645, %v2659, 0
    %v2671 = vsel %vm645, %v2660, 0
    %2673 = vmatprep.subr.mxu0 0.0
    %2674 = vmatpush1.msra.mxu0 %v2662
    %2675 = vmatprep.subr.mxu0 0.0
    %2676 = vmatpush1.msra.mxu0 %v2664
    %2677 = vmatprep.subr.mxu0 0.0
    %2678 = vmatpush1.msra.mxu0 0.0
    %2679 = vmatprep.subr.mxu0 0.0
    %2680 = vmatpush1.msra.mxu0 0.0
    %2681 = vmatprep.subr.mxu0 0.0
    %2682 = vmatpush1.msra.mxu0 0.0
    %2683 = vmatprep.subr.mxu0 0.0
    %2684 = vmatpush1.msra.mxu0 0.0
    %2685 = vmatprep.subr.mxu0 0.0
    %2686 = vmatpush1.msra.mxu0 0.0
    %2687 = vmatprep.subr.mxu0 0.0
    %2688 = vmatpush1.msra.mxu0 0.0
    %2689 = vmatprep.subr.mxu0 0.0
    %2690 = vmatpush1.msra.mxu0 0.0
    %2691 = vmatprep.subr.mxu0 0.0
    %2692 = vmatpush1.msra.mxu0 0.0
    %2693 = vmatprep.subr.mxu0 0.0
    %2694 = vmatpush1.msra.mxu0 0.0
    %2695 = vmatprep.subr.mxu0 0.0
    %2696 = vmatpush1.msra.mxu0 0.0
    %2697 = vmatprep.subr.mxu0 0.0
    %2698 = vmatpush1.msra.mxu0 0.0
    %2699 = vmatprep.subr.mxu0 0.0
    %2700 = vmatpush1.msra.mxu0 0.0
    %2701 = vmatprep.subr.mxu0 0.0
    %2702 = vmatpush1.msra.mxu0 0.0
    %2703 = vmatprep.subr.mxu0 0.0
    %2704 = vmatpush1.msra.mxu0 0.0
    %2705 = vmatprep.subr.mxu0 0.0
    %2706 = vmatpush1.msra.mxu0 0.0
    %2707 = vmatprep.subr.mxu0 0.0
    %2708 = vmatpush1.msra.mxu0 0.0
    %2709 = vmatprep.subr.mxu0 0.0
    %2710 = vmatpush1.msra.mxu0 0.0
    %2711 = vmatprep.subr.mxu0 0.0
    %2712 = vmatpush1.msra.mxu0 0.0
    %2713 = vmatprep.subr.mxu0 0.0
    %2714 = vmatpush1.msra.mxu0 0.0
    %2715 = vmatprep.subr.mxu0 0.0
    %2716 = vmatpush1.msra.mxu0 0.0
    %2717 = vmatprep.subr.mxu0 0.0
    %2718 = vmatpush1.msra.mxu0 0.0
    %2719 = vmatprep.subr.mxu0 0.0
    %2720 = vmatpush1.msra.mxu0 0.0
    %2721 = vmatprep.subr.mxu0 0.0
    %2722 = vmatpush1.msra.mxu0 0.0
    %2723 = vmatprep.subr.mxu0 0.0
    %2724 = vmatpush1.msra.mxu0 0.0
    %2725 = vmatprep.subr.mxu0 0.0
    %2726 = vmatpush1.msra.mxu0 0.0
    %2727 = vmatprep.subr.mxu0 0.0
    %2728 = vmatpush1.msra.mxu0 0.0
    %2729 = vmatprep.subr.mxu0 0.0
    %2730 = vmatpush1.msra.mxu0 0.0
    %2731 = vmatprep.subr.mxu0 0.0
    %2732 = vmatpush1.msra.mxu0 0.0
    %2733 = vmatprep.subr.mxu0 0.0
    %2734 = vmatpush1.msra.mxu0 0.0
    %2735 = vmatprep.subr.mxu0 0.0
    %2736 = vmatpush1.msra.mxu0 0.0
    %2737 = vmatprep.mubr.f32.mxu0 0.0
    %2738 = vmatmul.mubr.f32.gmra.mrb[0].mxu0 %v2668
    %v2739 = vpop.f32.mrb[0].mxu0
    %v2740 = vadd.f32 0.0, %v2739
    %v2741 = vpop.f32.mrb[0].mxu0
    %2742 = vmatprep.mubr.f32.mxu0 0.0
    %2743 = vmatmul.mubr.f32.gmra.mrb[0].mxu0 %v2671
    %v2744 = vpop.f32.mrb[0].mxu0
    %v2745 = vadd.f32 0.0, %v2744
    %v2746 = vpop.f32.mrb[0].mxu0
    %2747 = vdwg.mxu0
    %2750 = vrot.lane.b32.xlu0 %v2340, 8
    %v2751 = vpop.permute.xlu0 %2750
    %2752 = vrot.lane.b32.xlu0 %v2345, 8
    %v2753 = vpop.permute.xlu0 %2752
    %2758 = vrot.lane.b32.xlu0 %v2540, 16
    %v2759 = vpop.permute.xlu0 %2758
    %2760 = vrot.lane.b32.xlu0 %v2545, 16
    %v2761 = vpop.permute.xlu0 %2760
    %2766 = vrot.lane.b32.xlu0 %v2740, 24
    %v2767 = vpop.permute.xlu0 %2766
    %2768 = vrot.lane.b32.xlu0 %v2745, 24
    %v2769 = vpop.permute.xlu0 %2768
    %v2772 = vsel %vm557, %v2140, %v2751
    %v2773 = vsel %vm557, %v2145, %v2753
    %v2774 = vsel %vm645, %v2772, %v2759
    %v2775 = vsel %vm645, %v2773, %v2761
    %v2776 = vsel %vm1383, %v2774, %v2767
    %v2777 = vsel %vm1383, %v2775, %v2769
    %s2778 = scalar_lea.vmem %s11, 32
    %v2779 = vld [vmem:[%s2778] sm:$0xff]
    %v2780 = vld [vmem:[%s2778 + $0x8] sm:$0xff]
    %v2781 = vld [vmem:[%s2778 + $0x10] sm:$0xff]
    %v2782 = vld [vmem:[%s2778 + $0x18] sm:$0xff]
    %s2783 = scalar_lea.vmem %s15, 3
    %v2784 = vld [vmem:[%s2783] sm:$0x1]
    %v2786 = vlaneseq
    %v2787 = vshrl.u32 %v2786, 7
    %v2788 = vsub.s32 0, %v2787
    %v2789 = vrot.slane %v2784, %v2788
    %v2792 = vsel %vm387, %v2776, 0
    %v2795 = vsel %vm387, %v2777, 0
    %2797 = vmatprep.subr.mxu0 0.0
    %2798 = vmatpush1.msra.mxu0 %v2779
    %2799 = vmatprep.subr.mxu0 0.0
    %2800 = vmatpush1.msra.mxu0 %v2780
    %2801 = vmatprep.subr.mxu0 0.0
    %2802 = vmatpush1.msra.mxu0 %v2781
    %2803 = vmatprep.subr.mxu0 0.0
    %2804 = vmatpush1.msra.mxu0 %v2782
    %2805 = vmatprep.subr.mxu0 0.0
    %2806 = vmatpush1.msra.mxu0 0.0
    %2807 = vmatprep.subr.mxu0 0.0
    %2808 = vmatpush1.msra.mxu0 0.0
    %2809 = vmatprep.subr.mxu0 0.0
    %2810 = vmatpush1.msra.mxu0 0.0
    %2811 = vmatprep.subr.mxu0 0.0
    %2812 = vmatpush1.msra.mxu0 0.0
    %2813 = vmatprep.subr.mxu0 0.0
    %2814 = vmatpush1.msra.mxu0 0.0
    %2815 = vmatprep.subr.mxu0 0.0
    %2816 = vmatpush1.msra.mxu0 0.0
    %2817 = vmatprep.subr.mxu0 0.0
    %2818 = vmatpush1.msra.mxu0 0.0
    %2819 = vmatprep.subr.mxu0 0.0
    %2820 = vmatpush1.msra.mxu0 0.0
    %2821 = vmatprep.subr.mxu0 0.0
    %2822 = vmatpush1.msra.mxu0 0.0
    %2823 = vmatprep.subr.mxu0 0.0
    %2824 = vmatpush1.msra.mxu0 0.0
    %2825 = vmatprep.subr.mxu0 0.0
    %2826 = vmatpush1.msra.mxu0 0.0
    %2827 = vmatprep.subr.mxu0 0.0
    %2828 = vmatpush1.msra.mxu0 0.0
    %2829 = vmatprep.subr.mxu0 0.0
    %2830 = vmatpush1.msra.mxu0 0.0
    %2831 = vmatprep.subr.mxu0 0.0
    %2832 = vmatpush1.msra.mxu0 0.0
    %2833 = vmatprep.subr.mxu0 0.0
    %2834 = vmatpush1.msra.mxu0 0.0
    %2835 = vmatprep.subr.mxu0 0.0
    %2836 = vmatpush1.msra.mxu0 0.0
    %2837 = vmatprep.subr.mxu0 0.0
    %2838 = vmatpush1.msra.mxu0 0.0
    %2839 = vmatprep.subr.mxu0 0.0
    %2840 = vmatpush1.msra.mxu0 0.0
    %2841 = vmatprep.subr.mxu0 0.0
    %2842 = vmatpush1.msra.mxu0 0.0
    %2843 = vmatprep.subr.mxu0 0.0
    %2844 = vmatpush1.msra.mxu0 0.0
    %2845 = vmatprep.subr.mxu0 0.0
    %2846 = vmatpush1.msra.mxu0 0.0
    %2847 = vmatprep.subr.mxu0 0.0
    %2848 = vmatpush1.msra.mxu0 0.0
    %2849 = vmatprep.subr.mxu0 0.0
    %2850 = vmatpush1.msra.mxu0 0.0
    %2851 = vmatprep.subr.mxu0 0.0
    %2852 = vmatpush1.msra.mxu0 0.0
    %2853 = vmatprep.subr.mxu0 0.0
    %2854 = vmatpush1.msra.mxu0 0.0
    %2855 = vmatprep.subr.mxu0 0.0
    %2856 = vmatpush1.msra.mxu0 0.0
    %2857 = vmatprep.subr.mxu0 0.0
    %2858 = vmatpush1.msra.mxu0 0.0
    %2859 = vmatprep.subr.mxu0 0.0
    %2860 = vmatpush1.msra.mxu0 0.0
    %2861 = vmatprep.mubr.f32.mxu0 0.0
    %2862 = vmatmul.mubr.f32.gmra.mrb[0].mxu0 %v2792
    %v2863 = vpop.f32.mrb[0].mxu0
    %v2864 = vadd.f32 %v2789, %v2863
    %v2865 = vpop.f32.mrb[0].mxu0
    %2866 = vmatprep.mubr.f32.mxu0 0.0
    %2867 = vmatmul.mubr.f32.gmra.mrb[0].mxu0 %v2795
    %v2868 = vpop.f32.mrb[0].mxu0
    %v2869 = vadd.f32 %v2789, %v2868
    %v2870 = vpop.f32.mrb[0].mxu0
    %2871 = vdwg.mxu0
    %v2872 = vadd.f32 %v1766, %v2864
    %v2873 = vadd.f32 %v1767, %v2869
    %v2874 = vsel %vm387, %v2872, 0.0
    %2875 = vadd.xlane.f32.xlu0 %v2874
    %v2876 = vpop.xlane.xlu0 %2875
    %v2877 = vsel %vm387, %v2873, 0.0
    %2878 = vadd.xlane.f32.xlu0 %v2877
    %v2879 = vpop.xlane.xlu0 %2878
    %v2880 = vmul.f32 %v2876, %v1487
    %v2881 = vmul.f32 %v2879, %v1487
    %v2882 = vsub.f32 %v2872, %v2880
    %v2883 = vsub.f32 %v2873, %v2881
    %v2884 = vmul.f32 %v2882, %v2882
    %v2885 = vmul.f32 %v2883, %v2883
    %v2886 = vsel %vm387, %v2884, 0.0
    %2887 = vadd.xlane.f32.xlu0 %v2886
    %v2888 = vpop.xlane.xlu0 %2887
    %v2889 = vsel %vm387, %v2885, 0.0
    %2890 = vadd.xlane.f32.xlu0 %v2889
    %v2891 = vpop.xlane.xlu0 %2890
    %v2892 = vmul.f32 %v2888, %v1487
    %v2893 = vmul.f32 %v2891, %v1487
    %v2894 = vadd.f32 %v2892, 1e-05
    %v2895 = vadd.f32 %v2893, 1e-05
    %v2896 = vrsqrt.pop %v2894
    %v2897 = vrsqrt.pop %v2895
    %v2898 = vmul.f32 %v2882, %v2896
    %v2899 = vmul.f32 %v2883, %v2897
    %s2900 = scalar_lea.vmem %s15, 12
    %v2901 = vld [vmem:[%s2900] sm:$0x1]
    %v2903 = vlaneseq
    %v2904 = vshrl.u32 %v2903, 7
    %v2905 = vsub.s32 0, %v2904
    %v2906 = vrot.slane %v2901, %v2905
    %v2908 = vmul.f32 %v2898, %v2906
    %v2909 = vmul.f32 %v2899, %v2906
    %s2910 = scalar_lea.vmem %s15, 13
    %v2911 = vld [vmem:[%s2910] sm:$0x1]
    %v2913 = vlaneseq
    %v2914 = vshrl.u32 %v2913, 7
    %v2915 = vsub.s32 0, %v2914
    %v2916 = vrot.slane %v2911, %v2915
    %v2918 = vadd.f32 %v2908, %v2916
    %v2919 = vadd.f32 %v2909, %v2916
    %s2920 = scalar_lea.vmem [#allocation11], 32
    %v2921 = vld [vmem:[%s2920] sm:$0xff]
    %v2922 = vld [vmem:[%s2920 + $0x8] sm:$0xff]
    %v2923 = vld [vmem:[%s2920 + $0x10] sm:$0xff]
    %v2924 = vld [vmem:[%s2920 + $0x18] sm:$0xff]
    %s2925 = scalar_lea.vmem [#allocation13], 1
    %v2926 = vld [vmem:[%s2925] sm:$0x1]
    %v2928 = vlaneseq
    %v2929 = vshrl.u32 %v2928, 7
    %v2930 = vsub.s32 0, %v2929
    %v2931 = vrot.slane %v2926, %v2930
    %v2934 = vsel %vm387, %v2918, 0
    %v2937 = vsel %vm387, %v2919, 0
    %2939 = vmatprep.subr.mxu0 0.0
    %2940 = vmatpush1.msra.mxu0 %v2921
    %2941 = vmatprep.subr.mxu0 0.0
    %2942 = vmatpush1.msra.mxu0 %v2922
    %2943 = vmatprep.subr.mxu0 0.0
    %2944 = vmatpush1.msra.mxu0 %v2923
    %2945 = vmatprep.subr.mxu0 0.0
    %2946 = vmatpush1.msra.mxu0 %v2924
    %2947 = vmatprep.subr.mxu0 0.0
    %2948 = vmatpush1.msra.mxu0 0.0
    %2949 = vmatprep.subr.mxu0 0.0
    %2950 = vmatpush1.msra.mxu0 0.0
    %2951 = vmatprep.subr.mxu0 0.0
    %2952 = vmatpush1.msra.mxu0 0.0
    %2953 = vmatprep.subr.mxu0 0.0
    %2954 = vmatpush1.msra.mxu0 0.0
    %2955 = vmatprep.subr.mxu0 0.0
    %2956 = vmatpush1.msra.mxu0 0.0
    %2957 = vmatprep.subr.mxu0 0.0
    %2958 = vmatpush1.msra.mxu0 0.0
    %2959 = vmatprep.subr.mxu0 0.0
    %2960 = vmatpush1.msra.mxu0 0.0
    %2961 = vmatprep.subr.mxu0 0.0
    %2962 = vmatpush1.msra.mxu0 0.0
    %2963 = vmatprep.subr.mxu0 0.0
    %2964 = vmatpush1.msra.mxu0 0.0
    %2965 = vmatprep.subr.mxu0 0.0
    %2966 = vmatpush1.msra.mxu0 0.0
    %2967 = vmatprep.subr.mxu0 0.0
    %2968 = vmatpush1.msra.mxu0 0.0
    %2969 = vmatprep.subr.mxu0 0.0
    %2970 = vmatpush1.msra.mxu0 0.0
    %2971 = vmatprep.subr.mxu0 0.0
    %2972 = vmatpush1.msra.mxu0 0.0
    %2973 = vmatprep.subr.mxu0 0.0
    %2974 = vmatpush1.msra.mxu0 0.0
    %2975 = vmatprep.subr.mxu0 0.0
    %2976 = vmatpush1.msra.mxu0 0.0
    %2977 = vmatprep.subr.mxu0 0.0
    %2978 = vmatpush1.msra.mxu0 0.0
    %2979 = vmatprep.subr.mxu0 0.0
    %2980 = vmatpush1.msra.mxu0 0.0
    %2981 = vmatprep.subr.mxu0 0.0
    %2982 = vmatpush1.msra.mxu0 0.0
    %2983 = vmatprep.subr.mxu0 0.0
    %2984 = vmatpush1.msra.mxu0 0.0
    %2985 = vmatprep.subr.mxu0 0.0
    %2986 = vmatpush1.msra.mxu0 0.0
    %2987 = vmatprep.subr.mxu0 0.0
    %2988 = vmatpush1.msra.mxu0 0.0
    %2989 = vmatprep.subr.mxu0 0.0
    %2990 = vmatpush1.msra.mxu0 0.0
    %2991 = vmatprep.subr.mxu0 0.0
    %2992 = vmatpush1.msra.mxu0 0.0
    %2993 = vmatprep.subr.mxu0 0.0
    %2994 = vmatpush1.msra.mxu0 0.0
    %2995 = vmatprep.subr.mxu0 0.0
    %2996 = vmatpush1.msra.mxu0 0.0
    %2997 = vmatprep.subr.mxu0 0.0
    %2998 = vmatpush1.msra.mxu0 0.0
    %2999 = vmatprep.subr.mxu0 0.0
    %3000 = vmatpush1.msra.mxu0 0.0
    %3001 = vmatprep.subr.mxu0 0.0
    %3002 = vmatpush1.msra.mxu0 0.0
    %3003 = vmatprep.mubr.f32.mxu0 0.0
    %3004 = vmatmul.mubr.f32.gmra.mrb[0].mxu0 %v2934
    %v3005 = vpop.f32.mrb[0].mxu0
    %v3006 = vadd.f32 %v2931, %v3005
    %v3007 = vpop.f32.mrb[0].mxu0
    %3008 = vmatprep.mubr.f32.mxu0 0.0
    %3009 = vmatmul.mubr.f32.gmra.mrb[0].mxu0 %v2937
    %v3010 = vpop.f32.mrb[0].mxu0
    %v3011 = vadd.f32 %v2931, %v3010
    %v3012 = vpop.f32.mrb[0].mxu0
    %3013 = vdwg.mxu0
    %v3014 = vmax.f32 %v3006, 0.0
    %v3015 = vmax.f32 %v3011, 0.0
    %s3016 = scalar_lea.vmem %s14, 64
    %v3017 = vld [vmem:[%s3016] sm:$0xff]
    %v3018 = vld [vmem:[%s3016 + $0x8] sm:$0xff]
    %v3019 = vld [vmem:[%s3016 + $0x10] sm:$0xff]
    %v3020 = vld [vmem:[%s3016 + $0x18] sm:$0xff]
    %v3021 = vld [vmem:[%s3016 + $0x20] sm:$0xff]
    %v3022 = vld [vmem:[%s3016 + $0x28] sm:$0xff]
    %v3023 = vld [vmem:[%s3016 + $0x30] sm:$0xff]
    %v3024 = vld [vmem:[%s3016 + $0x38] sm:$0xff]
    %s3025 = scalar_lea.vmem %s15, 29
    %v3026 = vld [vmem:[%s3025] sm:$0x1]
    %v3028 = vlaneseq
    %v3029 = vshrl.u32 %v3028, 7
    %v3030 = vsub.s32 0, %v3029
    %v3031 = vrot.slane %v3026, %v3030
    %v3034 = vsel %vm1638, %v3014, 0
    %v3037 = vsel %vm1638, %v3015, 0
    %3039 = vmatprep.subr.mxu0 0.0
    %3040 = vmatpush1.msra.mxu0 %v3017
    %3041 = vmatprep.subr.mxu0 0.0
    %3042 = vmatpush1.msra.mxu0 %v3018
    %3043 = vmatprep.subr.mxu0 0.0
    %3044 = vmatpush1.msra.mxu0 %v3019
    %3045 = vmatprep.subr.mxu0 0.0
    %3046 = vmatpush1.msra.mxu0 %v3020
    %3047 = vmatprep.subr.mxu0 0.0
    %3048 = vmatpush1.msra.mxu0 %v3021
    %3049 = vmatprep.subr.mxu0 0.0
    %3050 = vmatpush1.msra.mxu0 %v3022
    %3051 = vmatprep.subr.mxu0 0.0
    %3052 = vmatpush1.msra.mxu0 %v3023
    %3053 = vmatprep.subr.mxu0 0.0
    %3054 = vmatpush1.msra.mxu0 %v3024
    %3055 = vmatprep.subr.mxu0 0.0
    %3056 = vmatpush1.msra.mxu0 0.0
    %3057 = vmatprep.subr.mxu0 0.0
    %3058 = vmatpush1.msra.mxu0 0.0
    %3059 = vmatprep.subr.mxu0 0.0
    %3060 = vmatpush1.msra.mxu0 0.0
    %3061 = vmatprep.subr.mxu0 0.0
    %3062 = vmatpush1.msra.mxu0 0.0
    %3063 = vmatprep.subr.mxu0 0.0
    %3064 = vmatpush1.msra.mxu0 0.0
    %3065 = vmatprep.subr.mxu0 0.0
    %3066 = vmatpush1.msra.mxu0 0.0
    %3067 = vmatprep.subr.mxu0 0.0
    %3068 = vmatpush1.msra.mxu0 0.0
    %3069 = vmatprep.subr.mxu0 0.0
    %3070 = vmatpush1.msra.mxu0 0.0
    %3071 = vmatprep.subr.mxu0 0.0
    %3072 = vmatpush1.msra.mxu0 0.0
    %3073 = vmatprep.subr.mxu0 0.0
    %3074 = vmatpush1.msra.mxu0 0.0
    %3075 = vmatprep.subr.mxu0 0.0
    %3076 = vmatpush1.msra.mxu0 0.0
    %3077 = vmatprep.subr.mxu0 0.0
    %3078 = vmatpush1.msra.mxu0 0.0
    %3079 = vmatprep.subr.mxu0 0.0
    %3080 = vmatpush1.msra.mxu0 0.0
    %3081 = vmatprep.subr.mxu0 0.0
    %3082 = vmatpush1.msra.mxu0 0.0
    %3083 = vmatprep.subr.mxu0 0.0
    %3084 = vmatpush1.msra.mxu0 0.0
    %3085 = vmatprep.subr.mxu0 0.0
    %3086 = vmatpush1.msra.mxu0 0.0
    %3087 = vmatprep.subr.mxu0 0.0
    %3088 = vmatpush1.msra.mxu0 0.0
    %3089 = vmatprep.subr.mxu0 0.0
    %3090 = vmatpush1.msra.mxu0 0.0
    %3091 = vmatprep.subr.mxu0 0.0
    %3092 = vmatpush1.msra.mxu0 0.0
    %3093 = vmatprep.subr.mxu0 0.0
    %3094 = vmatpush1.msra.mxu0 0.0
    %3095 = vmatprep.subr.mxu0 0.0
    %3096 = vmatpush1.msra.mxu0 0.0
    %3097 = vmatprep.subr.mxu0 0.0
    %3098 = vmatpush1.msra.mxu0 0.0
    %3099 = vmatprep.subr.mxu0 0.0
    %3100 = vmatpush1.msra.mxu0 0.0
    %3101 = vmatprep.subr.mxu0 0.0
    %3102 = vmatpush1.msra.mxu0 0.0
    %3103 = vmatprep.mubr.f32.mxu0 0.0
    %3104 = vmatmul.mubr.f32.gmra.mrb[0].mxu0 %v3034
    %v3105 = vpop.f32.mrb[0].mxu0
    %v3106 = vadd.f32 %v3031, %v3105
    %v3107 = vpop.f32.mrb[0].mxu0
    %3108 = vmatprep.mubr.f32.mxu0 0.0
    %3109 = vmatmul.mubr.f32.gmra.mrb[0].mxu0 %v3037
    %v3110 = vpop.f32.mrb[0].mxu0
    %v3111 = vadd.f32 %v3031, %v3110
    %v3112 = vpop.f32.mrb[0].mxu0
    %3113 = vdwg.mxu0
    %v3114 = vadd.f32 %v2918, %v3106
    %v3115 = vadd.f32 %v2919, %v3111
    %v3116 = vsel %vm387, %v3114, 0.0
    %3117 = vadd.xlane.f32.xlu0 %v3116
    %v3118 = vpop.xlane.xlu0 %3117
    %v3119 = vsel %vm387, %v3115, 0.0
    %3120 = vadd.xlane.f32.xlu0 %v3119
    %v3121 = vpop.xlane.xlu0 %3120
    %v3122 = vmul.f32 %v3118, %v1487
    %v3123 = vmul.f32 %v3121, %v1487
    %v3124 = vsub.f32 %v3114, %v3122
    %v3125 = vsub.f32 %v3115, %v3123
    %v3126 = vmul.f32 %v3124, %v3124
    %v3127 = vmul.f32 %v3125, %v3125
    %v3128 = vsel %vm387, %v3126, 0.0
    %3129 = vadd.xlane.f32.xlu0 %v3128
    %v3130 = vpop.xlane.xlu0 %3129
    %v3131 = vsel %vm387, %v3127, 0.0
    %3132 = vadd.xlane.f32.xlu0 %v3131
    %v3133 = vpop.xlane.xlu0 %3132
    %v3134 = vmul.f32 %v3130, %v1487
    %v3135 = vmul.f32 %v3133, %v1487
    %v3136 = vadd.f32 %v3134, 1e-05
    %v3137 = vadd.f32 %v3135, 1e-05
    %v3138 = vrsqrt.pop %v3136
    %v3139 = vrsqrt.pop %v3137
    %v3140 = vmul.f32 %v3124, %v3138
    %v3141 = vmul.f32 %v3125, %v3139
    %s3142 = scalar_lea.vmem %s15, 14
    %v3143 = vld [vmem:[%s3142] sm:$0x1]
    %v3145 = vlaneseq
    %v3146 = vshrl.u32 %v3145, 7
    %v3147 = vsub.s32 0, %v3146
    %v3148 = vrot.slane %v3143, %v3147
    %v3150 = vmul.f32 %v3140, %v3148
    %v3151 = vmul.f32 %v3141, %v3148
    %s3152 = scalar_lea.vmem %s15, 15
    %v3153 = vld [vmem:[%s3152] sm:$0x1]
    %v3155 = vlaneseq
    %v3156 = vshrl.u32 %v3155, 7
    %v3157 = vsub.s32 0, %v3156
    %v3158 = vrot.slane %v3153, %v3157
    %v3160 = vadd.f32 %v3150, %v3158
    %v3161 = vadd.f32 %v3151, %v3158
    %v3162 = vsel %vm387, %v3160, 0.0
    %3163 = vadd.xlane.f32.xlu0 %v3162
    %v3164 = vpop.xlane.xlu0 %3163
    %v3165 = vsel %vm387, %v3161, 0.0
    %3166 = vadd.xlane.f32.xlu0 %v3165
    %v3167 = vpop.xlane.xlu0 %3166
    %v3168 = vmul.f32 %v3164, %v1487
    %v3169 = vmul.f32 %v3167, %v1487
    %v3170 = vsub.f32 %v3160, %v3168
    %v3171 = vsub.f32 %v3161, %v3169
    %v3172 = vmul.f32 %v3170, %v3170
    %v3173 = vmul.f32 %v3171, %v3171
    %v3174 = vsel %vm387, %v3172, 0.0
    %3175 = vadd.xlane.f32.xlu0 %v3174
    %v3176 = vpop.xlane.xlu0 %3175
    %v3177 = vsel %vm387, %v3173, 0.0
    %3178 = vadd.xlane.f32.xlu0 %v3177
    %v3179 = vpop.xlane.xlu0 %3178
    %v3180 = vmul.f32 %v3176, %v1487
    %v3181 = vmul.f32 %v3179, %v1487
    %v3182 = vadd.f32 %v3180, 1e-05
    %v3183 = vadd.f32 %v3181, 1e-05
    %v3184 = vrsqrt.pop %v3182
    %v3185 = vrsqrt.pop %v3183
    %v3186 = vmul.f32 %v3170, %v3184
    %v3187 = vmul.f32 %v3171, %v3185
    %s3188 = scalar_lea.vmem %s15, 32
    %v3189 = vld [vmem:[%s3188] sm:$0x1]
    %v3191 = vlaneseq
    %v3192 = vshrl.u32 %v3191, 7
    %v3193 = vsub.s32 0, %v3192
    %v3194 = vrot.slane %v3189, %v3193
    %v3196 = vmul.f32 %v3186, %v3194
    %v3197 = vmul.f32 %v3187, %v3194
    %s3198 = scalar_lea.vmem %s15, 33
    %v3199 = vld [vmem:[%s3198] sm:$0x1]
    %v3201 = vlaneseq
    %v3202 = vshrl.u32 %v3201, 7
    %v3203 = vsub.s32 0, %v3202
    %v3204 = vrot.slane %v3199, %v3203
    %v3206 = vadd.f32 %v3196, %v3204
    %v3207 = vadd.f32 %v3197, %v3204
    %s3208 = scalar_lea.vmem %s7, 64
    %v3209 = vld [vmem:[%s3208] sm:$0xff]
    %v3210 = vld [vmem:[%s3208 + $0x8] sm:$0xff]
    %v3211 = vld [vmem:[%s3208 + $0x10] sm:$0xff]
    %v3212 = vld [vmem:[%s3208 + $0x18] sm:$0xff]
    %s3213 = scalar_lea.vmem %s8, 2
    %v3214 = vld [vmem:[%s3213] sm:$0x1]
    %v3216 = vlaneseq
    %v3217 = vshrl.u32 %v3216, 7
    %v3218 = vsub.s32 0, %v3217
    %v3219 = vrot.slane %v3214, %v3218
    %v3222 = vsel %vm387, %v373, 0
    %3224 = vmatprep.subr.mxu0 0.0
    %3225 = vmatpush1.msra.mxu0 %v3209
    %3226 = vmatprep.subr.mxu0 0.0
    %3227 = vmatpush1.msra.mxu0 %v3210
    %3228 = vmatprep.subr.mxu0 0.0
    %3229 = vmatpush1.msra.mxu0 %v3211
    %3230 = vmatprep.subr.mxu0 0.0
    %3231 = vmatpush1.msra.mxu0 %v3212
    %3232 = vmatprep.subr.mxu0 0.0
    %3233 = vmatpush1.msra.mxu0 0.0
    %3234 = vmatprep.subr.mxu0 0.0
    %3235 = vmatpush1.msra.mxu0 0.0
    %3236 = vmatprep.subr.mxu0 0.0
    %3237 = vmatpush1.msra.mxu0 0.0
    %3238 = vmatprep.subr.mxu0 0.0
    %3239 = vmatpush1.msra.mxu0 0.0
    %3240 = vmatprep.subr.mxu0 0.0
    %3241 = vmatpush1.msra.mxu0 0.0
    %3242 = vmatprep.subr.mxu0 0.0
    %3243 = vmatpush1.msra.mxu0 0.0
    %3244 = vmatprep.subr.mxu0 0.0
    %3245 = vmatpush1.msra.mxu0 0.0
    %3246 = vmatprep.subr.mxu0 0.0
    %3247 = vmatpush1.msra.mxu0 0.0
    %3248 = vmatprep.subr.mxu0 0.0
    %3249 = vmatpush1.msra.mxu0 0.0
    %3250 = vmatprep.subr.mxu0 0.0
    %3251 = vmatpush1.msra.mxu0 0.0
    %3252 = vmatprep.subr.mxu0 0.0
    %3253 = vmatpush1.msra.mxu0 0.0
    %3254 = vmatprep.subr.mxu0 0.0
    %3255 = vmatpush1.msra.mxu0 0.0
    %3256 = vmatprep.subr.mxu0 0.0
    %3257 = vmatpush1.msra.mxu0 0.0
    %3258 = vmatprep.subr.mxu0 0.0
    %3259 = vmatpush1.msra.mxu0 0.0
    %3260 = vmatprep.subr.mxu0 0.0
    %3261 = vmatpush1.msra.mxu0 0.0
    %3262 = vmatprep.subr.mxu0 0.0
    %3263 = vmatpush1.msra.mxu0 0.0
    %3264 = vmatprep.subr.mxu0 0.0
    %3265 = vmatpush1.msra.mxu0 0.0
    %3266 = vmatprep.subr.mxu0 0.0
    %3267 = vmatpush1.msra.mxu0 0.0
    %3268 = vmatprep.subr.mxu0 0.0
    %3269 = vmatpush1.msra.mxu0 0.0
    %3270 = vmatprep.subr.mxu0 0.0
    %3271 = vmatpush1.msra.mxu0 0.0
    %3272 = vmatprep.subr.mxu0 0.0
    %3273 = vmatpush1.msra.mxu0 0.0
    %3274 = vmatprep.subr.mxu0 0.0
    %3275 = vmatpush1.msra.mxu0 0.0
    %3276 = vmatprep.subr.mxu0 0.0
    %3277 = vmatpush1.msra.mxu0 0.0
    %3278 = vmatprep.subr.mxu0 0.0
    %3279 = vmatpush1.msra.mxu0 0.0
    %3280 = vmatprep.subr.mxu0 0.0
    %3281 = vmatpush1.msra.mxu0 0.0
    %3282 = vmatprep.subr.mxu0 0.0
    %3283 = vmatpush1.msra.mxu0 0.0
    %3284 = vmatprep.subr.mxu0 0.0
    %3285 = vmatpush1.msra.mxu0 0.0
    %3286 = vmatprep.subr.mxu0 0.0
    %3287 = vmatpush1.msra.mxu0 0.0
    %3288 = vmatprep.mubr.f32.mxu0 0.0
    %3289 = vmatmul.mubr.f32.gmra.mrb[0].mxu0 %v3222
    %v3290 = vpop.f32.mrb[0].mxu0
    %v3291 = vadd.f32 %v3219, %v3290
    %v3292 = vpop.f32.mrb[0].mxu0
    %3293 = vdwg.mxu0
    %v3294 = vmul.f32 %v3291, 0.35355338
    %s3295 = scalar_lea.vmem %s9, 64
    %v3296 = vld [vmem:[%s3295] sm:$0xff]
    %v3297 = vld [vmem:[%s3295 + $0x8] sm:$0xff]
    %v3298 = vld [vmem:[%s3295 + $0x10] sm:$0xff]
    %v3299 = vld [vmem:[%s3295 + $0x18] sm:$0xff]
    %s3300 = scalar_lea.vmem [#allocation10], 2
    %v3301 = vld [vmem:[%s3300] sm:$0x1]
    %v3303 = vlaneseq
    %v3304 = vshrl.u32 %v3303, 7
    %v3305 = vsub.s32 0, %v3304
    %v3306 = vrot.slane %v3301, %v3305
    %3308 = vmatprep.subr.mxu0 0.0
    %3309 = vmatpush1.msra.mxu0 %v3296
    %3310 = vmatprep.subr.mxu0 0.0
    %3311 = vmatpush1.msra.mxu0 %v3297
    %3312 = vmatprep.subr.mxu0 0.0
    %3313 = vmatpush1.msra.mxu0 %v3298
    %3314 = vmatprep.subr.mxu0 0.0
    %3315 = vmatpush1.msra.mxu0 %v3299
    %3316 = vmatprep.subr.mxu0 0.0
    %3317 = vmatpush1.msra.mxu0 0.0
    %3318 = vmatprep.subr.mxu0 0.0
    %3319 = vmatpush1.msra.mxu0 0.0
    %3320 = vmatprep.subr.mxu0 0.0
    %3321 = vmatpush1.msra.mxu0 0.0
    %3322 = vmatprep.subr.mxu0 0.0
    %3323 = vmatpush1.msra.mxu0 0.0
    %3324 = vmatprep.subr.mxu0 0.0
    %3325 = vmatpush1.msra.mxu0 0.0
    %3326 = vmatprep.subr.mxu0 0.0
    %3327 = vmatpush1.msra.mxu0 0.0
    %3328 = vmatprep.subr.mxu0 0.0
    %3329 = vmatpush1.msra.mxu0 0.0
    %3330 = vmatprep.subr.mxu0 0.0
    %3331 = vmatpush1.msra.mxu0 0.0
    %3332 = vmatprep.subr.mxu0 0.0
    %3333 = vmatpush1.msra.mxu0 0.0
    %3334 = vmatprep.subr.mxu0 0.0
    %3335 = vmatpush1.msra.mxu0 0.0
    %3336 = vmatprep.subr.mxu0 0.0
    %3337 = vmatpush1.msra.mxu0 0.0
    %3338 = vmatprep.subr.mxu0 0.0
    %3339 = vmatpush1.msra.mxu0 0.0
    %3340 = vmatprep.subr.mxu0 0.0
    %3341 = vmatpush1.msra.mxu0 0.0
    %3342 = vmatprep.subr.mxu0 0.0
    %3343 = vmatpush1.msra.mxu0 0.0
    %3344 = vmatprep.subr.mxu0 0.0
    %3345 = vmatpush1.msra.mxu0 0.0
    %3346 = vmatprep.subr.mxu0 0.0
    %3347 = vmatpush1.msra.mxu0 0.0
    %3348 = vmatprep.subr.mxu0 0.0
    %3349 = vmatpush1.msra.mxu0 0.0
    %3350 = vmatprep.subr.mxu0 0.0
    %3351 = vmatpush1.msra.mxu0 0.0
    %3352 = vmatprep.subr.mxu0 0.0
    %3353 = vmatpush1.msra.mxu0 0.0
    %3354 = vmatprep.subr.mxu0 0.0
    %3355 = vmatpush1.msra.mxu0 0.0
    %3356 = vmatprep.subr.mxu0 0.0
    %3357 = vmatpush1.msra.mxu0 0.0
    %3358 = vmatprep.subr.mxu0 0.0
    %3359 = vmatpush1.msra.mxu0 0.0
    %3360 = vmatprep.subr.mxu0 0.0
    %3361 = vmatpush1.msra.mxu0 0.0
    %3362 = vmatprep.subr.mxu0 0.0
    %3363 = vmatpush1.msra.mxu0 0.0
    %3364 = vmatprep.subr.mxu0 0.0
    %3365 = vmatpush1.msra.mxu0 0.0
    %3366 = vmatprep.subr.mxu0 0.0
    %3367 = vmatpush1.msra.mxu0 0.0
    %3368 = vmatprep.subr.mxu0 0.0
    %3369 = vmatpush1.msra.mxu0 0.0
    %3370 = vmatprep.subr.mxu0 0.0
    %3371 = vmatpush1.msra.mxu0 0.0
    %3372 = vmatprep.mubr.f32.mxu0 0.0
    %3373 = vmatmul.mubr.f32.gmra.mrb[0].mxu0 %v3222
    %v3374 = vpop.f32.mrb[0].mxu0
    %v3375 = vadd.f32 %v3306, %v3374
    %v3376 = vpop.f32.mrb[0].mxu0
    %3377 = vdwg.mxu0
    %v3379 = vsel %vm557, %v3294, 0
    %v3382 = vsel %vm557, %v3375, 0
    %3384 = vmatprep.subr.mxu0 0.0
    %3385 = vmatpush1.xpose.msra.mxu0 %v3382
    %3386 = vmatprep.subr.mxu0 0.0
    %3387 = vmatpush1.xpose.msra.mxu0 0.0
    %3388 = vmatprep.subr.mxu0 0.0
    %3389 = vmatpush1.xpose.msra.mxu0 0.0
    %3390 = vmatprep.subr.mxu0 0.0
    %3391 = vmatpush1.xpose.msra.mxu0 0.0
    %3392 = vmatprep.subr.mxu0 0.0
    %3393 = vmatpush1.xpose.msra.mxu0 0.0
    %3394 = vmatprep.subr.mxu0 0.0
    %3395 = vmatpush1.xpose.msra.mxu0 0.0
    %3396 = vmatprep.subr.mxu0 0.0
    %3397 = vmatpush1.xpose.msra.mxu0 0.0
    %3398 = vmatprep.subr.mxu0 0.0
    %3399 = vmatpush1.xpose.msra.mxu0 0.0
    %3400 = vmatprep.subr.mxu0 0.0
    %3401 = vmatpush1.xpose.msra.mxu0 0.0
    %3402 = vmatprep.subr.mxu0 0.0
    %3403 = vmatpush1.xpose.msra.mxu0 0.0
    %3404 = vmatprep.subr.mxu0 0.0
    %3405 = vmatpush1.xpose.msra.mxu0 0.0
    %3406 = vmatprep.subr.mxu0 0.0
    %3407 = vmatpush1.xpose.msra.mxu0 0.0
    %3408 = vmatprep.subr.mxu0 0.0
    %3409 = vmatpush1.xpose.msra.mxu0 0.0
    %3410 = vmatprep.subr.mxu0 0.0
    %3411 = vmatpush1.xpose.msra.mxu0 0.0
    %3412 = vmatprep.subr.mxu0 0.0
    %3413 = vmatpush1.xpose.msra.mxu0 0.0
    %3414 = vmatprep.subr.mxu0 0.0
    %3415 = vmatpush1.xpose.msra.mxu0 0.0
    %3416 = vmatprep.subr.mxu0 0.0
    %3417 = vmatpush1.xpose.msra.mxu0 0.0
    %3418 = vmatprep.subr.mxu0 0.0
    %3419 = vmatpush1.xpose.msra.mxu0 0.0
    %3420 = vmatprep.subr.mxu0 0.0
    %3421 = vmatpush1.xpose.msra.mxu0 0.0
    %3422 = vmatprep.subr.mxu0 0.0
    %3423 = vmatpush1.xpose.msra.mxu0 0.0
    %3424 = vmatprep.subr.mxu0 0.0
    %3425 = vmatpush1.xpose.msra.mxu0 0.0
    %3426 = vmatprep.subr.mxu0 0.0
    %3427 = vmatpush1.xpose.msra.mxu0 0.0
    %3428 = vmatprep.subr.mxu0 0.0
    %3429 = vmatpush1.xpose.msra.mxu0 0.0
    %3430 = vmatprep.subr.mxu0 0.0
    %3431 = vmatpush1.xpose.msra.mxu0 0.0
    %3432 = vmatprep.subr.mxu0 0.0
    %3433 = vmatpush1.xpose.msra.mxu0 0.0
    %3434 = vmatprep.subr.mxu0 0.0
    %3435 = vmatpush1.xpose.msra.mxu0 0.0
    %3436 = vmatprep.subr.mxu0 0.0
    %3437 = vmatpush1.xpose.msra.mxu0 0.0
    %3438 = vmatprep.subr.mxu0 0.0
    %3439 = vmatpush1.xpose.msra.mxu0 0.0
    %3440 = vmatprep.subr.mxu0 0.0
    %3441 = vmatpush1.xpose.msra.mxu0 0.0
    %3442 = vmatprep.subr.mxu0 0.0
    %3443 = vmatpush1.xpose.msra.mxu0 0.0
    %3444 = vmatprep.subr.mxu0 0.0
    %3445 = vmatpush1.xpose.msra.mxu0 0.0
    %3446 = vmatprep.subr.mxu0 0.0
    %3447 = vmatpush1.xpose.msra.mxu0 0.0
    %3448 = vmatprep.mubr.f32.mxu0 0.0
    %3449 = vmatmul.mubr.f32.gmra.mrb[0].mxu0 %v3379
    %v3450 = vpop.f32.mrb[0].mxu0
    %v3451 = vadd.f32 %v185, %v3450
    %v3452 = vpop.f32.mrb[0].mxu0
    %3453 = vdwg.mxu0
    %v3454 = vsel %vm557, %v3451, -inf
    %3455 = vmax.xlane.f32.xlu0 %v3454
    %v3456 = vpop.xlane.xlu0 %3455
    %v3457 = vsub.f32 %v3451, %v3456
    %v3458 = vmul.f32 %v3457, 1.442695
    %v3459 = vpow.pop %v3458
    %v3460 = vsel %vm557, %v3459, 0.0
    %3461 = vadd.xlane.f32.xlu0 %v3460
    %v3462 = vpop.xlane.xlu0 %3461
    %v3463 = vrcp.pop %v3462
    %v3464 = vmul.f32 %v3459, %v3463
    %3465 = vrot.lane.b32.xlu0 %v3375, 96
    %v3466 = vpop.permute.xlu0 %3465
    %v3469 = vsel %vm557, %v3464, 0
    %3471 = vmatprep.subr.mxu0 0.0
    %3472 = vmatpush1.msra.mxu0 %v3466
    %3473 = vmatprep.subr.mxu0 0.0
    %3474 = vmatpush1.msra.mxu0 0.0
    %3475 = vmatprep.subr.mxu0 0.0
    %3476 = vmatpush1.msra.mxu0 0.0
    %3477 = vmatprep.subr.mxu0 0.0
    %3478 = vmatpush1.msra.mxu0 0.0
    %3479 = vmatprep.subr.mxu0 0.0
    %3480 = vmatpush1.msra.mxu0 0.0
    %3481 = vmatprep.subr.mxu0 0.0
    %3482 = vmatpush1.msra.mxu0 0.0
    %3483 = vmatprep.subr.mxu0 0.0
    %3484 = vmatpush1.msra.mxu0 0.0
    %3485 = vmatprep.subr.mxu0 0.0
    %3486 = vmatpush1.msra.mxu0 0.0
    %3487 = vmatprep.subr.mxu0 0.0
    %3488 = vmatpush1.msra.mxu0 0.0
    %3489 = vmatprep.subr.mxu0 0.0
    %3490 = vmatpush1.msra.mxu0 0.0
    %3491 = vmatprep.subr.mxu0 0.0
    %3492 = vmatpush1.msra.mxu0 0.0
    %3493 = vmatprep.subr.mxu0 0.0
    %3494 = vmatpush1.msra.mxu0 0.0
    %3495 = vmatprep.subr.mxu0 0.0
    %3496 = vmatpush1.msra.mxu0 0.0
    %3497 = vmatprep.subr.mxu0 0.0
    %3498 = vmatpush1.msra.mxu0 0.0
    %3499 = vmatprep.subr.mxu0 0.0
    %3500 = vmatpush1.msra.mxu0 0.0
    %3501 = vmatprep.subr.mxu0 0.0
    %3502 = vmatpush1.msra.mxu0 0.0
    %3503 = vmatprep.subr.mxu0 0.0
    %3504 = vmatpush1.msra.mxu0 0.0
    %3505 = vmatprep.subr.mxu0 0.0
    %3506 = vmatpush1.msra.mxu0 0.0
    %3507 = vmatprep.subr.mxu0 0.0
    %3508 = vmatpush1.msra.mxu0 0.0
    %3509 = vmatprep.subr.mxu0 0.0
    %3510 = vmatpush1.msra.mxu0 0.0
    %3511 = vmatprep.subr.mxu0 0.0
    %3512 = vmatpush1.msra.mxu0 0.0
    %3513 = vmatprep.subr.mxu0 0.0
    %3514 = vmatpush1.msra.mxu0 0.0
    %3515 = vmatprep.subr.mxu0 0.0
    %3516 = vmatpush1.msra.mxu0 0.0
    %3517 = vmatprep.subr.mxu0 0.0
    %3518 = vmatpush1.msra.mxu0 0.0
    %3519 = vmatprep.subr.mxu0 0.0
    %3520 = vmatpush1.msra.mxu0 0.0
    %3521 = vmatprep.subr.mxu0 0.0
    %3522 = vmatpush1.msra.mxu0 0.0
    %3523 = vmatprep.subr.mxu0 0.0
    %3524 = vmatpush1.msra.mxu0 0.0
    %3525 = vmatprep.subr.mxu0 0.0
    %3526 = vmatpush1.msra.mxu0 0.0
    %3527 = vmatprep.subr.mxu0 0.0
    %3528 = vmatpush1.msra.mxu0 0.0
    %3529 = vmatprep.subr.mxu0 0.0
    %3530 = vmatpush1.msra.mxu0 0.0
    %3531 = vmatprep.subr.mxu0 0.0
    %3532 = vmatpush1.msra.mxu0 0.0
    %3533 = vmatprep.subr.mxu0 0.0
    %3534 = vmatpush1.msra.mxu0 0.0
    %3535 = vmatprep.mubr.f32.mxu0 0.0
    %3536 = vmatmul.mubr.f32.gmra.mrb[0].mxu0 %v3469
    %v3537 = vpop.f32.mrb[0].mxu0
    %v3538 = vadd.f32 0.0, %v3537
    %v3539 = vpop.f32.mrb[0].mxu0
    %3540 = vdwg.mxu0
    %3541 = vrot.lane.b32.xlu0 %v3294, 120
    %v3542 = vpop.permute.xlu0 %3541
    %3543 = vrot.lane.b32.xlu0 %v3375, 120
    %v3544 = vpop.permute.xlu0 %3543
    %v3545 = vsel %vm557, %v3542, 0
    %v3547 = vsel %vm557, %v3544, 0
    %3549 = vmatprep.subr.mxu0 0.0
    %3550 = vmatpush1.xpose.msra.mxu0 %v3547
    %3551 = vmatprep.subr.mxu0 0.0
    %3552 = vmatpush1.xpose.msra.mxu0 0.0
    %3553 = vmatprep.subr.mxu0 0.0
    %3554 = vmatpush1.xpose.msra.mxu0 0.0
    %3555 = vmatprep.subr.mxu0 0.0
    %3556 = vmatpush1.xpose.msra.mxu0 0.0
    %3557 = vmatprep.subr.mxu0 0.0
    %3558 = vmatpush1.xpose.msra.mxu0 0.0
    %3559 = vmatprep.subr.mxu0 0.0
    %3560 = vmatpush1.xpose.msra.mxu0 0.0
    %3561 = vmatprep.subr.mxu0 0.0
    %3562 = vmatpush1.xpose.msra.mxu0 0.0
    %3563 = vmatprep.subr.mxu0 0.0
    %3564 = vmatpush1.xpose.msra.mxu0 0.0
    %3565 = vmatprep.subr.mxu0 0.0
    %3566 = vmatpush1.xpose.msra.mxu0 0.0
    %3567 = vmatprep.subr.mxu0 0.0
    %3568 = vmatpush1.xpose.msra.mxu0 0.0
    %3569 = vmatprep.subr.mxu0 0.0
    %3570 = vmatpush1.xpose.msra.mxu0 0.0
    %3571 = vmatprep.subr.mxu0 0.0
    %3572 = vmatpush1.xpose.msra.mxu0 0.0
    %3573 = vmatprep.subr.mxu0 0.0
    %3574 = vmatpush1.xpose.msra.mxu0 0.0
    %3575 = vmatprep.subr.mxu0 0.0
    %3576 = vmatpush1.xpose.msra.mxu0 0.0
    %3577 = vmatprep.subr.mxu0 0.0
    %3578 = vmatpush1.xpose.msra.mxu0 0.0
    %3579 = vmatprep.subr.mxu0 0.0
    %3580 = vmatpush1.xpose.msra.mxu0 0.0
    %3581 = vmatprep.subr.mxu0 0.0
    %3582 = vmatpush1.xpose.msra.mxu0 0.0
    %3583 = vmatprep.subr.mxu0 0.0
    %3584 = vmatpush1.xpose.msra.mxu0 0.0
    %3585 = vmatprep.subr.mxu0 0.0
    %3586 = vmatpush1.xpose.msra.mxu0 0.0
    %3587 = vmatprep.subr.mxu0 0.0
    %3588 = vmatpush1.xpose.msra.mxu0 0.0
    %3589 = vmatprep.subr.mxu0 0.0
    %3590 = vmatpush1.xpose.msra.mxu0 0.0
    %3591 = vmatprep.subr.mxu0 0.0
    %3592 = vmatpush1.xpose.msra.mxu0 0.0
    %3593 = vmatprep.subr.mxu0 0.0
    %3594 = vmatpush1.xpose.msra.mxu0 0.0
    %3595 = vmatprep.subr.mxu0 0.0
    %3596 = vmatpush1.xpose.msra.mxu0 0.0
    %3597 = vmatprep.subr.mxu0 0.0
    %3598 = vmatpush1.xpose.msra.mxu0 0.0
    %3599 = vmatprep.subr.mxu0 0.0
    %3600 = vmatpush1.xpose.msra.mxu0 0.0
    %3601 = vmatprep.subr.mxu0 0.0
    %3602 = vmatpush1.xpose.msra.mxu0 0.0
    %3603 = vmatprep.subr.mxu0 0.0
    %3604 = vmatpush1.xpose.msra.mxu0 0.0
    %3605 = vmatprep.subr.mxu0 0.0
    %3606 = vmatpush1.xpose.msra.mxu0 0.0
    %3607 = vmatprep.subr.mxu0 0.0
    %3608 = vmatpush1.xpose.msra.mxu0 0.0
    %3609 = vmatprep.subr.mxu0 0.0
    %3610 = vmatpush1.xpose.msra.mxu0 0.0
    %3611 = vmatprep.subr.mxu0 0.0
    %3612 = vmatpush1.xpose.msra.mxu0 0.0
    %3613 = vmatprep.mubr.f32.mxu0 0.0
    %3614 = vmatmul.mubr.f32.gmra.mrb[0].mxu0 %v3545
    %v3615 = vpop.f32.mrb[0].mxu0
    %v3616 = vadd.f32 %v185, %v3615
    %v3617 = vpop.f32.mrb[0].mxu0
    %3618 = vdwg.mxu0
    %v3619 = vsel %vm557, %v3616, -inf
    %3620 = vmax.xlane.f32.xlu0 %v3619
    %v3621 = vpop.xlane.xlu0 %3620
    %v3622 = vsub.f32 %v3616, %v3621
    %v3623 = vmul.f32 %v3622, 1.442695
    %v3624 = vpow.pop %v3623
    %v3625 = vsel %vm557, %v3624, 0.0
    %3626 = vadd.xlane.f32.xlu0 %v3625
    %v3627 = vpop.xlane.xlu0 %3626
    %v3628 = vrcp.pop %v3627
    %v3629 = vmul.f32 %v3624, %v3628
    %3630 = vrot.lane.b32.xlu0 %v3375, 88
    %v3631 = vpop.permute.xlu0 %3630
    %v3634 = vsel %vm557, %v3629, 0
    %3636 = vmatprep.subr.mxu0 0.0
    %3637 = vmatpush1.msra.mxu0 %v3631
    %3638 = vmatprep.subr.mxu0 0.0
    %3639 = vmatpush1.msra.mxu0 0.0
    %3640 = vmatprep.subr.mxu0 0.0
    %3641 = vmatpush1.msra.mxu0 0.0
    %3642 = vmatprep.subr.mxu0 0.0
    %3643 = vmatpush1.msra.mxu0 0.0
    %3644 = vmatprep.subr.mxu0 0.0
    %3645 = vmatpush1.msra.mxu0 0.0
    %3646 = vmatprep.subr.mxu0 0.0
    %3647 = vmatpush1.msra.mxu0 0.0
    %3648 = vmatprep.subr.mxu0 0.0
    %3649 = vmatpush1.msra.mxu0 0.0
    %3650 = vmatprep.subr.mxu0 0.0
    %3651 = vmatpush1.msra.mxu0 0.0
    %3652 = vmatprep.subr.mxu0 0.0
    %3653 = vmatpush1.msra.mxu0 0.0
    %3654 = vmatprep.subr.mxu0 0.0
    %3655 = vmatpush1.msra.mxu0 0.0
    %3656 = vmatprep.subr.mxu0 0.0
    %3657 = vmatpush1.msra.mxu0 0.0
    %3658 = vmatprep.subr.mxu0 0.0
    %3659 = vmatpush1.msra.mxu0 0.0
    %3660 = vmatprep.subr.mxu0 0.0
    %3661 = vmatpush1.msra.mxu0 0.0
    %3662 = vmatprep.subr.mxu0 0.0
    %3663 = vmatpush1.msra.mxu0 0.0
    %3664 = vmatprep.subr.mxu0 0.0
    %3665 = vmatpush1.msra.mxu0 0.0
    %3666 = vmatprep.subr.mxu0 0.0
    %3667 = vmatpush1.msra.mxu0 0.0
    %3668 = vmatprep.subr.mxu0 0.0
    %3669 = vmatpush1.msra.mxu0 0.0
    %3670 = vmatprep.subr.mxu0 0.0
    %3671 = vmatpush1.msra.mxu0 0.0
    %3672 = vmatprep.subr.mxu0 0.0
    %3673 = vmatpush1.msra.mxu0 0.0
    %3674 = vmatprep.subr.mxu0 0.0
    %3675 = vmatpush1.msra.mxu0 0.0
    %3676 = vmatprep.subr.mxu0 0.0
    %3677 = vmatpush1.msra.mxu0 0.0
    %3678 = vmatprep.subr.mxu0 0.0
    %3679 = vmatpush1.msra.mxu0 0.0
    %3680 = vmatprep.subr.mxu0 0.0
    %3681 = vmatpush1.msra.mxu0 0.0
    %3682 = vmatprep.subr.mxu0 0.0
    %3683 = vmatpush1.msra.mxu0 0.0
    %3684 = vmatprep.subr.mxu0 0.0
    %3685 = vmatpush1.msra.mxu0 0.0
    %3686 = vmatprep.subr.mxu0 0.0
    %3687 = vmatpush1.msra.mxu0 0.0
    %3688 = vmatprep.subr.mxu0 0.0
    %3689 = vmatpush1.msra.mxu0 0.0
    %3690 = vmatprep.subr.mxu0 0.0
    %3691 = vmatpush1.msra.mxu0 0.0
    %3692 = vmatprep.subr.mxu0 0.0
    %3693 = vmatpush1.msra.mxu0 0.0
    %3694 = vmatprep.subr.mxu0 0.0
    %3695 = vmatpush1.msra.mxu0 0.0
    %3696 = vmatprep.subr.mxu0 0.0
    %3697 = vmatpush1.msra.mxu0 0.0
    %3698 = vmatprep.subr.mxu0 0.0
    %3699 = vmatpush1.msra.mxu0 0.0
    %3700 = vmatprep.mubr.f32.mxu0 0.0
    %3701 = vmatmul.mubr.f32.gmra.mrb[0].mxu0 %v3634
    %v3702 = vpop.f32.mrb[0].mxu0
    %v3703 = vadd.f32 0.0, %v3702
    %v3704 = vpop.f32.mrb[0].mxu0
    %3705 = vdwg.mxu0
    %3706 = vrot.lane.b32.xlu0 %v3294, 112
    %v3707 = vpop.permute.xlu0 %3706
    %3708 = vrot.lane.b32.xlu0 %v3375, 112
    %v3709 = vpop.permute.xlu0 %3708
    %v3710 = vsel %vm557, %v3707, 0
    %v3712 = vsel %vm557, %v3709, 0
    %3714 = vmatprep.subr.mxu0 0.0
    %3715 = vmatpush1.xpose.msra.mxu0 %v3712
    %3716 = vmatprep.subr.mxu0 0.0
    %3717 = vmatpush1.xpose.msra.mxu0 0.0
    %3718 = vmatprep.subr.mxu0 0.0
    %3719 = vmatpush1.xpose.msra.mxu0 0.0
    %3720 = vmatprep.subr.mxu0 0.0
    %3721 = vmatpush1.xpose.msra.mxu0 0.0
    %3722 = vmatprep.subr.mxu0 0.0
    %3723 = vmatpush1.xpose.msra.mxu0 0.0
    %3724 = vmatprep.subr.mxu0 0.0
    %3725 = vmatpush1.xpose.msra.mxu0 0.0
    %3726 = vmatprep.subr.mxu0 0.0
    %3727 = vmatpush1.xpose.msra.mxu0 0.0
    %3728 = vmatprep.subr.mxu0 0.0
    %3729 = vmatpush1.xpose.msra.mxu0 0.0
    %3730 = vmatprep.subr.mxu0 0.0
    %3731 = vmatpush1.xpose.msra.mxu0 0.0
    %3732 = vmatprep.subr.mxu0 0.0
    %3733 = vmatpush1.xpose.msra.mxu0 0.0
    %3734 = vmatprep.subr.mxu0 0.0
    %3735 = vmatpush1.xpose.msra.mxu0 0.0
    %3736 = vmatprep.subr.mxu0 0.0
    %3737 = vmatpush1.xpose.msra.mxu0 0.0
    %3738 = vmatprep.subr.mxu0 0.0
    %3739 = vmatpush1.xpose.msra.mxu0 0.0
    %3740 = vmatprep.subr.mxu0 0.0
    %3741 = vmatpush1.xpose.msra.mxu0 0.0
    %3742 = vmatprep.subr.mxu0 0.0
    %3743 = vmatpush1.xpose.msra.mxu0 0.0
    %3744 = vmatprep.subr.mxu0 0.0
    %3745 = vmatpush1.xpose.msra.mxu0 0.0
    %3746 = vmatprep.subr.mxu0 0.0
    %3747 = vmatpush1.xpose.msra.mxu0 0.0
    %3748 = vmatprep.subr.mxu0 0.0
    %3749 = vmatpush1.xpose.msra.mxu0 0.0
    %3750 = vmatprep.subr.mxu0 0.0
    %3751 = vmatpush1.xpose.msra.mxu0 0.0
    %3752 = vmatprep.subr.mxu0 0.0
    %3753 = vmatpush1.xpose.msra.mxu0 0.0
    %3754 = vmatprep.subr.mxu0 0.0
    %3755 = vmatpush1.xpose.msra.mxu0 0.0
    %3756 = vmatprep.subr.mxu0 0.0
    %3757 = vmatpush1.xpose.msra.mxu0 0.0
    %3758 = vmatprep.subr.mxu0 0.0
    %3759 = vmatpush1.xpose.msra.mxu0 0.0
    %3760 = vmatprep.subr.mxu0 0.0
    %3761 = vmatpush1.xpose.msra.mxu0 0.0
    %3762 = vmatprep.subr.mxu0 0.0
    %3763 = vmatpush1.xpose.msra.mxu0 0.0
    %3764 = vmatprep.subr.mxu0 0.0
    %3765 = vmatpush1.xpose.msra.mxu0 0.0
    %3766 = vmatprep.subr.mxu0 0.0
    %3767 = vmatpush1.xpose.msra.mxu0 0.0
    %3768 = vmatprep.subr.mxu0 0.0
    %3769 = vmatpush1.xpose.msra.mxu0 0.0
    %3770 = vmatprep.subr.mxu0 0.0
    %3771 = vmatpush1.xpose.msra.mxu0 0.0
    %3772 = vmatprep.subr.mxu0 0.0
    %3773 = vmatpush1.xpose.msra.mxu0 0.0
    %3774 = vmatprep.subr.mxu0 0.0
    %3775 = vmatpush1.xpose.msra.mxu0 0.0
    %3776 = vmatprep.subr.mxu0 0.0
    %3777 = vmatpush1.xpose.msra.mxu0 0.0
    %3778 = vmatprep.mubr.f32.mxu0 0.0
    %3779 = vmatmul.mubr.f32.gmra.mrb[0].mxu0 %v3710
    %v3780 = vpop.f32.mrb[0].mxu0
    %v3781 = vadd.f32 %v185, %v3780
    %v3782 = vpop.f32.mrb[0].mxu0
    %3783 = vdwg.mxu0
    %v3784 = vsel %vm557, %v3781, -inf
    %3785 = vmax.xlane.f32.xlu0 %v3784
    %v3786 = vpop.xlane.xlu0 %3785
    %v3787 = vsub.f32 %v3781, %v3786
    %v3788 = vmul.f32 %v3787, 1.442695
    %v3789 = vpow.pop %v3788
    %v3790 = vsel %vm557, %v3789, 0.0
    %3791 = vadd.xlane.f32.xlu0 %v3790
    %v3792 = vpop.xlane.xlu0 %3791
    %v3793 = vrcp.pop %v3792
    %v3794 = vmul.f32 %v3789, %v3793
    %3795 = vrot.lane.b32.xlu0 %v3375, 80
    %v3796 = vpop.permute.xlu0 %3795
    %v3799 = vsel %vm557, %v3794, 0
    %3801 = vmatprep.subr.mxu0 0.0
    %3802 = vmatpush1.msra.mxu0 %v3796
    %3803 = vmatprep.subr.mxu0 0.0
    %3804 = vmatpush1.msra.mxu0 0.0
    %3805 = vmatprep.subr.mxu0 0.0
    %3806 = vmatpush1.msra.mxu0 0.0
    %3807 = vmatprep.subr.mxu0 0.0
    %3808 = vmatpush1.msra.mxu0 0.0
    %3809 = vmatprep.subr.mxu0 0.0
    %3810 = vmatpush1.msra.mxu0 0.0
    %3811 = vmatprep.subr.mxu0 0.0
    %3812 = vmatpush1.msra.mxu0 0.0
    %3813 = vmatprep.subr.mxu0 0.0
    %3814 = vmatpush1.msra.mxu0 0.0
    %3815 = vmatprep.subr.mxu0 0.0
    %3816 = vmatpush1.msra.mxu0 0.0
    %3817 = vmatprep.subr.mxu0 0.0
    %3818 = vmatpush1.msra.mxu0 0.0
    %3819 = vmatprep.subr.mxu0 0.0
    %3820 = vmatpush1.msra.mxu0 0.0
    %3821 = vmatprep.subr.mxu0 0.0
    %3822 = vmatpush1.msra.mxu0 0.0
    %3823 = vmatprep.subr.mxu0 0.0
    %3824 = vmatpush1.msra.mxu0 0.0
    %3825 = vmatprep.subr.mxu0 0.0
    %3826 = vmatpush1.msra.mxu0 0.0
    %3827 = vmatprep.subr.mxu0 0.0
    %3828 = vmatpush1.msra.mxu0 0.0
    %3829 = vmatprep.subr.mxu0 0.0
    %3830 = vmatpush1.msra.mxu0 0.0
    %3831 = vmatprep.subr.mxu0 0.0
    %3832 = vmatpush1.msra.mxu0 0.0
    %3833 = vmatprep.subr.mxu0 0.0
    %3834 = vmatpush1.msra.mxu0 0.0
    %3835 = vmatprep.subr.mxu0 0.0
    %3836 = vmatpush1.msra.mxu0 0.0
    %3837 = vmatprep.subr.mxu0 0.0
    %3838 = vmatpush1.msra.mxu0 0.0
    %3839 = vmatprep.subr.mxu0 0.0
    %3840 = vmatpush1.msra.mxu0 0.0
    %3841 = vmatprep.subr.mxu0 0.0
    %3842 = vmatpush1.msra.mxu0 0.0
    %3843 = vmatprep.subr.mxu0 0.0
    %3844 = vmatpush1.msra.mxu0 0.0
    %3845 = vmatprep.subr.mxu0 0.0
    %3846 = vmatpush1.msra.mxu0 0.0
    %3847 = vmatprep.subr.mxu0 0.0
    %3848 = vmatpush1.msra.mxu0 0.0
    %3849 = vmatprep.subr.mxu0 0.0
    %3850 = vmatpush1.msra.mxu0 0.0
    %3851 = vmatprep.subr.mxu0 0.0
    %3852 = vmatpush1.msra.mxu0 0.0
    %3853 = vmatprep.subr.mxu0 0.0
    %3854 = vmatpush1.msra.mxu0 0.0
    %3855 = vmatprep.subr.mxu0 0.0
    %3856 = vmatpush1.msra.mxu0 0.0
    %3857 = vmatprep.subr.mxu0 0.0
    %3858 = vmatpush1.msra.mxu0 0.0
    %3859 = vmatprep.subr.mxu0 0.0
    %3860 = vmatpush1.msra.mxu0 0.0
    %3861 = vmatprep.subr.mxu0 0.0
    %3862 = vmatpush1.msra.mxu0 0.0
    %3863 = vmatprep.subr.mxu0 0.0
    %3864 = vmatpush1.msra.mxu0 0.0
    %3865 = vmatprep.mubr.f32.mxu0 0.0
    %3866 = vmatmul.mubr.f32.gmra.mrb[0].mxu0 %v3799
    %v3867 = vpop.f32.mrb[0].mxu0
    %v3868 = vadd.f32 0.0, %v3867
    %v3869 = vpop.f32.mrb[0].mxu0
    %3870 = vdwg.mxu0
    %3871 = vrot.lane.b32.xlu0 %v3294, 104
    %v3872 = vpop.permute.xlu0 %3871
    %3873 = vrot.lane.b32.xlu0 %v3375, 104
    %v3874 = vpop.permute.xlu0 %3873
    %v3875 = vsel %vm557, %v3872, 0
    %v3877 = vsel %vm557, %v3874, 0
    %3879 = vmatprep.subr.mxu0 0.0
    %3880 = vmatpush1.xpose.msra.mxu0 %v3877
    %3881 = vmatprep.subr.mxu0 0.0
    %3882 = vmatpush1.xpose.msra.mxu0 0.0
    %3883 = vmatprep.subr.mxu0 0.0
    %3884 = vmatpush1.xpose.msra.mxu0 0.0
    %3885 = vmatprep.subr.mxu0 0.0
    %3886 = vmatpush1.xpose.msra.mxu0 0.0
    %3887 = vmatprep.subr.mxu0 0.0
    %3888 = vmatpush1.xpose.msra.mxu0 0.0
    %3889 = vmatprep.subr.mxu0 0.0
    %3890 = vmatpush1.xpose.msra.mxu0 0.0
    %3891 = vmatprep.subr.mxu0 0.0
    %3892 = vmatpush1.xpose.msra.mxu0 0.0
    %3893 = vmatprep.subr.mxu0 0.0
    %3894 = vmatpush1.xpose.msra.mxu0 0.0
    %3895 = vmatprep.subr.mxu0 0.0
    %3896 = vmatpush1.xpose.msra.mxu0 0.0
    %3897 = vmatprep.subr.mxu0 0.0
    %3898 = vmatpush1.xpose.msra.mxu0 0.0
    %3899 = vmatprep.subr.mxu0 0.0
    %3900 = vmatpush1.xpose.msra.mxu0 0.0
    %3901 = vmatprep.subr.mxu0 0.0
    %3902 = vmatpush1.xpose.msra.mxu0 0.0
    %3903 = vmatprep.subr.mxu0 0.0
    %3904 = vmatpush1.xpose.msra.mxu0 0.0
    %3905 = vmatprep.subr.mxu0 0.0
    %3906 = vmatpush1.xpose.msra.mxu0 0.0
    %3907 = vmatprep.subr.mxu0 0.0
    %3908 = vmatpush1.xpose.msra.mxu0 0.0
    %3909 = vmatprep.subr.mxu0 0.0
    %3910 = vmatpush1.xpose.msra.mxu0 0.0
    %3911 = vmatprep.subr.mxu0 0.0
    %3912 = vmatpush1.xpose.msra.mxu0 0.0
    %3913 = vmatprep.subr.mxu0 0.0
    %3914 = vmatpush1.xpose.msra.mxu0 0.0
    %3915 = vmatprep.subr.mxu0 0.0
    %3916 = vmatpush1.xpose.msra.mxu0 0.0
    %3917 = vmatprep.subr.mxu0 0.0
    %3918 = vmatpush1.xpose.msra.mxu0 0.0
    %3919 = vmatprep.subr.mxu0 0.0
    %3920 = vmatpush1.xpose.msra.mxu0 0.0
    %3921 = vmatprep.subr.mxu0 0.0
    %3922 = vmatpush1.xpose.msra.mxu0 0.0
    %3923 = vmatprep.subr.mxu0 0.0
    %3924 = vmatpush1.xpose.msra.mxu0 0.0
    %3925 = vmatprep.subr.mxu0 0.0
    %3926 = vmatpush1.xpose.msra.mxu0 0.0
    %3927 = vmatprep.subr.mxu0 0.0
    %3928 = vmatpush1.xpose.msra.mxu0 0.0
    %3929 = vmatprep.subr.mxu0 0.0
    %3930 = vmatpush1.xpose.msra.mxu0 0.0
    %3931 = vmatprep.subr.mxu0 0.0
    %3932 = vmatpush1.xpose.msra.mxu0 0.0
    %3933 = vmatprep.subr.mxu0 0.0
    %3934 = vmatpush1.xpose.msra.mxu0 0.0
    %3935 = vmatprep.subr.mxu0 0.0
    %3936 = vmatpush1.xpose.msra.mxu0 0.0
    %3937 = vmatprep.subr.mxu0 0.0
    %3938 = vmatpush1.xpose.msra.mxu0 0.0
    %3939 = vmatprep.subr.mxu0 0.0
    %3940 = vmatpush1.xpose.msra.mxu0 0.0
    %3941 = vmatprep.subr.mxu0 0.0
    %3942 = vmatpush1.xpose.msra.mxu0 0.0
    %3943 = vmatprep.mubr.f32.mxu0 0.0
    %3944 = vmatmul.mubr.f32.gmra.mrb[0].mxu0 %v3875
    %v3945 = vpop.f32.mrb[0].mxu0
    %v3946 = vadd.f32 %v185, %v3945
    %v3947 = vpop.f32.mrb[0].mxu0
    %3948 = vdwg.mxu0
    %v3949 = vsel %vm557, %v3946, -inf
    %3950 = vmax.xlane.f32.xlu0 %v3949
    %v3951 = vpop.xlane.xlu0 %3950
    %v3952 = vsub.f32 %v3946, %v3951
    %v3953 = vmul.f32 %v3952, 1.442695
    %v3954 = vpow.pop %v3953
    %v3955 = vsel %vm557, %v3954, 0.0
    %3956 = vadd.xlane.f32.xlu0 %v3955
    %v3957 = vpop.xlane.xlu0 %3956
    %v3958 = vrcp.pop %v3957
    %v3959 = vmul.f32 %v3954, %v3958
    %3960 = vrot.lane.b32.xlu0 %v3375, 72
    %v3961 = vpop.permute.xlu0 %3960
    %v3964 = vsel %vm557, %v3959, 0
    %3966 = vmatprep.subr.mxu0 0.0
    %3967 = vmatpush1.msra.mxu0 %v3961
    %3968 = vmatprep.subr.mxu0 0.0
    %3969 = vmatpush1.msra.mxu0 0.0
    %3970 = vmatprep.subr.mxu0 0.0
    %3971 = vmatpush1.msra.mxu0 0.0
    %3972 = vmatprep.subr.mxu0 0.0
    %3973 = vmatpush1.msra.mxu0 0.0
    %3974 = vmatprep.subr.mxu0 0.0
    %3975 = vmatpush1.msra.mxu0 0.0
    %3976 = vmatprep.subr.mxu0 0.0
    %3977 = vmatpush1.msra.mxu0 0.0
    %3978 = vmatprep.subr.mxu0 0.0
    %3979 = vmatpush1.msra.mxu0 0.0
    %3980 = vmatprep.subr.mxu0 0.0
    %3981 = vmatpush1.msra.mxu0 0.0
    %3982 = vmatprep.subr.mxu0 0.0
    %3983 = vmatpush1.msra.mxu0 0.0
    %3984 = vmatprep.subr.mxu0 0.0
    %3985 = vmatpush1.msra.mxu0 0.0
    %3986 = vmatprep.subr.mxu0 0.0
    %3987 = vmatpush1.msra.mxu0 0.0
    %3988 = vmatprep.subr.mxu0 0.0
    %3989 = vmatpush1.msra.mxu0 0.0
    %3990 = vmatprep.subr.mxu0 0.0
    %3991 = vmatpush1.msra.mxu0 0.0
    %3992 = vmatprep.subr.mxu0 0.0
    %3993 = vmatpush1.msra.mxu0 0.0
    %3994 = vmatprep.subr.mxu0 0.0
    %3995 = vmatpush1.msra.mxu0 0.0
    %3996 = vmatprep.subr.mxu0 0.0
    %3997 = vmatpush1.msra.mxu0 0.0
    %3998 = vmatprep.subr.mxu0 0.0
    %3999 = vmatpush1.msra.mxu0 0.0
    %4000 = vmatprep.subr.mxu0 0.0
    %4001 = vmatpush1.msra.mxu0 0.0
    %4002 = vmatprep.subr.mxu0 0.0
    %4003 = vmatpush1.msra.mxu0 0.0
    %4004 = vmatprep.subr.mxu0 0.0
    %4005 = vmatpush1.msra.mxu0 0.0
    %4006 = vmatprep.subr.mxu0 0.0
    %4007 = vmatpush1.msra.mxu0 0.0
    %4008 = vmatprep.subr.mxu0 0.0
    %4009 = vmatpush1.msra.mxu0 0.0
    %4010 = vmatprep.subr.mxu0 0.0
    %4011 = vmatpush1.msra.mxu0 0.0
    %4012 = vmatprep.subr.mxu0 0.0
    %4013 = vmatpush1.msra.mxu0 0.0
    %4014 = vmatprep.subr.mxu0 0.0
    %4015 = vmatpush1.msra.mxu0 0.0
    %4016 = vmatprep.subr.mxu0 0.0
    %4017 = vmatpush1.msra.mxu0 0.0
    %4018 = vmatprep.subr.mxu0 0.0
    %4019 = vmatpush1.msra.mxu0 0.0
    %4020 = vmatprep.subr.mxu0 0.0
    %4021 = vmatpush1.msra.mxu0 0.0
    %4022 = vmatprep.subr.mxu0 0.0
    %4023 = vmatpush1.msra.mxu0 0.0
    %4024 = vmatprep.subr.mxu0 0.0
    %4025 = vmatpush1.msra.mxu0 0.0
    %4026 = vmatprep.subr.mxu0 0.0
    %4027 = vmatpush1.msra.mxu0 0.0
    %4028 = vmatprep.subr.mxu0 0.0
    %4029 = vmatpush1.msra.mxu0 0.0
    %4030 = vmatprep.mubr.f32.mxu0 0.0
    %4031 = vmatmul.mubr.f32.gmra.mrb[0].mxu0 %v3964
    %v4032 = vpop.f32.mrb[0].mxu0
    %v4033 = vadd.f32 0.0, %v4032
    %v4034 = vpop.f32.mrb[0].mxu0
    %4035 = vdwg.mxu0
    %4037 = vrot.lane.b32.xlu0 %v3703, 8
    %v4038 = vpop.permute.xlu0 %4037
    %4041 = vrot.lane.b32.xlu0 %v3868, 16
    %v4042 = vpop.permute.xlu0 %4041
    %4045 = vrot.lane.b32.xlu0 %v4033, 24
    %v4046 = vpop.permute.xlu0 %4045
    %v4048 = vsel %vm557, %v3538, %v4038
    %v4049 = vsel %vm645, %v4048, %v4042
    %v4050 = vsel %vm1383, %v4049, %v4046
    %s4051 = scalar_lea.vmem %s11, 64
    %v4052 = vld [vmem:[%s4051] sm:$0xff]
    %v4053 = vld [vmem:[%s4051 + $0x8] sm:$0xff]
    %v4054 = vld [vmem:[%s4051 + $0x10] sm:$0xff]
    %v4055 = vld [vmem:[%s4051 + $0x18] sm:$0xff]
    %s4056 = scalar_lea.vmem %s15, 4
    %v4057 = vld [vmem:[%s4056] sm:$0x1]
    %v4059 = vlaneseq
    %v4060 = vshrl.u32 %v4059, 7
    %v4061 = vsub.s32 0, %v4060
    %v4062 = vrot.slane %v4057, %v4061
    %v4065 = vsel %vm387, %v4050, 0
    %4067 = vmatprep.subr.mxu0 0.0
    %4068 = vmatpush1.msra.mxu0 %v4052
    %4069 = vmatprep.subr.mxu0 0.0
    %4070 = vmatpush1.msra.mxu0 %v4053
    %4071 = vmatprep.subr.mxu0 0.0
    %4072 = vmatpush1.msra.mxu0 %v4054
    %4073 = vmatprep.subr.mxu0 0.0
    %4074 = vmatpush1.msra.mxu0 %v4055
    %4075 = vmatprep.subr.mxu0 0.0
    %4076 = vmatpush1.msra.mxu0 0.0
    %4077 = vmatprep.subr.mxu0 0.0
    %4078 = vmatpush1.msra.mxu0 0.0
    %4079 = vmatprep.subr.mxu0 0.0
    %4080 = vmatpush1.msra.mxu0 0.0
    %4081 = vmatprep.subr.mxu0 0.0
    %4082 = vmatpush1.msra.mxu0 0.0
    %4083 = vmatprep.subr.mxu0 0.0
    %4084 = vmatpush1.msra.mxu0 0.0
    %4085 = vmatprep.subr.mxu0 0.0
    %4086 = vmatpush1.msra.mxu0 0.0
    %4087 = vmatprep.subr.mxu0 0.0
    %4088 = vmatpush1.msra.mxu0 0.0
    %4089 = vmatprep.subr.mxu0 0.0
    %4090 = vmatpush1.msra.mxu0 0.0
    %4091 = vmatprep.subr.mxu0 0.0
    %4092 = vmatpush1.msra.mxu0 0.0
    %4093 = vmatprep.subr.mxu0 0.0
    %4094 = vmatpush1.msra.mxu0 0.0
    %4095 = vmatprep.subr.mxu0 0.0
    %4096 = vmatpush1.msra.mxu0 0.0
    %4097 = vmatprep.subr.mxu0 0.0
    %4098 = vmatpush1.msra.mxu0 0.0
    %4099 = vmatprep.subr.mxu0 0.0
    %4100 = vmatpush1.msra.mxu0 0.0
    %4101 = vmatprep.subr.mxu0 0.0
    %4102 = vmatpush1.msra.mxu0 0.0
    %4103 = vmatprep.subr.mxu0 0.0
    %4104 = vmatpush1.msra.mxu0 0.0
    %4105 = vmatprep.subr.mxu0 0.0
    %4106 = vmatpush1.msra.mxu0 0.0
    %4107 = vmatprep.subr.mxu0 0.0
    %4108 = vmatpush1.msra.mxu0 0.0
    %4109 = vmatprep.subr.mxu0 0.0
    %4110 = vmatpush1.msra.mxu0 0.0
    %4111 = vmatprep.subr.mxu0 0.0
    %4112 = vmatpush1.msra.mxu0 0.0
    %4113 = vmatprep.subr.mxu0 0.0
    %4114 = vmatpush1.msra.mxu0 0.0
    %4115 = vmatprep.subr.mxu0 0.0
    %4116 = vmatpush1.msra.mxu0 0.0
    %4117 = vmatprep.subr.mxu0 0.0
    %4118 = vmatpush1.msra.mxu0 0.0
    %4119 = vmatprep.subr.mxu0 0.0
    %4120 = vmatpush1.msra.mxu0 0.0
    %4121 = vmatprep.subr.mxu0 0.0
    %4122 = vmatpush1.msra.mxu0 0.0
    %4123 = vmatprep.subr.mxu0 0.0
    %4124 = vmatpush1.msra.mxu0 0.0
    %4125 = vmatprep.subr.mxu0 0.0
    %4126 = vmatpush1.msra.mxu0 0.0
    %4127 = vmatprep.subr.mxu0 0.0
    %4128 = vmatpush1.msra.mxu0 0.0
    %4129 = vmatprep.subr.mxu0 0.0
    %4130 = vmatpush1.msra.mxu0 0.0
    %4131 = vmatprep.mubr.f32.mxu0 0.0
    %4132 = vmatmul.mubr.f32.gmra.mrb[0].mxu0 %v4065
    %v4133 = vpop.f32.mrb[0].mxu0
    %v4134 = vadd.f32 %v4062, %v4133
    %v4135 = vpop.f32.mrb[0].mxu0
    %4136 = vdwg.mxu0
    %v4137 = vadd.f32 %v373, %v4134
    %v4138 = vsel %vm387, %v4137, 0.0
    %4139 = vadd.xlane.f32.xlu0 %v4138
    %v4140 = vpop.xlane.xlu0 %4139
    %v4141 = vmul.f32 %v4140, %v1487
    %v4142 = vsub.f32 %v4137, %v4141
    %v4143 = vmul.f32 %v4142, %v4142
    %v4144 = vsel %vm387, %v4143, 0.0
    %4145 = vadd.xlane.f32.xlu0 %v4144
    %v4146 = vpop.xlane.xlu0 %4145
    %v4147 = vmul.f32 %v4146, %v1487
    %v4148 = vadd.f32 %v4147, 1e-05
    %v4149 = vrsqrt.pop %v4148
    %v4150 = vmul.f32 %v4142, %v4149
    %s4151 = scalar_lea.vmem %s15, 16
    %v4152 = vld [vmem:[%s4151] sm:$0x1]
    %v4154 = vlaneseq
    %v4155 = vshrl.u32 %v4154, 7
    %v4156 = vsub.s32 0, %v4155
    %v4157 = vrot.slane %v4152, %v4156
    %v4159 = vmul.f32 %v4150, %v4157
    %s4160 = scalar_lea.vmem %s15, 17
    %v4161 = vld [vmem:[%s4160] sm:$0x1]
    %v4163 = vlaneseq
    %v4164 = vshrl.u32 %v4163, 7
    %v4165 = vsub.s32 0, %v4164
    %v4166 = vrot.slane %v4161, %v4165
    %v4168 = vadd.f32 %v4159, %v4166
    %s4169 = scalar_lea.vmem %s7, 96
    %v4170 = vld [vmem:[%s4169] sm:$0xff]
    %v4171 = vld [vmem:[%s4169 + $0x8] sm:$0xff]
    %v4172 = vld [vmem:[%s4169 + $0x10] sm:$0xff]
    %v4173 = vld [vmem:[%s4169 + $0x18] sm:$0xff]
    %s4174 = scalar_lea.vmem %s8, 3
    %v4175 = vld [vmem:[%s4174] sm:$0x1]
    %v4177 = vlaneseq
    %v4178 = vshrl.u32 %v4177, 7
    %v4179 = vsub.s32 0, %v4178
    %v4180 = vrot.slane %v4175, %v4179
    %v4183 = vsel %vm387, %v4168, 0
    %4185 = vmatprep.subr.mxu0 0.0
    %4186 = vmatpush1.msra.mxu0 %v4170
    %4187 = vmatprep.subr.mxu0 0.0
    %4188 = vmatpush1.msra.mxu0 %v4171
    %4189 = vmatprep.subr.mxu0 0.0
    %4190 = vmatpush1.msra.mxu0 %v4172
    %4191 = vmatprep.subr.mxu0 0.0
    %4192 = vmatpush1.msra.mxu0 %v4173
    %4193 = vmatprep.subr.mxu0 0.0
    %4194 = vmatpush1.msra.mxu0 0.0
    %4195 = vmatprep.subr.mxu0 0.0
    %4196 = vmatpush1.msra.mxu0 0.0
    %4197 = vmatprep.subr.mxu0 0.0
    %4198 = vmatpush1.msra.mxu0 0.0
    %4199 = vmatprep.subr.mxu0 0.0
    %4200 = vmatpush1.msra.mxu0 0.0
    %4201 = vmatprep.subr.mxu0 0.0
    %4202 = vmatpush1.msra.mxu0 0.0
    %4203 = vmatprep.subr.mxu0 0.0
    %4204 = vmatpush1.msra.mxu0 0.0
    %4205 = vmatprep.subr.mxu0 0.0
    %4206 = vmatpush1.msra.mxu0 0.0
    %4207 = vmatprep.subr.mxu0 0.0
    %4208 = vmatpush1.msra.mxu0 0.0
    %4209 = vmatprep.subr.mxu0 0.0
    %4210 = vmatpush1.msra.mxu0 0.0
    %4211 = vmatprep.subr.mxu0 0.0
    %4212 = vmatpush1.msra.mxu0 0.0
    %4213 = vmatprep.subr.mxu0 0.0
    %4214 = vmatpush1.msra.mxu0 0.0
    %4215 = vmatprep.subr.mxu0 0.0
    %4216 = vmatpush1.msra.mxu0 0.0
    %4217 = vmatprep.subr.mxu0 0.0
    %4218 = vmatpush1.msra.mxu0 0.0
    %4219 = vmatprep.subr.mxu0 0.0
    %4220 = vmatpush1.msra.mxu0 0.0
    %4221 = vmatprep.subr.mxu0 0.0
    %4222 = vmatpush1.msra.mxu0 0.0
    %4223 = vmatprep.subr.mxu0 0.0
    %4224 = vmatpush1.msra.mxu0 0.0
    %4225 = vmatprep.subr.mxu0 0.0
    %4226 = vmatpush1.msra.mxu0 0.0
    %4227 = vmatprep.subr.mxu0 0.0
    %4228 = vmatpush1.msra.mxu0 0.0
    %4229 = vmatprep.subr.mxu0 0.0
    %4230 = vmatpush1.msra.mxu0 0.0
    %4231 = vmatprep.subr.mxu0 0.0
    %4232 = vmatpush1.msra.mxu0 0.0
    %4233 = vmatprep.subr.mxu0 0.0
    %4234 = vmatpush1.msra.mxu0 0.0
    %4235 = vmatprep.subr.mxu0 0.0
    %4236 = vmatpush1.msra.mxu0 0.0
    %4237 = vmatprep.subr.mxu0 0.0
    %4238 = vmatpush1.msra.mxu0 0.0
    %4239 = vmatprep.subr.mxu0 0.0
    %4240 = vmatpush1.msra.mxu0 0.0
    %4241 = vmatprep.subr.mxu0 0.0
    %4242 = vmatpush1.msra.mxu0 0.0
    %4243 = vmatprep.subr.mxu0 0.0
    %4244 = vmatpush1.msra.mxu0 0.0
    %4245 = vmatprep.subr.mxu0 0.0
    %4246 = vmatpush1.msra.mxu0 0.0
    %4247 = vmatprep.subr.mxu0 0.0
    %4248 = vmatpush1.msra.mxu0 0.0
    %4249 = vmatprep.mubr.f32.mxu0 0.0
    %4250 = vmatmul.mubr.f32.gmra.mrb[0].mxu0 %v4183
    %v4251 = vpop.f32.mrb[0].mxu0
    %v4252 = vadd.f32 %v4180, %v4251
    %v4253 = vpop.f32.mrb[0].mxu0
    %4254 = vdwg.mxu0
    %v4255 = vmul.f32 %v4252, 0.35355338
    %s4256 = scalar_lea.vmem %s9, 96
    %v4257 = vld [vmem:[%s4256] sm:$0xff]
    %v4258 = vld [vmem:[%s4256 + $0x8] sm:$0xff]
    %v4259 = vld [vmem:[%s4256 + $0x10] sm:$0xff]
    %v4260 = vld [vmem:[%s4256 + $0x18] sm:$0xff]
    %s4261 = scalar_lea.vmem [#allocation10], 3
    %v4262 = vld [vmem:[%s4261] sm:$0x1]
    %v4264 = vlaneseq
    %v4265 = vshrl.u32 %v4264, 7
    %v4266 = vsub.s32 0, %v4265
    %v4267 = vrot.slane %v4262, %v4266
    %v4270 = vsel %vm387, %v3206, 0
    %v4273 = vsel %vm387, %v3207, 0
    %4275 = vmatprep.subr.mxu0 0.0
    %4276 = vmatpush1.msra.mxu0 %v4257
    %4277 = vmatprep.subr.mxu0 0.0
    %4278 = vmatpush1.msra.mxu0 %v4258
    %4279 = vmatprep.subr.mxu0 0.0
    %4280 = vmatpush1.msra.mxu0 %v4259
    %4281 = vmatprep.subr.mxu0 0.0
    %4282 = vmatpush1.msra.mxu0 %v4260
    %4283 = vmatprep.subr.mxu0 0.0
    %4284 = vmatpush1.msra.mxu0 0.0
    %4285 = vmatprep.subr.mxu0 0.0
    %4286 = vmatpush1.msra.mxu0 0.0
    %4287 = vmatprep.subr.mxu0 0.0
    %4288 = vmatpush1.msra.mxu0 0.0
    %4289 = vmatprep.subr.mxu0 0.0
    %4290 = vmatpush1.msra.mxu0 0.0
    %4291 = vmatprep.subr.mxu0 0.0
    %4292 = vmatpush1.msra.mxu0 0.0
    %4293 = vmatprep.subr.mxu0 0.0
    %4294 = vmatpush1.msra.mxu0 0.0
    %4295 = vmatprep.subr.mxu0 0.0
    %4296 = vmatpush1.msra.mxu0 0.0
    %4297 = vmatprep.subr.mxu0 0.0
    %4298 = vmatpush1.msra.mxu0 0.0
    %4299 = vmatprep.subr.mxu0 0.0
    %4300 = vmatpush1.msra.mxu0 0.0
    %4301 = vmatprep.subr.mxu0 0.0
    %4302 = vmatpush1.msra.mxu0 0.0
    %4303 = vmatprep.subr.mxu0 0.0
    %4304 = vmatpush1.msra.mxu0 0.0
    %4305 = vmatprep.subr.mxu0 0.0
    %4306 = vmatpush1.msra.mxu0 0.0
    %4307 = vmatprep.subr.mxu0 0.0
    %4308 = vmatpush1.msra.mxu0 0.0
    %4309 = vmatprep.subr.mxu0 0.0
    %4310 = vmatpush1.msra.mxu0 0.0
    %4311 = vmatprep.subr.mxu0 0.0
    %4312 = vmatpush1.msra.mxu0 0.0
    %4313 = vmatprep.subr.mxu0 0.0
    %4314 = vmatpush1.msra.mxu0 0.0
    %4315 = vmatprep.subr.mxu0 0.0
    %4316 = vmatpush1.msra.mxu0 0.0
    %4317 = vmatprep.subr.mxu0 0.0
    %4318 = vmatpush1.msra.mxu0 0.0
    %4319 = vmatprep.subr.mxu0 0.0
    %4320 = vmatpush1.msra.mxu0 0.0
    %4321 = vmatprep.subr.mxu0 0.0
    %4322 = vmatpush1.msra.mxu0 0.0
    %4323 = vmatprep.subr.mxu0 0.0
    %4324 = vmatpush1.msra.mxu0 0.0
    %4325 = vmatprep.subr.mxu0 0.0
    %4326 = vmatpush1.msra.mxu0 0.0
    %4327 = vmatprep.subr.mxu0 0.0
    %4328 = vmatpush1.msra.mxu0 0.0
    %4329 = vmatprep.subr.mxu0 0.0
    %4330 = vmatpush1.msra.mxu0 0.0
    %4331 = vmatprep.subr.mxu0 0.0
    %4332 = vmatpush1.msra.mxu0 0.0
    %4333 = vmatprep.subr.mxu0 0.0
    %4334 = vmatpush1.msra.mxu0 0.0
    %4335 = vmatprep.subr.mxu0 0.0
    %4336 = vmatpush1.msra.mxu0 0.0
    %4337 = vmatprep.subr.mxu0 0.0
    %4338 = vmatpush1.msra.mxu0 0.0
    %4339 = vmatprep.mubr.f32.mxu0 0.0
    %4340 = vmatmul.mubr.f32.gmra.mrb[0].mxu0 %v4270
    %v4341 = vpop.f32.mrb[0].mxu0
    %v4342 = vadd.f32 %v4267, %v4341
    %v4343 = vpop.f32.mrb[0].mxu0
    %4344 = vmatprep.mubr.f32.mxu0 0.0
    %4345 = vmatmul.mubr.f32.gmra.mrb[0].mxu0 %v4273
    %v4346 = vpop.f32.mrb[0].mxu0
    %v4347 = vadd.f32 %v4267, %v4346
    %v4348 = vpop.f32.mrb[0].mxu0
    %4349 = vdwg.mxu0
    %v4351 = vsel %vm557, %v4255, 0
    %v4354 = vsel %vm557, %v4342, 0
    %v4357 = vsel %vm557, %v4347, 0
    %4359 = vmatprep.subr.mxu0 0.0
    %4360 = vmatpush1.xpose.msra.mxu0 %v4354
    %4361 = vmatprep.subr.mxu0 0.0
    %4362 = vmatpush1.xpose.msra.mxu0 %v4357
    %4363 = vmatprep.subr.mxu0 0.0
    %4364 = vmatpush1.xpose.msra.mxu0 0.0
    %4365 = vmatprep.subr.mxu0 0.0
    %4366 = vmatpush1.xpose.msra.mxu0 0.0
    %4367 = vmatprep.subr.mxu0 0.0
    %4368 = vmatpush1.xpose.msra.mxu0 0.0
    %4369 = vmatprep.subr.mxu0 0.0
    %4370 = vmatpush1.xpose.msra.mxu0 0.0
    %4371 = vmatprep.subr.mxu0 0.0
    %4372 = vmatpush1.xpose.msra.mxu0 0.0
    %4373 = vmatprep.subr.mxu0 0.0
    %4374 = vmatpush1.xpose.msra.mxu0 0.0
    %4375 = vmatprep.subr.mxu0 0.0
    %4376 = vmatpush1.xpose.msra.mxu0 0.0
    %4377 = vmatprep.subr.mxu0 0.0
    %4378 = vmatpush1.xpose.msra.mxu0 0.0
    %4379 = vmatprep.subr.mxu0 0.0
    %4380 = vmatpush1.xpose.msra.mxu0 0.0
    %4381 = vmatprep.subr.mxu0 0.0
    %4382 = vmatpush1.xpose.msra.mxu0 0.0
    %4383 = vmatprep.subr.mxu0 0.0
    %4384 = vmatpush1.xpose.msra.mxu0 0.0
    %4385 = vmatprep.subr.mxu0 0.0
    %4386 = vmatpush1.xpose.msra.mxu0 0.0
    %4387 = vmatprep.subr.mxu0 0.0
    %4388 = vmatpush1.xpose.msra.mxu0 0.0
    %4389 = vmatprep.subr.mxu0 0.0
    %4390 = vmatpush1.xpose.msra.mxu0 0.0
    %4391 = vmatprep.subr.mxu0 0.0
    %4392 = vmatpush1.xpose.msra.mxu0 0.0
    %4393 = vmatprep.subr.mxu0 0.0
    %4394 = vmatpush1.xpose.msra.mxu0 0.0
    %4395 = vmatprep.subr.mxu0 0.0
    %4396 = vmatpush1.xpose.msra.mxu0 0.0
    %4397 = vmatprep.subr.mxu0 0.0
    %4398 = vmatpush1.xpose.msra.mxu0 0.0
    %4399 = vmatprep.subr.mxu0 0.0
    %4400 = vmatpush1.xpose.msra.mxu0 0.0
    %4401 = vmatprep.subr.mxu0 0.0
    %4402 = vmatpush1.xpose.msra.mxu0 0.0
    %4403 = vmatprep.subr.mxu0 0.0
    %4404 = vmatpush1.xpose.msra.mxu0 0.0
    %4405 = vmatprep.subr.mxu0 0.0
    %4406 = vmatpush1.xpose.msra.mxu0 0.0
    %4407 = vmatprep.subr.mxu0 0.0
    %4408 = vmatpush1.xpose.msra.mxu0 0.0
    %4409 = vmatprep.subr.mxu0 0.0
    %4410 = vmatpush1.xpose.msra.mxu0 0.0
    %4411 = vmatprep.subr.mxu0 0.0
    %4412 = vmatpush1.xpose.msra.mxu0 0.0
    %4413 = vmatprep.subr.mxu0 0.0
    %4414 = vmatpush1.xpose.msra.mxu0 0.0
    %4415 = vmatprep.subr.mxu0 0.0
    %4416 = vmatpush1.xpose.msra.mxu0 0.0
    %4417 = vmatprep.subr.mxu0 0.0
    %4418 = vmatpush1.xpose.msra.mxu0 0.0
    %4419 = vmatprep.subr.mxu0 0.0
    %4420 = vmatpush1.xpose.msra.mxu0 0.0
    %4421 = vmatprep.subr.mxu0 0.0
    %4422 = vmatpush1.xpose.msra.mxu0 0.0
    %4423 = vmatprep.mubr.f32.mxu0 0.0
    %4424 = vmatmul.mubr.f32.gmra.mrb[0].mxu0 %v4351
    %v4425 = vpop.f32.mrb[0].mxu0
    %v4426 = vadd.f32 %v186, %v4425
    %v4427 = vpop.f32.mrb[0].mxu0
    %4428 = vdwg.mxu0
    %v4429 = vsel %vm645, %v4426, -inf
    %4430 = vmax.xlane.f32.xlu0 %v4429
    %v4431 = vpop.xlane.xlu0 %4430
    %v4432 = vsub.f32 %v4426, %v4431
    %v4433 = vmul.f32 %v4432, 1.442695
    %v4434 = vpow.pop %v4433
    %v4435 = vsel %vm645, %v4434, 0.0
    %4436 = vadd.xlane.f32.xlu0 %v4435
    %v4437 = vpop.xlane.xlu0 %4436
    %v4438 = vrcp.pop %v4437
    %v4439 = vmul.f32 %v4434, %v4438
    %4440 = vrot.lane.b32.xlu0 %v4342, 96
    %v4441 = vpop.permute.xlu0 %4440
    %4442 = vrot.lane.b32.xlu0 %v4347, 96
    %v4443 = vpop.permute.xlu0 %4442
    %v4447 = vsel %vm645, %v4439, 0
    %4449 = vmatprep.subr.mxu0 0.0
    %4450 = vmatpush1.msra.mxu0 %v4441
    %4451 = vmatprep.subr.mxu0 0.0
    %4452 = vmatpush1.msra.mxu0 %v4443
    %4453 = vmatprep.subr.mxu0 0.0
    %4454 = vmatpush1.msra.mxu0 0.0
    %4455 = vmatprep.subr.mxu0 0.0
    %4456 = vmatpush1.msra.mxu0 0.0
    %4457 = vmatprep.subr.mxu0 0.0
    %4458 = vmatpush1.msra.mxu0 0.0
    %4459 = vmatprep.subr.mxu0 0.0
    %4460 = vmatpush1.msra.mxu0 0.0
    %4461 = vmatprep.subr.mxu0 0.0
    %4462 = vmatpush1.msra.mxu0 0.0
    %4463 = vmatprep.subr.mxu0 0.0
    %4464 = vmatpush1.msra.mxu0 0.0
    %4465 = vmatprep.subr.mxu0 0.0
    %4466 = vmatpush1.msra.mxu0 0.0
    %4467 = vmatprep.subr.mxu0 0.0
    %4468 = vmatpush1.msra.mxu0 0.0
    %4469 = vmatprep.subr.mxu0 0.0
    %4470 = vmatpush1.msra.mxu0 0.0
    %4471 = vmatprep.subr.mxu0 0.0
    %4472 = vmatpush1.msra.mxu0 0.0
    %4473 = vmatprep.subr.mxu0 0.0
    %4474 = vmatpush1.msra.mxu0 0.0
    %4475 = vmatprep.subr.mxu0 0.0
    %4476 = vmatpush1.msra.mxu0 0.0
    %4477 = vmatprep.subr.mxu0 0.0
    %4478 = vmatpush1.msra.mxu0 0.0
    %4479 = vmatprep.subr.mxu0 0.0
    %4480 = vmatpush1.msra.mxu0 0.0
    %4481 = vmatprep.subr.mxu0 0.0
    %4482 = vmatpush1.msra.mxu0 0.0
    %4483 = vmatprep.subr.mxu0 0.0
    %4484 = vmatpush1.msra.mxu0 0.0
    %4485 = vmatprep.subr.mxu0 0.0
    %4486 = vmatpush1.msra.mxu0 0.0
    %4487 = vmatprep.subr.mxu0 0.0
    %4488 = vmatpush1.msra.mxu0 0.0
    %4489 = vmatprep.subr.mxu0 0.0
    %4490 = vmatpush1.msra.mxu0 0.0
    %4491 = vmatprep.subr.mxu0 0.0
    %4492 = vmatpush1.msra.mxu0 0.0
    %4493 = vmatprep.subr.mxu0 0.0
    %4494 = vmatpush1.msra.mxu0 0.0
    %4495 = vmatprep.subr.mxu0 0.0
    %4496 = vmatpush1.msra.mxu0 0.0
    %4497 = vmatprep.subr.mxu0 0.0
    %4498 = vmatpush1.msra.mxu0 0.0
    %4499 = vmatprep.subr.mxu0 0.0
    %4500 = vmatpush1.msra.mxu0 0.0
    %4501 = vmatprep.subr.mxu0 0.0
    %4502 = vmatpush1.msra.mxu0 0.0
    %4503 = vmatprep.subr.mxu0 0.0
    %4504 = vmatpush1.msra.mxu0 0.0
    %4505 = vmatprep.subr.mxu0 0.0
    %4506 = vmatpush1.msra.mxu0 0.0
    %4507 = vmatprep.subr.mxu0 0.0
    %4508 = vmatpush1.msra.mxu0 0.0
    %4509 = vmatprep.subr.mxu0 0.0
    %4510 = vmatpush1.msra.mxu0 0.0
    %4511 = vmatprep.subr.mxu0 0.0
    %4512 = vmatpush1.msra.mxu0 0.0
    %4513 = vmatprep.mubr.f32.mxu0 0.0
    %4514 = vmatmul.mubr.f32.gmra.mrb[0].mxu0 %v4447
    %v4515 = vpop.f32.mrb[0].mxu0
    %v4516 = vadd.f32 0.0, %v4515
    %v4517 = vpop.f32.mrb[0].mxu0
    %4518 = vdwg.mxu0
    %4519 = vrot.lane.b32.xlu0 %v4255, 120
    %v4520 = vpop.permute.xlu0 %4519
    %4521 = vrot.lane.b32.xlu0 %v4342, 120
    %v4522 = vpop.permute.xlu0 %4521
    %4523 = vrot.lane.b32.xlu0 %v4347, 120
    %v4524 = vpop.permute.xlu0 %4523
    %v4525 = vsel %vm557, %v4520, 0
    %v4527 = vsel %vm557, %v4522, 0
    %v4529 = vsel %vm557, %v4524, 0
    %4531 = vmatprep.subr.mxu0 0.0
    %4532 = vmatpush1.xpose.msra.mxu0 %v4527
    %4533 = vmatprep.subr.mxu0 0.0
    %4534 = vmatpush1.xpose.msra.mxu0 %v4529
    %4535 = vmatprep.subr.mxu0 0.0
    %4536 = vmatpush1.xpose.msra.mxu0 0.0
    %4537 = vmatprep.subr.mxu0 0.0
    %4538 = vmatpush1.xpose.msra.mxu0 0.0
    %4539 = vmatprep.subr.mxu0 0.0
    %4540 = vmatpush1.xpose.msra.mxu0 0.0
    %4541 = vmatprep.subr.mxu0 0.0
    %4542 = vmatpush1.xpose.msra.mxu0 0.0
    %4543 = vmatprep.subr.mxu0 0.0
    %4544 = vmatpush1.xpose.msra.mxu0 0.0
    %4545 = vmatprep.subr.mxu0 0.0
    %4546 = vmatpush1.xpose.msra.mxu0 0.0
    %4547 = vmatprep.subr.mxu0 0.0
    %4548 = vmatpush1.xpose.msra.mxu0 0.0
    %4549 = vmatprep.subr.mxu0 0.0
    %4550 = vmatpush1.xpose.msra.mxu0 0.0
    %4551 = vmatprep.subr.mxu0 0.0
    %4552 = vmatpush1.xpose.msra.mxu0 0.0
    %4553 = vmatprep.subr.mxu0 0.0
    %4554 = vmatpush1.xpose.msra.mxu0 0.0
    %4555 = vmatprep.subr.mxu0 0.0
    %4556 = vmatpush1.xpose.msra.mxu0 0.0
    %4557 = vmatprep.subr.mxu0 0.0
    %4558 = vmatpush1.xpose.msra.mxu0 0.0
    %4559 = vmatprep.subr.mxu0 0.0
    %4560 = vmatpush1.xpose.msra.mxu0 0.0
    %4561 = vmatprep.subr.mxu0 0.0
    %4562 = vmatpush1.xpose.msra.mxu0 0.0
    %4563 = vmatprep.subr.mxu0 0.0
    %4564 = vmatpush1.xpose.msra.mxu0 0.0
    %4565 = vmatprep.subr.mxu0 0.0
    %4566 = vmatpush1.xpose.msra.mxu0 0.0
    %4567 = vmatprep.subr.mxu0 0.0
    %4568 = vmatpush1.xpose.msra.mxu0 0.0
    %4569 = vmatprep.subr.mxu0 0.0
    %4570 = vmatpush1.xpose.msra.mxu0 0.0
    %4571 = vmatprep.subr.mxu0 0.0
    %4572 = vmatpush1.xpose.msra.mxu0 0.0
    %4573 = vmatprep.subr.mxu0 0.0
    %4574 = vmatpush1.xpose.msra.mxu0 0.0
    %4575 = vmatprep.subr.mxu0 0.0
    %4576 = vmatpush1.xpose.msra.mxu0 0.0
    %4577 = vmatprep.subr.mxu0 0.0
    %4578 = vmatpush1.xpose.msra.mxu0 0.0
    %4579 = vmatprep.subr.mxu0 0.0
    %4580 = vmatpush1.xpose.msra.mxu0 0.0
    %4581 = vmatprep.subr.mxu0 0.0
    %4582 = vmatpush1.xpose.msra.mxu0 0.0
    %4583 = vmatprep.subr.mxu0 0.0
    %4584 = vmatpush1.xpose.msra.mxu0 0.0
    %4585 = vmatprep.subr.mxu0 0.0
    %4586 = vmatpush1.xpose.msra.mxu0 0.0
    %4587 = vmatprep.subr.mxu0 0.0
    %4588 = vmatpush1.xpose.msra.mxu0 0.0
    %4589 = vmatprep.subr.mxu0 0.0
    %4590 = vmatpush1.xpose.msra.mxu0 0.0
    %4591 = vmatprep.subr.mxu0 0.0
    %4592 = vmatpush1.xpose.msra.mxu0 0.0
    %4593 = vmatprep.subr.mxu0 0.0
    %4594 = vmatpush1.xpose.msra.mxu0 0.0
    %4595 = vmatprep.mubr.f32.mxu0 0.0
    %4596 = vmatmul.mubr.f32.gmra.mrb[0].mxu0 %v4525
    %v4597 = vpop.f32.mrb[0].mxu0
    %v4598 = vadd.f32 %v186, %v4597
    %v4599 = vpop.f32.mrb[0].mxu0
    %4600 = vdwg.mxu0
    %v4601 = vsel %vm645, %v4598, -inf
    %4602 = vmax.xlane.f32.xlu0 %v4601
    %v4603 = vpop.xlane.xlu0 %4602
    %v4604 = vsub.f32 %v4598, %v4603
    %v4605 = vmul.f32 %v4604, 1.442695
    %v4606 = vpow.pop %v4605
    %v4607 = vsel %vm645, %v4606, 0.0
    %4608 = vadd.xlane.f32.xlu0 %v4607
    %v4609 = vpop.xlane.xlu0 %4608
    %v4610 = vrcp.pop %v4609
    %v4611 = vmul.f32 %v4606, %v4610
    %4612 = vrot.lane.b32.xlu0 %v4342, 88
    %v4613 = vpop.permute.xlu0 %4612
    %4614 = vrot.lane.b32.xlu0 %v4347, 88
    %v4615 = vpop.permute.xlu0 %4614
    %v4619 = vsel %vm645, %v4611, 0
    %4621 = vmatprep.subr.mxu0 0.0
    %4622 = vmatpush1.msra.mxu0 %v4613
    %4623 = vmatprep.subr.mxu0 0.0
    %4624 = vmatpush1.msra.mxu0 %v4615
    %4625 = vmatprep.subr.mxu0 0.0
    %4626 = vmatpush1.msra.mxu0 0.0
    %4627 = vmatprep.subr.mxu0 0.0
    %4628 = vmatpush1.msra.mxu0 0.0
    %4629 = vmatprep.subr.mxu0 0.0
    %4630 = vmatpush1.msra.mxu0 0.0
    %4631 = vmatprep.subr.mxu0 0.0
    %4632 = vmatpush1.msra.mxu0 0.0
    %4633 = vmatprep.subr.mxu0 0.0
    %4634 = vmatpush1.msra.mxu0 0.0
    %4635 = vmatprep.subr.mxu0 0.0
    %4636 = vmatpush1.msra.mxu0 0.0
    %4637 = vmatprep.subr.mxu0 0.0
    %4638 = vmatpush1.msra.mxu0 0.0
    %4639 = vmatprep.subr.mxu0 0.0
    %4640 = vmatpush1.msra.mxu0 0.0
    %4641 = vmatprep.subr.mxu0 0.0
    %4642 = vmatpush1.msra.mxu0 0.0
    %4643 = vmatprep.subr.mxu0 0.0
    %4644 = vmatpush1.msra.mxu0 0.0
    %4645 = vmatprep.subr.mxu0 0.0
    %4646 = vmatpush1.msra.mxu0 0.0
    %4647 = vmatprep.subr.mxu0 0.0
    %4648 = vmatpush1.msra.mxu0 0.0
    %4649 = vmatprep.subr.mxu0 0.0
    %4650 = vmatpush1.msra.mxu0 0.0
    %4651 = vmatprep.subr.mxu0 0.0
    %4652 = vmatpush1.msra.mxu0 0.0
    %4653 = vmatprep.subr.mxu0 0.0
    %4654 = vmatpush1.msra.mxu0 0.0
    %4655 = vmatprep.subr.mxu0 0.0
    %4656 = vmatpush1.msra.mxu0 0.0
    %4657 = vmatprep.subr.mxu0 0.0
    %4658 = vmatpush1.msra.mxu0 0.0
    %4659 = vmatprep.subr.mxu0 0.0
    %4660 = vmatpush1.msra.mxu0 0.0
    %4661 = vmatprep.subr.mxu0 0.0
    %4662 = vmatpush1.msra.mxu0 0.0
    %4663 = vmatprep.subr.mxu0 0.0
    %4664 = vmatpush1.msra.mxu0 0.0
    %4665 = vmatprep.subr.mxu0 0.0
    %4666 = vmatpush1.msra.mxu0 0.0
    %4667 = vmatprep.subr.mxu0 0.0
    %4668 = vmatpush1.msra.mxu0 0.0
    %4669 = vmatprep.subr.mxu0 0.0
    %4670 = vmatpush1.msra.mxu0 0.0
    %4671 = vmatprep.subr.mxu0 0.0
    %4672 = vmatpush1.msra.mxu0 0.0
    %4673 = vmatprep.subr.mxu0 0.0
    %4674 = vmatpush1.msra.mxu0 0.0
    %4675 = vmatprep.subr.mxu0 0.0
    %4676 = vmatpush1.msra.mxu0 0.0
    %4677 = vmatprep.subr.mxu0 0.0
    %4678 = vmatpush1.msra.mxu0 0.0
    %4679 = vmatprep.subr.mxu0 0.0
    %4680 = vmatpush1.msra.mxu0 0.0
    %4681 = vmatprep.subr.mxu0 0.0
    %4682 = vmatpush1.msra.mxu0 0.0
    %4683 = vmatprep.subr.mxu0 0.0
    %4684 = vmatpush1.msra.mxu0 0.0
    %4685 = vmatprep.mubr.f32.mxu0 0.0
    %4686 = vmatmul.mubr.f32.gmra.mrb[0].mxu0 %v4619
    %v4687 = vpop.f32.mrb[0].mxu0
    %v4688 = vadd.f32 0.0, %v4687
    %v4689 = vpop.f32.mrb[0].mxu0
    %4690 = vdwg.mxu0
    %4691 = vrot.lane.b32.xlu0 %v4255, 112
    %v4692 = vpop.permute.xlu0 %4691
    %4693 = vrot.lane.b32.xlu0 %v4342, 112
    %v4694 = vpop.permute.xlu0 %4693
    %4695 = vrot.lane.b32.xlu0 %v4347, 112
    %v4696 = vpop.permute.xlu0 %4695
    %v4697 = vsel %vm557, %v4692, 0
    %v4699 = vsel %vm557, %v4694, 0
    %v4701 = vsel %vm557, %v4696, 0
    %4703 = vmatprep.subr.mxu0 0.0
    %4704 = vmatpush1.xpose.msra.mxu0 %v4699
    %4705 = vmatprep.subr.mxu0 0.0
    %4706 = vmatpush1.xpose.msra.mxu0 %v4701
    %4707 = vmatprep.subr.mxu0 0.0
    %4708 = vmatpush1.xpose.msra.mxu0 0.0
    %4709 = vmatprep.subr.mxu0 0.0
    %4710 = vmatpush1.xpose.msra.mxu0 0.0
    %4711 = vmatprep.subr.mxu0 0.0
    %4712 = vmatpush1.xpose.msra.mxu0 0.0
    %4713 = vmatprep.subr.mxu0 0.0
    %4714 = vmatpush1.xpose.msra.mxu0 0.0
    %4715 = vmatprep.subr.mxu0 0.0
    %4716 = vmatpush1.xpose.msra.mxu0 0.0
    %4717 = vmatprep.subr.mxu0 0.0
    %4718 = vmatpush1.xpose.msra.mxu0 0.0
    %4719 = vmatprep.subr.mxu0 0.0
    %4720 = vmatpush1.xpose.msra.mxu0 0.0
    %4721 = vmatprep.subr.mxu0 0.0
    %4722 = vmatpush1.xpose.msra.mxu0 0.0
    %4723 = vmatprep.subr.mxu0 0.0
    %4724 = vmatpush1.xpose.msra.mxu0 0.0
    %4725 = vmatprep.subr.mxu0 0.0
    %4726 = vmatpush1.xpose.msra.mxu0 0.0
    %4727 = vmatprep.subr.mxu0 0.0
    %4728 = vmatpush1.xpose.msra.mxu0 0.0
    %4729 = vmatprep.subr.mxu0 0.0
    %4730 = vmatpush1.xpose.msra.mxu0 0.0
    %4731 = vmatprep.subr.mxu0 0.0
    %4732 = vmatpush1.xpose.msra.mxu0 0.0
    %4733 = vmatprep.subr.mxu0 0.0
    %4734 = vmatpush1.xpose.msra.mxu0 0.0
    %4735 = vmatprep.subr.mxu0 0.0
    %4736 = vmatpush1.xpose.msra.mxu0 0.0
    %4737 = vmatprep.subr.mxu0 0.0
    %4738 = vmatpush1.xpose.msra.mxu0 0.0
    %4739 = vmatprep.subr.mxu0 0.0
    %4740 = vmatpush1.xpose.msra.mxu0 0.0
    %4741 = vmatprep.subr.mxu0 0.0
    %4742 = vmatpush1.xpose.msra.mxu0 0.0
    %4743 = vmatprep.subr.mxu0 0.0
    %4744 = vmatpush1.xpose.msra.mxu0 0.0
    %4745 = vmatprep.subr.mxu0 0.0
    %4746 = vmatpush1.xpose.msra.mxu0 0.0
    %4747 = vmatprep.subr.mxu0 0.0
    %4748 = vmatpush1.xpose.msra.mxu0 0.0
    %4749 = vmatprep.subr.mxu0 0.0
    %4750 = vmatpush1.xpose.msra.mxu0 0.0
    %4751 = vmatprep.subr.mxu0 0.0
    %4752 = vmatpush1.xpose.msra.mxu0 0.0
    %4753 = vmatprep.subr.mxu0 0.0
    %4754 = vmatpush1.xpose.msra.mxu0 0.0
    %4755 = vmatprep.subr.mxu0 0.0
    %4756 = vmatpush1.xpose.msra.mxu0 0.0
    %4757 = vmatprep.subr.mxu0 0.0
    %4758 = vmatpush1.xpose.msra.mxu0 0.0
    %4759 = vmatprep.subr.mxu0 0.0
    %4760 = vmatpush1.xpose.msra.mxu0 0.0
    %4761 = vmatprep.subr.mxu0 0.0
    %4762 = vmatpush1.xpose.msra.mxu0 0.0
    %4763 = vmatprep.subr.mxu0 0.0
    %4764 = vmatpush1.xpose.msra.mxu0 0.0
    %4765 = vmatprep.subr.mxu0 0.0
    %4766 = vmatpush1.xpose.msra.mxu0 0.0
    %4767 = vmatprep.mubr.f32.mxu0 0.0
    %4768 = vmatmul.mubr.f32.gmra.mrb[0].mxu0 %v4697
    %v4769 = vpop.f32.mrb[0].mxu0
    %v4770 = vadd.f32 %v186, %v4769
    %v4771 = vpop.f32.mrb[0].mxu0
    %4772 = vdwg.mxu0
    %v4773 = vsel %vm645, %v4770, -inf
    %4774 = vmax.xlane.f32.xlu0 %v4773
    %v4775 = vpop.xlane.xlu0 %4774
    %v4776 = vsub.f32 %v4770, %v4775
    %v4777 = vmul.f32 %v4776, 1.442695
    %v4778 = vpow.pop %v4777
    %v4779 = vsel %vm645, %v4778, 0.0
    %4780 = vadd.xlane.f32.xlu0 %v4779
    %v4781 = vpop.xlane.xlu0 %4780
    %v4782 = vrcp.pop %v4781
    %v4783 = vmul.f32 %v4778, %v4782
    %4784 = vrot.lane.b32.xlu0 %v4342, 80
    %v4785 = vpop.permute.xlu0 %4784
    %4786 = vrot.lane.b32.xlu0 %v4347, 80
    %v4787 = vpop.permute.xlu0 %4786
    %v4791 = vsel %vm645, %v4783, 0
    %4793 = vmatprep.subr.mxu0 0.0
    %4794 = vmatpush1.msra.mxu0 %v4785
    %4795 = vmatprep.subr.mxu0 0.0
    %4796 = vmatpush1.msra.mxu0 %v4787
    %4797 = vmatprep.subr.mxu0 0.0
    %4798 = vmatpush1.msra.mxu0 0.0
    %4799 = vmatprep.subr.mxu0 0.0
    %4800 = vmatpush1.msra.mxu0 0.0
    %4801 = vmatprep.subr.mxu0 0.0
    %4802 = vmatpush1.msra.mxu0 0.0
    %4803 = vmatprep.subr.mxu0 0.0
    %4804 = vmatpush1.msra.mxu0 0.0
    %4805 = vmatprep.subr.mxu0 0.0
    %4806 = vmatpush1.msra.mxu0 0.0
    %4807 = vmatprep.subr.mxu0 0.0
    %4808 = vmatpush1.msra.mxu0 0.0
    %4809 = vmatprep.subr.mxu0 0.0
    %4810 = vmatpush1.msra.mxu0 0.0
    %4811 = vmatprep.subr.mxu0 0.0
    %4812 = vmatpush1.msra.mxu0 0.0
    %4813 = vmatprep.subr.mxu0 0.0
    %4814 = vmatpush1.msra.mxu0 0.0
    %4815 = vmatprep.subr.mxu0 0.0
    %4816 = vmatpush1.msra.mxu0 0.0
    %4817 = vmatprep.subr.mxu0 0.0
    %4818 = vmatpush1.msra.mxu0 0.0
    %4819 = vmatprep.subr.mxu0 0.0
    %4820 = vmatpush1.msra.mxu0 0.0
    %4821 = vmatprep.subr.mxu0 0.0
    %4822 = vmatpush1.msra.mxu0 0.0
    %4823 = vmatprep.subr.mxu0 0.0
    %4824 = vmatpush1.msra.mxu0 0.0
    %4825 = vmatprep.subr.mxu0 0.0
    %4826 = vmatpush1.msra.mxu0 0.0
    %4827 = vmatprep.subr.mxu0 0.0
    %4828 = vmatpush1.msra.mxu0 0.0
    %4829 = vmatprep.subr.mxu0 0.0
    %4830 = vmatpush1.msra.mxu0 0.0
    %4831 = vmatprep.subr.mxu0 0.0
    %4832 = vmatpush1.msra.mxu0 0.0
    %4833 = vmatprep.subr.mxu0 0.0
    %4834 = vmatpush1.msra.mxu0 0.0
    %4835 = vmatprep.subr.mxu0 0.0
    %4836 = vmatpush1.msra.mxu0 0.0
    %4837 = vmatprep.subr.mxu0 0.0
    %4838 = vmatpush1.msra.mxu0 0.0
    %4839 = vmatprep.subr.mxu0 0.0
    %4840 = vmatpush1.msra.mxu0 0.0
    %4841 = vmatprep.subr.mxu0 0.0
    %4842 = vmatpush1.msra.mxu0 0.0
    %4843 = vmatprep.subr.mxu0 0.0
    %4844 = vmatpush1.msra.mxu0 0.0
    %4845 = vmatprep.subr.mxu0 0.0
    %4846 = vmatpush1.msra.mxu0 0.0
    %4847 = vmatprep.subr.mxu0 0.0
    %4848 = vmatpush1.msra.mxu0 0.0
    %4849 = vmatprep.subr.mxu0 0.0
    %4850 = vmatpush1.msra.mxu0 0.0
    %4851 = vmatprep.subr.mxu0 0.0
    %4852 = vmatpush1.msra.mxu0 0.0
    %4853 = vmatprep.subr.mxu0 0.0
    %4854 = vmatpush1.msra.mxu0 0.0
    %4855 = vmatprep.subr.mxu0 0.0
    %4856 = vmatpush1.msra.mxu0 0.0
    %4857 = vmatprep.mubr.f32.mxu0 0.0
    %4858 = vmatmul.mubr.f32.gmra.mrb[0].mxu0 %v4791
    %v4859 = vpop.f32.mrb[0].mxu0
    %v4860 = vadd.f32 0.0, %v4859
    %v4861 = vpop.f32.mrb[0].mxu0
    %4862 = vdwg.mxu0
    %4863 = vrot.lane.b32.xlu0 %v4255, 104
    %v4864 = vpop.permute.xlu0 %4863
    %4865 = vrot.lane.b32.xlu0 %v4342, 104
    %v4866 = vpop.permute.xlu0 %4865
    %4867 = vrot.lane.b32.xlu0 %v4347, 104
    %v4868 = vpop.permute.xlu0 %4867
    %v4869 = vsel %vm557, %v4864, 0
    %v4871 = vsel %vm557, %v4866, 0
    %v4873 = vsel %vm557, %v4868, 0
    %4875 = vmatprep.subr.mxu0 0.0
    %4876 = vmatpush1.xpose.msra.mxu0 %v4871
    %4877 = vmatprep.subr.mxu0 0.0
    %4878 = vmatpush1.xpose.msra.mxu0 %v4873
    %4879 = vmatprep.subr.mxu0 0.0
    %4880 = vmatpush1.xpose.msra.mxu0 0.0
    %4881 = vmatprep.subr.mxu0 0.0
    %4882 = vmatpush1.xpose.msra.mxu0 0.0
    %4883 = vmatprep.subr.mxu0 0.0
    %4884 = vmatpush1.xpose.msra.mxu0 0.0
    %4885 = vmatprep.subr.mxu0 0.0
    %4886 = vmatpush1.xpose.msra.mxu0 0.0
    %4887 = vmatprep.subr.mxu0 0.0
    %4888 = vmatpush1.xpose.msra.mxu0 0.0
    %4889 = vmatprep.subr.mxu0 0.0
    %4890 = vmatpush1.xpose.msra.mxu0 0.0
    %4891 = vmatprep.subr.mxu0 0.0
    %4892 = vmatpush1.xpose.msra.mxu0 0.0
    %4893 = vmatprep.subr.mxu0 0.0
    %4894 = vmatpush1.xpose.msra.mxu0 0.0
    %4895 = vmatprep.subr.mxu0 0.0
    %4896 = vmatpush1.xpose.msra.mxu0 0.0
    %4897 = vmatprep.subr.mxu0 0.0
    %4898 = vmatpush1.xpose.msra.mxu0 0.0
    %4899 = vmatprep.subr.mxu0 0.0
    %4900 = vmatpush1.xpose.msra.mxu0 0.0
    %4901 = vmatprep.subr.mxu0 0.0
    %4902 = vmatpush1.xpose.msra.mxu0 0.0
    %4903 = vmatprep.subr.mxu0 0.0
    %4904 = vmatpush1.xpose.msra.mxu0 0.0
    %4905 = vmatprep.subr.mxu0 0.0
    %4906 = vmatpush1.xpose.msra.mxu0 0.0
    %4907 = vmatprep.subr.mxu0 0.0
    %4908 = vmatpush1.xpose.msra.mxu0 0.0
    %4909 = vmatprep.subr.mxu0 0.0
    %4910 = vmatpush1.xpose.msra.mxu0 0.0
    %4911 = vmatprep.subr.mxu0 0.0
    %4912 = vmatpush1.xpose.msra.mxu0 0.0
    %4913 = vmatprep.subr.mxu0 0.0
    %4914 = vmatpush1.xpose.msra.mxu0 0.0
    %4915 = vmatprep.subr.mxu0 0.0
    %4916 = vmatpush1.xpose.msra.mxu0 0.0
    %4917 = vmatprep.subr.mxu0 0.0
    %4918 = vmatpush1.xpose.msra.mxu0 0.0
    %4919 = vmatprep.subr.mxu0 0.0
    %4920 = vmatpush1.xpose.msra.mxu0 0.0
    %4921 = vmatprep.subr.mxu0 0.0
    %4922 = vmatpush1.xpose.msra.mxu0 0.0
    %4923 = vmatprep.subr.mxu0 0.0
    %4924 = vmatpush1.xpose.msra.mxu0 0.0
    %4925 = vmatprep.subr.mxu0 0.0
    %4926 = vmatpush1.xpose.msra.mxu0 0.0
    %4927 = vmatprep.subr.mxu0 0.0
    %4928 = vmatpush1.xpose.msra.mxu0 0.0
    %4929 = vmatprep.subr.mxu0 0.0
    %4930 = vmatpush1.xpose.msra.mxu0 0.0
    %4931 = vmatprep.subr.mxu0 0.0
    %4932 = vmatpush1.xpose.msra.mxu0 0.0
    %4933 = vmatprep.subr.mxu0 0.0
    %4934 = vmatpush1.xpose.msra.mxu0 0.0
    %4935 = vmatprep.subr.mxu0 0.0
    %4936 = vmatpush1.xpose.msra.mxu0 0.0
    %4937 = vmatprep.subr.mxu0 0.0
    %4938 = vmatpush1.xpose.msra.mxu0 0.0
    %4939 = vmatprep.mubr.f32.mxu0 0.0
    %4940 = vmatmul.mubr.f32.gmra.mrb[0].mxu0 %v4869
    %v4941 = vpop.f32.mrb[0].mxu0
    %v4942 = vadd.f32 %v186, %v4941
    %v4943 = vpop.f32.mrb[0].mxu0
    %4944 = vdwg.mxu0
    %v4945 = vsel %vm645, %v4942, -inf
    %4946 = vmax.xlane.f32.xlu0 %v4945
    %v4947 = vpop.xlane.xlu0 %4946
    %v4948 = vsub.f32 %v4942, %v4947
    %v4949 = vmul.f32 %v4948, 1.442695
    %v4950 = vpow.pop %v4949
    %v4951 = vsel %vm645, %v4950, 0.0
    %4952 = vadd.xlane.f32.xlu0 %v4951
    %v4953 = vpop.xlane.xlu0 %4952
    %v4954 = vrcp.pop %v4953
    %v4955 = vmul.f32 %v4950, %v4954
    %4956 = vrot.lane.b32.xlu0 %v4342, 72
    %v4957 = vpop.permute.xlu0 %4956
    %4958 = vrot.lane.b32.xlu0 %v4347, 72
    %v4959 = vpop.permute.xlu0 %4958
    %v4963 = vsel %vm645, %v4955, 0
    %4965 = vmatprep.subr.mxu0 0.0
    %4966 = vmatpush1.msra.mxu0 %v4957
    %4967 = vmatprep.subr.mxu0 0.0
    %4968 = vmatpush1.msra.mxu0 %v4959
    %4969 = vmatprep.subr.mxu0 0.0
    %4970 = vmatpush1.msra.mxu0 0.0
    %4971 = vmatprep.subr.mxu0 0.0
    %4972 = vmatpush1.msra.mxu0 0.0
    %4973 = vmatprep.subr.mxu0 0.0
    %4974 = vmatpush1.msra.mxu0 0.0
    %4975 = vmatprep.subr.mxu0 0.0
    %4976 = vmatpush1.msra.mxu0 0.0
    %4977 = vmatprep.subr.mxu0 0.0
    %4978 = vmatpush1.msra.mxu0 0.0
    %4979 = vmatprep.subr.mxu0 0.0
    %4980 = vmatpush1.msra.mxu0 0.0
    %4981 = vmatprep.subr.mxu0 0.0
    %4982 = vmatpush1.msra.mxu0 0.0
    %4983 = vmatprep.subr.mxu0 0.0
    %4984 = vmatpush1.msra.mxu0 0.0
    %4985 = vmatprep.subr.mxu0 0.0
    %4986 = vmatpush1.msra.mxu0 0.0
    %4987 = vmatprep.subr.mxu0 0.0
    %4988 = vmatpush1.msra.mxu0 0.0
    %4989 = vmatprep.subr.mxu0 0.0
    %4990 = vmatpush1.msra.mxu0 0.0
    %4991 = vmatprep.subr.mxu0 0.0
    %4992 = vmatpush1.msra.mxu0 0.0
    %4993 = vmatprep.subr.mxu0 0.0
    %4994 = vmatpush1.msra.mxu0 0.0
    %4995 = vmatprep.subr.mxu0 0.0
    %4996 = vmatpush1.msra.mxu0 0.0
    %4997 = vmatprep.subr.mxu0 0.0
    %4998 = vmatpush1.msra.mxu0 0.0
    %4999 = vmatprep.subr.mxu0 0.0
    %5000 = vmatpush1.msra.mxu0 0.0
    %5001 = vmatprep.subr.mxu0 0.0
    %5002 = vmatpush1.msra.mxu0 0.0
    %5003 = vmatprep.subr.mxu0 0.0
    %5004 = vmatpush1.msra.mxu0 0.0
    %5005 = vmatprep.subr.mxu0 0.0
    %5006 = vmatpush1.msra.mxu0 0.0
    %5007 = vmatprep.subr.mxu0 0.0
    %5008 = vmatpush1.msra.mxu0 0.0
    %5009 = vmatprep.subr.mxu0 0.0
    %5010 = vmatpush1.msra.mxu0 0.0
    %5011 = vmatprep.subr.mxu0 0.0
    %5012 = vmatpush1.msra.mxu0 0.0
    %5013 = vmatprep.subr.mxu0 0.0
    %5014 = vmatpush1.msra.mxu0 0.0
    %5015 = vmatprep.subr.mxu0 0.0
    %5016 = vmatpush1.msra.mxu0 0.0
    %5017 = vmatprep.subr.mxu0 0.0
    %5018 = vmatpush1.msra.mxu0 0.0
    %5019 = vmatprep.subr.mxu0 0.0
    %5020 = vmatpush1.msra.mxu0 0.0
    %5021 = vmatprep.subr.mxu0 0.0
    %5022 = vmatpush1.msra.mxu0 0.0
    %5023 = vmatprep.subr.mxu0 0.0
    %5024 = vmatpush1.msra.mxu0 0.0
    %5025 = vmatprep.subr.mxu0 0.0
    %5026 = vmatpush1.msra.mxu0 0.0
    %5027 = vmatprep.subr.mxu0 0.0
    %5028 = vmatpush1.msra.mxu0 0.0
    %5029 = vmatprep.mubr.f32.mxu0 0.0
    %5030 = vmatmul.mubr.f32.gmra.mrb[0].mxu0 %v4963
    %v5031 = vpop.f32.mrb[0].mxu0
    %v5032 = vadd.f32 0.0, %v5031
    %v5033 = vpop.f32.mrb[0].mxu0
    %5034 = vdwg.mxu0
    %5036 = vrot.lane.b32.xlu0 %v4688, 8
    %v5037 = vpop.permute.xlu0 %5036
    %5040 = vrot.lane.b32.xlu0 %v4860, 16
    %v5041 = vpop.permute.xlu0 %5040
    %5044 = vrot.lane.b32.xlu0 %v5032, 24
    %v5045 = vpop.permute.xlu0 %5044
    %v5047 = vsel %vm557, %v4516, %v5037
    %v5048 = vsel %vm645, %v5047, %v5041
    %v5049 = vsel %vm1383, %v5048, %v5045
    %s5050 = scalar_lea.vmem %s11, 96
    %v5051 = vld [vmem:[%s5050] sm:$0xff]
    %v5052 = vld [vmem:[%s5050 + $0x8] sm:$0xff]
    %v5053 = vld [vmem:[%s5050 + $0x10] sm:$0xff]
    %v5054 = vld [vmem:[%s5050 + $0x18] sm:$0xff]
    %s5055 = scalar_lea.vmem %s15, 5
    %v5056 = vld [vmem:[%s5055] sm:$0x1]
    %v5058 = vlaneseq
    %v5059 = vshrl.u32 %v5058, 7
    %v5060 = vsub.s32 0, %v5059
    %v5061 = vrot.slane %v5056, %v5060
    %v5064 = vsel %vm387, %v5049, 0
    %5066 = vmatprep.subr.mxu0 0.0
    %5067 = vmatpush1.msra.mxu0 %v5051
    %5068 = vmatprep.subr.mxu0 0.0
    %5069 = vmatpush1.msra.mxu0 %v5052
    %5070 = vmatprep.subr.mxu0 0.0
    %5071 = vmatpush1.msra.mxu0 %v5053
    %5072 = vmatprep.subr.mxu0 0.0
    %5073 = vmatpush1.msra.mxu0 %v5054
    %5074 = vmatprep.subr.mxu0 0.0
    %5075 = vmatpush1.msra.mxu0 0.0
    %5076 = vmatprep.subr.mxu0 0.0
    %5077 = vmatpush1.msra.mxu0 0.0
    %5078 = vmatprep.subr.mxu0 0.0
    %5079 = vmatpush1.msra.mxu0 0.0
    %5080 = vmatprep.subr.mxu0 0.0
    %5081 = vmatpush1.msra.mxu0 0.0
    %5082 = vmatprep.subr.mxu0 0.0
    %5083 = vmatpush1.msra.mxu0 0.0
    %5084 = vmatprep.subr.mxu0 0.0
    %5085 = vmatpush1.msra.mxu0 0.0
    %5086 = vmatprep.subr.mxu0 0.0
    %5087 = vmatpush1.msra.mxu0 0.0
    %5088 = vmatprep.subr.mxu0 0.0
    %5089 = vmatpush1.msra.mxu0 0.0
    %5090 = vmatprep.subr.mxu0 0.0
    %5091 = vmatpush1.msra.mxu0 0.0
    %5092 = vmatprep.subr.mxu0 0.0
    %5093 = vmatpush1.msra.mxu0 0.0
    %5094 = vmatprep.subr.mxu0 0.0
    %5095 = vmatpush1.msra.mxu0 0.0
    %5096 = vmatprep.subr.mxu0 0.0
    %5097 = vmatpush1.msra.mxu0 0.0
    %5098 = vmatprep.subr.mxu0 0.0
    %5099 = vmatpush1.msra.mxu0 0.0
    %5100 = vmatprep.subr.mxu0 0.0
    %5101 = vmatpush1.msra.mxu0 0.0
    %5102 = vmatprep.subr.mxu0 0.0
    %5103 = vmatpush1.msra.mxu0 0.0
    %5104 = vmatprep.subr.mxu0 0.0
    %5105 = vmatpush1.msra.mxu0 0.0
    %5106 = vmatprep.subr.mxu0 0.0
    %5107 = vmatpush1.msra.mxu0 0.0
    %5108 = vmatprep.subr.mxu0 0.0
    %5109 = vmatpush1.msra.mxu0 0.0
    %5110 = vmatprep.subr.mxu0 0.0
    %5111 = vmatpush1.msra.mxu0 0.0
    %5112 = vmatprep.subr.mxu0 0.0
    %5113 = vmatpush1.msra.mxu0 0.0
    %5114 = vmatprep.subr.mxu0 0.0
    %5115 = vmatpush1.msra.mxu0 0.0
    %5116 = vmatprep.subr.mxu0 0.0
    %5117 = vmatpush1.msra.mxu0 0.0
    %5118 = vmatprep.subr.mxu0 0.0
    %5119 = vmatpush1.msra.mxu0 0.0
    %5120 = vmatprep.subr.mxu0 0.0
    %5121 = vmatpush1.msra.mxu0 0.0
    %5122 = vmatprep.subr.mxu0 0.0
    %5123 = vmatpush1.msra.mxu0 0.0
    %5124 = vmatprep.subr.mxu0 0.0
    %5125 = vmatpush1.msra.mxu0 0.0
    %5126 = vmatprep.subr.mxu0 0.0
    %5127 = vmatpush1.msra.mxu0 0.0
    %5128 = vmatprep.subr.mxu0 0.0
    %5129 = vmatpush1.msra.mxu0 0.0
    %5130 = vmatprep.mubr.f32.mxu0 0.0
    %5131 = vmatmul.mubr.f32.gmra.mrb[0].mxu0 %v5064
    %v5132 = vpop.f32.mrb[0].mxu0
    %v5133 = vadd.f32 %v5061, %v5132
    %v5134 = vpop.f32.mrb[0].mxu0
    %5135 = vdwg.mxu0
    %v5136 = vadd.f32 %v4168, %v5133
    %v5137 = vsel %vm387, %v5136, 0.0
    %5138 = vadd.xlane.f32.xlu0 %v5137
    %v5139 = vpop.xlane.xlu0 %5138
    %v5140 = vmul.f32 %v5139, %v1487
    %v5141 = vsub.f32 %v5136, %v5140
    %v5142 = vmul.f32 %v5141, %v5141
    %v5143 = vsel %vm387, %v5142, 0.0
    %5144 = vadd.xlane.f32.xlu0 %v5143
    %v5145 = vpop.xlane.xlu0 %5144
    %v5146 = vmul.f32 %v5145, %v1487
    %v5147 = vadd.f32 %v5146, 1e-05
    %v5148 = vrsqrt.pop %v5147
    %v5149 = vmul.f32 %v5141, %v5148
    %s5150 = scalar_lea.vmem %s15, 18
    %v5151 = vld [vmem:[%s5150] sm:$0x1]
    %v5153 = vlaneseq
    %v5154 = vshrl.u32 %v5153, 7
    %v5155 = vsub.s32 0, %v5154
    %v5156 = vrot.slane %v5151, %v5155
    %v5158 = vmul.f32 %v5149, %v5156
    %s5159 = scalar_lea.vmem %s15, 19
    %v5160 = vld [vmem:[%s5159] sm:$0x1]
    %v5162 = vlaneseq
    %v5163 = vshrl.u32 %v5162, 7
    %v5164 = vsub.s32 0, %v5163
    %v5165 = vrot.slane %v5160, %v5164
    %v5167 = vadd.f32 %v5158, %v5165
    %s5168 = scalar_lea.vmem [#allocation11], 64
    %v5169 = vld [vmem:[%s5168] sm:$0xff]
    %v5170 = vld [vmem:[%s5168 + $0x8] sm:$0xff]
    %v5171 = vld [vmem:[%s5168 + $0x10] sm:$0xff]
    %v5172 = vld [vmem:[%s5168 + $0x18] sm:$0xff]
    %s5173 = scalar_lea.vmem [#allocation13], 2
    %v5174 = vld [vmem:[%s5173] sm:$0x1]
    %v5176 = vlaneseq
    %v5177 = vshrl.u32 %v5176, 7
    %v5178 = vsub.s32 0, %v5177
    %v5179 = vrot.slane %v5174, %v5178
    %v5182 = vsel %vm387, %v5167, 0
    %5184 = vmatprep.subr.mxu0 0.0
    %5185 = vmatpush1.msra.mxu0 %v5169
    %5186 = vmatprep.subr.mxu0 0.0
    %5187 = vmatpush1.msra.mxu0 %v5170
    %5188 = vmatprep.subr.mxu0 0.0
    %5189 = vmatpush1.msra.mxu0 %v5171
    %5190 = vmatprep.subr.mxu0 0.0
    %5191 = vmatpush1.msra.mxu0 %v5172
    %5192 = vmatprep.subr.mxu0 0.0
    %5193 = vmatpush1.msra.mxu0 0.0
    %5194 = vmatprep.subr.mxu0 0.0
    %5195 = vmatpush1.msra.mxu0 0.0
    %5196 = vmatprep.subr.mxu0 0.0
    %5197 = vmatpush1.msra.mxu0 0.0
    %5198 = vmatprep.subr.mxu0 0.0
    %5199 = vmatpush1.msra.mxu0 0.0
    %5200 = vmatprep.subr.mxu0 0.0
    %5201 = vmatpush1.msra.mxu0 0.0
    %5202 = vmatprep.subr.mxu0 0.0
    %5203 = vmatpush1.msra.mxu0 0.0
    %5204 = vmatprep.subr.mxu0 0.0
    %5205 = vmatpush1.msra.mxu0 0.0
    %5206 = vmatprep.subr.mxu0 0.0
    %5207 = vmatpush1.msra.mxu0 0.0
    %5208 = vmatprep.subr.mxu0 0.0
    %5209 = vmatpush1.msra.mxu0 0.0
    %5210 = vmatprep.subr.mxu0 0.0
    %5211 = vmatpush1.msra.mxu0 0.0
    %5212 = vmatprep.subr.mxu0 0.0
    %5213 = vmatpush1.msra.mxu0 0.0
    %5214 = vmatprep.subr.mxu0 0.0
    %5215 = vmatpush1.msra.mxu0 0.0
    %5216 = vmatprep.subr.mxu0 0.0
    %5217 = vmatpush1.msra.mxu0 0.0
    %5218 = vmatprep.subr.mxu0 0.0
    %5219 = vmatpush1.msra.mxu0 0.0
    %5220 = vmatprep.subr.mxu0 0.0
    %5221 = vmatpush1.msra.mxu0 0.0
    %5222 = vmatprep.subr.mxu0 0.0
    %5223 = vmatpush1.msra.mxu0 0.0
    %5224 = vmatprep.subr.mxu0 0.0
    %5225 = vmatpush1.msra.mxu0 0.0
    %5226 = vmatprep.subr.mxu0 0.0
    %5227 = vmatpush1.msra.mxu0 0.0
    %5228 = vmatprep.subr.mxu0 0.0
    %5229 = vmatpush1.msra.mxu0 0.0
    %5230 = vmatprep.subr.mxu0 0.0
    %5231 = vmatpush1.msra.mxu0 0.0
    %5232 = vmatprep.subr.mxu0 0.0
    %5233 = vmatpush1.msra.mxu0 0.0
    %5234 = vmatprep.subr.mxu0 0.0
    %5235 = vmatpush1.msra.mxu0 0.0
    %5236 = vmatprep.subr.mxu0 0.0
    %5237 = vmatpush1.msra.mxu0 0.0
    %5238 = vmatprep.subr.mxu0 0.0
    %5239 = vmatpush1.msra.mxu0 0.0
    %5240 = vmatprep.subr.mxu0 0.0
    %5241 = vmatpush1.msra.mxu0 0.0
    %5242 = vmatprep.subr.mxu0 0.0
    %5243 = vmatpush1.msra.mxu0 0.0
    %5244 = vmatprep.subr.mxu0 0.0
    %5245 = vmatpush1.msra.mxu0 0.0
    %5246 = vmatprep.subr.mxu0 0.0
    %5247 = vmatpush1.msra.mxu0 0.0
    %5248 = vmatprep.mubr.f32.mxu0 0.0
    %5249 = vmatmul.mubr.f32.gmra.mrb[0].mxu0 %v5182
    %v5250 = vpop.f32.mrb[0].mxu0
    %v5251 = vadd.f32 %v5179, %v5250
    %v5252 = vpop.f32.mrb[0].mxu0
    %5253 = vdwg.mxu0
    %v5254 = vmax.f32 %v5251, 0.0
    %s5255 = scalar_lea.vmem %s14, 128
    %v5256 = vld [vmem:[%s5255] sm:$0xff]
    %v5257 = vld [vmem:[%s5255 + $0x8] sm:$0xff]
    %v5258 = vld [vmem:[%s5255 + $0x10] sm:$0xff]
    %v5259 = vld [vmem:[%s5255 + $0x18] sm:$0xff]
    %v5260 = vld [vmem:[%s5255 + $0x20] sm:$0xff]
    %v5261 = vld [vmem:[%s5255 + $0x28] sm:$0xff]
    %v5262 = vld [vmem:[%s5255 + $0x30] sm:$0xff]
    %v5263 = vld [vmem:[%s5255 + $0x38] sm:$0xff]
    %s5264 = scalar_lea.vmem %s15, 30
    %v5265 = vld [vmem:[%s5264] sm:$0x1]
    %v5267 = vlaneseq
    %v5268 = vshrl.u32 %v5267, 7
    %v5269 = vsub.s32 0, %v5268
    %v5270 = vrot.slane %v5265, %v5269
    %v5273 = vsel %vm1638, %v5254, 0
    %5275 = vmatprep.subr.mxu0 0.0
    %5276 = vmatpush1.msra.mxu0 %v5256
    %5277 = vmatprep.subr.mxu0 0.0
    %5278 = vmatpush1.msra.mxu0 %v5257
    %5279 = vmatprep.subr.mxu0 0.0
    %5280 = vmatpush1.msra.mxu0 %v5258
    %5281 = vmatprep.subr.mxu0 0.0
    %5282 = vmatpush1.msra.mxu0 %v5259
    %5283 = vmatprep.subr.mxu0 0.0
    %5284 = vmatpush1.msra.mxu0 %v5260
    %5285 = vmatprep.subr.mxu0 0.0
    %5286 = vmatpush1.msra.mxu0 %v5261
    %5287 = vmatprep.subr.mxu0 0.0
    %5288 = vmatpush1.msra.mxu0 %v5262
    %5289 = vmatprep.subr.mxu0 0.0
    %5290 = vmatpush1.msra.mxu0 %v5263
    %5291 = vmatprep.subr.mxu0 0.0
    %5292 = vmatpush1.msra.mxu0 0.0
    %5293 = vmatprep.subr.mxu0 0.0
    %5294 = vmatpush1.msra.mxu0 0.0
    %5295 = vmatprep.subr.mxu0 0.0
    %5296 = vmatpush1.msra.mxu0 0.0
    %5297 = vmatprep.subr.mxu0 0.0
    %5298 = vmatpush1.msra.mxu0 0.0
    %5299 = vmatprep.subr.mxu0 0.0
    %5300 = vmatpush1.msra.mxu0 0.0
    %5301 = vmatprep.subr.mxu0 0.0
    %5302 = vmatpush1.msra.mxu0 0.0
    %5303 = vmatprep.subr.mxu0 0.0
    %5304 = vmatpush1.msra.mxu0 0.0
    %5305 = vmatprep.subr.mxu0 0.0
    %5306 = vmatpush1.msra.mxu0 0.0
    %5307 = vmatprep.subr.mxu0 0.0
    %5308 = vmatpush1.msra.mxu0 0.0
    %5309 = vmatprep.subr.mxu0 0.0
    %5310 = vmatpush1.msra.mxu0 0.0
    %5311 = vmatprep.subr.mxu0 0.0
    %5312 = vmatpush1.msra.mxu0 0.0
    %5313 = vmatprep.subr.mxu0 0.0
    %5314 = vmatpush1.msra.mxu0 0.0
    %5315 = vmatprep.subr.mxu0 0.0
    %5316 = vmatpush1.msra.mxu0 0.0
    %5317 = vmatprep.subr.mxu0 0.0
    %5318 = vmatpush1.msra.mxu0 0.0
    %5319 = vmatprep.subr.mxu0 0.0
    %5320 = vmatpush1.msra.mxu0 0.0
    %5321 = vmatprep.subr.mxu0 0.0
    %5322 = vmatpush1.msra.mxu0 0.0
    %5323 = vmatprep.subr.mxu0 0.0
    %5324 = vmatpush1.msra.mxu0 0.0
    %5325 = vmatprep.subr.mxu0 0.0
    %5326 = vmatpush1.msra.mxu0 0.0
    %5327 = vmatprep.subr.mxu0 0.0
    %5328 = vmatpush1.msra.mxu0 0.0
    %5329 = vmatprep.subr.mxu0 0.0
    %5330 = vmatpush1.msra.mxu0 0.0
    %5331 = vmatprep.subr.mxu0 0.0
    %5332 = vmatpush1.msra.mxu0 0.0
    %5333 = vmatprep.subr.mxu0 0.0
    %5334 = vmatpush1.msra.mxu0 0.0
    %5335 = vmatprep.subr.mxu0 0.0
    %5336 = vmatpush1.msra.mxu0 0.0
    %5337 = vmatprep.subr.mxu0 0.0
    %5338 = vmatpush1.msra.mxu0 0.0
    %5339 = vmatprep.mubr.f32.mxu0 0.0
    %5340 = vmatmul.mubr.f32.gmra.mrb[0].mxu0 %v5273
    %v5341 = vpop.f32.mrb[0].mxu0
    %v5342 = vadd.f32 %v5270, %v5341
    %v5343 = vpop.f32.mrb[0].mxu0
    %5344 = vdwg.mxu0
    %v5345 = vadd.f32 %v5167, %v5342
    %v5346 = vsel %vm387, %v5345, 0.0
    %5347 = vadd.xlane.f32.xlu0 %v5346
    %v5348 = vpop.xlane.xlu0 %5347
    %v5349 = vmul.f32 %v5348, %v1487
    %v5350 = vsub.f32 %v5345, %v5349
    %v5351 = vmul.f32 %v5350, %v5350
    %v5352 = vsel %vm387, %v5351, 0.0
    %5353 = vadd.xlane.f32.xlu0 %v5352
    %v5354 = vpop.xlane.xlu0 %5353
    %v5355 = vmul.f32 %v5354, %v1487
    %v5356 = vadd.f32 %v5355, 1e-05
    %v5357 = vrsqrt.pop %v5356
    %v5358 = vmul.f32 %v5350, %v5357
    %s5359 = scalar_lea.vmem %s15, 20
    %v5360 = vld [vmem:[%s5359] sm:$0x1]
    %v5362 = vlaneseq
    %v5363 = vshrl.u32 %v5362, 7
    %v5364 = vsub.s32 0, %v5363
    %v5365 = vrot.slane %v5360, %v5364
    %v5367 = vmul.f32 %v5358, %v5365
    %s5368 = scalar_lea.vmem %s15, 21
    %v5369 = vld [vmem:[%s5368] sm:$0x1]
    %v5371 = vlaneseq
    %v5372 = vshrl.u32 %v5371, 7
    %v5373 = vsub.s32 0, %v5372
    %v5374 = vrot.slane %v5369, %v5373
    %v5376 = vadd.f32 %v5367, %v5374
    %s5377 = scalar_lea.vmem %s7, 128
    %v5378 = vld [vmem:[%s5377] sm:$0xff]
    %v5379 = vld [vmem:[%s5377 + $0x8] sm:$0xff]
    %v5380 = vld [vmem:[%s5377 + $0x10] sm:$0xff]
    %v5381 = vld [vmem:[%s5377 + $0x18] sm:$0xff]
    %s5382 = scalar_lea.vmem %s8, 4
    %v5383 = vld [vmem:[%s5382] sm:$0x1]
    %v5385 = vlaneseq
    %v5386 = vshrl.u32 %v5385, 7
    %v5387 = vsub.s32 0, %v5386
    %v5388 = vrot.slane %v5383, %v5387
    %v5391 = vsel %vm387, %v5376, 0
    %5393 = vmatprep.subr.mxu0 0.0
    %5394 = vmatpush1.msra.mxu0 %v5378
    %5395 = vmatprep.subr.mxu0 0.0
    %5396 = vmatpush1.msra.mxu0 %v5379
    %5397 = vmatprep.subr.mxu0 0.0
    %5398 = vmatpush1.msra.mxu0 %v5380
    %5399 = vmatprep.subr.mxu0 0.0
    %5400 = vmatpush1.msra.mxu0 %v5381
    %5401 = vmatprep.subr.mxu0 0.0
    %5402 = vmatpush1.msra.mxu0 0.0
    %5403 = vmatprep.subr.mxu0 0.0
    %5404 = vmatpush1.msra.mxu0 0.0
    %5405 = vmatprep.subr.mxu0 0.0
    %5406 = vmatpush1.msra.mxu0 0.0
    %5407 = vmatprep.subr.mxu0 0.0
    %5408 = vmatpush1.msra.mxu0 0.0
    %5409 = vmatprep.subr.mxu0 0.0
    %5410 = vmatpush1.msra.mxu0 0.0
    %5411 = vmatprep.subr.mxu0 0.0
    %5412 = vmatpush1.msra.mxu0 0.0
    %5413 = vmatprep.subr.mxu0 0.0
    %5414 = vmatpush1.msra.mxu0 0.0
    %5415 = vmatprep.subr.mxu0 0.0
    %5416 = vmatpush1.msra.mxu0 0.0
    %5417 = vmatprep.subr.mxu0 0.0
    %5418 = vmatpush1.msra.mxu0 0.0
    %5419 = vmatprep.subr.mxu0 0.0
    %5420 = vmatpush1.msra.mxu0 0.0
    %5421 = vmatprep.subr.mxu0 0.0
    %5422 = vmatpush1.msra.mxu0 0.0
    %5423 = vmatprep.subr.mxu0 0.0
    %5424 = vmatpush1.msra.mxu0 0.0
    %5425 = vmatprep.subr.mxu0 0.0
    %5426 = vmatpush1.msra.mxu0 0.0
    %5427 = vmatprep.subr.mxu0 0.0
    %5428 = vmatpush1.msra.mxu0 0.0
    %5429 = vmatprep.subr.mxu0 0.0
    %5430 = vmatpush1.msra.mxu0 0.0
    %5431 = vmatprep.subr.mxu0 0.0
    %5432 = vmatpush1.msra.mxu0 0.0
    %5433 = vmatprep.subr.mxu0 0.0
    %5434 = vmatpush1.msra.mxu0 0.0
    %5435 = vmatprep.subr.mxu0 0.0
    %5436 = vmatpush1.msra.mxu0 0.0
    %5437 = vmatprep.subr.mxu0 0.0
    %5438 = vmatpush1.msra.mxu0 0.0
    %5439 = vmatprep.subr.mxu0 0.0
    %5440 = vmatpush1.msra.mxu0 0.0
    %5441 = vmatprep.subr.mxu0 0.0
    %5442 = vmatpush1.msra.mxu0 0.0
    %5443 = vmatprep.subr.mxu0 0.0
    %5444 = vmatpush1.msra.mxu0 0.0
    %5445 = vmatprep.subr.mxu0 0.0
    %5446 = vmatpush1.msra.mxu0 0.0
    %5447 = vmatprep.subr.mxu0 0.0
    %5448 = vmatpush1.msra.mxu0 0.0
    %5449 = vmatprep.subr.mxu0 0.0
    %5450 = vmatpush1.msra.mxu0 0.0
    %5451 = vmatprep.subr.mxu0 0.0
    %5452 = vmatpush1.msra.mxu0 0.0
    %5453 = vmatprep.subr.mxu0 0.0
    %5454 = vmatpush1.msra.mxu0 0.0
    %5455 = vmatprep.subr.mxu0 0.0
    %5456 = vmatpush1.msra.mxu0 0.0
    %5457 = vmatprep.mubr.f32.mxu0 0.0
    %5458 = vmatmul.mubr.f32.gmra.mrb[0].mxu0 %v5391
    %v5459 = vpop.f32.mrb[0].mxu0
    %v5460 = vadd.f32 %v5388, %v5459
    %v5461 = vpop.f32.mrb[0].mxu0
    %5462 = vdwg.mxu0
    %v5463 = vmul.f32 %v5460, 0.35355338
    %s5464 = scalar_lea.vmem %s9, 128
    %v5465 = vld [vmem:[%s5464] sm:$0xff]
    %v5466 = vld [vmem:[%s5464 + $0x8] sm:$0xff]
    %v5467 = vld [vmem:[%s5464 + $0x10] sm:$0xff]
    %v5468 = vld [vmem:[%s5464 + $0x18] sm:$0xff]
    %s5469 = scalar_lea.vmem [#allocation10], 4
    %v5470 = vld [vmem:[%s5469] sm:$0x1]
    %v5472 = vlaneseq
    %v5473 = vshrl.u32 %v5472, 7
    %v5474 = vsub.s32 0, %v5473
    %v5475 = vrot.slane %v5470, %v5474
    %5477 = vmatprep.subr.mxu0 0.0
    %5478 = vmatpush1.msra.mxu0 %v5465
    %5479 = vmatprep.subr.mxu0 0.0
    %5480 = vmatpush1.msra.mxu0 %v5466
    %5481 = vmatprep.subr.mxu0 0.0
    %5482 = vmatpush1.msra.mxu0 %v5467
    %5483 = vmatprep.subr.mxu0 0.0
    %5484 = vmatpush1.msra.mxu0 %v5468
    %5485 = vmatprep.subr.mxu0 0.0
    %5486 = vmatpush1.msra.mxu0 0.0
    %5487 = vmatprep.subr.mxu0 0.0
    %5488 = vmatpush1.msra.mxu0 0.0
    %5489 = vmatprep.subr.mxu0 0.0
    %5490 = vmatpush1.msra.mxu0 0.0
    %5491 = vmatprep.subr.mxu0 0.0
    %5492 = vmatpush1.msra.mxu0 0.0
    %5493 = vmatprep.subr.mxu0 0.0
    %5494 = vmatpush1.msra.mxu0 0.0
    %5495 = vmatprep.subr.mxu0 0.0
    %5496 = vmatpush1.msra.mxu0 0.0
    %5497 = vmatprep.subr.mxu0 0.0
    %5498 = vmatpush1.msra.mxu0 0.0
    %5499 = vmatprep.subr.mxu0 0.0
    %5500 = vmatpush1.msra.mxu0 0.0
    %5501 = vmatprep.subr.mxu0 0.0
    %5502 = vmatpush1.msra.mxu0 0.0
    %5503 = vmatprep.subr.mxu0 0.0
    %5504 = vmatpush1.msra.mxu0 0.0
    %5505 = vmatprep.subr.mxu0 0.0
    %5506 = vmatpush1.msra.mxu0 0.0
    %5507 = vmatprep.subr.mxu0 0.0
    %5508 = vmatpush1.msra.mxu0 0.0
    %5509 = vmatprep.subr.mxu0 0.0
    %5510 = vmatpush1.msra.mxu0 0.0
    %5511 = vmatprep.subr.mxu0 0.0
    %5512 = vmatpush1.msra.mxu0 0.0
    %5513 = vmatprep.subr.mxu0 0.0
    %5514 = vmatpush1.msra.mxu0 0.0
    %5515 = vmatprep.subr.mxu0 0.0
    %5516 = vmatpush1.msra.mxu0 0.0
    %5517 = vmatprep.subr.mxu0 0.0
    %5518 = vmatpush1.msra.mxu0 0.0
    %5519 = vmatprep.subr.mxu0 0.0
    %5520 = vmatpush1.msra.mxu0 0.0
    %5521 = vmatprep.subr.mxu0 0.0
    %5522 = vmatpush1.msra.mxu0 0.0
    %5523 = vmatprep.subr.mxu0 0.0
    %5524 = vmatpush1.msra.mxu0 0.0
    %5525 = vmatprep.subr.mxu0 0.0
    %5526 = vmatpush1.msra.mxu0 0.0
    %5527 = vmatprep.subr.mxu0 0.0
    %5528 = vmatpush1.msra.mxu0 0.0
    %5529 = vmatprep.subr.mxu0 0.0
    %5530 = vmatpush1.msra.mxu0 0.0
    %5531 = vmatprep.subr.mxu0 0.0
    %5532 = vmatpush1.msra.mxu0 0.0
    %5533 = vmatprep.subr.mxu0 0.0
    %5534 = vmatpush1.msra.mxu0 0.0
    %5535 = vmatprep.subr.mxu0 0.0
    %5536 = vmatpush1.msra.mxu0 0.0
    %5537 = vmatprep.subr.mxu0 0.0
    %5538 = vmatpush1.msra.mxu0 0.0
    %5539 = vmatprep.subr.mxu0 0.0
    %5540 = vmatpush1.msra.mxu0 0.0
    %5541 = vmatprep.mubr.f32.mxu0 0.0
    %5542 = vmatmul.mubr.f32.gmra.mrb[0].mxu0 %v5391
    %v5543 = vpop.f32.mrb[0].mxu0
    %v5544 = vadd.f32 %v5475, %v5543
    %v5545 = vpop.f32.mrb[0].mxu0
    %5546 = vdwg.mxu0
    %v5548 = vsel %vm557, %v5463, 0
    %v5551 = vsel %vm557, %v5544, 0
    %5553 = vmatprep.subr.mxu0 0.0
    %5554 = vmatpush1.xpose.msra.mxu0 %v5551
    %5555 = vmatprep.subr.mxu0 0.0
    %5556 = vmatpush1.xpose.msra.mxu0 0.0
    %5557 = vmatprep.subr.mxu0 0.0
    %5558 = vmatpush1.xpose.msra.mxu0 0.0
    %5559 = vmatprep.subr.mxu0 0.0
    %5560 = vmatpush1.xpose.msra.mxu0 0.0
    %5561 = vmatprep.subr.mxu0 0.0
    %5562 = vmatpush1.xpose.msra.mxu0 0.0
    %5563 = vmatprep.subr.mxu0 0.0
    %5564 = vmatpush1.xpose.msra.mxu0 0.0
    %5565 = vmatprep.subr.mxu0 0.0
    %5566 = vmatpush1.xpose.msra.mxu0 0.0
    %5567 = vmatprep.subr.mxu0 0.0
    %5568 = vmatpush1.xpose.msra.mxu0 0.0
    %5569 = vmatprep.subr.mxu0 0.0
    %5570 = vmatpush1.xpose.msra.mxu0 0.0
    %5571 = vmatprep.subr.mxu0 0.0
    %5572 = vmatpush1.xpose.msra.mxu0 0.0
    %5573 = vmatprep.subr.mxu0 0.0
    %5574 = vmatpush1.xpose.msra.mxu0 0.0
    %5575 = vmatprep.subr.mxu0 0.0
    %5576 = vmatpush1.xpose.msra.mxu0 0.0
    %5577 = vmatprep.subr.mxu0 0.0
    %5578 = vmatpush1.xpose.msra.mxu0 0.0
    %5579 = vmatprep.subr.mxu0 0.0
    %5580 = vmatpush1.xpose.msra.mxu0 0.0
    %5581 = vmatprep.subr.mxu0 0.0
    %5582 = vmatpush1.xpose.msra.mxu0 0.0
    %5583 = vmatprep.subr.mxu0 0.0
    %5584 = vmatpush1.xpose.msra.mxu0 0.0
    %5585 = vmatprep.subr.mxu0 0.0
    %5586 = vmatpush1.xpose.msra.mxu0 0.0
    %5587 = vmatprep.subr.mxu0 0.0
    %5588 = vmatpush1.xpose.msra.mxu0 0.0
    %5589 = vmatprep.subr.mxu0 0.0
    %5590 = vmatpush1.xpose.msra.mxu0 0.0
    %5591 = vmatprep.subr.mxu0 0.0
    %5592 = vmatpush1.xpose.msra.mxu0 0.0
    %5593 = vmatprep.subr.mxu0 0.0
    %5594 = vmatpush1.xpose.msra.mxu0 0.0
    %5595 = vmatprep.subr.mxu0 0.0
    %5596 = vmatpush1.xpose.msra.mxu0 0.0
    %5597 = vmatprep.subr.mxu0 0.0
    %5598 = vmatpush1.xpose.msra.mxu0 0.0
    %5599 = vmatprep.subr.mxu0 0.0
    %5600 = vmatpush1.xpose.msra.mxu0 0.0
    %5601 = vmatprep.subr.mxu0 0.0
    %5602 = vmatpush1.xpose.msra.mxu0 0.0
    %5603 = vmatprep.subr.mxu0 0.0
    %5604 = vmatpush1.xpose.msra.mxu0 0.0
    %5605 = vmatprep.subr.mxu0 0.0
    %5606 = vmatpush1.xpose.msra.mxu0 0.0
    %5607 = vmatprep.subr.mxu0 0.0
    %5608 = vmatpush1.xpose.msra.mxu0 0.0
    %5609 = vmatprep.subr.mxu0 0.0
    %5610 = vmatpush1.xpose.msra.mxu0 0.0
    %5611 = vmatprep.subr.mxu0 0.0
    %5612 = vmatpush1.xpose.msra.mxu0 0.0
    %5613 = vmatprep.subr.mxu0 0.0
    %5614 = vmatpush1.xpose.msra.mxu0 0.0
    %5615 = vmatprep.subr.mxu0 0.0
    %5616 = vmatpush1.xpose.msra.mxu0 0.0
    %5617 = vmatprep.mubr.f32.mxu0 0.0
    %5618 = vmatmul.mubr.f32.gmra.mrb[0].mxu0 %v5548
    %v5619 = vpop.f32.mrb[0].mxu0
    %v5620 = vadd.f32 %v185, %v5619
    %v5621 = vpop.f32.mrb[0].mxu0
    %5622 = vdwg.mxu0
    %v5623 = vsel %vm557, %v5620, -inf
    %5624 = vmax.xlane.f32.xlu0 %v5623
    %v5625 = vpop.xlane.xlu0 %5624
    %v5626 = vsub.f32 %v5620, %v5625
    %v5627 = vmul.f32 %v5626, 1.442695
    %v5628 = vpow.pop %v5627
    %v5629 = vsel %vm557, %v5628, 0.0
    %5630 = vadd.xlane.f32.xlu0 %v5629
    %v5631 = vpop.xlane.xlu0 %5630
    %v5632 = vrcp.pop %v5631
    %v5633 = vmul.f32 %v5628, %v5632
    %5634 = vrot.lane.b32.xlu0 %v5544, 96
    %v5635 = vpop.permute.xlu0 %5634
    %v5638 = vsel %vm557, %v5633, 0
    %5640 = vmatprep.subr.mxu0 0.0
    %5641 = vmatpush1.msra.mxu0 %v5635
    %5642 = vmatprep.subr.mxu0 0.0
    %5643 = vmatpush1.msra.mxu0 0.0
    %5644 = vmatprep.subr.mxu0 0.0
    %5645 = vmatpush1.msra.mxu0 0.0
    %5646 = vmatprep.subr.mxu0 0.0
    %5647 = vmatpush1.msra.mxu0 0.0
    %5648 = vmatprep.subr.mxu0 0.0
    %5649 = vmatpush1.msra.mxu0 0.0
    %5650 = vmatprep.subr.mxu0 0.0
    %5651 = vmatpush1.msra.mxu0 0.0
    %5652 = vmatprep.subr.mxu0 0.0
    %5653 = vmatpush1.msra.mxu0 0.0
    %5654 = vmatprep.subr.mxu0 0.0
    %5655 = vmatpush1.msra.mxu0 0.0
    %5656 = vmatprep.subr.mxu0 0.0
    %5657 = vmatpush1.msra.mxu0 0.0
    %5658 = vmatprep.subr.mxu0 0.0
    %5659 = vmatpush1.msra.mxu0 0.0
    %5660 = vmatprep.subr.mxu0 0.0
    %5661 = vmatpush1.msra.mxu0 0.0
    %5662 = vmatprep.subr.mxu0 0.0
    %5663 = vmatpush1.msra.mxu0 0.0
    %5664 = vmatprep.subr.mxu0 0.0
    %5665 = vmatpush1.msra.mxu0 0.0
    %5666 = vmatprep.subr.mxu0 0.0
    %5667 = vmatpush1.msra.mxu0 0.0
    %5668 = vmatprep.subr.mxu0 0.0
    %5669 = vmatpush1.msra.mxu0 0.0
    %5670 = vmatprep.subr.mxu0 0.0
    %5671 = vmatpush1.msra.mxu0 0.0
    %5672 = vmatprep.subr.mxu0 0.0
    %5673 = vmatpush1.msra.mxu0 0.0
    %5674 = vmatprep.subr.mxu0 0.0
    %5675 = vmatpush1.msra.mxu0 0.0
    %5676 = vmatprep.subr.mxu0 0.0
    %5677 = vmatpush1.msra.mxu0 0.0
    %5678 = vmatprep.subr.mxu0 0.0
    %5679 = vmatpush1.msra.mxu0 0.0
    %5680 = vmatprep.subr.mxu0 0.0
    %5681 = vmatpush1.msra.mxu0 0.0
    %5682 = vmatprep.subr.mxu0 0.0
    %5683 = vmatpush1.msra.mxu0 0.0
    %5684 = vmatprep.subr.mxu0 0.0
    %5685 = vmatpush1.msra.mxu0 0.0
    %5686 = vmatprep.subr.mxu0 0.0
    %5687 = vmatpush1.msra.mxu0 0.0
    %5688 = vmatprep.subr.mxu0 0.0
    %5689 = vmatpush1.msra.mxu0 0.0
    %5690 = vmatprep.subr.mxu0 0.0
    %5691 = vmatpush1.msra.mxu0 0.0
    %5692 = vmatprep.subr.mxu0 0.0
    %5693 = vmatpush1.msra.mxu0 0.0
    %5694 = vmatprep.subr.mxu0 0.0
    %5695 = vmatpush1.msra.mxu0 0.0
    %5696 = vmatprep.subr.mxu0 0.0
    %5697 = vmatpush1.msra.mxu0 0.0
    %5698 = vmatprep.subr.mxu0 0.0
    %5699 = vmatpush1.msra.mxu0 0.0
    %5700 = vmatprep.subr.mxu0 0.0
    %5701 = vmatpush1.msra.mxu0 0.0
    %5702 = vmatprep.subr.mxu0 0.0
    %5703 = vmatpush1.msra.mxu0 0.0
    %5704 = vmatprep.mubr.f32.mxu0 0.0
    %5705 = vmatmul.mubr.f32.gmra.mrb[0].mxu0 %v5638
    %v5706 = vpop.f32.mrb[0].mxu0
    %v5707 = vadd.f32 0.0, %v5706
    %v5708 = vpop.f32.mrb[0].mxu0
    %5709 = vdwg.mxu0
    %5710 = vrot.lane.b32.xlu0 %v5463, 120
    %v5711 = vpop.permute.xlu0 %5710
    %5712 = vrot.lane.b32.xlu0 %v5544, 120
    %v5713 = vpop.permute.xlu0 %5712
    %v5714 = vsel %vm557, %v5711, 0
    %v5716 = vsel %vm557, %v5713, 0
    %5718 = vmatprep.subr.mxu0 0.0
    %5719 = vmatpush1.xpose.msra.mxu0 %v5716
    %5720 = vmatprep.subr.mxu0 0.0
    %5721 = vmatpush1.xpose.msra.mxu0 0.0
    %5722 = vmatprep.subr.mxu0 0.0
    %5723 = vmatpush1.xpose.msra.mxu0 0.0
    %5724 = vmatprep.subr.mxu0 0.0
    %5725 = vmatpush1.xpose.msra.mxu0 0.0
    %5726 = vmatprep.subr.mxu0 0.0
    %5727 = vmatpush1.xpose.msra.mxu0 0.0
    %5728 = vmatprep.subr.mxu0 0.0
    %5729 = vmatpush1.xpose.msra.mxu0 0.0
    %5730 = vmatprep.subr.mxu0 0.0
    %5731 = vmatpush1.xpose.msra.mxu0 0.0
    %5732 = vmatprep.subr.mxu0 0.0
    %5733 = vmatpush1.xpose.msra.mxu0 0.0
    %5734 = vmatprep.subr.mxu0 0.0
    %5735 = vmatpush1.xpose.msra.mxu0 0.0
    %5736 = vmatprep.subr.mxu0 0.0
    %5737 = vmatpush1.xpose.msra.mxu0 0.0
    %5738 = vmatprep.subr.mxu0 0.0
    %5739 = vmatpush1.xpose.msra.mxu0 0.0
    %5740 = vmatprep.subr.mxu0 0.0
    %5741 = vmatpush1.xpose.msra.mxu0 0.0
    %5742 = vmatprep.subr.mxu0 0.0
    %5743 = vmatpush1.xpose.msra.mxu0 0.0
    %5744 = vmatprep.subr.mxu0 0.0
    %5745 = vmatpush1.xpose.msra.mxu0 0.0
    %5746 = vmatprep.subr.mxu0 0.0
    %5747 = vmatpush1.xpose.msra.mxu0 0.0
    %5748 = vmatprep.subr.mxu0 0.0
    %5749 = vmatpush1.xpose.msra.mxu0 0.0
    %5750 = vmatprep.subr.mxu0 0.0
    %5751 = vmatpush1.xpose.msra.mxu0 0.0
    %5752 = vmatprep.subr.mxu0 0.0
    %5753 = vmatpush1.xpose.msra.mxu0 0.0
    %5754 = vmatprep.subr.mxu0 0.0
    %5755 = vmatpush1.xpose.msra.mxu0 0.0
    %5756 = vmatprep.subr.mxu0 0.0
    %5757 = vmatpush1.xpose.msra.mxu0 0.0
    %5758 = vmatprep.subr.mxu0 0.0
    %5759 = vmatpush1.xpose.msra.mxu0 0.0
    %5760 = vmatprep.subr.mxu0 0.0
    %5761 = vmatpush1.xpose.msra.mxu0 0.0
    %5762 = vmatprep.subr.mxu0 0.0
    %5763 = vmatpush1.xpose.msra.mxu0 0.0
    %5764 = vmatprep.subr.mxu0 0.0
    %5765 = vmatpush1.xpose.msra.mxu0 0.0
    %5766 = vmatprep.subr.mxu0 0.0
    %5767 = vmatpush1.xpose.msra.mxu0 0.0
    %5768 = vmatprep.subr.mxu0 0.0
    %5769 = vmatpush1.xpose.msra.mxu0 0.0
    %5770 = vmatprep.subr.mxu0 0.0
    %5771 = vmatpush1.xpose.msra.mxu0 0.0
    %5772 = vmatprep.subr.mxu0 0.0
    %5773 = vmatpush1.xpose.msra.mxu0 0.0
    %5774 = vmatprep.subr.mxu0 0.0
    %5775 = vmatpush1.xpose.msra.mxu0 0.0
    %5776 = vmatprep.subr.mxu0 0.0
    %5777 = vmatpush1.xpose.msra.mxu0 0.0
    %5778 = vmatprep.subr.mxu0 0.0
    %5779 = vmatpush1.xpose.msra.mxu0 0.0
    %5780 = vmatprep.subr.mxu0 0.0
    %5781 = vmatpush1.xpose.msra.mxu0 0.0
    %5782 = vmatprep.mubr.f32.mxu0 0.0
    %5783 = vmatmul.mubr.f32.gmra.mrb[0].mxu0 %v5714
    %v5784 = vpop.f32.mrb[0].mxu0
    %v5785 = vadd.f32 %v185, %v5784
    %v5786 = vpop.f32.mrb[0].mxu0
    %5787 = vdwg.mxu0
    %v5788 = vsel %vm557, %v5785, -inf
    %5789 = vmax.xlane.f32.xlu0 %v5788
    %v5790 = vpop.xlane.xlu0 %5789
    %v5791 = vsub.f32 %v5785, %v5790
    %v5792 = vmul.f32 %v5791, 1.442695
    %v5793 = vpow.pop %v5792
    %v5794 = vsel %vm557, %v5793, 0.0
    %5795 = vadd.xlane.f32.xlu0 %v5794
    %v5796 = vpop.xlane.xlu0 %5795
    %v5797 = vrcp.pop %v5796
    %v5798 = vmul.f32 %v5793, %v5797
    %5799 = vrot.lane.b32.xlu0 %v5544, 88
    %v5800 = vpop.permute.xlu0 %5799
    %v5803 = vsel %vm557, %v5798, 0
    %5805 = vmatprep.subr.mxu0 0.0
    %5806 = vmatpush1.msra.mxu0 %v5800
    %5807 = vmatprep.subr.mxu0 0.0
    %5808 = vmatpush1.msra.mxu0 0.0
    %5809 = vmatprep.subr.mxu0 0.0
    %5810 = vmatpush1.msra.mxu0 0.0
    %5811 = vmatprep.subr.mxu0 0.0
    %5812 = vmatpush1.msra.mxu0 0.0
    %5813 = vmatprep.subr.mxu0 0.0
    %5814 = vmatpush1.msra.mxu0 0.0
    %5815 = vmatprep.subr.mxu0 0.0
    %5816 = vmatpush1.msra.mxu0 0.0
    %5817 = vmatprep.subr.mxu0 0.0
    %5818 = vmatpush1.msra.mxu0 0.0
    %5819 = vmatprep.subr.mxu0 0.0
    %5820 = vmatpush1.msra.mxu0 0.0
    %5821 = vmatprep.subr.mxu0 0.0
    %5822 = vmatpush1.msra.mxu0 0.0
    %5823 = vmatprep.subr.mxu0 0.0
    %5824 = vmatpush1.msra.mxu0 0.0
    %5825 = vmatprep.subr.mxu0 0.0
    %5826 = vmatpush1.msra.mxu0 0.0
    %5827 = vmatprep.subr.mxu0 0.0
    %5828 = vmatpush1.msra.mxu0 0.0
    %5829 = vmatprep.subr.mxu0 0.0
    %5830 = vmatpush1.msra.mxu0 0.0
    %5831 = vmatprep.subr.mxu0 0.0
    %5832 = vmatpush1.msra.mxu0 0.0
    %5833 = vmatprep.subr.mxu0 0.0
    %5834 = vmatpush1.msra.mxu0 0.0
    %5835 = vmatprep.subr.mxu0 0.0
    %5836 = vmatpush1.msra.mxu0 0.0
    %5837 = vmatprep.subr.mxu0 0.0
    %5838 = vmatpush1.msra.mxu0 0.0
    %5839 = vmatprep.subr.mxu0 0.0
    %5840 = vmatpush1.msra.mxu0 0.0
    %5841 = vmatprep.subr.mxu0 0.0
    %5842 = vmatpush1.msra.mxu0 0.0
    %5843 = vmatprep.subr.mxu0 0.0
    %5844 = vmatpush1.msra.mxu0 0.0
    %5845 = vmatprep.subr.mxu0 0.0
    %5846 = vmatpush1.msra.mxu0 0.0
    %5847 = vmatprep.subr.mxu0 0.0
    %5848 = vmatpush1.msra.mxu0 0.0
    %5849 = vmatprep.subr.mxu0 0.0
    %5850 = vmatpush1.msra.mxu0 0.0
    %5851 = vmatprep.subr.mxu0 0.0
    %5852 = vmatpush1.msra.mxu0 0.0
    %5853 = vmatprep.subr.mxu0 0.0
    %5854 = vmatpush1.msra.mxu0 0.0
    %5855 = vmatprep.subr.mxu0 0.0
    %5856 = vmatpush1.msra.mxu0 0.0
    %5857 = vmatprep.subr.mxu0 0.0
    %5858 = vmatpush1.msra.mxu0 0.0
    %5859 = vmatprep.subr.mxu0 0.0
    %5860 = vmatpush1.msra.mxu0 0.0
    %5861 = vmatprep.subr.mxu0 0.0
    %5862 = vmatpush1.msra.mxu0 0.0
    %5863 = vmatprep.subr.mxu0 0.0
    %5864 = vmatpush1.msra.mxu0 0.0
    %5865 = vmatprep.subr.mxu0 0.0
    %5866 = vmatpush1.msra.mxu0 0.0
    %5867 = vmatprep.subr.mxu0 0.0
    %5868 = vmatpush1.msra.mxu0 0.0
    %5869 = vmatprep.mubr.f32.mxu0 0.0
    %5870 = vmatmul.mubr.f32.gmra.mrb[0].mxu0 %v5803
    %v5871 = vpop.f32.mrb[0].mxu0
    %v5872 = vadd.f32 0.0, %v5871
    %v5873 = vpop.f32.mrb[0].mxu0
    %5874 = vdwg.mxu0
    %5875 = vrot.lane.b32.xlu0 %v5463, 112
    %v5876 = vpop.permute.xlu0 %5875
    %5877 = vrot.lane.b32.xlu0 %v5544, 112
    %v5878 = vpop.permute.xlu0 %5877
    %v5879 = vsel %vm557, %v5876, 0
    %v5881 = vsel %vm557, %v5878, 0
    %5883 = vmatprep.subr.mxu0 0.0
    %5884 = vmatpush1.xpose.msra.mxu0 %v5881
    %5885 = vmatprep.subr.mxu0 0.0
    %5886 = vmatpush1.xpose.msra.mxu0 0.0
    %5887 = vmatprep.subr.mxu0 0.0
    %5888 = vmatpush1.xpose.msra.mxu0 0.0
    %5889 = vmatprep.subr.mxu0 0.0
    %5890 = vmatpush1.xpose.msra.mxu0 0.0
    %5891 = vmatprep.subr.mxu0 0.0
    %5892 = vmatpush1.xpose.msra.mxu0 0.0
    %5893 = vmatprep.subr.mxu0 0.0
    %5894 = vmatpush1.xpose.msra.mxu0 0.0
    %5895 = vmatprep.subr.mxu0 0.0
    %5896 = vmatpush1.xpose.msra.mxu0 0.0
    %5897 = vmatprep.subr.mxu0 0.0
    %5898 = vmatpush1.xpose.msra.mxu0 0.0
    %5899 = vmatprep.subr.mxu0 0.0
    %5900 = vmatpush1.xpose.msra.mxu0 0.0
    %5901 = vmatprep.subr.mxu0 0.0
    %5902 = vmatpush1.xpose.msra.mxu0 0.0
    %5903 = vmatprep.subr.mxu0 0.0
    %5904 = vmatpush1.xpose.msra.mxu0 0.0
    %5905 = vmatprep.subr.mxu0 0.0
    %5906 = vmatpush1.xpose.msra.mxu0 0.0
    %5907 = vmatprep.subr.mxu0 0.0
    %5908 = vmatpush1.xpose.msra.mxu0 0.0
    %5909 = vmatprep.subr.mxu0 0.0
    %5910 = vmatpush1.xpose.msra.mxu0 0.0
    %5911 = vmatprep.subr.mxu0 0.0
    %5912 = vmatpush1.xpose.msra.mxu0 0.0
    %5913 = vmatprep.subr.mxu0 0.0
    %5914 = vmatpush1.xpose.msra.mxu0 0.0
    %5915 = vmatprep.subr.mxu0 0.0
    %5916 = vmatpush1.xpose.msra.mxu0 0.0
    %5917 = vmatprep.subr.mxu0 0.0
    %5918 = vmatpush1.xpose.msra.mxu0 0.0
    %5919 = vmatprep.subr.mxu0 0.0
    %5920 = vmatpush1.xpose.msra.mxu0 0.0
    %5921 = vmatprep.subr.mxu0 0.0
    %5922 = vmatpush1.xpose.msra.mxu0 0.0
    %5923 = vmatprep.subr.mxu0 0.0
    %5924 = vmatpush1.xpose.msra.mxu0 0.0
    %5925 = vmatprep.subr.mxu0 0.0
    %5926 = vmatpush1.xpose.msra.mxu0 0.0
    %5927 = vmatprep.subr.mxu0 0.0
    %5928 = vmatpush1.xpose.msra.mxu0 0.0
    %5929 = vmatprep.subr.mxu0 0.0
    %5930 = vmatpush1.xpose.msra.mxu0 0.0
    %5931 = vmatprep.subr.mxu0 0.0
    %5932 = vmatpush1.xpose.msra.mxu0 0.0
    %5933 = vmatprep.subr.mxu0 0.0
    %5934 = vmatpush1.xpose.msra.mxu0 0.0
    %5935 = vmatprep.subr.mxu0 0.0
    %5936 = vmatpush1.xpose.msra.mxu0 0.0
    %5937 = vmatprep.subr.mxu0 0.0
    %5938 = vmatpush1.xpose.msra.mxu0 0.0
    %5939 = vmatprep.subr.mxu0 0.0
    %5940 = vmatpush1.xpose.msra.mxu0 0.0
    %5941 = vmatprep.subr.mxu0 0.0
    %5942 = vmatpush1.xpose.msra.mxu0 0.0
    %5943 = vmatprep.subr.mxu0 0.0
    %5944 = vmatpush1.xpose.msra.mxu0 0.0
    %5945 = vmatprep.subr.mxu0 0.0
    %5946 = vmatpush1.xpose.msra.mxu0 0.0
    %5947 = vmatprep.mubr.f32.mxu0 0.0
    %5948 = vmatmul.mubr.f32.gmra.mrb[0].mxu0 %v5879
    %v5949 = vpop.f32.mrb[0].mxu0
    %v5950 = vadd.f32 %v185, %v5949
    %v5951 = vpop.f32.mrb[0].mxu0
    %5952 = vdwg.mxu0
    %v5953 = vsel %vm557, %v5950, -inf
    %5954 = vmax.xlane.f32.xlu0 %v5953
    %v5955 = vpop.xlane.xlu0 %5954
    %v5956 = vsub.f32 %v5950, %v5955
    %v5957 = vmul.f32 %v5956, 1.442695
    %v5958 = vpow.pop %v5957
    %v5959 = vsel %vm557, %v5958, 0.0
    %5960 = vadd.xlane.f32.xlu0 %v5959
    %v5961 = vpop.xlane.xlu0 %5960
    %v5962 = vrcp.pop %v5961
    %v5963 = vmul.f32 %v5958, %v5962
    %5964 = vrot.lane.b32.xlu0 %v5544, 80
    %v5965 = vpop.permute.xlu0 %5964
    %v5968 = vsel %vm557, %v5963, 0
    %5970 = vmatprep.subr.mxu0 0.0
    %5971 = vmatpush1.msra.mxu0 %v5965
    %5972 = vmatprep.subr.mxu0 0.0
    %5973 = vmatpush1.msra.mxu0 0.0
    %5974 = vmatprep.subr.mxu0 0.0
    %5975 = vmatpush1.msra.mxu0 0.0
    %5976 = vmatprep.subr.mxu0 0.0
    %5977 = vmatpush1.msra.mxu0 0.0
    %5978 = vmatprep.subr.mxu0 0.0
    %5979 = vmatpush1.msra.mxu0 0.0
    %5980 = vmatprep.subr.mxu0 0.0
    %5981 = vmatpush1.msra.mxu0 0.0
    %5982 = vmatprep.subr.mxu0 0.0
    %5983 = vmatpush1.msra.mxu0 0.0
    %5984 = vmatprep.subr.mxu0 0.0
    %5985 = vmatpush1.msra.mxu0 0.0
    %5986 = vmatprep.subr.mxu0 0.0
    %5987 = vmatpush1.msra.mxu0 0.0
    %5988 = vmatprep.subr.mxu0 0.0
    %5989 = vmatpush1.msra.mxu0 0.0
    %5990 = vmatprep.subr.mxu0 0.0
    %5991 = vmatpush1.msra.mxu0 0.0
    %5992 = vmatprep.subr.mxu0 0.0
    %5993 = vmatpush1.msra.mxu0 0.0
    %5994 = vmatprep.subr.mxu0 0.0
    %5995 = vmatpush1.msra.mxu0 0.0
    %5996 = vmatprep.subr.mxu0 0.0
    %5997 = vmatpush1.msra.mxu0 0.0
    %5998 = vmatprep.subr.mxu0 0.0
    %5999 = vmatpush1.msra.mxu0 0.0
    %6000 = vmatprep.subr.mxu0 0.0
    %6001 = vmatpush1.msra.mxu0 0.0
    %6002 = vmatprep.subr.mxu0 0.0
    %6003 = vmatpush1.msra.mxu0 0.0
    %6004 = vmatprep.subr.mxu0 0.0
    %6005 = vmatpush1.msra.mxu0 0.0
    %6006 = vmatprep.subr.mxu0 0.0
    %6007 = vmatpush1.msra.mxu0 0.0
    %6008 = vmatprep.subr.mxu0 0.0
    %6009 = vmatpush1.msra.mxu0 0.0
    %6010 = vmatprep.subr.mxu0 0.0
    %6011 = vmatpush1.msra.mxu0 0.0
    %6012 = vmatprep.subr.mxu0 0.0
    %6013 = vmatpush1.msra.mxu0 0.0
    %6014 = vmatprep.subr.mxu0 0.0
    %6015 = vmatpush1.msra.mxu0 0.0
    %6016 = vmatprep.subr.mxu0 0.0
    %6017 = vmatpush1.msra.mxu0 0.0
    %6018 = vmatprep.subr.mxu0 0.0
    %6019 = vmatpush1.msra.mxu0 0.0
    %6020 = vmatprep.subr.mxu0 0.0
    %6021 = vmatpush1.msra.mxu0 0.0
    %6022 = vmatprep.subr.mxu0 0.0
    %6023 = vmatpush1.msra.mxu0 0.0
    %6024 = vmatprep.subr.mxu0 0.0
    %6025 = vmatpush1.msra.mxu0 0.0
    %6026 = vmatprep.subr.mxu0 0.0
    %6027 = vmatpush1.msra.mxu0 0.0
    %6028 = vmatprep.subr.mxu0 0.0
    %6029 = vmatpush1.msra.mxu0 0.0
    %6030 = vmatprep.subr.mxu0 0.0
    %6031 = vmatpush1.msra.mxu0 0.0
    %6032 = vmatprep.subr.mxu0 0.0
    %6033 = vmatpush1.msra.mxu0 0.0
    %6034 = vmatprep.mubr.f32.mxu0 0.0
    %6035 = vmatmul.mubr.f32.gmra.mrb[0].mxu0 %v5968
    %v6036 = vpop.f32.mrb[0].mxu0
    %v6037 = vadd.f32 0.0, %v6036
    %v6038 = vpop.f32.mrb[0].mxu0
    %6039 = vdwg.mxu0
    %6040 = vrot.lane.b32.xlu0 %v5463, 104
    %v6041 = vpop.permute.xlu0 %6040
    %6042 = vrot.lane.b32.xlu0 %v5544, 104
    %v6043 = vpop.permute.xlu0 %6042
    %v6044 = vsel %vm557, %v6041, 0
    %v6046 = vsel %vm557, %v6043, 0
    %6048 = vmatprep.subr.mxu0 0.0
    %6049 = vmatpush1.xpose.msra.mxu0 %v6046
    %6050 = vmatprep.subr.mxu0 0.0
    %6051 = vmatpush1.xpose.msra.mxu0 0.0
    %6052 = vmatprep.subr.mxu0 0.0
    %6053 = vmatpush1.xpose.msra.mxu0 0.0
    %6054 = vmatprep.subr.mxu0 0.0
    %6055 = vmatpush1.xpose.msra.mxu0 0.0
    %6056 = vmatprep.subr.mxu0 0.0
    %6057 = vmatpush1.xpose.msra.mxu0 0.0
    %6058 = vmatprep.subr.mxu0 0.0
    %6059 = vmatpush1.xpose.msra.mxu0 0.0
    %6060 = vmatprep.subr.mxu0 0.0
    %6061 = vmatpush1.xpose.msra.mxu0 0.0
    %6062 = vmatprep.subr.mxu0 0.0
    %6063 = vmatpush1.xpose.msra.mxu0 0.0
    %6064 = vmatprep.subr.mxu0 0.0
    %6065 = vmatpush1.xpose.msra.mxu0 0.0
    %6066 = vmatprep.subr.mxu0 0.0
    %6067 = vmatpush1.xpose.msra.mxu0 0.0
    %6068 = vmatprep.subr.mxu0 0.0
    %6069 = vmatpush1.xpose.msra.mxu0 0.0
    %6070 = vmatprep.subr.mxu0 0.0
    %6071 = vmatpush1.xpose.msra.mxu0 0.0
    %6072 = vmatprep.subr.mxu0 0.0
    %6073 = vmatpush1.xpose.msra.mxu0 0.0
    %6074 = vmatprep.subr.mxu0 0.0
    %6075 = vmatpush1.xpose.msra.mxu0 0.0
    %6076 = vmatprep.subr.mxu0 0.0
    %6077 = vmatpush1.xpose.msra.mxu0 0.0
    %6078 = vmatprep.subr.mxu0 0.0
    %6079 = vmatpush1.xpose.msra.mxu0 0.0
    %6080 = vmatprep.subr.mxu0 0.0
    %6081 = vmatpush1.xpose.msra.mxu0 0.0
    %6082 = vmatprep.subr.mxu0 0.0
    %6083 = vmatpush1.xpose.msra.mxu0 0.0
    %6084 = vmatprep.subr.mxu0 0.0
    %6085 = vmatpush1.xpose.msra.mxu0 0.0
    %6086 = vmatprep.subr.mxu0 0.0
    %6087 = vmatpush1.xpose.msra.mxu0 0.0
    %6088 = vmatprep.subr.mxu0 0.0
    %6089 = vmatpush1.xpose.msra.mxu0 0.0
    %6090 = vmatprep.subr.mxu0 0.0
    %6091 = vmatpush1.xpose.msra.mxu0 0.0
    %6092 = vmatprep.subr.mxu0 0.0
    %6093 = vmatpush1.xpose.msra.mxu0 0.0
    %6094 = vmatprep.subr.mxu0 0.0
    %6095 = vmatpush1.xpose.msra.mxu0 0.0
    %6096 = vmatprep.subr.mxu0 0.0
    %6097 = vmatpush1.xpose.msra.mxu0 0.0
    %6098 = vmatprep.subr.mxu0 0.0
    %6099 = vmatpush1.xpose.msra.mxu0 0.0
    %6100 = vmatprep.subr.mxu0 0.0
    %6101 = vmatpush1.xpose.msra.mxu0 0.0
    %6102 = vmatprep.subr.mxu0 0.0
    %6103 = vmatpush1.xpose.msra.mxu0 0.0
    %6104 = vmatprep.subr.mxu0 0.0
    %6105 = vmatpush1.xpose.msra.mxu0 0.0
    %6106 = vmatprep.subr.mxu0 0.0
    %6107 = vmatpush1.xpose.msra.mxu0 0.0
    %6108 = vmatprep.subr.mxu0 0.0
    %6109 = vmatpush1.xpose.msra.mxu0 0.0
    %6110 = vmatprep.subr.mxu0 0.0
    %6111 = vmatpush1.xpose.msra.mxu0 0.0
    %6112 = vmatprep.mubr.f32.mxu0 0.0
    %6113 = vmatmul.mubr.f32.gmra.mrb[0].mxu0 %v6044
    %v6114 = vpop.f32.mrb[0].mxu0
    %v6115 = vadd.f32 %v185, %v6114
    %v6116 = vpop.f32.mrb[0].mxu0
    %6117 = vdwg.mxu0
    %v6118 = vsel %vm557, %v6115, -inf
    %6119 = vmax.xlane.f32.xlu0 %v6118
    %v6120 = vpop.xlane.xlu0 %6119
    %v6121 = vsub.f32 %v6115, %v6120
    %v6122 = vmul.f32 %v6121, 1.442695
    %v6123 = vpow.pop %v6122
    %v6124 = vsel %vm557, %v6123, 0.0
    %6125 = vadd.xlane.f32.xlu0 %v6124
    %v6126 = vpop.xlane.xlu0 %6125
    %v6127 = vrcp.pop %v6126
    %v6128 = vmul.f32 %v6123, %v6127
    %6129 = vrot.lane.b32.xlu0 %v5544, 72
    %v6130 = vpop.permute.xlu0 %6129
    %v6133 = vsel %vm557, %v6128, 0
    %6135 = vmatprep.subr.mxu0 0.0
    %6136 = vmatpush1.msra.mxu0 %v6130
    %6137 = vmatprep.subr.mxu0 0.0
    %6138 = vmatpush1.msra.mxu0 0.0
    %6139 = vmatprep.subr.mxu0 0.0
    %6140 = vmatpush1.msra.mxu0 0.0
    %6141 = vmatprep.subr.mxu0 0.0
    %6142 = vmatpush1.msra.mxu0 0.0
    %6143 = vmatprep.subr.mxu0 0.0
    %6144 = vmatpush1.msra.mxu0 0.0
    %6145 = vmatprep.subr.mxu0 0.0
    %6146 = vmatpush1.msra.mxu0 0.0
    %6147 = vmatprep.subr.mxu0 0.0
    %6148 = vmatpush1.msra.mxu0 0.0
    %6149 = vmatprep.subr.mxu0 0.0
    %6150 = vmatpush1.msra.mxu0 0.0
    %6151 = vmatprep.subr.mxu0 0.0
    %6152 = vmatpush1.msra.mxu0 0.0
    %6153 = vmatprep.subr.mxu0 0.0
    %6154 = vmatpush1.msra.mxu0 0.0
    %6155 = vmatprep.subr.mxu0 0.0
    %6156 = vmatpush1.msra.mxu0 0.0
    %6157 = vmatprep.subr.mxu0 0.0
    %6158 = vmatpush1.msra.mxu0 0.0
    %6159 = vmatprep.subr.mxu0 0.0
    %6160 = vmatpush1.msra.mxu0 0.0
    %6161 = vmatprep.subr.mxu0 0.0
    %6162 = vmatpush1.msra.mxu0 0.0
    %6163 = vmatprep.subr.mxu0 0.0
    %6164 = vmatpush1.msra.mxu0 0.0
    %6165 = vmatprep.subr.mxu0 0.0
    %6166 = vmatpush1.msra.mxu0 0.0
    %6167 = vmatprep.subr.mxu0 0.0
    %6168 = vmatpush1.msra.mxu0 0.0
    %6169 = vmatprep.subr.mxu0 0.0
    %6170 = vmatpush1.msra.mxu0 0.0
    %6171 = vmatprep.subr.mxu0 0.0
    %6172 = vmatpush1.msra.mxu0 0.0
    %6173 = vmatprep.subr.mxu0 0.0
    %6174 = vmatpush1.msra.mxu0 0.0
    %6175 = vmatprep.subr.mxu0 0.0
    %6176 = vmatpush1.msra.mxu0 0.0
    %6177 = vmatprep.subr.mxu0 0.0
    %6178 = vmatpush1.msra.mxu0 0.0
    %6179 = vmatprep.subr.mxu0 0.0
    %6180 = vmatpush1.msra.mxu0 0.0
    %6181 = vmatprep.subr.mxu0 0.0
    %6182 = vmatpush1.msra.mxu0 0.0
    %6183 = vmatprep.subr.mxu0 0.0
    %6184 = vmatpush1.msra.mxu0 0.0
    %6185 = vmatprep.subr.mxu0 0.0
    %6186 = vmatpush1.msra.mxu0 0.0
    %6187 = vmatprep.subr.mxu0 0.0
    %6188 = vmatpush1.msra.mxu0 0.0
    %6189 = vmatprep.subr.mxu0 0.0
    %6190 = vmatpush1.msra.mxu0 0.0
    %6191 = vmatprep.subr.mxu0 0.0
    %6192 = vmatpush1.msra.mxu0 0.0
    %6193 = vmatprep.subr.mxu0 0.0
    %6194 = vmatpush1.msra.mxu0 0.0
    %6195 = vmatprep.subr.mxu0 0.0
    %6196 = vmatpush1.msra.mxu0 0.0
    %6197 = vmatprep.subr.mxu0 0.0
    %6198 = vmatpush1.msra.mxu0 0.0
    %6199 = vmatprep.mubr.f32.mxu0 0.0
    %6200 = vmatmul.mubr.f32.gmra.mrb[0].mxu0 %v6133
    %v6201 = vpop.f32.mrb[0].mxu0
    %v6202 = vadd.f32 0.0, %v6201
    %v6203 = vpop.f32.mrb[0].mxu0
    %6204 = vdwg.mxu0
    %6206 = vrot.lane.b32.xlu0 %v5872, 8
    %v6207 = vpop.permute.xlu0 %6206
    %6210 = vrot.lane.b32.xlu0 %v6037, 16
    %v6211 = vpop.permute.xlu0 %6210
    %6214 = vrot.lane.b32.xlu0 %v6202, 24
    %v6215 = vpop.permute.xlu0 %6214
    %v6217 = vsel %vm557, %v5707, %v6207
    %v6218 = vsel %vm645, %v6217, %v6211
    %v6219 = vsel %vm1383, %v6218, %v6215
    %s6220 = scalar_lea.vmem %s11, 128
    %v6221 = vld [vmem:[%s6220] sm:$0xff]
    %v6222 = vld [vmem:[%s6220 + $0x8] sm:$0xff]
    %v6223 = vld [vmem:[%s6220 + $0x10] sm:$0xff]
    %v6224 = vld [vmem:[%s6220 + $0x18] sm:$0xff]
    %s6225 = scalar_lea.vmem %s15, 6
    %v6226 = vld [vmem:[%s6225] sm:$0x1]
    %v6228 = vlaneseq
    %v6229 = vshrl.u32 %v6228, 7
    %v6230 = vsub.s32 0, %v6229
    %v6231 = vrot.slane %v6226, %v6230
    %v6234 = vsel %vm387, %v6219, 0
    %6236 = vmatprep.subr.mxu0 0.0
    %6237 = vmatpush1.msra.mxu0 %v6221
    %6238 = vmatprep.subr.mxu0 0.0
    %6239 = vmatpush1.msra.mxu0 %v6222
    %6240 = vmatprep.subr.mxu0 0.0
    %6241 = vmatpush1.msra.mxu0 %v6223
    %6242 = vmatprep.subr.mxu0 0.0
    %6243 = vmatpush1.msra.mxu0 %v6224
    %6244 = vmatprep.subr.mxu0 0.0
    %6245 = vmatpush1.msra.mxu0 0.0
    %6246 = vmatprep.subr.mxu0 0.0
    %6247 = vmatpush1.msra.mxu0 0.0
    %6248 = vmatprep.subr.mxu0 0.0
    %6249 = vmatpush1.msra.mxu0 0.0
    %6250 = vmatprep.subr.mxu0 0.0
    %6251 = vmatpush1.msra.mxu0 0.0
    %6252 = vmatprep.subr.mxu0 0.0
    %6253 = vmatpush1.msra.mxu0 0.0
    %6254 = vmatprep.subr.mxu0 0.0
    %6255 = vmatpush1.msra.mxu0 0.0
    %6256 = vmatprep.subr.mxu0 0.0
    %6257 = vmatpush1.msra.mxu0 0.0
    %6258 = vmatprep.subr.mxu0 0.0
    %6259 = vmatpush1.msra.mxu0 0.0
    %6260 = vmatprep.subr.mxu0 0.0
    %6261 = vmatpush1.msra.mxu0 0.0
    %6262 = vmatprep.subr.mxu0 0.0
    %6263 = vmatpush1.msra.mxu0 0.0
    %6264 = vmatprep.subr.mxu0 0.0
    %6265 = vmatpush1.msra.mxu0 0.0
    %6266 = vmatprep.subr.mxu0 0.0
    %6267 = vmatpush1.msra.mxu0 0.0
    %6268 = vmatprep.subr.mxu0 0.0
    %6269 = vmatpush1.msra.mxu0 0.0
    %6270 = vmatprep.subr.mxu0 0.0
    %6271 = vmatpush1.msra.mxu0 0.0
    %6272 = vmatprep.subr.mxu0 0.0
    %6273 = vmatpush1.msra.mxu0 0.0
    %6274 = vmatprep.subr.mxu0 0.0
    %6275 = vmatpush1.msra.mxu0 0.0
    %6276 = vmatprep.subr.mxu0 0.0
    %6277 = vmatpush1.msra.mxu0 0.0
    %6278 = vmatprep.subr.mxu0 0.0
    %6279 = vmatpush1.msra.mxu0 0.0
    %6280 = vmatprep.subr.mxu0 0.0
    %6281 = vmatpush1.msra.mxu0 0.0
    %6282 = vmatprep.subr.mxu0 0.0
    %6283 = vmatpush1.msra.mxu0 0.0
    %6284 = vmatprep.subr.mxu0 0.0
    %6285 = vmatpush1.msra.mxu0 0.0
    %6286 = vmatprep.subr.mxu0 0.0
    %6287 = vmatpush1.msra.mxu0 0.0
    %6288 = vmatprep.subr.mxu0 0.0
    %6289 = vmatpush1.msra.mxu0 0.0
    %6290 = vmatprep.subr.mxu0 0.0
    %6291 = vmatpush1.msra.mxu0 0.0
    %6292 = vmatprep.subr.mxu0 0.0
    %6293 = vmatpush1.msra.mxu0 0.0
    %6294 = vmatprep.subr.mxu0 0.0
    %6295 = vmatpush1.msra.mxu0 0.0
    %6296 = vmatprep.subr.mxu0 0.0
    %6297 = vmatpush1.msra.mxu0 0.0
    %6298 = vmatprep.subr.mxu0 0.0
    %6299 = vmatpush1.msra.mxu0 0.0
    %6300 = vmatprep.mubr.f32.mxu0 0.0
    %6301 = vmatmul.mubr.f32.gmra.mrb[0].mxu0 %v6234
    %v6302 = vpop.f32.mrb[0].mxu0
    %v6303 = vadd.f32 %v6231, %v6302
    %v6304 = vpop.f32.mrb[0].mxu0
    %6305 = vdwg.mxu0
    %v6306 = vadd.f32 %v5376, %v6303
    %v6307 = vsel %vm387, %v6306, 0.0
    %6308 = vadd.xlane.f32.xlu0 %v6307
    %v6309 = vpop.xlane.xlu0 %6308
    %v6310 = vmul.f32 %v6309, %v1487
    %v6311 = vsub.f32 %v6306, %v6310
    %v6312 = vmul.f32 %v6311, %v6311
    %v6313 = vsel %vm387, %v6312, 0.0
    %6314 = vadd.xlane.f32.xlu0 %v6313
    %v6315 = vpop.xlane.xlu0 %6314
    %v6316 = vmul.f32 %v6315, %v1487
    %v6317 = vadd.f32 %v6316, 1e-05
    %v6318 = vrsqrt.pop %v6317
    %v6319 = vmul.f32 %v6311, %v6318
    %s6320 = scalar_lea.vmem %s15, 22
    %v6321 = vld [vmem:[%s6320] sm:$0x1]
    %v6323 = vlaneseq
    %v6324 = vshrl.u32 %v6323, 7
    %v6325 = vsub.s32 0, %v6324
    %v6326 = vrot.slane %v6321, %v6325
    %v6328 = vmul.f32 %v6319, %v6326
    %s6329 = scalar_lea.vmem %s15, 23
    %v6330 = vld [vmem:[%s6329] sm:$0x1]
    %v6332 = vlaneseq
    %v6333 = vshrl.u32 %v6332, 7
    %v6334 = vsub.s32 0, %v6333
    %v6335 = vrot.slane %v6330, %v6334
    %v6337 = vadd.f32 %v6328, %v6335
    %s6338 = scalar_lea.vmem %s7, 160
    %v6339 = vld [vmem:[%s6338] sm:$0xff]
    %v6340 = vld [vmem:[%s6338 + $0x8] sm:$0xff]
    %v6341 = vld [vmem:[%s6338 + $0x10] sm:$0xff]
    %v6342 = vld [vmem:[%s6338 + $0x18] sm:$0xff]
    %s6343 = scalar_lea.vmem %s8, 5
    %v6344 = vld [vmem:[%s6343] sm:$0x1]
    %v6346 = vlaneseq
    %v6347 = vshrl.u32 %v6346, 7
    %v6348 = vsub.s32 0, %v6347
    %v6349 = vrot.slane %v6344, %v6348
    %v6352 = vsel %vm387, %v6337, 0
    %6354 = vmatprep.subr.mxu0 0.0
    %6355 = vmatpush1.msra.mxu0 %v6339
    %6356 = vmatprep.subr.mxu0 0.0
    %6357 = vmatpush1.msra.mxu0 %v6340
    %6358 = vmatprep.subr.mxu0 0.0
    %6359 = vmatpush1.msra.mxu0 %v6341
    %6360 = vmatprep.subr.mxu0 0.0
    %6361 = vmatpush1.msra.mxu0 %v6342
    %6362 = vmatprep.subr.mxu0 0.0
    %6363 = vmatpush1.msra.mxu0 0.0
    %6364 = vmatprep.subr.mxu0 0.0
    %6365 = vmatpush1.msra.mxu0 0.0
    %6366 = vmatprep.subr.mxu0 0.0
    %6367 = vmatpush1.msra.mxu0 0.0
    %6368 = vmatprep.subr.mxu0 0.0
    %6369 = vmatpush1.msra.mxu0 0.0
    %6370 = vmatprep.subr.mxu0 0.0
    %6371 = vmatpush1.msra.mxu0 0.0
    %6372 = vmatprep.subr.mxu0 0.0
    %6373 = vmatpush1.msra.mxu0 0.0
    %6374 = vmatprep.subr.mxu0 0.0
    %6375 = vmatpush1.msra.mxu0 0.0
    %6376 = vmatprep.subr.mxu0 0.0
    %6377 = vmatpush1.msra.mxu0 0.0
    %6378 = vmatprep.subr.mxu0 0.0
    %6379 = vmatpush1.msra.mxu0 0.0
    %6380 = vmatprep.subr.mxu0 0.0
    %6381 = vmatpush1.msra.mxu0 0.0
    %6382 = vmatprep.subr.mxu0 0.0
    %6383 = vmatpush1.msra.mxu0 0.0
    %6384 = vmatprep.subr.mxu0 0.0
    %6385 = vmatpush1.msra.mxu0 0.0
    %6386 = vmatprep.subr.mxu0 0.0
    %6387 = vmatpush1.msra.mxu0 0.0
    %6388 = vmatprep.subr.mxu0 0.0
    %6389 = vmatpush1.msra.mxu0 0.0
    %6390 = vmatprep.subr.mxu0 0.0
    %6391 = vmatpush1.msra.mxu0 0.0
    %6392 = vmatprep.subr.mxu0 0.0
    %6393 = vmatpush1.msra.mxu0 0.0
    %6394 = vmatprep.subr.mxu0 0.0
    %6395 = vmatpush1.msra.mxu0 0.0
    %6396 = vmatprep.subr.mxu0 0.0
    %6397 = vmatpush1.msra.mxu0 0.0
    %6398 = vmatprep.subr.mxu0 0.0
    %6399 = vmatpush1.msra.mxu0 0.0
    %6400 = vmatprep.subr.mxu0 0.0
    %6401 = vmatpush1.msra.mxu0 0.0
    %6402 = vmatprep.subr.mxu0 0.0
    %6403 = vmatpush1.msra.mxu0 0.0
    %6404 = vmatprep.subr.mxu0 0.0
    %6405 = vmatpush1.msra.mxu0 0.0
    %6406 = vmatprep.subr.mxu0 0.0
    %6407 = vmatpush1.msra.mxu0 0.0
    %6408 = vmatprep.subr.mxu0 0.0
    %6409 = vmatpush1.msra.mxu0 0.0
    %6410 = vmatprep.subr.mxu0 0.0
    %6411 = vmatpush1.msra.mxu0 0.0
    %6412 = vmatprep.subr.mxu0 0.0
    %6413 = vmatpush1.msra.mxu0 0.0
    %6414 = vmatprep.subr.mxu0 0.0
    %6415 = vmatpush1.msra.mxu0 0.0
    %6416 = vmatprep.subr.mxu0 0.0
    %6417 = vmatpush1.msra.mxu0 0.0
    %6418 = vmatprep.mubr.f32.mxu0 0.0
    %6419 = vmatmul.mubr.f32.gmra.mrb[0].mxu0 %v6352
    %v6420 = vpop.f32.mrb[0].mxu0
    %v6421 = vadd.f32 %v6349, %v6420
    %v6422 = vpop.f32.mrb[0].mxu0
    %6423 = vdwg.mxu0
    %v6424 = vmul.f32 %v6421, 0.35355338
    %s6425 = scalar_lea.vmem %s9, 160
    %v6426 = vld [vmem:[%s6425] sm:$0xff]
    %v6427 = vld [vmem:[%s6425 + $0x8] sm:$0xff]
    %v6428 = vld [vmem:[%s6425 + $0x10] sm:$0xff]
    %v6429 = vld [vmem:[%s6425 + $0x18] sm:$0xff]
    %s6430 = scalar_lea.vmem [#allocation10], 5
    %v6431 = vld [vmem:[%s6430] sm:$0x1]
    %v6433 = vlaneseq
    %v6434 = vshrl.u32 %v6433, 7
    %v6435 = vsub.s32 0, %v6434
    %v6436 = vrot.slane %v6431, %v6435
    %6438 = vmatprep.subr.mxu0 0.0
    %6439 = vmatpush1.msra.mxu0 %v6426
    %6440 = vmatprep.subr.mxu0 0.0
    %6441 = vmatpush1.msra.mxu0 %v6427
    %6442 = vmatprep.subr.mxu0 0.0
    %6443 = vmatpush1.msra.mxu0 %v6428
    %6444 = vmatprep.subr.mxu0 0.0
    %6445 = vmatpush1.msra.mxu0 %v6429
    %6446 = vmatprep.subr.mxu0 0.0
    %6447 = vmatpush1.msra.mxu0 0.0
    %6448 = vmatprep.subr.mxu0 0.0
    %6449 = vmatpush1.msra.mxu0 0.0
    %6450 = vmatprep.subr.mxu0 0.0
    %6451 = vmatpush1.msra.mxu0 0.0
    %6452 = vmatprep.subr.mxu0 0.0
    %6453 = vmatpush1.msra.mxu0 0.0
    %6454 = vmatprep.subr.mxu0 0.0
    %6455 = vmatpush1.msra.mxu0 0.0
    %6456 = vmatprep.subr.mxu0 0.0
    %6457 = vmatpush1.msra.mxu0 0.0
    %6458 = vmatprep.subr.mxu0 0.0
    %6459 = vmatpush1.msra.mxu0 0.0
    %6460 = vmatprep.subr.mxu0 0.0
    %6461 = vmatpush1.msra.mxu0 0.0
    %6462 = vmatprep.subr.mxu0 0.0
    %6463 = vmatpush1.msra.mxu0 0.0
    %6464 = vmatprep.subr.mxu0 0.0
    %6465 = vmatpush1.msra.mxu0 0.0
    %6466 = vmatprep.subr.mxu0 0.0
    %6467 = vmatpush1.msra.mxu0 0.0
    %6468 = vmatprep.subr.mxu0 0.0
    %6469 = vmatpush1.msra.mxu0 0.0
    %6470 = vmatprep.subr.mxu0 0.0
    %6471 = vmatpush1.msra.mxu0 0.0
    %6472 = vmatprep.subr.mxu0 0.0
    %6473 = vmatpush1.msra.mxu0 0.0
    %6474 = vmatprep.subr.mxu0 0.0
    %6475 = vmatpush1.msra.mxu0 0.0
    %6476 = vmatprep.subr.mxu0 0.0
    %6477 = vmatpush1.msra.mxu0 0.0
    %6478 = vmatprep.subr.mxu0 0.0
    %6479 = vmatpush1.msra.mxu0 0.0
    %6480 = vmatprep.subr.mxu0 0.0
    %6481 = vmatpush1.msra.mxu0 0.0
    %6482 = vmatprep.subr.mxu0 0.0
    %6483 = vmatpush1.msra.mxu0 0.0
    %6484 = vmatprep.subr.mxu0 0.0
    %6485 = vmatpush1.msra.mxu0 0.0
    %6486 = vmatprep.subr.mxu0 0.0
    %6487 = vmatpush1.msra.mxu0 0.0
    %6488 = vmatprep.subr.mxu0 0.0
    %6489 = vmatpush1.msra.mxu0 0.0
    %6490 = vmatprep.subr.mxu0 0.0
    %6491 = vmatpush1.msra.mxu0 0.0
    %6492 = vmatprep.subr.mxu0 0.0
    %6493 = vmatpush1.msra.mxu0 0.0
    %6494 = vmatprep.subr.mxu0 0.0
    %6495 = vmatpush1.msra.mxu0 0.0
    %6496 = vmatprep.subr.mxu0 0.0
    %6497 = vmatpush1.msra.mxu0 0.0
    %6498 = vmatprep.subr.mxu0 0.0
    %6499 = vmatpush1.msra.mxu0 0.0
    %6500 = vmatprep.subr.mxu0 0.0
    %6501 = vmatpush1.msra.mxu0 0.0
    %6502 = vmatprep.mubr.f32.mxu0 0.0
    %6503 = vmatmul.mubr.f32.gmra.mrb[0].mxu0 %v4270
    %v6504 = vpop.f32.mrb[0].mxu0
    %v6505 = vadd.f32 %v6436, %v6504
    %v6506 = vpop.f32.mrb[0].mxu0
    %6507 = vmatprep.mubr.f32.mxu0 0.0
    %6508 = vmatmul.mubr.f32.gmra.mrb[0].mxu0 %v4273
    %v6509 = vpop.f32.mrb[0].mxu0
    %v6510 = vadd.f32 %v6436, %v6509
    %v6511 = vpop.f32.mrb[0].mxu0
    %6512 = vdwg.mxu0
    %v6514 = vsel %vm557, %v6424, 0
    %v6517 = vsel %vm557, %v6505, 0
    %v6520 = vsel %vm557, %v6510, 0
    %6522 = vmatprep.subr.mxu0 0.0
    %6523 = vmatpush1.xpose.msra.mxu0 %v6517
    %6524 = vmatprep.subr.mxu0 0.0
    %6525 = vmatpush1.xpose.msra.mxu0 %v6520
    %6526 = vmatprep.subr.mxu0 0.0
    %6527 = vmatpush1.xpose.msra.mxu0 0.0
    %6528 = vmatprep.subr.mxu0 0.0
    %6529 = vmatpush1.xpose.msra.mxu0 0.0
    %6530 = vmatprep.subr.mxu0 0.0
    %6531 = vmatpush1.xpose.msra.mxu0 0.0
    %6532 = vmatprep.subr.mxu0 0.0
    %6533 = vmatpush1.xpose.msra.mxu0 0.0
    %6534 = vmatprep.subr.mxu0 0.0
    %6535 = vmatpush1.xpose.msra.mxu0 0.0
    %6536 = vmatprep.subr.mxu0 0.0
    %6537 = vmatpush1.xpose.msra.mxu0 0.0
    %6538 = vmatprep.subr.mxu0 0.0
    %6539 = vmatpush1.xpose.msra.mxu0 0.0
    %6540 = vmatprep.subr.mxu0 0.0
    %6541 = vmatpush1.xpose.msra.mxu0 0.0
    %6542 = vmatprep.subr.mxu0 0.0
    %6543 = vmatpush1.xpose.msra.mxu0 0.0
    %6544 = vmatprep.subr.mxu0 0.0
    %6545 = vmatpush1.xpose.msra.mxu0 0.0
    %6546 = vmatprep.subr.mxu0 0.0
    %6547 = vmatpush1.xpose.msra.mxu0 0.0
    %6548 = vmatprep.subr.mxu0 0.0
    %6549 = vmatpush1.xpose.msra.mxu0 0.0
    %6550 = vmatprep.subr.mxu0 0.0
    %6551 = vmatpush1.xpose.msra.mxu0 0.0
    %6552 = vmatprep.subr.mxu0 0.0
    %6553 = vmatpush1.xpose.msra.mxu0 0.0
    %6554 = vmatprep.subr.mxu0 0.0
    %6555 = vmatpush1.xpose.msra.mxu0 0.0
    %6556 = vmatprep.subr.mxu0 0.0
    %6557 = vmatpush1.xpose.msra.mxu0 0.0
    %6558 = vmatprep.subr.mxu0 0.0
    %6559 = vmatpush1.xpose.msra.mxu0 0.0
    %6560 = vmatprep.subr.mxu0 0.0
    %6561 = vmatpush1.xpose.msra.mxu0 0.0
    %6562 = vmatprep.subr.mxu0 0.0
    %6563 = vmatpush1.xpose.msra.mxu0 0.0
    %6564 = vmatprep.subr.mxu0 0.0
    %6565 = vmatpush1.xpose.msra.mxu0 0.0
    %6566 = vmatprep.subr.mxu0 0.0
    %6567 = vmatpush1.xpose.msra.mxu0 0.0
    %6568 = vmatprep.subr.mxu0 0.0
    %6569 = vmatpush1.xpose.msra.mxu0 0.0
    %6570 = vmatprep.subr.mxu0 0.0
    %6571 = vmatpush1.xpose.msra.mxu0 0.0
    %6572 = vmatprep.subr.mxu0 0.0
    %6573 = vmatpush1.xpose.msra.mxu0 0.0
    %6574 = vmatprep.subr.mxu0 0.0
    %6575 = vmatpush1.xpose.msra.mxu0 0.0
    %6576 = vmatprep.subr.mxu0 0.0
    %6577 = vmatpush1.xpose.msra.mxu0 0.0
    %6578 = vmatprep.subr.mxu0 0.0
    %6579 = vmatpush1.xpose.msra.mxu0 0.0
    %6580 = vmatprep.subr.mxu0 0.0
    %6581 = vmatpush1.xpose.msra.mxu0 0.0
    %6582 = vmatprep.subr.mxu0 0.0
    %6583 = vmatpush1.xpose.msra.mxu0 0.0
    %6584 = vmatprep.subr.mxu0 0.0
    %6585 = vmatpush1.xpose.msra.mxu0 0.0
    %6586 = vmatprep.mubr.f32.mxu0 0.0
    %6587 = vmatmul.mubr.f32.gmra.mrb[0].mxu0 %v6514
    %v6588 = vpop.f32.mrb[0].mxu0
    %v6589 = vadd.f32 %v186, %v6588
    %v6590 = vpop.f32.mrb[0].mxu0
    %6591 = vdwg.mxu0
    %v6592 = vsel %vm645, %v6589, -inf
    %6593 = vmax.xlane.f32.xlu0 %v6592
    %v6594 = vpop.xlane.xlu0 %6593
    %v6595 = vsub.f32 %v6589, %v6594
    %v6596 = vmul.f32 %v6595, 1.442695
    %v6597 = vpow.pop %v6596
    %v6598 = vsel %vm645, %v6597, 0.0
    %6599 = vadd.xlane.f32.xlu0 %v6598
    %v6600 = vpop.xlane.xlu0 %6599
    %v6601 = vrcp.pop %v6600
    %v6602 = vmul.f32 %v6597, %v6601
    %6603 = vrot.lane.b32.xlu0 %v6505, 96
    %v6604 = vpop.permute.xlu0 %6603
    %6605 = vrot.lane.b32.xlu0 %v6510, 96
    %v6606 = vpop.permute.xlu0 %6605
    %v6610 = vsel %vm645, %v6602, 0
    %6612 = vmatprep.subr.mxu0 0.0
    %6613 = vmatpush1.msra.mxu0 %v6604
    %6614 = vmatprep.subr.mxu0 0.0
    %6615 = vmatpush1.msra.mxu0 %v6606
    %6616 = vmatprep.subr.mxu0 0.0
    %6617 = vmatpush1.msra.mxu0 0.0
    %6618 = vmatprep.subr.mxu0 0.0
    %6619 = vmatpush1.msra.mxu0 0.0
    %6620 = vmatprep.subr.mxu0 0.0
    %6621 = vmatpush1.msra.mxu0 0.0
    %6622 = vmatprep.subr.mxu0 0.0
    %6623 = vmatpush1.msra.mxu0 0.0
    %6624 = vmatprep.subr.mxu0 0.0
    %6625 = vmatpush1.msra.mxu0 0.0
    %6626 = vmatprep.subr.mxu0 0.0
    %6627 = vmatpush1.msra.mxu0 0.0
    %6628 = vmatprep.subr.mxu0 0.0
    %6629 = vmatpush1.msra.mxu0 0.0
    %6630 = vmatprep.subr.mxu0 0.0
    %6631 = vmatpush1.msra.mxu0 0.0
    %6632 = vmatprep.subr.mxu0 0.0
    %6633 = vmatpush1.msra.mxu0 0.0
    %6634 = vmatprep.subr.mxu0 0.0
    %6635 = vmatpush1.msra.mxu0 0.0
    %6636 = vmatprep.subr.mxu0 0.0
    %6637 = vmatpush1.msra.mxu0 0.0
    %6638 = vmatprep.subr.mxu0 0.0
    %6639 = vmatpush1.msra.mxu0 0.0
    %6640 = vmatprep.subr.mxu0 0.0
    %6641 = vmatpush1.msra.mxu0 0.0
    %6642 = vmatprep.subr.mxu0 0.0
    %6643 = vmatpush1.msra.mxu0 0.0
    %6644 = vmatprep.subr.mxu0 0.0
    %6645 = vmatpush1.msra.mxu0 0.0
    %6646 = vmatprep.subr.mxu0 0.0
    %6647 = vmatpush1.msra.mxu0 0.0
    %6648 = vmatprep.subr.mxu0 0.0
    %6649 = vmatpush1.msra.mxu0 0.0
    %6650 = vmatprep.subr.mxu0 0.0
    %6651 = vmatpush1.msra.mxu0 0.0
    %6652 = vmatprep.subr.mxu0 0.0
    %6653 = vmatpush1.msra.mxu0 0.0
    %6654 = vmatprep.subr.mxu0 0.0
    %6655 = vmatpush1.msra.mxu0 0.0
    %6656 = vmatprep.subr.mxu0 0.0
    %6657 = vmatpush1.msra.mxu0 0.0
    %6658 = vmatprep.subr.mxu0 0.0
    %6659 = vmatpush1.msra.mxu0 0.0
    %6660 = vmatprep.subr.mxu0 0.0
    %6661 = vmatpush1.msra.mxu0 0.0
    %6662 = vmatprep.subr.mxu0 0.0
    %6663 = vmatpush1.msra.mxu0 0.0
    %6664 = vmatprep.subr.mxu0 0.0
    %6665 = vmatpush1.msra.mxu0 0.0
    %6666 = vmatprep.subr.mxu0 0.0
    %6667 = vmatpush1.msra.mxu0 0.0
    %6668 = vmatprep.subr.mxu0 0.0
    %6669 = vmatpush1.msra.mxu0 0.0
    %6670 = vmatprep.subr.mxu0 0.0
    %6671 = vmatpush1.msra.mxu0 0.0
    %6672 = vmatprep.subr.mxu0 0.0
    %6673 = vmatpush1.msra.mxu0 0.0
    %6674 = vmatprep.subr.mxu0 0.0
    %6675 = vmatpush1.msra.mxu0 0.0
    %6676 = vmatprep.mubr.f32.mxu0 0.0
    %6677 = vmatmul.mubr.f32.gmra.mrb[0].mxu0 %v6610
    %v6678 = vpop.f32.mrb[0].mxu0
    %v6679 = vadd.f32 0.0, %v6678
    %v6680 = vpop.f32.mrb[0].mxu0
    %6681 = vdwg.mxu0
    %6682 = vrot.lane.b32.xlu0 %v6424, 120
    %v6683 = vpop.permute.xlu0 %6682
    %6684 = vrot.lane.b32.xlu0 %v6505, 120
    %v6685 = vpop.permute.xlu0 %6684
    %6686 = vrot.lane.b32.xlu0 %v6510, 120
    %v6687 = vpop.permute.xlu0 %6686
    %v6688 = vsel %vm557, %v6683, 0
    %v6690 = vsel %vm557, %v6685, 0
    %v6692 = vsel %vm557, %v6687, 0
    %6694 = vmatprep.subr.mxu0 0.0
    %6695 = vmatpush1.xpose.msra.mxu0 %v6690
    %6696 = vmatprep.subr.mxu0 0.0
    %6697 = vmatpush1.xpose.msra.mxu0 %v6692
    %6698 = vmatprep.subr.mxu0 0.0
    %6699 = vmatpush1.xpose.msra.mxu0 0.0
    %6700 = vmatprep.subr.mxu0 0.0
    %6701 = vmatpush1.xpose.msra.mxu0 0.0
    %6702 = vmatprep.subr.mxu0 0.0
    %6703 = vmatpush1.xpose.msra.mxu0 0.0
    %6704 = vmatprep.subr.mxu0 0.0
    %6705 = vmatpush1.xpose.msra.mxu0 0.0
    %6706 = vmatprep.subr.mxu0 0.0
    %6707 = vmatpush1.xpose.msra.mxu0 0.0
    %6708 = vmatprep.subr.mxu0 0.0
    %6709 = vmatpush1.xpose.msra.mxu0 0.0
    %6710 = vmatprep.subr.mxu0 0.0
    %6711 = vmatpush1.xpose.msra.mxu0 0.0
    %6712 = vmatprep.subr.mxu0 0.0
    %6713 = vmatpush1.xpose.msra.mxu0 0.0
    %6714 = vmatprep.subr.mxu0 0.0
    %6715 = vmatpush1.xpose.msra.mxu0 0.0
    %6716 = vmatprep.subr.mxu0 0.0
    %6717 = vmatpush1.xpose.msra.mxu0 0.0
    %6718 = vmatprep.subr.mxu0 0.0
    %6719 = vmatpush1.xpose.msra.mxu0 0.0
    %6720 = vmatprep.subr.mxu0 0.0
    %6721 = vmatpush1.xpose.msra.mxu0 0.0
    %6722 = vmatprep.subr.mxu0 0.0
    %6723 = vmatpush1.xpose.msra.mxu0 0.0
    %6724 = vmatprep.subr.mxu0 0.0
    %6725 = vmatpush1.xpose.msra.mxu0 0.0
    %6726 = vmatprep.subr.mxu0 0.0
    %6727 = vmatpush1.xpose.msra.mxu0 0.0
    %6728 = vmatprep.subr.mxu0 0.0
    %6729 = vmatpush1.xpose.msra.mxu0 0.0
    %6730 = vmatprep.subr.mxu0 0.0
    %6731 = vmatpush1.xpose.msra.mxu0 0.0
    %6732 = vmatprep.subr.mxu0 0.0
    %6733 = vmatpush1.xpose.msra.mxu0 0.0
    %6734 = vmatprep.subr.mxu0 0.0
    %6735 = vmatpush1.xpose.msra.mxu0 0.0
    %6736 = vmatprep.subr.mxu0 0.0
    %6737 = vmatpush1.xpose.msra.mxu0 0.0
    %6738 = vmatprep.subr.mxu0 0.0
    %6739 = vmatpush1.xpose.msra.mxu0 0.0
    %6740 = vmatprep.subr.mxu0 0.0
    %6741 = vmatpush1.xpose.msra.mxu0 0.0
    %6742 = vmatprep.subr.mxu0 0.0
    %6743 = vmatpush1.xpose.msra.mxu0 0.0
    %6744 = vmatprep.subr.mxu0 0.0
    %6745 = vmatpush1.xpose.msra.mxu0 0.0
    %6746 = vmatprep.subr.mxu0 0.0
    %6747 = vmatpush1.xpose.msra.mxu0 0.0
    %6748 = vmatprep.subr.mxu0 0.0
    %6749 = vmatpush1.xpose.msra.mxu0 0.0
    %6750 = vmatprep.subr.mxu0 0.0
    %6751 = vmatpush1.xpose.msra.mxu0 0.0
    %6752 = vmatprep.subr.mxu0 0.0
    %6753 = vmatpush1.xpose.msra.mxu0 0.0
    %6754 = vmatprep.subr.mxu0 0.0
    %6755 = vmatpush1.xpose.msra.mxu0 0.0
    %6756 = vmatprep.subr.mxu0 0.0
    %6757 = vmatpush1.xpose.msra.mxu0 0.0
    %6758 = vmatprep.mubr.f32.mxu0 0.0
    %6759 = vmatmul.mubr.f32.gmra.mrb[0].mxu0 %v6688
    %v6760 = vpop.f32.mrb[0].mxu0
    %v6761 = vadd.f32 %v186, %v6760
    %v6762 = vpop.f32.mrb[0].mxu0
    %6763 = vdwg.mxu0
    %v6764 = vsel %vm645, %v6761, -inf
    %6765 = vmax.xlane.f32.xlu0 %v6764
    %v6766 = vpop.xlane.xlu0 %6765
    %v6767 = vsub.f32 %v6761, %v6766
    %v6768 = vmul.f32 %v6767, 1.442695
    %v6769 = vpow.pop %v6768
    %v6770 = vsel %vm645, %v6769, 0.0
    %6771 = vadd.xlane.f32.xlu0 %v6770
    %v6772 = vpop.xlane.xlu0 %6771
    %v6773 = vrcp.pop %v6772
    %v6774 = vmul.f32 %v6769, %v6773
    %6775 = vrot.lane.b32.xlu0 %v6505, 88
    %v6776 = vpop.permute.xlu0 %6775
    %6777 = vrot.lane.b32.xlu0 %v6510, 88
    %v6778 = vpop.permute.xlu0 %6777
    %v6782 = vsel %vm645, %v6774, 0
    %6784 = vmatprep.subr.mxu0 0.0
    %6785 = vmatpush1.msra.mxu0 %v6776
    %6786 = vmatprep.subr.mxu0 0.0
    %6787 = vmatpush1.msra.mxu0 %v6778
    %6788 = vmatprep.subr.mxu0 0.0
    %6789 = vmatpush1.msra.mxu0 0.0
    %6790 = vmatprep.subr.mxu0 0.0
    %6791 = vmatpush1.msra.mxu0 0.0
    %6792 = vmatprep.subr.mxu0 0.0
    %6793 = vmatpush1.msra.mxu0 0.0
    %6794 = vmatprep.subr.mxu0 0.0
    %6795 = vmatpush1.msra.mxu0 0.0
    %6796 = vmatprep.subr.mxu0 0.0
    %6797 = vmatpush1.msra.mxu0 0.0
    %6798 = vmatprep.subr.mxu0 0.0
    %6799 = vmatpush1.msra.mxu0 0.0
    %6800 = vmatprep.subr.mxu0 0.0
    %6801 = vmatpush1.msra.mxu0 0.0
    %6802 = vmatprep.subr.mxu0 0.0
    %6803 = vmatpush1.msra.mxu0 0.0
    %6804 = vmatprep.subr.mxu0 0.0
    %6805 = vmatpush1.msra.mxu0 0.0
    %6806 = vmatprep.subr.mxu0 0.0
    %6807 = vmatpush1.msra.mxu0 0.0
    %6808 = vmatprep.subr.mxu0 0.0
    %6809 = vmatpush1.msra.mxu0 0.0
    %6810 = vmatprep.subr.mxu0 0.0
    %6811 = vmatpush1.msra.mxu0 0.0
    %6812 = vmatprep.subr.mxu0 0.0
    %6813 = vmatpush1.msra.mxu0 0.0
    %6814 = vmatprep.subr.mxu0 0.0
    %6815 = vmatpush1.msra.mxu0 0.0
    %6816 = vmatprep.subr.mxu0 0.0
    %6817 = vmatpush1.msra.mxu0 0.0
    %6818 = vmatprep.subr.mxu0 0.0
    %6819 = vmatpush1.msra.mxu0 0.0
    %6820 = vmatprep.subr.mxu0 0.0
    %6821 = vmatpush1.msra.mxu0 0.0
    %6822 = vmatprep.subr.mxu0 0.0
    %6823 = vmatpush1.msra.mxu0 0.0
    %6824 = vmatprep.subr.mxu0 0.0
    %6825 = vmatpush1.msra.mxu0 0.0
    %6826 = vmatprep.subr.mxu0 0.0
    %6827 = vmatpush1.msra.mxu0 0.0
    %6828 = vmatprep.subr.mxu0 0.0
    %6829 = vmatpush1.msra.mxu0 0.0
    %6830 = vmatprep.subr.mxu0 0.0
    %6831 = vmatpush1.msra.mxu0 0.0
    %6832 = vmatprep.subr.mxu0 0.0
    %6833 = vmatpush1.msra.mxu0 0.0
    %6834 = vmatprep.subr.mxu0 0.0
    %6835 = vmatpush1.msra.mxu0 0.0
    %6836 = vmatprep.subr.mxu0 0.0
    %6837 = vmatpush1.msra.mxu0 0.0
    %6838 = vmatprep.subr.mxu0 0.0
    %6839 = vmatpush1.msra.mxu0 0.0
    %6840 = vmatprep.subr.mxu0 0.0
    %6841 = vmatpush1.msra.mxu0 0.0
    %6842 = vmatprep.subr.mxu0 0.0
    %6843 = vmatpush1.msra.mxu0 0.0
    %6844 = vmatprep.subr.mxu0 0.0
    %6845 = vmatpush1.msra.mxu0 0.0
    %6846 = vmatprep.subr.mxu0 0.0
    %6847 = vmatpush1.msra.mxu0 0.0
    %6848 = vmatprep.mubr.f32.mxu0 0.0
    %6849 = vmatmul.mubr.f32.gmra.mrb[0].mxu0 %v6782
    %v6850 = vpop.f32.mrb[0].mxu0
    %v6851 = vadd.f32 0.0, %v6850
    %v6852 = vpop.f32.mrb[0].mxu0
    %6853 = vdwg.mxu0
    %6854 = vrot.lane.b32.xlu0 %v6424, 112
    %v6855 = vpop.permute.xlu0 %6854
    %6856 = vrot.lane.b32.xlu0 %v6505, 112
    %v6857 = vpop.permute.xlu0 %6856
    %6858 = vrot.lane.b32.xlu0 %v6510, 112
    %v6859 = vpop.permute.xlu0 %6858
    %v6860 = vsel %vm557, %v6855, 0
    %v6862 = vsel %vm557, %v6857, 0
    %v6864 = vsel %vm557, %v6859, 0
    %6866 = vmatprep.subr.mxu0 0.0
    %6867 = vmatpush1.xpose.msra.mxu0 %v6862
    %6868 = vmatprep.subr.mxu0 0.0
    %6869 = vmatpush1.xpose.msra.mxu0 %v6864
    %6870 = vmatprep.subr.mxu0 0.0
    %6871 = vmatpush1.xpose.msra.mxu0 0.0
    %6872 = vmatprep.subr.mxu0 0.0
    %6873 = vmatpush1.xpose.msra.mxu0 0.0
    %6874 = vmatprep.subr.mxu0 0.0
    %6875 = vmatpush1.xpose.msra.mxu0 0.0
    %6876 = vmatprep.subr.mxu0 0.0
    %6877 = vmatpush1.xpose.msra.mxu0 0.0
    %6878 = vmatprep.subr.mxu0 0.0
    %6879 = vmatpush1.xpose.msra.mxu0 0.0
    %6880 = vmatprep.subr.mxu0 0.0
    %6881 = vmatpush1.xpose.msra.mxu0 0.0
    %6882 = vmatprep.subr.mxu0 0.0
    %6883 = vmatpush1.xpose.msra.mxu0 0.0
    %6884 = vmatprep.subr.mxu0 0.0
    %6885 = vmatpush1.xpose.msra.mxu0 0.0
    %6886 = vmatprep.subr.mxu0 0.0
    %6887 = vmatpush1.xpose.msra.mxu0 0.0
    %6888 = vmatprep.subr.mxu0 0.0
    %6889 = vmatpush1.xpose.msra.mxu0 0.0
    %6890 = vmatprep.subr.mxu0 0.0
    %6891 = vmatpush1.xpose.msra.mxu0 0.0
    %6892 = vmatprep.subr.mxu0 0.0
    %6893 = vmatpush1.xpose.msra.mxu0 0.0
    %6894 = vmatprep.subr.mxu0 0.0
    %6895 = vmatpush1.xpose.msra.mxu0 0.0
    %6896 = vmatprep.subr.mxu0 0.0
    %6897 = vmatpush1.xpose.msra.mxu0 0.0
    %6898 = vmatprep.subr.mxu0 0.0
    %6899 = vmatpush1.xpose.msra.mxu0 0.0
    %6900 = vmatprep.subr.mxu0 0.0
    %6901 = vmatpush1.xpose.msra.mxu0 0.0
    %6902 = vmatprep.subr.mxu0 0.0
    %6903 = vmatpush1.xpose.msra.mxu0 0.0
    %6904 = vmatprep.subr.mxu0 0.0
    %6905 = vmatpush1.xpose.msra.mxu0 0.0
    %6906 = vmatprep.subr.mxu0 0.0
    %6907 = vmatpush1.xpose.msra.mxu0 0.0
    %6908 = vmatprep.subr.mxu0 0.0
    %6909 = vmatpush1.xpose.msra.mxu0 0.0
    %6910 = vmatprep.subr.mxu0 0.0
    %6911 = vmatpush1.xpose.msra.mxu0 0.0
    %6912 = vmatprep.subr.mxu0 0.0
    %6913 = vmatpush1.xpose.msra.mxu0 0.0
    %6914 = vmatprep.subr.mxu0 0.0
    %6915 = vmatpush1.xpose.msra.mxu0 0.0
    %6916 = vmatprep.subr.mxu0 0.0
    %6917 = vmatpush1.xpose.msra.mxu0 0.0
    %6918 = vmatprep.subr.mxu0 0.0
    %6919 = vmatpush1.xpose.msra.mxu0 0.0
    %6920 = vmatprep.subr.mxu0 0.0
    %6921 = vmatpush1.xpose.msra.mxu0 0.0
    %6922 = vmatprep.subr.mxu0 0.0
    %6923 = vmatpush1.xpose.msra.mxu0 0.0
    %6924 = vmatprep.subr.mxu0 0.0
    %6925 = vmatpush1.xpose.msra.mxu0 0.0
    %6926 = vmatprep.subr.mxu0 0.0
    %6927 = vmatpush1.xpose.msra.mxu0 0.0
    %6928 = vmatprep.subr.mxu0 0.0
    %6929 = vmatpush1.xpose.msra.mxu0 0.0
    %6930 = vmatprep.mubr.f32.mxu0 0.0
    %6931 = vmatmul.mubr.f32.gmra.mrb[0].mxu0 %v6860
    %v6932 = vpop.f32.mrb[0].mxu0
    %v6933 = vadd.f32 %v186, %v6932
    %v6934 = vpop.f32.mrb[0].mxu0
    %6935 = vdwg.mxu0
    %v6936 = vsel %vm645, %v6933, -inf
    %6937 = vmax.xlane.f32.xlu0 %v6936
    %v6938 = vpop.xlane.xlu0 %6937
    %v6939 = vsub.f32 %v6933, %v6938
    %v6940 = vmul.f32 %v6939, 1.442695
    %v6941 = vpow.pop %v6940
    %v6942 = vsel %vm645, %v6941, 0.0
    %6943 = vadd.xlane.f32.xlu0 %v6942
    %v6944 = vpop.xlane.xlu0 %6943
    %v6945 = vrcp.pop %v6944
    %v6946 = vmul.f32 %v6941, %v6945
    %6947 = vrot.lane.b32.xlu0 %v6505, 80
    %v6948 = vpop.permute.xlu0 %6947
    %6949 = vrot.lane.b32.xlu0 %v6510, 80
    %v6950 = vpop.permute.xlu0 %6949
    %v6954 = vsel %vm645, %v6946, 0
    %6956 = vmatprep.subr.mxu0 0.0
    %6957 = vmatpush1.msra.mxu0 %v6948
    %6958 = vmatprep.subr.mxu0 0.0
    %6959 = vmatpush1.msra.mxu0 %v6950
    %6960 = vmatprep.subr.mxu0 0.0
    %6961 = vmatpush1.msra.mxu0 0.0
    %6962 = vmatprep.subr.mxu0 0.0
    %6963 = vmatpush1.msra.mxu0 0.0
    %6964 = vmatprep.subr.mxu0 0.0
    %6965 = vmatpush1.msra.mxu0 0.0
    %6966 = vmatprep.subr.mxu0 0.0
    %6967 = vmatpush1.msra.mxu0 0.0
    %6968 = vmatprep.subr.mxu0 0.0
    %6969 = vmatpush1.msra.mxu0 0.0
    %6970 = vmatprep.subr.mxu0 0.0
    %6971 = vmatpush1.msra.mxu0 0.0
    %6972 = vmatprep.subr.mxu0 0.0
    %6973 = vmatpush1.msra.mxu0 0.0
    %6974 = vmatprep.subr.mxu0 0.0
    %6975 = vmatpush1.msra.mxu0 0.0
    %6976 = vmatprep.subr.mxu0 0.0
    %6977 = vmatpush1.msra.mxu0 0.0
    %6978 = vmatprep.subr.mxu0 0.0
    %6979 = vmatpush1.msra.mxu0 0.0
    %6980 = vmatprep.subr.mxu0 0.0
    %6981 = vmatpush1.msra.mxu0 0.0
    %6982 = vmatprep.subr.mxu0 0.0
    %6983 = vmatpush1.msra.mxu0 0.0
    %6984 = vmatprep.subr.mxu0 0.0
    %6985 = vmatpush1.msra.mxu0 0.0
    %6986 = vmatprep.subr.mxu0 0.0
    %6987 = vmatpush1.msra.mxu0 0.0
    %6988 = vmatprep.subr.mxu0 0.0
    %6989 = vmatpush1.msra.mxu0 0.0
    %6990 = vmatprep.subr.mxu0 0.0
    %6991 = vmatpush1.msra.mxu0 0.0
    %6992 = vmatprep.subr.mxu0 0.0
    %6993 = vmatpush1.msra.mxu0 0.0
    %6994 = vmatprep.subr.mxu0 0.0
    %6995 = vmatpush1.msra.mxu0 0.0
    %6996 = vmatprep.subr.mxu0 0.0
    %6997 = vmatpush1.msra.mxu0 0.0
    %6998 = vmatprep.subr.mxu0 0.0
    %6999 = vmatpush1.msra.mxu0 0.0
    %7000 = vmatprep.subr.mxu0 0.0
    %7001 = vmatpush1.msra.mxu0 0.0
    %7002 = vmatprep.subr.mxu0 0.0
    %7003 = vmatpush1.msra.mxu0 0.0
    %7004 = vmatprep.subr.mxu0 0.0
    %7005 = vmatpush1.msra.mxu0 0.0
    %7006 = vmatprep.subr.mxu0 0.0
    %7007 = vmatpush1.msra.mxu0 0.0
    %7008 = vmatprep.subr.mxu0 0.0
    %7009 = vmatpush1.msra.mxu0 0.0
    %7010 = vmatprep.subr.mxu0 0.0
    %7011 = vmatpush1.msra.mxu0 0.0
    %7012 = vmatprep.subr.mxu0 0.0
    %7013 = vmatpush1.msra.mxu0 0.0
    %7014 = vmatprep.subr.mxu0 0.0
    %7015 = vmatpush1.msra.mxu0 0.0
    %7016 = vmatprep.subr.mxu0 0.0
    %7017 = vmatpush1.msra.mxu0 0.0
    %7018 = vmatprep.subr.mxu0 0.0
    %7019 = vmatpush1.msra.mxu0 0.0
    %7020 = vmatprep.mubr.f32.mxu0 0.0
    %7021 = vmatmul.mubr.f32.gmra.mrb[0].mxu0 %v6954
    %v7022 = vpop.f32.mrb[0].mxu0
    %v7023 = vadd.f32 0.0, %v7022
    %v7024 = vpop.f32.mrb[0].mxu0
    %7025 = vdwg.mxu0
    %7026 = vrot.lane.b32.xlu0 %v6424, 104
    %v7027 = vpop.permute.xlu0 %7026
    %7028 = vrot.lane.b32.xlu0 %v6505, 104
    %v7029 = vpop.permute.xlu0 %7028
    %7030 = vrot.lane.b32.xlu0 %v6510, 104
    %v7031 = vpop.permute.xlu0 %7030
    %v7032 = vsel %vm557, %v7027, 0
    %v7034 = vsel %vm557, %v7029, 0
    %v7036 = vsel %vm557, %v7031, 0
    %7038 = vmatprep.subr.mxu0 0.0
    %7039 = vmatpush1.xpose.msra.mxu0 %v7034
    %7040 = vmatprep.subr.mxu0 0.0
    %7041 = vmatpush1.xpose.msra.mxu0 %v7036
    %7042 = vmatprep.subr.mxu0 0.0
    %7043 = vmatpush1.xpose.msra.mxu0 0.0
    %7044 = vmatprep.subr.mxu0 0.0
    %7045 = vmatpush1.xpose.msra.mxu0 0.0
    %7046 = vmatprep.subr.mxu0 0.0
    %7047 = vmatpush1.xpose.msra.mxu0 0.0
    %7048 = vmatprep.subr.mxu0 0.0
    %7049 = vmatpush1.xpose.msra.mxu0 0.0
    %7050 = vmatprep.subr.mxu0 0.0
    %7051 = vmatpush1.xpose.msra.mxu0 0.0
    %7052 = vmatprep.subr.mxu0 0.0
    %7053 = vmatpush1.xpose.msra.mxu0 0.0
    %7054 = vmatprep.subr.mxu0 0.0
    %7055 = vmatpush1.xpose.msra.mxu0 0.0
    %7056 = vmatprep.subr.mxu0 0.0
    %7057 = vmatpush1.xpose.msra.mxu0 0.0
    %7058 = vmatprep.subr.mxu0 0.0
    %7059 = vmatpush1.xpose.msra.mxu0 0.0
    %7060 = vmatprep.subr.mxu0 0.0
    %7061 = vmatpush1.xpose.msra.mxu0 0.0
    %7062 = vmatprep.subr.mxu0 0.0
    %7063 = vmatpush1.xpose.msra.mxu0 0.0
    %7064 = vmatprep.subr.mxu0 0.0
    %7065 = vmatpush1.xpose.msra.mxu0 0.0
    %7066 = vmatprep.subr.mxu0 0.0
    %7067 = vmatpush1.xpose.msra.mxu0 0.0
    %7068 = vmatprep.subr.mxu0 0.0
    %7069 = vmatpush1.xpose.msra.mxu0 0.0
    %7070 = vmatprep.subr.mxu0 0.0
    %7071 = vmatpush1.xpose.msra.mxu0 0.0
    %7072 = vmatprep.subr.mxu0 0.0
    %7073 = vmatpush1.xpose.msra.mxu0 0.0
    %7074 = vmatprep.subr.mxu0 0.0
    %7075 = vmatpush1.xpose.msra.mxu0 0.0
    %7076 = vmatprep.subr.mxu0 0.0
    %7077 = vmatpush1.xpose.msra.mxu0 0.0
    %7078 = vmatprep.subr.mxu0 0.0
    %7079 = vmatpush1.xpose.msra.mxu0 0.0
    %7080 = vmatprep.subr.mxu0 0.0
    %7081 = vmatpush1.xpose.msra.mxu0 0.0
    %7082 = vmatprep.subr.mxu0 0.0
    %7083 = vmatpush1.xpose.msra.mxu0 0.0
    %7084 = vmatprep.subr.mxu0 0.0
    %7085 = vmatpush1.xpose.msra.mxu0 0.0
    %7086 = vmatprep.subr.mxu0 0.0
    %7087 = vmatpush1.xpose.msra.mxu0 0.0
    %7088 = vmatprep.subr.mxu0 0.0
    %7089 = vmatpush1.xpose.msra.mxu0 0.0
    %7090 = vmatprep.subr.mxu0 0.0
    %7091 = vmatpush1.xpose.msra.mxu0 0.0
    %7092 = vmatprep.subr.mxu0 0.0
    %7093 = vmatpush1.xpose.msra.mxu0 0.0
    %7094 = vmatprep.subr.mxu0 0.0
    %7095 = vmatpush1.xpose.msra.mxu0 0.0
    %7096 = vmatprep.subr.mxu0 0.0
    %7097 = vmatpush1.xpose.msra.mxu0 0.0
    %7098 = vmatprep.subr.mxu0 0.0
    %7099 = vmatpush1.xpose.msra.mxu0 0.0
    %7100 = vmatprep.subr.mxu0 0.0
    %7101 = vmatpush1.xpose.msra.mxu0 0.0
    %7102 = vmatprep.mubr.f32.mxu0 0.0
    %7103 = vmatmul.mubr.f32.gmra.mrb[0].mxu0 %v7032
    %v7104 = vpop.f32.mrb[0].mxu0
    %v7105 = vadd.f32 %v186, %v7104
    %v7106 = vpop.f32.mrb[0].mxu0
    %7107 = vdwg.mxu0
    %v7108 = vsel %vm645, %v7105, -inf
    %7109 = vmax.xlane.f32.xlu0 %v7108
    %v7110 = vpop.xlane.xlu0 %7109
    %v7111 = vsub.f32 %v7105, %v7110
    %v7112 = vmul.f32 %v7111, 1.442695
    %v7113 = vpow.pop %v7112
    %v7114 = vsel %vm645, %v7113, 0.0
    %7115 = vadd.xlane.f32.xlu0 %v7114
    %v7116 = vpop.xlane.xlu0 %7115
    %v7117 = vrcp.pop %v7116
    %v7118 = vmul.f32 %v7113, %v7117
    %7119 = vrot.lane.b32.xlu0 %v6505, 72
    %v7120 = vpop.permute.xlu0 %7119
    %7121 = vrot.lane.b32.xlu0 %v6510, 72
    %v7122 = vpop.permute.xlu0 %7121
    %v7126 = vsel %vm645, %v7118, 0
    %7128 = vmatprep.subr.mxu0 0.0
    %7129 = vmatpush1.msra.mxu0 %v7120
    %7130 = vmatprep.subr.mxu0 0.0
    %7131 = vmatpush1.msra.mxu0 %v7122
    %7132 = vmatprep.subr.mxu0 0.0
    %7133 = vmatpush1.msra.mxu0 0.0
    %7134 = vmatprep.subr.mxu0 0.0
    %7135 = vmatpush1.msra.mxu0 0.0
    %7136 = vmatprep.subr.mxu0 0.0
    %7137 = vmatpush1.msra.mxu0 0.0
    %7138 = vmatprep.subr.mxu0 0.0
    %7139 = vmatpush1.msra.mxu0 0.0
    %7140 = vmatprep.subr.mxu0 0.0
    %7141 = vmatpush1.msra.mxu0 0.0
    %7142 = vmatprep.subr.mxu0 0.0
    %7143 = vmatpush1.msra.mxu0 0.0
    %7144 = vmatprep.subr.mxu0 0.0
    %7145 = vmatpush1.msra.mxu0 0.0
    %7146 = vmatprep.subr.mxu0 0.0
    %7147 = vmatpush1.msra.mxu0 0.0
    %7148 = vmatprep.subr.mxu0 0.0
    %7149 = vmatpush1.msra.mxu0 0.0
    %7150 = vmatprep.subr.mxu0 0.0
    %7151 = vmatpush1.msra.mxu0 0.0
    %7152 = vmatprep.subr.mxu0 0.0
    %7153 = vmatpush1.msra.mxu0 0.0
    %7154 = vmatprep.subr.mxu0 0.0
    %7155 = vmatpush1.msra.mxu0 0.0
    %7156 = vmatprep.subr.mxu0 0.0
    %7157 = vmatpush1.msra.mxu0 0.0
    %7158 = vmatprep.subr.mxu0 0.0
    %7159 = vmatpush1.msra.mxu0 0.0
    %7160 = vmatprep.subr.mxu0 0.0
    %7161 = vmatpush1.msra.mxu0 0.0
    %7162 = vmatprep.subr.mxu0 0.0
    %7163 = vmatpush1.msra.mxu0 0.0
    %7164 = vmatprep.subr.mxu0 0.0
    %7165 = vmatpush1.msra.mxu0 0.0
    %7166 = vmatprep.subr.mxu0 0.0
    %7167 = vmatpush1.msra.mxu0 0.0
    %7168 = vmatprep.subr.mxu0 0.0
    %7169 = vmatpush1.msra.mxu0 0.0
    %7170 = vmatprep.subr.mxu0 0.0
    %7171 = vmatpush1.msra.mxu0 0.0
    %7172 = vmatprep.subr.mxu0 0.0
    %7173 = vmatpush1.msra.mxu0 0.0
    %7174 = vmatprep.subr.mxu0 0.0
    %7175 = vmatpush1.msra.mxu0 0.0
    %7176 = vmatprep.subr.mxu0 0.0
    %7177 = vmatpush1.msra.mxu0 0.0
    %7178 = vmatprep.subr.mxu0 0.0
    %7179 = vmatpush1.msra.mxu0 0.0
    %7180 = vmatprep.subr.mxu0 0.0
    %7181 = vmatpush1.msra.mxu0 0.0
    %7182 = vmatprep.subr.mxu0 0.0
    %7183 = vmatpush1.msra.mxu0 0.0
    %7184 = vmatprep.subr.mxu0 0.0
    %7185 = vmatpush1.msra.mxu0 0.0
    %7186 = vmatprep.subr.mxu0 0.0
    %7187 = vmatpush1.msra.mxu0 0.0
    %7188 = vmatprep.subr.mxu0 0.0
    %7189 = vmatpush1.msra.mxu0 0.0
    %7190 = vmatprep.subr.mxu0 0.0
    %7191 = vmatpush1.msra.mxu0 0.0
    %7192 = vmatprep.mubr.f32.mxu0 0.0
    %7193 = vmatmul.mubr.f32.gmra.mrb[0].mxu0 %v7126
    %v7194 = vpop.f32.mrb[0].mxu0
    %v7195 = vadd.f32 0.0, %v7194
    %v7196 = vpop.f32.mrb[0].mxu0
    %7197 = vdwg.mxu0
    %7199 = vrot.lane.b32.xlu0 %v6851, 8
    %v7200 = vpop.permute.xlu0 %7199
    %7203 = vrot.lane.b32.xlu0 %v7023, 16
    %v7204 = vpop.permute.xlu0 %7203
    %7207 = vrot.lane.b32.xlu0 %v7195, 24
    %v7208 = vpop.permute.xlu0 %7207
    %v7210 = vsel %vm557, %v6679, %v7200
    %v7211 = vsel %vm645, %v7210, %v7204
    %v7212 = vsel %vm1383, %v7211, %v7208
    %s7213 = scalar_lea.vmem %s11, 160
    %v7214 = vld [vmem:[%s7213] sm:$0xff]
    %v7215 = vld [vmem:[%s7213 + $0x8] sm:$0xff]
    %v7216 = vld [vmem:[%s7213 + $0x10] sm:$0xff]
    %v7217 = vld [vmem:[%s7213 + $0x18] sm:$0xff]
    %s7218 = scalar_lea.vmem %s15, 7
    %v7219 = vld [vmem:[%s7218] sm:$0x1]
    %v7221 = vlaneseq
    %v7222 = vshrl.u32 %v7221, 7
    %v7223 = vsub.s32 0, %v7222
    %v7224 = vrot.slane %v7219, %v7223
    %v7227 = vsel %vm387, %v7212, 0
    %7229 = vmatprep.subr.mxu0 0.0
    %7230 = vmatpush1.msra.mxu0 %v7214
    %7231 = vmatprep.subr.mxu0 0.0
    %7232 = vmatpush1.msra.mxu0 %v7215
    %7233 = vmatprep.subr.mxu0 0.0
    %7234 = vmatpush1.msra.mxu0 %v7216
    %7235 = vmatprep.subr.mxu0 0.0
    %7236 = vmatpush1.msra.mxu0 %v7217
    %7237 = vmatprep.subr.mxu0 0.0
    %7238 = vmatpush1.msra.mxu0 0.0
    %7239 = vmatprep.subr.mxu0 0.0
    %7240 = vmatpush1.msra.mxu0 0.0
    %7241 = vmatprep.subr.mxu0 0.0
    %7242 = vmatpush1.msra.mxu0 0.0
    %7243 = vmatprep.subr.mxu0 0.0
    %7244 = vmatpush1.msra.mxu0 0.0
    %7245 = vmatprep.subr.mxu0 0.0
    %7246 = vmatpush1.msra.mxu0 0.0
    %7247 = vmatprep.subr.mxu0 0.0
    %7248 = vmatpush1.msra.mxu0 0.0
    %7249 = vmatprep.subr.mxu0 0.0
    %7250 = vmatpush1.msra.mxu0 0.0
    %7251 = vmatprep.subr.mxu0 0.0
    %7252 = vmatpush1.msra.mxu0 0.0
    %7253 = vmatprep.subr.mxu0 0.0
    %7254 = vmatpush1.msra.mxu0 0.0
    %7255 = vmatprep.subr.mxu0 0.0
    %7256 = vmatpush1.msra.mxu0 0.0
    %7257 = vmatprep.subr.mxu0 0.0
    %7258 = vmatpush1.msra.mxu0 0.0
    %7259 = vmatprep.subr.mxu0 0.0
    %7260 = vmatpush1.msra.mxu0 0.0
    %7261 = vmatprep.subr.mxu0 0.0
    %7262 = vmatpush1.msra.mxu0 0.0
    %7263 = vmatprep.subr.mxu0 0.0
    %7264 = vmatpush1.msra.mxu0 0.0
    %7265 = vmatprep.subr.mxu0 0.0
    %7266 = vmatpush1.msra.mxu0 0.0
    %7267 = vmatprep.subr.mxu0 0.0
    %7268 = vmatpush1.msra.mxu0 0.0
    %7269 = vmatprep.subr.mxu0 0.0
    %7270 = vmatpush1.msra.mxu0 0.0
    %7271 = vmatprep.subr.mxu0 0.0
    %7272 = vmatpush1.msra.mxu0 0.0
    %7273 = vmatprep.subr.mxu0 0.0
    %7274 = vmatpush1.msra.mxu0 0.0
    %7275 = vmatprep.subr.mxu0 0.0
    %7276 = vmatpush1.msra.mxu0 0.0
    %7277 = vmatprep.subr.mxu0 0.0
    %7278 = vmatpush1.msra.mxu0 0.0
    %7279 = vmatprep.subr.mxu0 0.0
    %7280 = vmatpush1.msra.mxu0 0.0
    %7281 = vmatprep.subr.mxu0 0.0
    %7282 = vmatpush1.msra.mxu0 0.0
    %7283 = vmatprep.subr.mxu0 0.0
    %7284 = vmatpush1.msra.mxu0 0.0
    %7285 = vmatprep.subr.mxu0 0.0
    %7286 = vmatpush1.msra.mxu0 0.0
    %7287 = vmatprep.subr.mxu0 0.0
    %7288 = vmatpush1.msra.mxu0 0.0
    %7289 = vmatprep.subr.mxu0 0.0
    %7290 = vmatpush1.msra.mxu0 0.0
    %7291 = vmatprep.subr.mxu0 0.0
    %7292 = vmatpush1.msra.mxu0 0.0
    %7293 = vmatprep.mubr.f32.mxu0 0.0
    %7294 = vmatmul.mubr.f32.gmra.mrb[0].mxu0 %v7227
    %v7295 = vpop.f32.mrb[0].mxu0
    %v7296 = vadd.f32 %v7224, %v7295
    %v7297 = vpop.f32.mrb[0].mxu0
    %7298 = vdwg.mxu0
    %v7299 = vadd.f32 %v6337, %v7296
    %v7300 = vsel %vm387, %v7299, 0.0
    %7301 = vadd.xlane.f32.xlu0 %v7300
    %v7302 = vpop.xlane.xlu0 %7301
    %v7303 = vmul.f32 %v7302, %v1487
    %v7304 = vsub.f32 %v7299, %v7303
    %v7305 = vmul.f32 %v7304, %v7304
    %v7306 = vsel %vm387, %v7305, 0.0
    %7307 = vadd.xlane.f32.xlu0 %v7306
    %v7308 = vpop.xlane.xlu0 %7307
    %v7309 = vmul.f32 %v7308, %v1487
    %v7310 = vadd.f32 %v7309, 1e-05
    %v7311 = vrsqrt.pop %v7310
    %v7312 = vmul.f32 %v7304, %v7311
    %s7313 = scalar_lea.vmem %s15, 24
    %v7314 = vld [vmem:[%s7313] sm:$0x1]
    %v7316 = vlaneseq
    %v7317 = vshrl.u32 %v7316, 7
    %v7318 = vsub.s32 0, %v7317
    %v7319 = vrot.slane %v7314, %v7318
    %v7321 = vmul.f32 %v7312, %v7319
    %s7322 = scalar_lea.vmem %s15, 25
    %v7323 = vld [vmem:[%s7322] sm:$0x1]
    %v7325 = vlaneseq
    %v7326 = vshrl.u32 %v7325, 7
    %v7327 = vsub.s32 0, %v7326
    %v7328 = vrot.slane %v7323, %v7327
    %v7330 = vadd.f32 %v7321, %v7328
    %s7331 = scalar_lea.vmem [#allocation11], 96
    %v7332 = vld [vmem:[%s7331] sm:$0xff]
    %v7333 = vld [vmem:[%s7331 + $0x8] sm:$0xff]
    %v7334 = vld [vmem:[%s7331 + $0x10] sm:$0xff]
    %v7335 = vld [vmem:[%s7331 + $0x18] sm:$0xff]
    %s7336 = scalar_lea.vmem [#allocation13], 3
    %v7337 = vld [vmem:[%s7336] sm:$0x1]
    %v7339 = vlaneseq
    %v7340 = vshrl.u32 %v7339, 7
    %v7341 = vsub.s32 0, %v7340
    %v7342 = vrot.slane %v7337, %v7341
    %v7345 = vsel %vm387, %v7330, 0
    %7347 = vmatprep.subr.mxu0 0.0
    %7348 = vmatpush1.msra.mxu0 %v7332
    %7349 = vmatprep.subr.mxu0 0.0
    %7350 = vmatpush1.msra.mxu0 %v7333
    %7351 = vmatprep.subr.mxu0 0.0
    %7352 = vmatpush1.msra.mxu0 %v7334
    %7353 = vmatprep.subr.mxu0 0.0
    %7354 = vmatpush1.msra.mxu0 %v7335
    %7355 = vmatprep.subr.mxu0 0.0
    %7356 = vmatpush1.msra.mxu0 0.0
    %7357 = vmatprep.subr.mxu0 0.0
    %7358 = vmatpush1.msra.mxu0 0.0
    %7359 = vmatprep.subr.mxu0 0.0
    %7360 = vmatpush1.msra.mxu0 0.0
    %7361 = vmatprep.subr.mxu0 0.0
    %7362 = vmatpush1.msra.mxu0 0.0
    %7363 = vmatprep.subr.mxu0 0.0
    %7364 = vmatpush1.msra.mxu0 0.0
    %7365 = vmatprep.subr.mxu0 0.0
    %7366 = vmatpush1.msra.mxu0 0.0
    %7367 = vmatprep.subr.mxu0 0.0
    %7368 = vmatpush1.msra.mxu0 0.0
    %7369 = vmatprep.subr.mxu0 0.0
    %7370 = vmatpush1.msra.mxu0 0.0
    %7371 = vmatprep.subr.mxu0 0.0
    %7372 = vmatpush1.msra.mxu0 0.0
    %7373 = vmatprep.subr.mxu0 0.0
    %7374 = vmatpush1.msra.mxu0 0.0
    %7375 = vmatprep.subr.mxu0 0.0
    %7376 = vmatpush1.msra.mxu0 0.0
    %7377 = vmatprep.subr.mxu0 0.0
    %7378 = vmatpush1.msra.mxu0 0.0
    %7379 = vmatprep.subr.mxu0 0.0
    %7380 = vmatpush1.msra.mxu0 0.0
    %7381 = vmatprep.subr.mxu0 0.0
    %7382 = vmatpush1.msra.mxu0 0.0
    %7383 = vmatprep.subr.mxu0 0.0
    %7384 = vmatpush1.msra.mxu0 0.0
    %7385 = vmatprep.subr.mxu0 0.0
    %7386 = vmatpush1.msra.mxu0 0.0
    %7387 = vmatprep.subr.mxu0 0.0
    %7388 = vmatpush1.msra.mxu0 0.0
    %7389 = vmatprep.subr.mxu0 0.0
    %7390 = vmatpush1.msra.mxu0 0.0
    %7391 = vmatprep.subr.mxu0 0.0
    %7392 = vmatpush1.msra.mxu0 0.0
    %7393 = vmatprep.subr.mxu0 0.0
    %7394 = vmatpush1.msra.mxu0 0.0
    %7395 = vmatprep.subr.mxu0 0.0
    %7396 = vmatpush1.msra.mxu0 0.0
    %7397 = vmatprep.subr.mxu0 0.0
    %7398 = vmatpush1.msra.mxu0 0.0
    %7399 = vmatprep.subr.mxu0 0.0
    %7400 = vmatpush1.msra.mxu0 0.0
    %7401 = vmatprep.subr.mxu0 0.0
    %7402 = vmatpush1.msra.mxu0 0.0
    %7403 = vmatprep.subr.mxu0 0.0
    %7404 = vmatpush1.msra.mxu0 0.0
    %7405 = vmatprep.subr.mxu0 0.0
    %7406 = vmatpush1.msra.mxu0 0.0
    %7407 = vmatprep.subr.mxu0 0.0
    %7408 = vmatpush1.msra.mxu0 0.0
    %7409 = vmatprep.subr.mxu0 0.0
    %7410 = vmatpush1.msra.mxu0 0.0
    %7411 = vmatprep.mubr.f32.mxu0 0.0
    %7412 = vmatmul.mubr.f32.gmra.mrb[0].mxu0 %v7345
    %v7413 = vpop.f32.mrb[0].mxu0
    %v7414 = vadd.f32 %v7342, %v7413
    %v7415 = vpop.f32.mrb[0].mxu0
    %7416 = vdwg.mxu0
    %v7417 = vmax.f32 %v7414, 0.0
    %s7418 = scalar_lea.vmem %s14, 192
    %v7419 = vld [vmem:[%s7418] sm:$0xff]
    %v7420 = vld [vmem:[%s7418 + $0x8] sm:$0xff]
    %v7421 = vld [vmem:[%s7418 + $0x10] sm:$0xff]
    %v7422 = vld [vmem:[%s7418 + $0x18] sm:$0xff]
    %v7423 = vld [vmem:[%s7418 + $0x20] sm:$0xff]
    %v7424 = vld [vmem:[%s7418 + $0x28] sm:$0xff]
    %v7425 = vld [vmem:[%s7418 + $0x30] sm:$0xff]
    %v7426 = vld [vmem:[%s7418 + $0x38] sm:$0xff]
    %s7427 = scalar_lea.vmem %s15, 31
    %v7428 = vld [vmem:[%s7427] sm:$0x1]
    %v7430 = vlaneseq
    %v7431 = vshrl.u32 %v7430, 7
    %v7432 = vsub.s32 0, %v7431
    %v7433 = vrot.slane %v7428, %v7432
    %v7436 = vsel %vm1638, %v7417, 0
    %7438 = vmatprep.subr.mxu0 0.0
    %7439 = vmatpush1.msra.mxu0 %v7419
    %7440 = vmatprep.subr.mxu0 0.0
    %7441 = vmatpush1.msra.mxu0 %v7420
    %7442 = vmatprep.subr.mxu0 0.0
    %7443 = vmatpush1.msra.mxu0 %v7421
    %7444 = vmatprep.subr.mxu0 0.0
    %7445 = vmatpush1.msra.mxu0 %v7422
    %7446 = vmatprep.subr.mxu0 0.0
    %7447 = vmatpush1.msra.mxu0 %v7423
    %7448 = vmatprep.subr.mxu0 0.0
    %7449 = vmatpush1.msra.mxu0 %v7424
    %7450 = vmatprep.subr.mxu0 0.0
    %7451 = vmatpush1.msra.mxu0 %v7425
    %7452 = vmatprep.subr.mxu0 0.0
    %7453 = vmatpush1.msra.mxu0 %v7426
    %7454 = vmatprep.subr.mxu0 0.0
    %7455 = vmatpush1.msra.mxu0 0.0
    %7456 = vmatprep.subr.mxu0 0.0
    %7457 = vmatpush1.msra.mxu0 0.0
    %7458 = vmatprep.subr.mxu0 0.0
    %7459 = vmatpush1.msra.mxu0 0.0
    %7460 = vmatprep.subr.mxu0 0.0
    %7461 = vmatpush1.msra.mxu0 0.0
    %7462 = vmatprep.subr.mxu0 0.0
    %7463 = vmatpush1.msra.mxu0 0.0
    %7464 = vmatprep.subr.mxu0 0.0
    %7465 = vmatpush1.msra.mxu0 0.0
    %7466 = vmatprep.subr.mxu0 0.0
    %7467 = vmatpush1.msra.mxu0 0.0
    %7468 = vmatprep.subr.mxu0 0.0
    %7469 = vmatpush1.msra.mxu0 0.0
    %7470 = vmatprep.subr.mxu0 0.0
    %7471 = vmatpush1.msra.mxu0 0.0
    %7472 = vmatprep.subr.mxu0 0.0
    %7473 = vmatpush1.msra.mxu0 0.0
    %7474 = vmatprep.subr.mxu0 0.0
    %7475 = vmatpush1.msra.mxu0 0.0
    %7476 = vmatprep.subr.mxu0 0.0
    %7477 = vmatpush1.msra.mxu0 0.0
    %7478 = vmatprep.subr.mxu0 0.0
    %7479 = vmatpush1.msra.mxu0 0.0
    %7480 = vmatprep.subr.mxu0 0.0
    %7481 = vmatpush1.msra.mxu0 0.0
    %7482 = vmatprep.subr.mxu0 0.0
    %7483 = vmatpush1.msra.mxu0 0.0
    %7484 = vmatprep.subr.mxu0 0.0
    %7485 = vmatpush1.msra.mxu0 0.0
    %7486 = vmatprep.subr.mxu0 0.0
    %7487 = vmatpush1.msra.mxu0 0.0
    %7488 = vmatprep.subr.mxu0 0.0
    %7489 = vmatpush1.msra.mxu0 0.0
    %7490 = vmatprep.subr.mxu0 0.0
    %7491 = vmatpush1.msra.mxu0 0.0
    %7492 = vmatprep.subr.mxu0 0.0
    %7493 = vmatpush1.msra.mxu0 0.0
    %7494 = vmatprep.subr.mxu0 0.0
    %7495 = vmatpush1.msra.mxu0 0.0
    %7496 = vmatprep.subr.mxu0 0.0
    %7497 = vmatpush1.msra.mxu0 0.0
    %7498 = vmatprep.subr.mxu0 0.0
    %7499 = vmatpush1.msra.mxu0 0.0
    %7500 = vmatprep.subr.mxu0 0.0
    %7501 = vmatpush1.msra.mxu0 0.0
    %7502 = vmatprep.mubr.f32.mxu0 0.0
    %7503 = vmatmul.mubr.f32.gmra.mrb[0].mxu0 %v7436
    %v7504 = vpop.f32.mrb[0].mxu0
    %v7505 = vadd.f32 %v7433, %v7504
    %v7506 = vpop.f32.mrb[0].mxu0
    %7507 = vdwg.mxu0
    %v7508 = vadd.f32 %v7330, %v7505
    %v7509 = vsel %vm387, %v7508, 0.0
    %7510 = vadd.xlane.f32.xlu0 %v7509
    %v7511 = vpop.xlane.xlu0 %7510
    %v7512 = vmul.f32 %v7511, %v1487
    %v7513 = vsub.f32 %v7508, %v7512
    %v7514 = vmul.f32 %v7513, %v7513
    %v7515 = vsel %vm387, %v7514, 0.0
    %7516 = vadd.xlane.f32.xlu0 %v7515
    %v7517 = vpop.xlane.xlu0 %7516
    %v7518 = vmul.f32 %v7517, %v1487
    %v7519 = vadd.f32 %v7518, 1e-05
    %v7520 = vrsqrt.pop %v7519
    %v7521 = vmul.f32 %v7513, %v7520
    %s7522 = scalar_lea.vmem %s15, 26
    %v7523 = vld [vmem:[%s7522] sm:$0x1]
    %v7525 = vlaneseq
    %v7526 = vshrl.u32 %v7525, 7
    %v7527 = vsub.s32 0, %v7526
    %v7528 = vrot.slane %v7523, %v7527
    %v7530 = vmul.f32 %v7521, %v7528
    %s7531 = scalar_lea.vmem %s15, 27
    %v7532 = vld [vmem:[%s7531] sm:$0x1]
    %v7534 = vlaneseq
    %v7535 = vshrl.u32 %v7534, 7
    %v7536 = vsub.s32 0, %v7535
    %v7537 = vrot.slane %v7532, %v7536
    %v7539 = vadd.f32 %v7530, %v7537
    %v7540 = vsel %vm387, %v7539, 0.0
    %7541 = vadd.xlane.f32.xlu0 %v7540
    %v7542 = vpop.xlane.xlu0 %7541
    %v7543 = vmul.f32 %v7542, %v1487
    %v7544 = vsub.f32 %v7539, %v7543
    %v7545 = vmul.f32 %v7544, %v7544
    %v7546 = vsel %vm387, %v7545, 0.0
    %7547 = vadd.xlane.f32.xlu0 %v7546
    %v7548 = vpop.xlane.xlu0 %7547
    %v7549 = vmul.f32 %v7548, %v1487
    %v7550 = vadd.f32 %v7549, 1e-05
    %v7551 = vrsqrt.pop %v7550
    %v7552 = vmul.f32 %v7544, %v7551
    %s7553 = scalar_lea.vmem %s15, 34
    %v7554 = vld [vmem:[%s7553] sm:$0x1]
    %v7556 = vlaneseq
    %v7557 = vshrl.u32 %v7556, 7
    %v7558 = vsub.s32 0, %v7557
    %v7559 = vrot.slane %v7554, %v7558
    %v7561 = vmul.f32 %v7552, %v7559
    %s7562 = scalar_lea.vmem %s15, 35
    %v7563 = vld [vmem:[%s7562] sm:$0x1]
    %v7565 = vlaneseq
    %v7566 = vshrl.u32 %v7565, 7
    %v7567 = vsub.s32 0, %v7566
    %v7568 = vrot.slane %v7563, %v7567
    %v7570 = vadd.f32 %v7561, %v7568
    %v7571 = vld [vmem:[#allocation14] sm:$0xff]
    %v7572 = vld [vmem:[#allocation14 + $0x8] sm:$0xff]
    %v7573 = vld [vmem:[#allocation14 + $0x10] sm:$0xff]
    %v7574 = vld [vmem:[#allocation14 + $0x18] sm:$0xff]
    %v7575 = vld [vmem:[#allocation16] sm:$0x1]
    %v7577 = vlaneseq
    %v7578 = vshrl.u32 %v7577, 7
    %v7579 = vsub.s32 0, %v7578
    %v7580 = vrot.slane %v7575, %v7579
    %v7583 = vsel %vm387, %v7570, 0
    %7585 = vmatprep.subr.mxu0 0.0
    %7586 = vmatpush1.msra.mxu0 %v7571
    %7587 = vmatprep.subr.mxu0 0.0
    %7588 = vmatpush1.msra.mxu0 %v7572
    %7589 = vmatprep.subr.mxu0 0.0
    %7590 = vmatpush1.msra.mxu0 %v7573
    %7591 = vmatprep.subr.mxu0 0.0
    %7592 = vmatpush1.msra.mxu0 %v7574
    %7593 = vmatprep.subr.mxu0 0.0
    %7594 = vmatpush1.msra.mxu0 0.0
    %7595 = vmatprep.subr.mxu0 0.0
    %7596 = vmatpush1.msra.mxu0 0.0
    %7597 = vmatprep.subr.mxu0 0.0
    %7598 = vmatpush1.msra.mxu0 0.0
    %7599 = vmatprep.subr.mxu0 0.0
    %7600 = vmatpush1.msra.mxu0 0.0
    %7601 = vmatprep.subr.mxu0 0.0
    %7602 = vmatpush1.msra.mxu0 0.0
    %7603 = vmatprep.subr.mxu0 0.0
    %7604 = vmatpush1.msra.mxu0 0.0
    %7605 = vmatprep.subr.mxu0 0.0
    %7606 = vmatpush1.msra.mxu0 0.0
    %7607 = vmatprep.subr.mxu0 0.0
    %7608 = vmatpush1.msra.mxu0 0.0
    %7609 = vmatprep.subr.mxu0 0.0
    %7610 = vmatpush1.msra.mxu0 0.0
    %7611 = vmatprep.subr.mxu0 0.0
    %7612 = vmatpush1.msra.mxu0 0.0
    %7613 = vmatprep.subr.mxu0 0.0
    %7614 = vmatpush1.msra.mxu0 0.0
    %7615 = vmatprep.subr.mxu0 0.0
    %7616 = vmatpush1.msra.mxu0 0.0
    %7617 = vmatprep.subr.mxu0 0.0
    %7618 = vmatpush1.msra.mxu0 0.0
    %7619 = vmatprep.subr.mxu0 0.0
    %7620 = vmatpush1.msra.mxu0 0.0
    %7621 = vmatprep.subr.mxu0 0.0
    %7622 = vmatpush1.msra.mxu0 0.0
    %7623 = vmatprep.subr.mxu0 0.0
    %7624 = vmatpush1.msra.mxu0 0.0
    %7625 = vmatprep.subr.mxu0 0.0
    %7626 = vmatpush1.msra.mxu0 0.0
    %7627 = vmatprep.subr.mxu0 0.0
    %7628 = vmatpush1.msra.mxu0 0.0
    %7629 = vmatprep.subr.mxu0 0.0
    %7630 = vmatpush1.msra.mxu0 0.0
    %7631 = vmatprep.subr.mxu0 0.0
    %7632 = vmatpush1.msra.mxu0 0.0
    %7633 = vmatprep.subr.mxu0 0.0
    %7634 = vmatpush1.msra.mxu0 0.0
    %7635 = vmatprep.subr.mxu0 0.0
    %7636 = vmatpush1.msra.mxu0 0.0
    %7637 = vmatprep.subr.mxu0 0.0
    %7638 = vmatpush1.msra.mxu0 0.0
    %7639 = vmatprep.subr.mxu0 0.0
    %7640 = vmatpush1.msra.mxu0 0.0
    %7641 = vmatprep.subr.mxu0 0.0
    %7642 = vmatpush1.msra.mxu0 0.0
    %7643 = vmatprep.subr.mxu0 0.0
    %7644 = vmatpush1.msra.mxu0 0.0
    %7645 = vmatprep.subr.mxu0 0.0
    %7646 = vmatpush1.msra.mxu0 0.0
    %7647 = vmatprep.subr.mxu0 0.0
    %7648 = vmatpush1.msra.mxu0 0.0
    %7649 = vmatprep.mubr.f32.mxu0 0.0
    %7650 = vmatmul.mubr.f32.gmra.mrb[0].mxu0 %v7583
    %v7651 = vpop.f32.mrb[0].mxu0
    %v7652 = vadd.f32 %v7580, %v7651
    %v7653 = vpop.f32.mrb[0].mxu0
    %7654 = vdwg.mxu0
    %v7655 = vmax.f32 %v7652, 0.0
    %v7656 = vld [vmem:[%s18] sm:$0xff]
    %v7657 = vld [vmem:[%s18 + $0x8] sm:$0xff]
    %v7658 = vld [vmem:[%s18 + $0x10] sm:$0xff]
    %v7659 = vld [vmem:[%s18 + $0x18] sm:$0xff]
    %v7660 = vld [vmem:[%s18 + $0x20] sm:$0xff]
    %v7661 = vld [vmem:[%s18 + $0x28] sm:$0xff]
    %v7662 = vld [vmem:[%s18 + $0x30] sm:$0xff]
    %v7663 = vld [vmem:[%s18 + $0x38] sm:$0xff]
    %v7664 = vld [vmem:[%s18 + $0x40] sm:$0xff]
    %v7665 = vld [vmem:[%s18 + $0x48] sm:$0xff]
    %v7666 = vld [vmem:[%s18 + $0x50] sm:$0xff]
    %v7667 = vld [vmem:[%s18 + $0x58] sm:$0xff]
    %v7668 = vld [vmem:[%s18 + $0x60] sm:$0xff]
    %v7669 = vld [vmem:[%s18 + $0x68] sm:$0xff]
    %v7670 = vld [vmem:[%s18 + $0x70] sm:$0xff]
    %v7671 = vld [vmem:[%s18 + $0x78] sm:$0xff]
    %v7672 = vld [vmem:[#allocation2] sm:$0x1]
    %v7674 = vlaneseq
    %v7675 = vshrl.u32 %v7674, 7
    %v7676 = vsub.s32 0, %v7675
    %v7677 = vrot.slane %v7672, %v7676
    %7679 = vmatprep.subr.mxu0 0.0
    %7680 = vmatpush1.msra.mxu0 %v7656
    %7681 = vmatprep.subr.mxu0 0.0
    %7682 = vmatpush1.msra.mxu0 %v7657
    %7683 = vmatprep.subr.mxu0 0.0
    %7684 = vmatpush1.msra.mxu0 %v7658
    %7685 = vmatprep.subr.mxu0 0.0
    %7686 = vmatpush1.msra.mxu0 %v7659
    %7687 = vmatprep.subr.mxu0 0.0
    %7688 = vmatpush1.msra.mxu0 %v7660
    %7689 = vmatprep.subr.mxu0 0.0
    %7690 = vmatpush1.msra.mxu0 %v7661
    %7691 = vmatprep.subr.mxu0 0.0
    %7692 = vmatpush1.msra.mxu0 %v7662
    %7693 = vmatprep.subr.mxu0 0.0
    %7694 = vmatpush1.msra.mxu0 %v7663
    %7695 = vmatprep.subr.mxu0 0.0
    %7696 = vmatpush1.msra.mxu0 %v7664
    %7697 = vmatprep.subr.mxu0 0.0
    %7698 = vmatpush1.msra.mxu0 %v7665
    %7699 = vmatprep.subr.mxu0 0.0
    %7700 = vmatpush1.msra.mxu0 %v7666
    %7701 = vmatprep.subr.mxu0 0.0
    %7702 = vmatpush1.msra.mxu0 %v7667
    %7703 = vmatprep.subr.mxu0 0.0
    %7704 = vmatpush1.msra.mxu0 %v7668
    %7705 = vmatprep.subr.mxu0 0.0
    %7706 = vmatpush1.msra.mxu0 %v7669
    %7707 = vmatprep.subr.mxu0 0.0
    %7708 = vmatpush1.msra.mxu0 %v7670
    %7709 = vmatprep.subr.mxu0 0.0
    %7710 = vmatpush1.msra.mxu0 %v7671
    %7711 = vmatprep.subr.mxu0 0.0
    %7712 = vmatpush1.msra.mxu0 0.0
    %7713 = vmatprep.subr.mxu0 0.0
    %7714 = vmatpush1.msra.mxu0 0.0
    %7715 = vmatprep.subr.mxu0 0.0
    %7716 = vmatpush1.msra.mxu0 0.0
    %7717 = vmatprep.subr.mxu0 0.0
    %7718 = vmatpush1.msra.mxu0 0.0
    %7719 = vmatprep.subr.mxu0 0.0
    %7720 = vmatpush1.msra.mxu0 0.0
    %7721 = vmatprep.subr.mxu0 0.0
    %7722 = vmatpush1.msra.mxu0 0.0
    %7723 = vmatprep.subr.mxu0 0.0
    %7724 = vmatpush1.msra.mxu0 0.0
    %7725 = vmatprep.subr.mxu0 0.0
    %7726 = vmatpush1.msra.mxu0 0.0
    %7727 = vmatprep.subr.mxu0 0.0
    %7728 = vmatpush1.msra.mxu0 0.0
    %7729 = vmatprep.subr.mxu0 0.0
    %7730 = vmatpush1.msra.mxu0 0.0
    %7731 = vmatprep.subr.mxu0 0.0
    %7732 = vmatpush1.msra.mxu0 0.0
    %7733 = vmatprep.subr.mxu0 0.0
    %7734 = vmatpush1.msra.mxu0 0.0
    %7735 = vmatprep.subr.mxu0 0.0
    %7736 = vmatpush1.msra.mxu0 0.0
    %7737 = vmatprep.subr.mxu0 0.0
    %7738 = vmatpush1.msra.mxu0 0.0
    %7739 = vmatprep.subr.mxu0 0.0
    %7740 = vmatpush1.msra.mxu0 0.0
    %7741 = vmatprep.subr.mxu0 0.0
    %7742 = vmatpush1.msra.mxu0 0.0
    %7743 = vmatprep.mubr.f32.mxu0 0.0
    %7744 = vmatmul.mubr.f32.gmra.mrb[0].mxu0 %v7655
    %v7745 = vpop.f32.mrb[0].mxu0
    %v7746 = vadd.f32 %v7677, %v7745
    %v7747 = vpop.f32.mrb[0].mxu0
    %7748 = vdwg.mxu0
    %vm7749 = vcmask 7168
    %7750 = vst.msk [vmem:[%s20] sm:$0xff] %vm7749, %v7746
    // Predicated region
    $region118: #{transformer_ts_forward.1} parent=1 // pred_check
      _
    $region119: #{transformer_ts_forward.1} parent=1 // pred_check_branch
      %7752 = sbr.rel (0) target = $region121
    $region120: #{transformer_ts_forward.1} parent=1 // pred_region
      _
    $region121: #{transformer_ts_forward.1} parent=1 // pred_fallthru
      _
    // Predicated region
    $region122: #{transformer_ts_forward.1} parent=1 // pred_check
      _
    $region123: #{transformer_ts_forward.1} parent=1 // pred_check_branch
      %7754 = sbr.rel (0) target = $region125
    $region124: #{transformer_ts_forward.1} parent=1 // pred_region
      _
    $region125: #{transformer_ts_forward.1} parent=1 // pred_fallthru
      _
    %7755 = vsyncpa [#allocation4], 1
    %7756 = vsyncpa [#allocation6], 1
    %7757 = vsyncpa [#allocation9], 1
    %7758 = vsyncpa [#allocation12], 1
    %7759 = vsyncpa [#allocation15], 1

</llo_original>
